<compile_context>
chip_gen: v6e
topology: v6e:2x2x1
jax: 0.10.0
libtpu: 0.0.40
codegen_flags: <defaults>
</compile_context>

<pallas_src>
import functools

import numpy as np
import jax
import jax.numpy as jnp
from jax import lax
from jax.experimental import pallas as pl
from jax.experimental.pallas import tpu as pltpu

_LANE = 128
_SUBLANE = 8
_GRU_UNROLL = 8                       # inner-recurrence unroll (review: 4-8)
_VMEM_LIMIT = 32 * 1024 * 1024        # safe on v5e/v6e (128 MiB) and v7x (64 MiB)
# MXU operand dtype.  Set to jnp.bfloat16 on v6e/v7x for 2x MXU throughput and
# half the VMEM footprint on the projected-gate tensors (accumulation stays
# f32 either way).  Default f32 to match the f32 reference in the self-check.
_MXU_DTYPE = jnp.float32


def _rup(n, m):
    return ((n + m - 1) // m) * m


def _mxu_dot(a, b):
    return jnp.dot(a.astype(_MXU_DTYPE), b.astype(_MXU_DTYPE),
                   preferred_element_type=jnp.float32)


# ----------------------------------------------------------------------------
# In-kernel helpers (traced inside the Pallas kernels)
# ----------------------------------------------------------------------------
def _attn_with_context(x, wa, ba, va):
    """AttentionWithContext on (L, Bp, D): s = sum_l softmax_l(v.tanh(Wx+b)) x_l.

    Logits via a VPU lane-reduce (no N=1 MXU matmul); softmax denominator via
    the EUP approximate reciprocal (free slot).
    """
    L, Bp, D = x.shape
    u = jnp.tanh(_mxu_dot(x.reshape(L * Bp, D), wa).reshape(L, Bp, D) + ba)
    logits = jnp.sum(u * va, axis=-1, keepdims=True)            # (L, Bp, 1)
    m = jnp.max(logits, axis=0, keepdims=True)
    e = jnp.exp(logits - m)
    a = e * pl.reciprocal(jnp.sum(e, axis=0, keepdims=True), approx=True)
    return jnp.sum(a * x, axis=0)                               # (Bp, D)


def _run_fused_bigru(gif_scr, gir_scr, htf_scr, htr_scr, whh, bhn, dm, h0):
    """Fused fwd+rev GRU recurrence over the sequence held in gi scratch.

    State layout (block-diagonal, lane padded):
      h_blk: (2Bp, 2Hp); rows [0:Bp]  = forward batch, values in cols [0:Hp],
                         rows [Bp:2Bp]= reverse batch, values in cols [Hp:2Hp].
    gif_scr[t] / gir_scr[t] hold the hoisted input projections (+ folded r/z
    recurrent biases) at ORIGINAL time index t; the reverse direction reads
    them back-to-front, so no flipped copies are materialized anywhere.
    PyTorch gate order (r, z, n); b_hh_n is applied inside the r-multiply.
    """
    L, Bp, threeHp = gif_scr.shape
    Hp = threeHp // 3

    def step(t, h_blk):
        rt = L - 1 - t
        gi_t = jnp.concatenate([gif_scr[t, :, :], gir_scr[rt, :, :]], axis=0)
        gh = _mxu_dot(h_blk, whh)                               # (2Bp, 3Hp)
        r = jax.nn.sigmoid(gi_t[:, :Hp] + gh[:, :Hp])
        z = jax.nn.sigmoid(gi_t[:, Hp:2 * Hp] + gh[:, Hp:2 * Hp])
        n = jnp.tanh(gi_t[:, 2 * Hp:] + r * (gh[:, 2 * Hp:] + bhn))
        hc = (1.0 - z) * n + z * (h_blk[:, :Hp] + h_blk[:, Hp:])   # compact (2Bp,Hp)
        htf_scr[t, :, :] = hc[:Bp, :]         # forward output at time t
        htr_scr[rt, :, :] = hc[Bp:, :]        # reverse output -> original index
        return jnp.concatenate([hc, hc], axis=1) * dm           # back to block-diag

    return lax.fori_loop(0, L, step, h0, unroll=min(_GRU_UNROLL, L))


# ----------------------------------------------------------------------------
# Pallas kernels (2 pallas_calls per forward pass)
# ----------------------------------------------------------------------------
def word_level_kernel(emb_ref, wif_ref, wir_ref, bif_ref, bir_ref, whh_ref,
                      bhn_ref, dm_ref, wa_ref, ba_ref, va_ref,
                      out_ref, h_scr, gif_scr, gir_scr, htf_scr, htr_scr):
    """One grid step = one sentence: input projection + fused bi-GRU + word attn.

    word_h_n is carried across sentences (grid steps) in h_scr.  The gi
    projection for the whole sentence is computed here (one MXU matmul per
    direction), so nothing gi-sized ever touches HBM.
    """
    L_sent, Bp, threeHp = gif_scr.shape
    Ep = emb_ref.shape[-1]

    @pl.when(pl.program_id(0) == 0)
    def _init():
        h_scr[...] = jnp.zeros_like(h_scr)

    emb = emb_ref[...].reshape(L_sent * Bp, Ep)
    gif_scr[...] = (_mxu_dot(emb, wif_ref[...]) + bif_ref[...]
                    ).reshape(L_sent, Bp, threeHp)
    gir_scr[...] = (_mxu_dot(emb, wir_ref[...]) + bir_ref[...]
                    ).reshape(L_sent, Bp, threeHp)

    h_fin = _run_fused_bigru(gif_scr, gir_scr, htf_scr, htr_scr,
                             whh_ref[...], bhn_ref[...], dm_ref[...],
                             h_scr[...])
    h_scr[...] = h_fin                         # word_h_n -> next sentence

    h_t = jnp.concatenate([htf_scr[...], htr_scr[...]], axis=-1)   # (L,Bp,2Hp)
    sent = _attn_with_context(h_t, wa_ref[...], ba_ref[...], va_ref[...])
    out_ref[...] = sent.reshape(out_ref.shape)


def sent_level_kernel(x_ref, xtra_ref, wif_ref, wir_ref, bif_ref, bir_ref,
                      whh_ref, bhn_ref, dm_ref, wa_ref, ba_ref, va_ref,
                      out_ref, gif_scr, gir_scr, htf_scr, htr_scr):
    """Sentence level: fused bi-GRU over the document + sentence attention.

    Emits the lane-dense padded attended document vector; the tiny
    num_class-wide final FC stays in XLA (avoids a 4-lane masked store).
    """
    L_doc, Bp, threeHp = gif_scr.shape
    Din = x_ref.shape[-1]
    Hp = threeHp // 3

    x2 = x_ref[...].reshape(L_doc * Bp, Din)
    gif_scr[...] = (_mxu_dot(x2, wif_ref[...]) + bif_ref[...]
                    ).reshape(L_doc, Bp, threeHp)
    gir_scr[...] = (_mxu_dot(x2, wir_ref[...]) + bir_ref[...]
                    ).reshape(L_doc, Bp, threeHp)

    h0 = jnp.zeros((2 * Bp, 2 * Hp), jnp.float32)
    _run_fused_bigru(gif_scr, gir_scr, htf_scr, htr_scr,
                     whh_ref[...], bhn_ref[...], dm_ref[...], h0)

    h_t = jnp.concatenate([htf_scr[...], htr_scr[...]], axis=-1)   # (L,Bp,2Hp)
    feat = jnp.concatenate([h_t, xtra_ref[...]], axis=-1)          # 128-aligned blocks
    out_ref[...] = _attn_with_context(feat, wa_ref[...], ba_ref[...], va_ref[...])


# ----------------------------------------------------------------------------
# Wrapper-side padded parameter packs (zero-pad / scatter once, in XLA)
# ----------------------------------------------------------------------------
def _pad_gate_cols(w, H, Hp):
    """(K, 3H) gate-packed -> (K, 3Hp): each gate in its own 128-aligned block."""
    out = jnp.zeros((w.shape[0], 3 * Hp), jnp.float32)
    for g in range(3):
        out = out.at[:, g * Hp:g * Hp + H].set(w[:, g * H:(g + 1) * H])
    return out


def _pad_gate_vec(b, H, Hp):
    out = jnp.zeros((3 * Hp,), jnp.float32)
    for g in range(3):
        out = out.at[g * Hp:g * Hp + H].set(b[g * H:(g + 1) * H])
    return out


def _prep_gru(p, in_map, Din_p, H, Hp, Bp):
    """Padded, direction-fused bi-GRU parameter pack.

    in_map: static padded positions of the real input features (W_ih rows are
    scattered there, all other rows zero).
    """
    in_map = np.asarray(in_map)

    def scatter_rows(w_cols_padded):
        out = jnp.zeros((Din_p, 3 * Hp), jnp.float32)
        return out.at[in_map, :].set(w_cols_padded)

    wif = scatter_rows(_pad_gate_cols(p["w_ih_f"], H, Hp))
    wir = scatter_rows(_pad_gate_cols(p["w_ih_r"], H, Hp))

    # Fold the r/z recurrent biases into the hoisted projection bias (they add
    # linearly before the sigmoids); only the n-gate recurrent bias stays in
    # the kernel (it sits inside the r-multiply).
    zeros_h = jnp.zeros((H,), jnp.float32)
    bif = _pad_gate_vec(
        p["b_ih_f"] + jnp.concatenate([p["b_hh_f"][:2 * H], zeros_h]),
        H, Hp).reshape(1, 3 * Hp)
    bir = _pad_gate_vec(
        p["b_ih_r"] + jnp.concatenate([p["b_hh_r"][:2 * H], zeros_h]),
        H, Hp).reshape(1, 3 * Hp)

    whh = jnp.zeros((2 * Hp, 3 * Hp), jnp.float32)
    whh = whh.at[0:H, :].set(_pad_gate_cols(p["w_hh_f"], H, Hp))
    whh = whh.at[Hp:Hp + H, :].set(_pad_gate_cols(p["w_hh_r"], H, Hp))

    bhn = jnp.zeros((2 * Bp, Hp), jnp.float32)
    bhn = bhn.at[:Bp, :H].set(jnp.broadcast_to(p["b_hh_f"][2 * H:], (Bp, H)))
    bhn = bhn.at[Bp:, :H].set(jnp.broadcast_to(p["b_hh_r"][2 * H:], (Bp, H)))

    dm = jnp.zeros((2 * Bp, 2 * Hp), jnp.float32)
    dm = dm.at[:Bp, :Hp].set(1.0)
    dm = dm.at[Bp:, Hp:].set(1.0)
    return wif, wir, bif, bir, whh, bhn, dm


def _prep_attn(pa, pos_map, Dp):
    pos = np.asarray(pos_map)
    wa = jnp.zeros((Dp, Dp), jnp.float32
                   ).at[pos[:, None], pos[None, :]].set(pa["w_attn_t"])
    ba = jnp.zeros((Dp,), jnp.float32).at[pos].set(pa["b_attn"]).reshape(1, Dp)
    va = jnp.zeros((Dp,), jnp.float32).at[pos].set(pa["v_ctx"][:, 0]).reshape(1, Dp)
    return wa, ba, va


# ----------------------------------------------------------------------------
# Forward pass
# ----------------------------------------------------------------------------
def hier_attn_net_forward(params, X, S, T, totald, nttc, nttd, otc, otd, talkd,
                          *, word_hidden, sent_hidden):
    B, L_doc, L_sent = X.shape
    E = params["word_embed"].shape[1]
    spk_dim = params["spk_embed"].shape[1]
    Hw, Hs = word_hidden, sent_hidden
    eps = 1e-12
    f32 = jnp.float32

    # Padded (sublane/lane-aligned) geometry.
    Bp = _rup(B, _SUBLANE)
    Ep = _rup(E, _LANE)
    Hwp = _rup(Hw, _LANE)
    Hsp = _rup(Hs, _LANE)
    Xp = _rup(spk_dim + 2, _LANE)
    Dp = 2 * Hsp + Xp

    # ---- padded parameter packs ---------------------------------------------
    w_pack = _prep_gru(params["word_gru"], np.arange(E), Ep, Hw, Hwp, Bp)
    bidir_map_w = np.concatenate([np.arange(Hw), Hwp + np.arange(Hw)])
    wa, wb, wv = _prep_attn(params["word_attn"], bidir_map_w, 2 * Hwp)

    s_pack = _prep_gru(params["sent_gru"], bidir_map_w, 2 * Hwp, Hs, Hsp, Bp)
    sa_map = np.concatenate([np.arange(Hs), Hsp + np.arange(Hs),
                             2 * Hsp + np.arange(spk_dim + 2)])
    sa, sb, sv = _prep_attn(params["sent_attn"], sa_map, Dp)

    # ---- word level: one pallas_call, grid over sentences --------------------
    emb = params["word_embed"].astype(f32)[X]          # (B, L_doc, L_sent, E)
    emb = jnp.transpose(emb, (1, 2, 0, 3))             # (L_doc, L_sent, B, E)
    emb = jnp.pad(emb, ((0, 0), (0, 0), (0, Bp - B), (0, Ep - E)))

    word_gs = pltpu.PrefetchScalarGridSpec(
        num_scalar_prefetch=0,
        grid=(L_doc,),
        in_specs=[
            pl.BlockSpec((1, L_sent, Bp, Ep), lambda j: (j, 0, 0, 0)),   # embed
            pl.BlockSpec((Ep, 3 * Hwp), lambda j: (0, 0)),               # W_ih fwd
            pl.BlockSpec((Ep, 3 * Hwp), lambda j: (0, 0)),               # W_ih rev
            pl.BlockSpec((1, 3 * Hwp), lambda j: (0, 0)),                # bias fwd
            pl.BlockSpec((1, 3 * Hwp), lambda j: (0, 0)),                # bias rev
            pl.BlockSpec((2 * Hwp, 3 * Hwp), lambda j: (0, 0)),          # W_hh (blk)
            pl.BlockSpec((2 * Bp, Hwp), lambda j: (0, 0)),               # b_hh_n
            pl.BlockSpec((2 * Bp, 2 * Hwp), lambda j: (0, 0)),           # dir mask
            pl.BlockSpec((2 * Hwp, 2 * Hwp), lambda j: (0, 0)),          # attn W
            pl.BlockSpec((1, 2 * Hwp), lambda j: (0, 0)),                # attn b
            pl.BlockSpec((1, 2 * Hwp), lambda j: (0, 0)),                # attn v
        ],
        out_specs=pl.BlockSpec((1, Bp, 2 * Hwp), lambda j: (j, 0, 0)),
        scratch_shapes=[
            pltpu.VMEM((2 * Bp, 2 * Hwp), f32),            # word_h_n carry
            pltpu.VMEM((L_sent, Bp, 3 * Hwp), f32),        # gi fwd
            pltpu.VMEM((L_sent, Bp, 3 * Hwp), f32),        # gi rev
            pltpu.VMEM((L_sent, Bp, Hwp), f32),            # h_t fwd
            pltpu.VMEM((L_sent, Bp, Hwp), f32),            # h_t rev
        ],
    )
    sent_s = pl.pallas_call(
        word_level_kernel,
        grid_spec=word_gs,
        out_shape=jax.ShapeDtypeStruct((L_doc, Bp, 2 * Hwp), f32),
        compiler_params=pltpu.CompilerParams(
            dimension_semantics=("arbitrary",),   # h carries across sentences
            vmem_limit_bytes=_VMEM_LIMIT),
    )(emb, *w_pack, wa, wb, wv)

    # ---- sentence level -------------------------------------------------------
    spk = params["spk_embed"].astype(f32)[S[:, :, 0]]            # (B, L_doc, spk)
    Tf = T.astype(f32)
    T_n = Tf / jnp.maximum(jnp.sqrt(jnp.sum(Tf * Tf, axis=1, keepdims=True)), eps)
    xtra = jnp.transpose(jnp.concatenate([spk, T_n], axis=2), (1, 0, 2))
    xtra = jnp.pad(xtra, ((0, 0), (0, Bp - B), (0, Xp - (spk_dim + 2))))

    sent_gs = pltpu.PrefetchScalarGridSpec(
        num_scalar_prefetch=0,
        grid=(1,),
        in_specs=[
            pl.BlockSpec((L_doc, Bp, 2 * Hwp), lambda j: (0, 0, 0)),     # sent_s
            pl.BlockSpec((L_doc, Bp, Xp), lambda j: (0, 0, 0)),          # spk + T
            pl.BlockSpec((2 * Hwp, 3 * Hsp), lambda j: (0, 0)),
            pl.BlockSpec((2 * Hwp, 3 * Hsp), lambda j: (0, 0)),
            pl.BlockSpec((1, 3 * Hsp), lambda j: (0, 0)),
            pl.BlockSpec((1, 3 * Hsp), lambda j: (0, 0)),
            pl.BlockSpec((2 * Hsp, 3 * Hsp), lambda j: (0, 0)),
            pl.BlockSpec((2 * Bp, Hsp), lambda j: (0, 0)),
            pl.BlockSpec((2 * Bp, 2 * Hsp), lambda j: (0, 0)),
            pl.BlockSpec((Dp, Dp), lambda j: (0, 0)),
            pl.BlockSpec((1, Dp), lambda j: (0, 0)),
            pl.BlockSpec((1, Dp), lambda j: (0, 0)),
        ],
        out_specs=pl.BlockSpec((Bp, Dp), lambda j: (0, 0)),
        scratch_shapes=[
            pltpu.VMEM((L_doc, Bp, 3 * Hsp), f32),
            pltpu.VMEM((L_doc, Bp, 3 * Hsp), f32),
            pltpu.VMEM((L_doc, Bp, Hsp), f32),
            pltpu.VMEM((L_doc, Bp, Hsp), f32),
        ],
    )
    doc_s_p = pl.pallas_call(
        sent_level_kernel,
        grid_spec=sent_gs,
        out_shape=jax.ShapeDtypeStruct((Bp, Dp), f32),
        compiler_params=pltpu.CompilerParams(
            dimension_semantics=("arbitrary",),
            vmem_limit_bytes=_VMEM_LIMIT),
    )(sent_s, xtra, *s_pack, sa, sb, sv)

    # ---- un-pad + tiny final FC (XLA; avoids a 4-lane masked store) ----------
    doc_s = jnp.concatenate([doc_s_p[:B, 0:Hs],
                             doc_s_p[:B, Hsp:Hsp + Hs],
                             doc_s_p[:B, 2 * Hsp:2 * Hsp + spk_dim + 2]], axis=1)
    totald_u = totald[:, None]
    totald_n = totald_u / jnp.maximum(jnp.abs(totald_u), eps)   # F.normalize dim=1
    feats = jnp.concatenate([doc_s, totald_n, nttc[:, None], nttd[:, None],
                             otc[:, None], otd[:, None], talkd[:, None]], axis=1)
    return feats @ params["fc_w_t"] + params["fc_b"]


# ----------------------------------------------------------------------------
# Pure-JAX reference (faithful re-implementation of the PyTorch forward)
# ----------------------------------------------------------------------------
def _gru_dir_ref(x, h0, w_ih, w_hh, b_ih, b_hh):
    H = h0.shape[-1]

    def step(h, x_t):
        gi = x_t @ w_ih + b_ih
        gh = h @ w_hh + b_hh
        r = jax.nn.sigmoid(gi[:, :H] + gh[:, :H])
        z = jax.nn.sigmoid(gi[:, H:2 * H] + gh[:, H:2 * H])
        n = jnp.tanh(gi[:, 2 * H:] + r * gh[:, 2 * H:])
        h_new = (1.0 - z) * n + z * h
        return h_new, h_new

    h_fin, seq = lax.scan(step, h0, jnp.transpose(x, (1, 0, 2)))
    return jnp.transpose(seq, (1, 0, 2)), h_fin


def _bigru_ref(x, h0_f, h0_r, p):
    sf, ff = _gru_dir_ref(x, h0_f, p["w_ih_f"], p["w_hh_f"], p["b_ih_f"], p["b_hh_f"])
    sr, fr = _gru_dir_ref(x[:, ::-1], h0_r, p["w_ih_r"], p["w_hh_r"], p["b_ih_r"], p["b_hh_r"])
    return jnp.concatenate([sf, sr[:, ::-1]], axis=-1), jnp.stack([ff, fr], axis=0)


def _attn_ref(inp, p):
    u = jnp.tanh(inp @ p["w_attn_t"] + p["b_attn"])
    a = jax.nn.softmax(u @ p["v_ctx"], axis=1)
    return jnp.sum(a * inp, axis=1)


def reference_forward(params, X, S, T, totald, nttc, nttd, otc, otd, talkd,
                      *, word_hidden, sent_hidden):
    B, L_doc, L_sent = X.shape
    eps = 1e-12
    word_h_n = jnp.zeros((2, B, word_hidden), jnp.float32)
    sent_vecs = []
    for j in range(L_doc):
        embed = params["word_embed"][X[:, j, :]]
        h_t, word_h_n = _bigru_ref(embed, word_h_n[0], word_h_n[1], params["word_gru"])
        sent_vecs.append(_attn_ref(h_t, params["word_attn"])[:, None, :])
    sent_s = jnp.concatenate(sent_vecs, axis=1)

    spk = params["spk_embed"][S[:, :, 0]]
    Tf = T.astype(jnp.float32)
    T_n = Tf / jnp.maximum(jnp.sqrt(jnp.sum(Tf * Tf, axis=1, keepdims=True)), eps)
    h0 = jnp.zeros((B, sent_hidden), jnp.float32)
    h_t_sent, _ = _bigru_ref(sent_s, h0, h0, params["sent_gru"])
    sent_cat = jnp.concatenate([h_t_sent, spk, T_n], axis=2)
    doc_s = _attn_ref(sent_cat, params["sent_attn"])

    totald_u = totald[:, None]
    totald_n = totald_u / jnp.maximum(jnp.abs(totald_u), eps)
    feats = jnp.concatenate([doc_s, totald_n, nttc[:, None], nttd[:, None],
                             otc[:, None], otd[:, None], talkd[:, None]], axis=1)
    return feats @ params["fc_w_t"] + params["fc_b"]


# ----------------------------------------------------------------------------
# Parameter construction (deterministic, synthetic)
# ----------------------------------------------------------------------------
def make_gru_params(key, d_in, h):
    ks = jax.random.split(key, 8)
    sc = 0.1
    return {
        "w_ih_f": sc * jax.random.normal(ks[0], (d_in, 3 * h), jnp.float32),
        "w_hh_f": sc * jax.random.normal(ks[1], (h, 3 * h), jnp.float32),
        "b_ih_f": sc * jax.random.normal(ks[2], (3 * h,), jnp.float32),
        "b_hh_f": sc * jax.random.normal(ks[3], (3 * h,), jnp.float32),
        "w_ih_r": sc * jax.random.normal(ks[4], (d_in, 3 * h), jnp.float32),
        "w_hh_r": sc * jax.random.normal(ks[5], (h, 3 * h), jnp.float32),
        "b_ih_r": sc * jax.random.normal(ks[6], (3 * h,), jnp.float32),
        "b_hh_r": sc * jax.random.normal(ks[7], (3 * h,), jnp.float32),
    }


def make_attn_params(key, d):
    ks = jax.random.split(key, 3)
    sc = 0.1
    return {
        "w_attn_t": sc * jax.random.normal(ks[0], (d, d), jnp.float32),  # W.T
        "b_attn": sc * jax.random.normal(ks[1], (d,), jnp.float32),
        "v_ctx": sc * jax.random.normal(ks[2], (d, 1), jnp.float32),
    }


def make_params(key, vocab_size, embed_dim, word_hidden, sent_hidden,
                spk_dim, num_class, padding_idx=1):
    ks = jax.random.split(key, 8)
    sc = 0.1
    word_embed = sc * jax.random.normal(ks[0], (vocab_size, embed_dim), jnp.float32)
    word_embed = word_embed.at[padding_idx].set(0.0)
    spk_embed = sc * jax.random.normal(ks[1], (4, spk_dim), jnp.float32)
    spk_embed = spk_embed.at[padding_idx].set(0.0)

    d_sent_attn = 2 * sent_hidden + spk_dim + 2
    d_fc_in = d_sent_attn + 6
    return {
        "word_embed": word_embed,
        "spk_embed": spk_embed,
        "word_gru": make_gru_params(ks[2], embed_dim, word_hidden),
        "word_attn": make_attn_params(ks[3], 2 * word_hidden),
        "sent_gru": make_gru_params(ks[4], 2 * word_hidden, sent_hidden),
        "sent_attn": make_attn_params(ks[5], d_sent_attn),
        "fc_w_t": sc * jax.random.normal(ks[6], (d_fc_in, num_class), jnp.float32),
        "fc_b": sc * jax.random.normal(ks[7], (num_class,), jnp.float32),
    }


# ----------------------------------------------------------------------------
if __name__ == "__main__":
    B, L_doc, L_sent = 2, 4, 8
    vocab_size, embed_dim = 50, 32
    word_hidden, sent_hidden = 32, 32
    spk_dim, num_class = 8, 4

    root = jax.random.PRNGKey(0)
    kp, kd = jax.random.split(root)
    params = make_params(kp, vocab_size, embed_dim, word_hidden, sent_hidden,
                         spk_dim, num_class)

    k = jax.random.split(kd, 9)
    X = jax.random.randint(k[0], (B, L_doc, L_sent), 0, vocab_size, jnp.int32)
    S = jax.random.randint(k[1], (B, L_doc, 1), 0, 4, jnp.int32)
    T = jax.random.normal(k[2], (B, L_doc, 2), jnp.float32)
    totald = jax.random.normal(k[3], (B,), jnp.float32)
    nttc = jax.random.normal(k[4], (B,), jnp.float32)
    nttd = jax.random.normal(k[5], (B,), jnp.float32)
    otc = jax.random.normal(k[6], (B,), jnp.float32)
    otd = jax.random.normal(k[7], (B,), jnp.float32)
    talkd = jax.random.normal(k[8], (B,), jnp.float32)

    fwd = jax.jit(functools.partial(hier_attn_net_forward,
                                    word_hidden=word_hidden,
                                    sent_hidden=sent_hidden))
    out = jax.block_until_ready(fwd(params, X, S, T, totald, nttc, nttd,
                                    otc, otd, talkd))
    assert out.shape == (B, num_class), out.shape
    assert bool(jnp.all(jnp.isfinite(out)))

    # Pure-JAX reference check (loose tolerance: MXU vs XLA matmul rounding,
    # EUP approximate reciprocal in the softmax).
    ref = jax.jit(functools.partial(reference_forward,
                                    word_hidden=word_hidden,
                                    sent_hidden=sent_hidden))(
        params, X, S, T, totald, nttc, nttd, otc, otd, talkd)
    ref = jax.block_until_ready(ref)
    assert jnp.allclose(out, ref, rtol=2e-2, atol=2e-2), (out, ref)

    print("KERNEL_OK")
</pallas_src>

<mosaic_0001>
module attributes {stable_mosaic.version = 11 : i64} {
  func.func @word_level_kernel(%arg0: i32, %arg1: memref<1x8x8x128xf32, #tpu.memory_space<vmem>>, %arg2: memref<128x384xf32, #tpu.memory_space<vmem>>, %arg3: memref<128x384xf32, #tpu.memory_space<vmem>>, %arg4: memref<1x384xf32, #tpu.memory_space<vmem>>, %arg5: memref<1x384xf32, #tpu.memory_space<vmem>>, %arg6: memref<256x384xf32, #tpu.memory_space<vmem>>, %arg7: memref<16x128xf32, #tpu.memory_space<vmem>>, %arg8: memref<16x256xf32, #tpu.memory_space<vmem>>, %arg9: memref<256x256xf32, #tpu.memory_space<vmem>>, %arg10: memref<1x256xf32, #tpu.memory_space<vmem>>, %arg11: memref<1x256xf32, #tpu.memory_space<vmem>>, %arg12: memref<1x8x256xf32, #tpu.memory_space<vmem>>, %arg13: memref<16x256xf32, #tpu.memory_space<vmem>>, %arg14: memref<8x8x384xf32, #tpu.memory_space<vmem>>, %arg15: memref<8x8x384xf32, #tpu.memory_space<vmem>>, %arg16: memref<8x8x128xf32, #tpu.memory_space<vmem>>, %arg17: memref<8x8x128xf32, #tpu.memory_space<vmem>>) attributes {dimension_semantics = [#tpu.dimension_semantics<arbitrary>], iteration_bounds = array<i64: 4>, scalar_prefetch = 0 : i64, scratch_operands = 5 : i64, tpu.core_type = #tpu.core_type<tc>, window_params = [{transform_indices = @transform_0, window_bounds = array<i64: 1, 8, 8, 128>}, {pipeline_mode = #tpu.pipeline_mode<synchronous>, transform_indices = @transform_1, window_bounds = array<i64: 128, 384>}, {pipeline_mode = #tpu.pipeline_mode<synchronous>, transform_indices = @transform_2, window_bounds = array<i64: 128, 384>}, {pipeline_mode = #tpu.pipeline_mode<synchronous>, transform_indices = @transform_3, window_bounds = array<i64: 1, 384>}, {pipeline_mode = #tpu.pipeline_mode<synchronous>, transform_indices = @transform_4, window_bounds = array<i64: 1, 384>}, {pipeline_mode = #tpu.pipeline_mode<synchronous>, transform_indices = @transform_5, window_bounds = array<i64: 256, 384>}, {pipeline_mode = #tpu.pipeline_mode<synchronous>, transform_indices = @transform_6, window_bounds = array<i64: 16, 128>}, {pipeline_mode = #tpu.pipeline_mode<synchronous>, transform_indices = @transform_7, window_bounds = array<i64: 16, 256>}, {pipeline_mode = #tpu.pipeline_mode<synchronous>, transform_indices = @transform_8, window_bounds = array<i64: 256, 256>}, {pipeline_mode = #tpu.pipeline_mode<synchronous>, transform_indices = @transform_9, window_bounds = array<i64: 1, 256>}, {pipeline_mode = #tpu.pipeline_mode<synchronous>, transform_indices = @transform_10, window_bounds = array<i64: 1, 256>}, {transform_indices = @transform_11, window_bounds = array<i64: 1, 8, 256>}]} {
    %c0_i32 = arith.constant 0 : i32
    %0 = arith.cmpi eq, %arg0, %c0_i32 : i32
    %1 = arith.extui %0 : i1 to i32
    %c0_i32_0 = arith.constant 0 : i32
    %2 = arith.cmpi ne, %1, %c0_i32_0 : i32
    scf.if %2 {
      %cst_154 = arith.constant 0.000000e+00 : f32
      %465 = vector.broadcast %cst_154 : f32 to vector<16x256xf32>
      %c0_155 = arith.constant 0 : index
      %c0_156 = arith.constant 0 : index
      %466 = vector.load %arg13[%c0_155, %c0_156] : memref<16x256xf32, #tpu.memory_space<vmem>>, vector<16x256xf32>
      tpu.vector_store %arg13[%c0_155, %c0_156], %465 {strides = array<i32>} : memref<16x256xf32, #tpu.memory_space<vmem>>, vector<16x256xf32>,
    } else {
    }
    %c0 = arith.constant 0 : index
    %c0_1 = arith.constant 0 : index
    %c0_2 = arith.constant 0 : index
    %c0_3 = arith.constant 0 : index
    %3 = vector.load %arg1[%c0, %c0_1, %c0_2, %c0_3] : memref<1x8x8x128xf32, #tpu.memory_space<vmem>>, vector<1x8x8x128xf32>
    %4 = vector.shape_cast %3 : vector<1x8x8x128xf32> to vector<64x128xf32>
    %c0_4 = arith.constant 0 : index
    %c0_5 = arith.constant 0 : index
    %5 = vector.load %arg2[%c0_4, %c0_5] : memref<128x384xf32, #tpu.memory_space<vmem>>, vector<128x384xf32>
    %cst = arith.constant dense<0.000000e+00> : vector<64x384xf32>
    %6 = tpu.matmul %4, %5, %cst {dimension_numbers = #tpu.dot_dimension_numbers<[1], [0], [0], [1], [0, 0, 1, 1], [], []>} : vector<64x128xf32>, vector<128x384xf32>, vector<64x384xf32> -> vector<64x384xf32>
    %c0_6 = arith.constant 0 : index
    %c0_7 = arith.constant 0 : index
    %7 = vector.load %arg4[%c0_6, %c0_7] : memref<1x384xf32, #tpu.memory_space<vmem>>, vector<1x384xf32>
    %8 = vector.broadcast %7 : vector<1x384xf32> to vector<64x384xf32>
    %9 = arith.addf %6, %8 : vector<64x384xf32>
    %10 = vector.shape_cast %9 : vector<64x384xf32> to vector<8x8x384xf32>
    %c0_8 = arith.constant 0 : index
    %c0_9 = arith.constant 0 : index
    %c0_10 = arith.constant 0 : index
    %11 = vector.load %arg14[%c0_8, %c0_9, %c0_10] : memref<8x8x384xf32, #tpu.memory_space<vmem>>, vector<8x8x384xf32>
    tpu.vector_store %arg14[%c0_8, %c0_9, %c0_10], %10 {strides = array<i32>} : memref<8x8x384xf32, #tpu.memory_space<vmem>>, vector<8x8x384xf32>,
    %c0_11 = arith.constant 0 : index
    %c0_12 = arith.constant 0 : index
    %12 = vector.load %arg3[%c0_11, %c0_12] : memref<128x384xf32, #tpu.memory_space<vmem>>, vector<128x384xf32>
    %cst_13 = arith.constant dense<0.000000e+00> : vector<64x384xf32>
    %13 = tpu.matmul %4, %12, %cst_13 {dimension_numbers = #tpu.dot_dimension_numbers<[1], [0], [0], [1], [0, 0, 1, 1], [], []>} : vector<64x128xf32>, vector<128x384xf32>, vector<64x384xf32> -> vector<64x384xf32>
    %c0_14 = arith.constant 0 : index
    %c0_15 = arith.constant 0 : index
    %14 = vector.load %arg5[%c0_14, %c0_15] : memref<1x384xf32, #tpu.memory_space<vmem>>, vector<1x384xf32>
    %15 = vector.broadcast %14 : vector<1x384xf32> to vector<64x384xf32>
    %16 = arith.addf %13, %15 : vector<64x384xf32>
    %17 = vector.shape_cast %16 : vector<64x384xf32> to vector<8x8x384xf32>
    %c0_16 = arith.constant 0 : index
    %c0_17 = arith.constant 0 : index
    %c0_18 = arith.constant 0 : index
    %18 = vector.load %arg15[%c0_16, %c0_17, %c0_18] : memref<8x8x384xf32, #tpu.memory_space<vmem>>, vector<8x8x384xf32>
    tpu.vector_store %arg15[%c0_16, %c0_17, %c0_18], %17 {strides = array<i32>} : memref<8x8x384xf32, #tpu.memory_space<vmem>>, vector<8x8x384xf32>,
    %c0_19 = arith.constant 0 : index
    %c0_20 = arith.constant 0 : index
    %19 = vector.load %arg6[%c0_19, %c0_20] : memref<256x384xf32, #tpu.memory_space<vmem>>, vector<256x384xf32>
    %c0_21 = arith.constant 0 : index
    %c0_22 = arith.constant 0 : index
    %20 = vector.load %arg7[%c0_21, %c0_22] : memref<16x128xf32, #tpu.memory_space<vmem>>, vector<16x128xf32>
    %c0_23 = arith.constant 0 : index
    %c0_24 = arith.constant 0 : index
    %21 = vector.load %arg8[%c0_23, %c0_24] : memref<16x256xf32, #tpu.memory_space<vmem>>, vector<16x256xf32>
    %c0_25 = arith.constant 0 : index
    %c0_26 = arith.constant 0 : index
    %22 = vector.load %arg13[%c0_25, %c0_26] : memref<16x256xf32, #tpu.memory_space<vmem>>, vector<16x256xf32>
    %c0_i32_27 = arith.constant 0 : i32
    %c7_i32 = arith.constant 7 : i32
    %23 = arith.subi %c7_i32, %c0_i32_27 : i32
    %24 = arith.index_cast %c0_i32_27 : i32 to index
    %c0_28 = arith.constant 0 : index
    %c0_29 = arith.constant 0 : index
    %25 = vector.load %arg14[%24, %c0_28, %c0_29] : memref<8x8x384xf32, #tpu.memory_space<vmem>>, vector<1x8x384xf32>
    %26 = vector.shape_cast %25 : vector<1x8x384xf32> to vector<8x384xf32>
    %27 = arith.index_cast %23 : i32 to index
    %c0_30 = arith.constant 0 : index
    %c0_31 = arith.constant 0 : index
    %28 = vector.load %arg15[%27, %c0_30, %c0_31] : memref<8x8x384xf32, #tpu.memory_space<vmem>>, vector<1x8x384xf32>
    %29 = vector.shape_cast %28 : vector<1x8x384xf32> to vector<8x384xf32>
    %30 = tpu.concatenate %26, %29 in 0 : vector<8x384xf32>, vector<8x384xf32> -> vector<16x384xf32>
    %cst_32 = arith.constant dense<0.000000e+00> : vector<16x384xf32>
    %31 = tpu.matmul %22, %19, %cst_32 {dimension_numbers = #tpu.dot_dimension_numbers<[1], [0], [0], [1], [0, 0, 1, 1], [], []>} : vector<16x256xf32>, vector<256x384xf32>, vector<16x384xf32> -> vector<16x384xf32>
    %32 = vector.extract_strided_slice %30 {offsets = [0, 0], sizes = [16, 128], strides = [1, 1]} : vector<16x384xf32> to vector<16x128xf32>
    %33 = vector.extract_strided_slice %31 {offsets = [0, 0], sizes = [16, 128], strides = [1, 1]} : vector<16x384xf32> to vector<16x128xf32>
    %34 = arith.addf %32, %33 : vector<16x128xf32>
    %35 = arith.negf %34 : vector<16x128xf32>
    %36 = math.exp %35 : vector<16x128xf32>
    %cst_33 = arith.constant 1.000000e+00 : f32
    %37 = vector.broadcast %cst_33 : f32 to vector<16x128xf32>
    %38 = arith.addf %37, %36 : vector<16x128xf32>
    %39 = arith.divf %37, %38 : vector<16x128xf32>
    %40 = vector.extract_strided_slice %30 {offsets = [0, 128], sizes = [16, 128], strides = [1, 1]} : vector<16x384xf32> to vector<16x128xf32>
    %41 = vector.extract_strided_slice %31 {offsets = [0, 128], sizes = [16, 128], strides = [1, 1]} : vector<16x384xf32> to vector<16x128xf32>
    %42 = arith.addf %40, %41 : vector<16x128xf32>
    %43 = arith.negf %42 : vector<16x128xf32>
    %44 = math.exp %43 : vector<16x128xf32>
    %cst_34 = arith.constant 1.000000e+00 : f32
    %45 = vector.broadcast %cst_34 : f32 to vector<16x128xf32>
    %46 = arith.addf %45, %44 : vector<16x128xf32>
    %47 = arith.divf %45, %46 : vector<16x128xf32>
    %48 = vector.extract_strided_slice %30 {offsets = [0, 256], sizes = [16, 128], strides = [1, 1]} : vector<16x384xf32> to vector<16x128xf32>
    %49 = vector.extract_strided_slice %31 {offsets = [0, 256], sizes = [16, 128], strides = [1, 1]} : vector<16x384xf32> to vector<16x128xf32>
    %50 = arith.addf %49, %20 : vector<16x128xf32>
    %51 = arith.mulf %39, %50 : vector<16x128xf32>
    %52 = arith.addf %48, %51 : vector<16x128xf32>
    %53 = math.tanh %52 : vector<16x128xf32>
    %cst_35 = arith.constant 1.000000e+00 : f32
    %54 = vector.broadcast %cst_35 : f32 to vector<16x128xf32>
    %55 = arith.subf %54, %47 : vector<16x128xf32>
    %56 = arith.mulf %55, %53 : vector<16x128xf32>
    %57 = vector.extract_strided_slice %22 {offsets = [0, 0], sizes = [16, 128], strides = [1, 1]} : vector<16x256xf32> to vector<16x128xf32>
    %58 = vector.extract_strided_slice %22 {offsets = [0, 128], sizes = [16, 128], strides = [1, 1]} : vector<16x256xf32> to vector<16x128xf32>
    %59 = arith.addf %57, %58 : vector<16x128xf32>
    %60 = arith.mulf %47, %59 : vector<16x128xf32>
    %61 = arith.addf %56, %60 : vector<16x128xf32>
    %62 = vector.extract_strided_slice %61 {offsets = [0, 0], sizes = [8, 128], strides = [1, 1]} : vector<16x128xf32> to vector<8x128xf32>
    %63 = arith.index_cast %c0_i32_27 : i32 to index
    %c0_36 = arith.constant 0 : index
    %c0_37 = arith.constant 0 : index
    %64 = vector.load %arg16[%63, %c0_36, %c0_37] : memref<8x8x128xf32, #tpu.memory_space<vmem>>, vector<1x8x128xf32>
    %65 = vector.shape_cast %64 : vector<1x8x128xf32> to vector<8x128xf32>
    %66 = vector.shape_cast %62 : vector<8x128xf32> to vector<1x8x128xf32>
    tpu.vector_store %arg16[%63, %c0_36, %c0_37], %66 {strides = array<i32>} : memref<8x8x128xf32, #tpu.memory_space<vmem>>, vector<1x8x128xf32>,
    %67 = vector.extract_strided_slice %61 {offsets = [8, 0], sizes = [8, 128], strides = [1, 1]} : vector<16x128xf32> to vector<8x128xf32>
    %68 = arith.index_cast %23 : i32 to index
    %c0_38 = arith.constant 0 : index
    %c0_39 = arith.constant 0 : index
    %69 = vector.load %arg17[%68, %c0_38, %c0_39] : memref<8x8x128xf32, #tpu.memory_space<vmem>>, vector<1x8x128xf32>
    %70 = vector.shape_cast %69 : vector<1x8x128xf32> to vector<8x128xf32>
    %71 = vector.shape_cast %67 : vector<8x128xf32> to vector<1x8x128xf32>
    tpu.vector_store %arg17[%68, %c0_38, %c0_39], %71 {strides = array<i32>} : memref<8x8x128xf32, #tpu.memory_space<vmem>>, vector<1x8x128xf32>,
    %72 = tpu.concatenate %61, %61 in 1 : vector<16x128xf32>, vector<16x128xf32> -> vector<16x256xf32>
    %73 = arith.mulf %72, %21 : vector<16x256xf32>
    %c1_i32 = arith.constant 1 : i32
    %c7_i32_40 = arith.constant 7 : i32
    %74 = arith.subi %c7_i32_40, %c1_i32 : i32
    %75 = arith.index_cast %c1_i32 : i32 to index
    %c0_41 = arith.constant 0 : index
    %c0_42 = arith.constant 0 : index
    %76 = vector.load %arg14[%75, %c0_41, %c0_42] : memref<8x8x384xf32, #tpu.memory_space<vmem>>, vector<1x8x384xf32>
    %77 = vector.shape_cast %76 : vector<1x8x384xf32> to vector<8x384xf32>
    %78 = arith.index_cast %74 : i32 to index
    %c0_43 = arith.constant 0 : index
    %c0_44 = arith.constant 0 : index
    %79 = vector.load %arg15[%78, %c0_43, %c0_44] : memref<8x8x384xf32, #tpu.memory_space<vmem>>, vector<1x8x384xf32>
    %80 = vector.shape_cast %79 : vector<1x8x384xf32> to vector<8x384xf32>
    %81 = tpu.concatenate %77, %80 in 0 : vector<8x384xf32>, vector<8x384xf32> -> vector<16x384xf32>
    %cst_45 = arith.constant dense<0.000000e+00> : vector<16x384xf32>
    %82 = tpu.matmul %73, %19, %cst_45 {dimension_numbers = #tpu.dot_dimension_numbers<[1], [0], [0], [1], [0, 0, 1, 1], [], []>} : vector<16x256xf32>, vector<256x384xf32>, vector<16x384xf32> -> vector<16x384xf32>
    %83 = vector.extract_strided_slice %81 {offsets = [0, 0], sizes = [16, 128], strides = [1, 1]} : vector<16x384xf32> to vector<16x128xf32>
    %84 = vector.extract_strided_slice %82 {offsets = [0, 0], sizes = [16, 128], strides = [1, 1]} : vector<16x384xf32> to vector<16x128xf32>
    %85 = arith.addf %83, %84 : vector<16x128xf32>
    %86 = arith.negf %85 : vector<16x128xf32>
    %87 = math.exp %86 : vector<16x128xf32>
    %cst_46 = arith.constant 1.000000e+00 : f32
    %88 = vector.broadcast %cst_46 : f32 to vector<16x128xf32>
    %89 = arith.addf %88, %87 : vector<16x128xf32>
    %90 = arith.divf %88, %89 : vector<16x128xf32>
    %91 = vector.extract_strided_slice %81 {offsets = [0, 128], sizes = [16, 128], strides = [1, 1]} : vector<16x384xf32> to vector<16x128xf32>
    %92 = vector.extract_strided_slice %82 {offsets = [0, 128], sizes = [16, 128], strides = [1, 1]} : vector<16x384xf32> to vector<16x128xf32>
    %93 = arith.addf %91, %92 : vector<16x128xf32>
    %94 = arith.negf %93 : vector<16x128xf32>
    %95 = math.exp %94 : vector<16x128xf32>
    %cst_47 = arith.constant 1.000000e+00 : f32
    %96 = vector.broadcast %cst_47 : f32 to vector<16x128xf32>
    %97 = arith.addf %96, %95 : vector<16x128xf32>
    %98 = arith.divf %96, %97 : vector<16x128xf32>
    %99 = vector.extract_strided_slice %81 {offsets = [0, 256], sizes = [16, 128], strides = [1, 1]} : vector<16x384xf32> to vector<16x128xf32>
    %100 = vector.extract_strided_slice %82 {offsets = [0, 256], sizes = [16, 128], strides = [1, 1]} : vector<16x384xf32> to vector<16x128xf32>
    %101 = arith.addf %100, %20 : vector<16x128xf32>
    %102 = arith.mulf %90, %101 : vector<16x128xf32>
    %103 = arith.addf %99, %102 : vector<16x128xf32>
    %104 = math.tanh %103 : vector<16x128xf32>
    %cst_48 = arith.constant 1.000000e+00 : f32
    %105 = vector.broadcast %cst_48 : f32 to vector<16x128xf32>
    %106 = arith.subf %105, %98 : vector<16x128xf32>
    %107 = arith.mulf %106, %104 : vector<16x128xf32>
    %108 = vector.extract_strided_slice %73 {offsets = [0, 0], sizes = [16, 128], strides = [1, 1]} : vector<16x256xf32> to vector<16x128xf32>
    %109 = vector.extract_strided_slice %73 {offsets = [0, 128], sizes = [16, 128], strides = [1, 1]} : vector<16x256xf32> to vector<16x128xf32>
    %110 = arith.addf %108, %109 : vector<16x128xf32>
    %111 = arith.mulf %98, %110 : vector<16x128xf32>
    %112 = arith.addf %107, %111 : vector<16x128xf32>
    %113 = vector.extract_strided_slice %112 {offsets = [0, 0], sizes = [8, 128], strides = [1, 1]} : vector<16x128xf32> to vector<8x128xf32>
    %114 = arith.index_cast %c1_i32 : i32 to index
    %c0_49 = arith.constant 0 : index
    %c0_50 = arith.constant 0 : index
    %115 = vector.load %arg16[%114, %c0_49, %c0_50] : memref<8x8x128xf32, #tpu.memory_space<vmem>>, vector<1x8x128xf32>
    %116 = vector.shape_cast %115 : vector<1x8x128xf32> to vector<8x128xf32>
    %117 = vector.shape_cast %113 : vector<8x128xf32> to vector<1x8x128xf32>
    tpu.vector_store %arg16[%114, %c0_49, %c0_50], %117 {strides = array<i32>} : memref<8x8x128xf32, #tpu.memory_space<vmem>>, vector<1x8x128xf32>,
    %118 = vector.extract_strided_slice %112 {offsets = [8, 0], sizes = [8, 128], strides = [1, 1]} : vector<16x128xf32> to vector<8x128xf32>
    %119 = arith.index_cast %74 : i32 to index
    %c0_51 = arith.constant 0 : index
    %c0_52 = arith.constant 0 : index
    %120 = vector.load %arg17[%119, %c0_51, %c0_52] : memref<8x8x128xf32, #tpu.memory_space<vmem>>, vector<1x8x128xf32>
    %121 = vector.shape_cast %120 : vector<1x8x128xf32> to vector<8x128xf32>
    %122 = vector.shape_cast %118 : vector<8x128xf32> to vector<1x8x128xf32>
    tpu.vector_store %arg17[%119, %c0_51, %c0_52], %122 {strides = array<i32>} : memref<8x8x128xf32, #tpu.memory_space<vmem>>, vector<1x8x128xf32>,
    %123 = tpu.concatenate %112, %112 in 1 : vector<16x128xf32>, vector<16x128xf32> -> vector<16x256xf32>
    %124 = arith.mulf %123, %21 : vector<16x256xf32>
    %c2_i32 = arith.constant 2 : i32
    %c7_i32_53 = arith.constant 7 : i32
    %125 = arith.subi %c7_i32_53, %c2_i32 : i32
    %126 = arith.index_cast %c2_i32 : i32 to index
    %c0_54 = arith.constant 0 : index
    %c0_55 = arith.constant 0 : index
    %127 = vector.load %arg14[%126, %c0_54, %c0_55] : memref<8x8x384xf32, #tpu.memory_space<vmem>>, vector<1x8x384xf32>
    %128 = vector.shape_cast %127 : vector<1x8x384xf32> to vector<8x384xf32>
    %129 = arith.index_cast %125 : i32 to index
    %c0_56 = arith.constant 0 : index
    %c0_57 = arith.constant 0 : index
    %130 = vector.load %arg15[%129, %c0_56, %c0_57] : memref<8x8x384xf32, #tpu.memory_space<vmem>>, vector<1x8x384xf32>
    %131 = vector.shape_cast %130 : vector<1x8x384xf32> to vector<8x384xf32>
    %132 = tpu.concatenate %128, %131 in 0 : vector<8x384xf32>, vector<8x384xf32> -> vector<16x384xf32>
    %cst_58 = arith.constant dense<0.000000e+00> : vector<16x384xf32>
    %133 = tpu.matmul %124, %19, %cst_58 {dimension_numbers = #tpu.dot_dimension_numbers<[1], [0], [0], [1], [0, 0, 1, 1], [], []>} : vector<16x256xf32>, vector<256x384xf32>, vector<16x384xf32> -> vector<16x384xf32>
    %134 = vector.extract_strided_slice %132 {offsets = [0, 0], sizes = [16, 128], strides = [1, 1]} : vector<16x384xf32> to vector<16x128xf32>
    %135 = vector.extract_strided_slice %133 {offsets = [0, 0], sizes = [16, 128], strides = [1, 1]} : vector<16x384xf32> to vector<16x128xf32>
    %136 = arith.addf %134, %135 : vector<16x128xf32>
    %137 = arith.negf %136 : vector<16x128xf32>
    %138 = math.exp %137 : vector<16x128xf32>
    %cst_59 = arith.constant 1.000000e+00 : f32
    %139 = vector.broadcast %cst_59 : f32 to vector<16x128xf32>
    %140 = arith.addf %139, %138 : vector<16x128xf32>
    %141 = arith.divf %139, %140 : vector<16x128xf32>
    %142 = vector.extract_strided_slice %132 {offsets = [0, 128], sizes = [16, 128], strides = [1, 1]} : vector<16x384xf32> to vector<16x128xf32>
    %143 = vector.extract_strided_slice %133 {offsets = [0, 128], sizes = [16, 128], strides = [1, 1]} : vector<16x384xf32> to vector<16x128xf32>
    %144 = arith.addf %142, %143 : vector<16x128xf32>
    %145 = arith.negf %144 : vector<16x128xf32>
    %146 = math.exp %145 : vector<16x128xf32>
    %cst_60 = arith.constant 1.000000e+00 : f32
    %147 = vector.broadcast %cst_60 : f32 to vector<16x128xf32>
    %148 = arith.addf %147, %146 : vector<16x128xf32>
    %149 = arith.divf %147, %148 : vector<16x128xf32>
    %150 = vector.extract_strided_slice %132 {offsets = [0, 256], sizes = [16, 128], strides = [1, 1]} : vector<16x384xf32> to vector<16x128xf32>
    %151 = vector.extract_strided_slice %133 {offsets = [0, 256], sizes = [16, 128], strides = [1, 1]} : vector<16x384xf32> to vector<16x128xf32>
    %152 = arith.addf %151, %20 : vector<16x128xf32>
    %153 = arith.mulf %141, %152 : vector<16x128xf32>
    %154 = arith.addf %150, %153 : vector<16x128xf32>
    %155 = math.tanh %154 : vector<16x128xf32>
    %cst_61 = arith.constant 1.000000e+00 : f32
    %156 = vector.broadcast %cst_61 : f32 to vector<16x128xf32>
    %157 = arith.subf %156, %149 : vector<16x128xf32>
    %158 = arith.mulf %157, %155 : vector<16x128xf32>
    %159 = vector.extract_strided_slice %124 {offsets = [0, 0], sizes = [16, 128], strides = [1, 1]} : vector<16x256xf32> to vector<16x128xf32>
    %160 = vector.extract_strided_slice %124 {offsets = [0, 128], sizes = [16, 128], strides = [1, 1]} : vector<16x256xf32> to vector<16x128xf32>
    %161 = arith.addf %159, %160 : vector<16x128xf32>
    %162 = arith.mulf %149, %161 : vector<16x128xf32>
    %163 = arith.addf %158, %162 : vector<16x128xf32>
    %164 = vector.extract_strided_slice %163 {offsets = [0, 0], sizes = [8, 128], strides = [1, 1]} : vector<16x128xf32> to vector<8x128xf32>
    %165 = arith.index_cast %c2_i32 : i32 to index
    %c0_62 = arith.constant 0 : index
    %c0_63 = arith.constant 0 : index
    %166 = vector.load %arg16[%165, %c0_62, %c0_63] : memref<8x8x128xf32, #tpu.memory_space<vmem>>, vector<1x8x128xf32>
    %167 = vector.shape_cast %166 : vector<1x8x128xf32> to vector<8x128xf32>
    %168 = vector.shape_cast %164 : vector<8x128xf32> to vector<1x8x128xf32>
    tpu.vector_store %arg16[%165, %c0_62, %c0_63], %168 {strides = array<i32>} : memref<8x8x128xf32, #tpu.memory_space<vmem>>, vector<1x8x128xf32>,
    %169 = vector.extract_strided_slice %163 {offsets = [8, 0], sizes = [8, 128], strides = [1, 1]} : vector<16x128xf32> to vector<8x128xf32>
    %170 = arith.index_cast %125 : i32 to index
    %c0_64 = arith.constant 0 : index
    %c0_65 = arith.constant 0 : index
    %171 = vector.load %arg17[%170, %c0_64, %c0_65] : memref<8x8x128xf32, #tpu.memory_space<vmem>>, vector<1x8x128xf32>
    %172 = vector.shape_cast %171 : vector<1x8x128xf32> to vector<8x128xf32>
    %173 = vector.shape_cast %169 : vector<8x128xf32> to vector<1x8x128xf32>
    tpu.vector_store %arg17[%170, %c0_64, %c0_65], %173 {strides = array<i32>} : memref<8x8x128xf32, #tpu.memory_space<vmem>>, vector<1x8x128xf32>,
    %174 = tpu.concatenate %163, %163 in 1 : vector<16x128xf32>, vector<16x128xf32> -> vector<16x256xf32>
    %175 = arith.mulf %174, %21 : vector<16x256xf32>
    %c3_i32 = arith.constant 3 : i32
    %c7_i32_66 = arith.constant 7 : i32
    %176 = arith.subi %c7_i32_66, %c3_i32 : i32
    %177 = arith.index_cast %c3_i32 : i32 to index
    %c0_67 = arith.constant 0 : index
    %c0_68 = arith.constant 0 : index
    %178 = vector.load %arg14[%177, %c0_67, %c0_68] : memref<8x8x384xf32, #tpu.memory_space<vmem>>, vector<1x8x384xf32>
    %179 = vector.shape_cast %178 : vector<1x8x384xf32> to vector<8x384xf32>
    %180 = arith.index_cast %176 : i32 to index
    %c0_69 = arith.constant 0 : index
    %c0_70 = arith.constant 0 : index
    %181 = vector.load %arg15[%180, %c0_69, %c0_70] : memref<8x8x384xf32, #tpu.memory_space<vmem>>, vector<1x8x384xf32>
    %182 = vector.shape_cast %181 : vector<1x8x384xf32> to vector<8x384xf32>
    %183 = tpu.concatenate %179, %182 in 0 : vector<8x384xf32>, vector<8x384xf32> -> vector<16x384xf32>
    %cst_71 = arith.constant dense<0.000000e+00> : vector<16x384xf32>
    %184 = tpu.matmul %175, %19, %cst_71 {dimension_numbers = #tpu.dot_dimension_numbers<[1], [0], [0], [1], [0, 0, 1, 1], [], []>} : vector<16x256xf32>, vector<256x384xf32>, vector<16x384xf32> -> vector<16x384xf32>
    %185 = vector.extract_strided_slice %183 {offsets = [0, 0], sizes = [16, 128], strides = [1, 1]} : vector<16x384xf32> to vector<16x128xf32>
    %186 = vector.extract_strided_slice %184 {offsets = [0, 0], sizes = [16, 128], strides = [1, 1]} : vector<16x384xf32> to vector<16x128xf32>
    %187 = arith.addf %185, %186 : vector<16x128xf32>
    %188 = arith.negf %187 : vector<16x128xf32>
    %189 = math.exp %188 : vector<16x128xf32>
    %cst_72 = arith.constant 1.000000e+00 : f32
    %190 = vector.broadcast %cst_72 : f32 to vector<16x128xf32>
    %191 = arith.addf %190, %189 : vector<16x128xf32>
    %192 = arith.divf %190, %191 : vector<16x128xf32>
    %193 = vector.extract_strided_slice %183 {offsets = [0, 128], sizes = [16, 128], strides = [1, 1]} : vector<16x384xf32> to vector<16x128xf32>
    %194 = vector.extract_strided_slice %184 {offsets = [0, 128], sizes = [16, 128], strides = [1, 1]} : vector<16x384xf32> to vector<16x128xf32>
    %195 = arith.addf %193, %194 : vector<16x128xf32>
    %196 = arith.negf %195 : vector<16x128xf32>
    %197 = math.exp %196 : vector<16x128xf32>
    %cst_73 = arith.constant 1.000000e+00 : f32
    %198 = vector.broadcast %cst_73 : f32 to vector<16x128xf32>
    %199 = arith.addf %198, %197 : vector<16x128xf32>
    %200 = arith.divf %198, %199 : vector<16x128xf32>
    %201 = vector.extract_strided_slice %183 {offsets = [0, 256], sizes = [16, 128], strides = [1, 1]} : vector<16x384xf32> to vector<16x128xf32>
    %202 = vector.extract_strided_slice %184 {offsets = [0, 256], sizes = [16, 128], strides = [1, 1]} : vector<16x384xf32> to vector<16x128xf32>
    %203 = arith.addf %202, %20 : vector<16x128xf32>
    %204 = arith.mulf %192, %203 : vector<16x128xf32>
    %205 = arith.addf %201, %204 : vector<16x128xf32>
    %206 = math.tanh %205 : vector<16x128xf32>
    %cst_74 = arith.constant 1.000000e+00 : f32
    %207 = vector.broadcast %cst_74 : f32 to vector<16x128xf32>
    %208 = arith.subf %207, %200 : vector<16x128xf32>
    %209 = arith.mulf %208, %206 : vector<16x128xf32>
    %210 = vector.extract_strided_slice %175 {offsets = [0, 0], sizes = [16, 128], strides = [1, 1]} : vector<16x256xf32> to vector<16x128xf32>
    %211 = vector.extract_strided_slice %175 {offsets = [0, 128], sizes = [16, 128], strides = [1, 1]} : vector<16x256xf32> to vector<16x128xf32>
    %212 = arith.addf %210, %211 : vector<16x128xf32>
    %213 = arith.mulf %200, %212 : vector<16x128xf32>
    %214 = arith.addf %209, %213 : vector<16x128xf32>
    %215 = vector.extract_strided_slice %214 {offsets = [0, 0], sizes = [8, 128], strides = [1, 1]} : vector<16x128xf32> to vector<8x128xf32>
    %216 = arith.index_cast %c3_i32 : i32 to index
    %c0_75 = arith.constant 0 : index
    %c0_76 = arith.constant 0 : index
    %217 = vector.load %arg16[%216, %c0_75, %c0_76] : memref<8x8x128xf32, #tpu.memory_space<vmem>>, vector<1x8x128xf32>
    %218 = vector.shape_cast %217 : vector<1x8x128xf32> to vector<8x128xf32>
    %219 = vector.shape_cast %215 : vector<8x128xf32> to vector<1x8x128xf32>
    tpu.vector_store %arg16[%216, %c0_75, %c0_76], %219 {strides = array<i32>} : memref<8x8x128xf32, #tpu.memory_space<vmem>>, vector<1x8x128xf32>,
    %220 = vector.extract_strided_slice %214 {offsets = [8, 0], sizes = [8, 128], strides = [1, 1]} : vector<16x128xf32> to vector<8x128xf32>
    %221 = arith.index_cast %176 : i32 to index
    %c0_77 = arith.constant 0 : index
    %c0_78 = arith.constant 0 : index
    %222 = vector.load %arg17[%221, %c0_77, %c0_78] : memref<8x8x128xf32, #tpu.memory_space<vmem>>, vector<1x8x128xf32>
    %223 = vector.shape_cast %222 : vector<1x8x128xf32> to vector<8x128xf32>
    %224 = vector.shape_cast %220 : vector<8x128xf32> to vector<1x8x128xf32>
    tpu.vector_store %arg17[%221, %c0_77, %c0_78], %224 {strides = array<i32>} : memref<8x8x128xf32, #tpu.memory_space<vmem>>, vector<1x8x128xf32>,
    %225 = tpu.concatenate %214, %214 in 1 : vector<16x128xf32>, vector<16x128xf32> -> vector<16x256xf32>
    %226 = arith.mulf %225, %21 : vector<16x256xf32>
    %c4_i32 = arith.constant 4 : i32
    %c7_i32_79 = arith.constant 7 : i32
    %227 = arith.subi %c7_i32_79, %c4_i32 : i32
    %228 = arith.index_cast %c4_i32 : i32 to index
    %c0_80 = arith.constant 0 : index
    %c0_81 = arith.constant 0 : index
    %229 = vector.load %arg14[%228, %c0_80, %c0_81] : memref<8x8x384xf32, #tpu.memory_space<vmem>>, vector<1x8x384xf32>
    %230 = vector.shape_cast %229 : vector<1x8x384xf32> to vector<8x384xf32>
    %231 = arith.index_cast %227 : i32 to index
    %c0_82 = arith.constant 0 : index
    %c0_83 = arith.constant 0 : index
    %232 = vector.load %arg15[%231, %c0_82, %c0_83] : memref<8x8x384xf32, #tpu.memory_space<vmem>>, vector<1x8x384xf32>
    %233 = vector.shape_cast %232 : vector<1x8x384xf32> to vector<8x384xf32>
    %234 = tpu.concatenate %230, %233 in 0 : vector<8x384xf32>, vector<8x384xf32> -> vector<16x384xf32>
    %cst_84 = arith.constant dense<0.000000e+00> : vector<16x384xf32>
    %235 = tpu.matmul %226, %19, %cst_84 {dimension_numbers = #tpu.dot_dimension_numbers<[1], [0], [0], [1], [0, 0, 1, 1], [], []>} : vector<16x256xf32>, vector<256x384xf32>, vector<16x384xf32> -> vector<16x384xf32>
    %236 = vector.extract_strided_slice %234 {offsets = [0, 0], sizes = [16, 128], strides = [1, 1]} : vector<16x384xf32> to vector<16x128xf32>
    %237 = vector.extract_strided_slice %235 {offsets = [0, 0], sizes = [16, 128], strides = [1, 1]} : vector<16x384xf32> to vector<16x128xf32>
    %238 = arith.addf %236, %237 : vector<16x128xf32>
    %239 = arith.negf %238 : vector<16x128xf32>
    %240 = math.exp %239 : vector<16x128xf32>
    %cst_85 = arith.constant 1.000000e+00 : f32
    %241 = vector.broadcast %cst_85 : f32 to vector<16x128xf32>
    %242 = arith.addf %241, %240 : vector<16x128xf32>
    %243 = arith.divf %241, %242 : vector<16x128xf32>
    %244 = vector.extract_strided_slice %234 {offsets = [0, 128], sizes = [16, 128], strides = [1, 1]} : vector<16x384xf32> to vector<16x128xf32>
    %245 = vector.extract_strided_slice %235 {offsets = [0, 128], sizes = [16, 128], strides = [1, 1]} : vector<16x384xf32> to vector<16x128xf32>
    %246 = arith.addf %244, %245 : vector<16x128xf32>
    %247 = arith.negf %246 : vector<16x128xf32>
    %248 = math.exp %247 : vector<16x128xf32>
    %cst_86 = arith.constant 1.000000e+00 : f32
    %249 = vector.broadcast %cst_86 : f32 to vector<16x128xf32>
    %250 = arith.addf %249, %248 : vector<16x128xf32>
    %251 = arith.divf %249, %250 : vector<16x128xf32>
    %252 = vector.extract_strided_slice %234 {offsets = [0, 256], sizes = [16, 128], strides = [1, 1]} : vector<16x384xf32> to vector<16x128xf32>
    %253 = vector.extract_strided_slice %235 {offsets = [0, 256], sizes = [16, 128], strides = [1, 1]} : vector<16x384xf32> to vector<16x128xf32>
    %254 = arith.addf %253, %20 : vector<16x128xf32>
    %255 = arith.mulf %243, %254 : vector<16x128xf32>
    %256 = arith.addf %252, %255 : vector<16x128xf32>
    %257 = math.tanh %256 : vector<16x128xf32>
    %cst_87 = arith.constant 1.000000e+00 : f32
    %258 = vector.broadcast %cst_87 : f32 to vector<16x128xf32>
    %259 = arith.subf %258, %251 : vector<16x128xf32>
    %260 = arith.mulf %259, %257 : vector<16x128xf32>
    %261 = vector.extract_strided_slice %226 {offsets = [0, 0], sizes = [16, 128], strides = [1, 1]} : vector<16x256xf32> to vector<16x128xf32>
    %262 = vector.extract_strided_slice %226 {offsets = [0, 128], sizes = [16, 128], strides = [1, 1]} : vector<16x256xf32> to vector<16x128xf32>
    %263 = arith.addf %261, %262 : vector<16x128xf32>
    %264 = arith.mulf %251, %263 : vector<16x128xf32>
    %265 = arith.addf %260, %264 : vector<16x128xf32>
    %266 = vector.extract_strided_slice %265 {offsets = [0, 0], sizes = [8, 128], strides = [1, 1]} : vector<16x128xf32> to vector<8x128xf32>
    %267 = arith.index_cast %c4_i32 : i32 to index
    %c0_88 = arith.constant 0 : index
    %c0_89 = arith.constant 0 : index
    %268 = vector.load %arg16[%267, %c0_88, %c0_89] : memref<8x8x128xf32, #tpu.memory_space<vmem>>, vector<1x8x128xf32>
    %269 = vector.shape_cast %268 : vector<1x8x128xf32> to vector<8x128xf32>
    %270 = vector.shape_cast %266 : vector<8x128xf32> to vector<1x8x128xf32>
    tpu.vector_store %arg16[%267, %c0_88, %c0_89], %270 {strides = array<i32>} : memref<8x8x128xf32, #tpu.memory_space<vmem>>, vector<1x8x128xf32>,
    %271 = vector.extract_strided_slice %265 {offsets = [8, 0], sizes = [8, 128], strides = [1, 1]} : vector<16x128xf32> to vector<8x128xf32>
    %272 = arith.index_cast %227 : i32 to index
    %c0_90 = arith.constant 0 : index
    %c0_91 = arith.constant 0 : index
    %273 = vector.load %arg17[%272, %c0_90, %c0_91] : memref<8x8x128xf32, #tpu.memory_space<vmem>>, vector<1x8x128xf32>
    %274 = vector.shape_cast %273 : vector<1x8x128xf32> to vector<8x128xf32>
    %275 = vector.shape_cast %271 : vector<8x128xf32> to vector<1x8x128xf32>
    tpu.vector_store %arg17[%272, %c0_90, %c0_91], %275 {strides = array<i32>} : memref<8x8x128xf32, #tpu.memory_space<vmem>>, vector<1x8x128xf32>,
    %276 = tpu.concatenate %265, %265 in 1 : vector<16x128xf32>, vector<16x128xf32> -> vector<16x256xf32>
    %277 = arith.mulf %276, %21 : vector<16x256xf32>
    %c5_i32 = arith.constant 5 : i32
    %c7_i32_92 = arith.constant 7 : i32
    %278 = arith.subi %c7_i32_92, %c5_i32 : i32
    %279 = arith.index_cast %c5_i32 : i32 to index
    %c0_93 = arith.constant 0 : index
    %c0_94 = arith.constant 0 : index
    %280 = vector.load %arg14[%279, %c0_93, %c0_94] : memref<8x8x384xf32, #tpu.memory_space<vmem>>, vector<1x8x384xf32>
    %281 = vector.shape_cast %280 : vector<1x8x384xf32> to vector<8x384xf32>
    %282 = arith.index_cast %278 : i32 to index
    %c0_95 = arith.constant 0 : index
    %c0_96 = arith.constant 0 : index
    %283 = vector.load %arg15[%282, %c0_95, %c0_96] : memref<8x8x384xf32, #tpu.memory_space<vmem>>, vector<1x8x384xf32>
    %284 = vector.shape_cast %283 : vector<1x8x384xf32> to vector<8x384xf32>
    %285 = tpu.concatenate %281, %284 in 0 : vector<8x384xf32>, vector<8x384xf32> -> vector<16x384xf32>
    %cst_97 = arith.constant dense<0.000000e+00> : vector<16x384xf32>
    %286 = tpu.matmul %277, %19, %cst_97 {dimension_numbers = #tpu.dot_dimension_numbers<[1], [0], [0], [1], [0, 0, 1, 1], [], []>} : vector<16x256xf32>, vector<256x384xf32>, vector<16x384xf32> -> vector<16x384xf32>
    %287 = vector.extract_strided_slice %285 {offsets = [0, 0], sizes = [16, 128], strides = [1, 1]} : vector<16x384xf32> to vector<16x128xf32>
    %288 = vector.extract_strided_slice %286 {offsets = [0, 0], sizes = [16, 128], strides = [1, 1]} : vector<16x384xf32> to vector<16x128xf32>
    %289 = arith.addf %287, %288 : vector<16x128xf32>
    %290 = arith.negf %289 : vector<16x128xf32>
    %291 = math.exp %290 : vector<16x128xf32>
    %cst_98 = arith.constant 1.000000e+00 : f32
    %292 = vector.broadcast %cst_98 : f32 to vector<16x128xf32>
    %293 = arith.addf %292, %291 : vector<16x128xf32>
    %294 = arith.divf %292, %293 : vector<16x128xf32>
    %295 = vector.extract_strided_slice %285 {offsets = [0, 128], sizes = [16, 128], strides = [1, 1]} : vector<16x384xf32> to vector<16x128xf32>
    %296 = vector.extract_strided_slice %286 {offsets = [0, 128], sizes = [16, 128], strides = [1, 1]} : vector<16x384xf32> to vector<16x128xf32>
    %297 = arith.addf %295, %296 : vector<16x128xf32>
    %298 = arith.negf %297 : vector<16x128xf32>
    %299 = math.exp %298 : vector<16x128xf32>
    %cst_99 = arith.constant 1.000000e+00 : f32
    %300 = vector.broadcast %cst_99 : f32 to vector<16x128xf32>
    %301 = arith.addf %300, %299 : vector<16x128xf32>
    %302 = arith.divf %300, %301 : vector<16x128xf32>
    %303 = vector.extract_strided_slice %285 {offsets = [0, 256], sizes = [16, 128], strides = [1, 1]} : vector<16x384xf32> to vector<16x128xf32>
    %304 = vector.extract_strided_slice %286 {offsets = [0, 256], sizes = [16, 128], strides = [1, 1]} : vector<16x384xf32> to vector<16x128xf32>
    %305 = arith.addf %304, %20 : vector<16x128xf32>
    %306 = arith.mulf %294, %305 : vector<16x128xf32>
    %307 = arith.addf %303, %306 : vector<16x128xf32>
    %308 = math.tanh %307 : vector<16x128xf32>
    %cst_100 = arith.constant 1.000000e+00 : f32
    %309 = vector.broadcast %cst_100 : f32 to vector<16x128xf32>
    %310 = arith.subf %309, %302 : vector<16x128xf32>
    %311 = arith.mulf %310, %308 : vector<16x128xf32>
    %312 = vector.extract_strided_slice %277 {offsets = [0, 0], sizes = [16, 128], strides = [1, 1]} : vector<16x256xf32> to vector<16x128xf32>
    %313 = vector.extract_strided_slice %277 {offsets = [0, 128], sizes = [16, 128], strides = [1, 1]} : vector<16x256xf32> to vector<16x128xf32>
    %314 = arith.addf %312, %313 : vector<16x128xf32>
    %315 = arith.mulf %302, %314 : vector<16x128xf32>
    %316 = arith.addf %311, %315 : vector<16x128xf32>
    %317 = vector.extract_strided_slice %316 {offsets = [0, 0], sizes = [8, 128], strides = [1, 1]} : vector<16x128xf32> to vector<8x128xf32>
    %318 = arith.index_cast %c5_i32 : i32 to index
    %c0_101 = arith.constant 0 : index
    %c0_102 = arith.constant 0 : index
    %319 = vector.load %arg16[%318, %c0_101, %c0_102] : memref<8x8x128xf32, #tpu.memory_space<vmem>>, vector<1x8x128xf32>
    %320 = vector.shape_cast %319 : vector<1x8x128xf32> to vector<8x128xf32>
    %321 = vector.shape_cast %317 : vector<8x128xf32> to vector<1x8x128xf32>
    tpu.vector_store %arg16[%318, %c0_101, %c0_102], %321 {strides = array<i32>} : memref<8x8x128xf32, #tpu.memory_space<vmem>>, vector<1x8x128xf32>,
    %322 = vector.extract_strided_slice %316 {offsets = [8, 0], sizes = [8, 128], strides = [1, 1]} : vector<16x128xf32> to vector<8x128xf32>
    %323 = arith.index_cast %278 : i32 to index
    %c0_103 = arith.constant 0 : index
    %c0_104 = arith.constant 0 : index
    %324 = vector.load %arg17[%323, %c0_103, %c0_104] : memref<8x8x128xf32, #tpu.memory_space<vmem>>, vector<1x8x128xf32>
    %325 = vector.shape_cast %324 : vector<1x8x128xf32> to vector<8x128xf32>
    %326 = vector.shape_cast %322 : vector<8x128xf32> to vector<1x8x128xf32>
    tpu.vector_store %arg17[%323, %c0_103, %c0_104], %326 {strides = array<i32>} : memref<8x8x128xf32, #tpu.memory_space<vmem>>, vector<1x8x128xf32>,
    %327 = tpu.concatenate %316, %316 in 1 : vector<16x128xf32>, vector<16x128xf32> -> vector<16x256xf32>
    %328 = arith.mulf %327, %21 : vector<16x256xf32>
    %c6_i32 = arith.constant 6 : i32
    %c7_i32_105 = arith.constant 7 : i32
    %329 = arith.subi %c7_i32_105, %c6_i32 : i32
    %330 = arith.index_cast %c6_i32 : i32 to index
    %c0_106 = arith.constant 0 : index
    %c0_107 = arith.constant 0 : index
    %331 = vector.load %arg14[%330, %c0_106, %c0_107] : memref<8x8x384xf32, #tpu.memory_space<vmem>>, vector<1x8x384xf32>
    %332 = vector.shape_cast %331 : vector<1x8x384xf32> to vector<8x384xf32>
    %333 = arith.index_cast %329 : i32 to index
    %c0_108 = arith.constant 0 : index
    %c0_109 = arith.constant 0 : index
    %334 = vector.load %arg15[%333, %c0_108, %c0_109] : memref<8x8x384xf32, #tpu.memory_space<vmem>>, vector<1x8x384xf32>
    %335 = vector.shape_cast %334 : vector<1x8x384xf32> to vector<8x384xf32>
    %336 = tpu.concatenate %332, %335 in 0 : vector<8x384xf32>, vector<8x384xf32> -> vector<16x384xf32>
    %cst_110 = arith.constant dense<0.000000e+00> : vector<16x384xf32>
    %337 = tpu.matmul %328, %19, %cst_110 {dimension_numbers = #tpu.dot_dimension_numbers<[1], [0], [0], [1], [0, 0, 1, 1], [], []>} : vector<16x256xf32>, vector<256x384xf32>, vector<16x384xf32> -> vector<16x384xf32>
    %338 = vector.extract_strided_slice %336 {offsets = [0, 0], sizes = [16, 128], strides = [1, 1]} : vector<16x384xf32> to vector<16x128xf32>
    %339 = vector.extract_strided_slice %337 {offsets = [0, 0], sizes = [16, 128], strides = [1, 1]} : vector<16x384xf32> to vector<16x128xf32>
    %340 = arith.addf %338, %339 : vector<16x128xf32>
    %341 = arith.negf %340 : vector<16x128xf32>
    %342 = math.exp %341 : vector<16x128xf32>
    %cst_111 = arith.constant 1.000000e+00 : f32
    %343 = vector.broadcast %cst_111 : f32 to vector<16x128xf32>
    %344 = arith.addf %343, %342 : vector<16x128xf32>
    %345 = arith.divf %343, %344 : vector<16x128xf32>
    %346 = vector.extract_strided_slice %336 {offsets = [0, 128], sizes = [16, 128], strides = [1, 1]} : vector<16x384xf32> to vector<16x128xf32>
    %347 = vector.extract_strided_slice %337 {offsets = [0, 128], sizes = [16, 128], strides = [1, 1]} : vector<16x384xf32> to vector<16x128xf32>
    %348 = arith.addf %346, %347 : vector<16x128xf32>
    %349 = arith.negf %348 : vector<16x128xf32>
    %350 = math.exp %349 : vector<16x128xf32>
    %cst_112 = arith.constant 1.000000e+00 : f32
    %351 = vector.broadcast %cst_112 : f32 to vector<16x128xf32>
    %352 = arith.addf %351, %350 : vector<16x128xf32>
    %353 = arith.divf %351, %352 : vector<16x128xf32>
    %354 = vector.extract_strided_slice %336 {offsets = [0, 256], sizes = [16, 128], strides = [1, 1]} : vector<16x384xf32> to vector<16x128xf32>
    %355 = vector.extract_strided_slice %337 {offsets = [0, 256], sizes = [16, 128], strides = [1, 1]} : vector<16x384xf32> to vector<16x128xf32>
    %356 = arith.addf %355, %20 : vector<16x128xf32>
    %357 = arith.mulf %345, %356 : vector<16x128xf32>
    %358 = arith.addf %354, %357 : vector<16x128xf32>
    %359 = math.tanh %358 : vector<16x128xf32>
    %cst_113 = arith.constant 1.000000e+00 : f32
    %360 = vector.broadcast %cst_113 : f32 to vector<16x128xf32>
    %361 = arith.subf %360, %353 : vector<16x128xf32>
    %362 = arith.mulf %361, %359 : vector<16x128xf32>
    %363 = vector.extract_strided_slice %328 {offsets = [0, 0], sizes = [16, 128], strides = [1, 1]} : vector<16x256xf32> to vector<16x128xf32>
    %364 = vector.extract_strided_slice %328 {offsets = [0, 128], sizes = [16, 128], strides = [1, 1]} : vector<16x256xf32> to vector<16x128xf32>
    %365 = arith.addf %363, %364 : vector<16x128xf32>
    %366 = arith.mulf %353, %365 : vector<16x128xf32>
    %367 = arith.addf %362, %366 : vector<16x128xf32>
    %368 = vector.extract_strided_slice %367 {offsets = [0, 0], sizes = [8, 128], strides = [1, 1]} : vector<16x128xf32> to vector<8x128xf32>
    %369 = arith.index_cast %c6_i32 : i32 to index
    %c0_114 = arith.constant 0 : index
    %c0_115 = arith.constant 0 : index
    %370 = vector.load %arg16[%369, %c0_114, %c0_115] : memref<8x8x128xf32, #tpu.memory_space<vmem>>, vector<1x8x128xf32>
    %371 = vector.shape_cast %370 : vector<1x8x128xf32> to vector<8x128xf32>
    %372 = vector.shape_cast %368 : vector<8x128xf32> to vector<1x8x128xf32>
    tpu.vector_store %arg16[%369, %c0_114, %c0_115], %372 {strides = array<i32>} : memref<8x8x128xf32, #tpu.memory_space<vmem>>, vector<1x8x128xf32>,
    %373 = vector.extract_strided_slice %367 {offsets = [8, 0], sizes = [8, 128], strides = [1, 1]} : vector<16x128xf32> to vector<8x128xf32>
    %374 = arith.index_cast %329 : i32 to index
    %c0_116 = arith.constant 0 : index
    %c0_117 = arith.constant 0 : index
    %375 = vector.load %arg17[%374, %c0_116, %c0_117] : memref<8x8x128xf32, #tpu.memory_space<vmem>>, vector<1x8x128xf32>
    %376 = vector.shape_cast %375 : vector<1x8x128xf32> to vector<8x128xf32>
    %377 = vector.shape_cast %373 : vector<8x128xf32> to vector<1x8x128xf32>
    tpu.vector_store %arg17[%374, %c0_116, %c0_117], %377 {strides = array<i32>} : memref<8x8x128xf32, #tpu.memory_space<vmem>>, vector<1x8x128xf32>,
    %378 = tpu.concatenate %367, %367 in 1 : vector<16x128xf32>, vector<16x128xf32> -> vector<16x256xf32>
    %379 = arith.mulf %378, %21 : vector<16x256xf32>
    %c7_i32_118 = arith.constant 7 : i32
    %c7_i32_119 = arith.constant 7 : i32
    %380 = arith.subi %c7_i32_119, %c7_i32_118 : i32
    %381 = arith.index_cast %c7_i32_118 : i32 to index
    %c0_120 = arith.constant 0 : index
    %c0_121 = arith.constant 0 : index
    %382 = vector.load %arg14[%381, %c0_120, %c0_121] : memref<8x8x384xf32, #tpu.memory_space<vmem>>, vector<1x8x384xf32>
    %383 = vector.shape_cast %382 : vector<1x8x384xf32> to vector<8x384xf32>
    %384 = arith.index_cast %380 : i32 to index
    %c0_122 = arith.constant 0 : index
    %c0_123 = arith.constant 0 : index
    %385 = vector.load %arg15[%384, %c0_122, %c0_123] : memref<8x8x384xf32, #tpu.memory_space<vmem>>, vector<1x8x384xf32>
    %386 = vector.shape_cast %385 : vector<1x8x384xf32> to vector<8x384xf32>
    %387 = tpu.concatenate %383, %386 in 0 : vector<8x384xf32>, vector<8x384xf32> -> vector<16x384xf32>
    %cst_124 = arith.constant dense<0.000000e+00> : vector<16x384xf32>
    %388 = tpu.matmul %379, %19, %cst_124 {dimension_numbers = #tpu.dot_dimension_numbers<[1], [0], [0], [1], [0, 0, 1, 1], [], []>} : vector<16x256xf32>, vector<256x384xf32>, vector<16x384xf32> -> vector<16x384xf32>
    %389 = vector.extract_strided_slice %387 {offsets = [0, 0], sizes = [16, 128], strides = [1, 1]} : vector<16x384xf32> to vector<16x128xf32>
    %390 = vector.extract_strided_slice %388 {offsets = [0, 0], sizes = [16, 128], strides = [1, 1]} : vector<16x384xf32> to vector<16x128xf32>
    %391 = arith.addf %389, %390 : vector<16x128xf32>
    %392 = arith.negf %391 : vector<16x128xf32>
    %393 = math.exp %392 : vector<16x128xf32>
    %cst_125 = arith.constant 1.000000e+00 : f32
    %394 = vector.broadcast %cst_125 : f32 to vector<16x128xf32>
    %395 = arith.addf %394, %393 : vector<16x128xf32>
    %396 = arith.divf %394, %395 : vector<16x128xf32>
    %397 = vector.extract_strided_slice %387 {offsets = [0, 128], sizes = [16, 128], strides = [1, 1]} : vector<16x384xf32> to vector<16x128xf32>
    %398 = vector.extract_strided_slice %388 {offsets = [0, 128], sizes = [16, 128], strides = [1, 1]} : vector<16x384xf32> to vector<16x128xf32>
    %399 = arith.addf %397, %398 : vector<16x128xf32>
    %400 = arith.negf %399 : vector<16x128xf32>
    %401 = math.exp %400 : vector<16x128xf32>
    %cst_126 = arith.constant 1.000000e+00 : f32
    %402 = vector.broadcast %cst_126 : f32 to vector<16x128xf32>
    %403 = arith.addf %402, %401 : vector<16x128xf32>
    %404 = arith.divf %402, %403 : vector<16x128xf32>
    %405 = vector.extract_strided_slice %387 {offsets = [0, 256], sizes = [16, 128], strides = [1, 1]} : vector<16x384xf32> to vector<16x128xf32>
    %406 = vector.extract_strided_slice %388 {offsets = [0, 256], sizes = [16, 128], strides = [1, 1]} : vector<16x384xf32> to vector<16x128xf32>
    %407 = arith.addf %406, %20 : vector<16x128xf32>
    %408 = arith.mulf %396, %407 : vector<16x128xf32>
    %409 = arith.addf %405, %408 : vector<16x128xf32>
    %410 = math.tanh %409 : vector<16x128xf32>
    %cst_127 = arith.constant 1.000000e+00 : f32
    %411 = vector.broadcast %cst_127 : f32 to vector<16x128xf32>
    %412 = arith.subf %411, %404 : vector<16x128xf32>
    %413 = arith.mulf %412, %410 : vector<16x128xf32>
    %414 = vector.extract_strided_slice %379 {offsets = [0, 0], sizes = [16, 128], strides = [1, 1]} : vector<16x256xf32> to vector<16x128xf32>
    %415 = vector.extract_strided_slice %379 {offsets = [0, 128], sizes = [16, 128], strides = [1, 1]} : vector<16x256xf32> to vector<16x128xf32>
    %416 = arith.addf %414, %415 : vector<16x128xf32>
    %417 = arith.mulf %404, %416 : vector<16x128xf32>
    %418 = arith.addf %413, %417 : vector<16x128xf32>
    %419 = vector.extract_strided_slice %418 {offsets = [0, 0], sizes = [8, 128], strides = [1, 1]} : vector<16x128xf32> to vector<8x128xf32>
    %420 = arith.index_cast %c7_i32_118 : i32 to index
    %c0_128 = arith.constant 0 : index
    %c0_129 = arith.constant 0 : index
    %421 = vector.load %arg16[%420, %c0_128, %c0_129] : memref<8x8x128xf32, #tpu.memory_space<vmem>>, vector<1x8x128xf32>
    %422 = vector.shape_cast %421 : vector<1x8x128xf32> to vector<8x128xf32>
    %423 = vector.shape_cast %419 : vector<8x128xf32> to vector<1x8x128xf32>
    tpu.vector_store %arg16[%420, %c0_128, %c0_129], %423 {strides = array<i32>} : memref<8x8x128xf32, #tpu.memory_space<vmem>>, vector<1x8x128xf32>,
    %424 = vector.extract_strided_slice %418 {offsets = [8, 0], sizes = [8, 128], strides = [1, 1]} : vector<16x128xf32> to vector<8x128xf32>
    %425 = arith.index_cast %380 : i32 to index
    %c0_130 = arith.constant 0 : index
    %c0_131 = arith.constant 0 : index
    %426 = vector.load %arg17[%425, %c0_130, %c0_131] : memref<8x8x128xf32, #tpu.memory_space<vmem>>, vector<1x8x128xf32>
    %427 = vector.shape_cast %426 : vector<1x8x128xf32> to vector<8x128xf32>
    %428 = vector.shape_cast %424 : vector<8x128xf32> to vector<1x8x128xf32>
    tpu.vector_store %arg17[%425, %c0_130, %c0_131], %428 {strides = array<i32>} : memref<8x8x128xf32, #tpu.memory_space<vmem>>, vector<1x8x128xf32>,
    %429 = tpu.concatenate %418, %418 in 1 : vector<16x128xf32>, vector<16x128xf32> -> vector<16x256xf32>
    %430 = arith.mulf %429, %21 : vector<16x256xf32>
    %c8_i32 = arith.constant 8 : i32
    %c0_132 = arith.constant 0 : index
    %c0_133 = arith.constant 0 : index
    %431 = vector.load %arg13[%c0_132, %c0_133] : memref<16x256xf32, #tpu.memory_space<vmem>>, vector<16x256xf32>
    tpu.vector_store %arg13[%c0_132, %c0_133], %430 {strides = array<i32>} : memref<16x256xf32, #tpu.memory_space<vmem>>, vector<16x256xf32>,
    %c0_134 = arith.constant 0 : index
    %c0_135 = arith.constant 0 : index
    %c0_136 = arith.constant 0 : index
    %432 = vector.load %arg16[%c0_134, %c0_135, %c0_136] : memref<8x8x128xf32, #tpu.memory_space<vmem>>, vector<8x8x128xf32>
    %c0_137 = arith.constant 0 : index
    %c0_138 = arith.constant 0 : index
    %c0_139 = arith.constant 0 : index
    %433 = vector.load %arg17[%c0_137, %c0_138, %c0_139] : memref<8x8x128xf32, #tpu.memory_space<vmem>>, vector<8x8x128xf32>
    %434 = tpu.concatenate %432, %433 in 2 : vector<8x8x128xf32>, vector<8x8x128xf32> -> vector<8x8x256xf32>
    %c0_140 = arith.constant 0 : index
    %c0_141 = arith.constant 0 : index
    %435 = vector.load %arg9[%c0_140, %c0_141] : memref<256x256xf32, #tpu.memory_space<vmem>>, vector<256x256xf32>
    %c0_142 = arith.constant 0 : index
    %c0_143 = arith.constant 0 : index
    %436 = vector.load %arg10[%c0_142, %c0_143] : memref<1x256xf32, #tpu.memory_space<vmem>>, vector<1x256xf32>
    %c0_144 = arith.constant 0 : index
    %c0_145 = arith.constant 0 : index
    %437 = vector.load %arg11[%c0_144, %c0_145] : memref<1x256xf32, #tpu.memory_space<vmem>>, vector<1x256xf32>
    %438 = vector.shape_cast %434 : vector<8x8x256xf32> to vector<64x256xf32>
    %cst_146 = arith.constant dense<0.000000e+00> : vector<64x256xf32>
    %439 = tpu.matmul %438, %435, %cst_146 {dimension_numbers = #tpu.dot_dimension_numbers<[1], [0], [0], [1], [0, 0, 1, 1], [], []>} : vector<64x256xf32>, vector<256x256xf32>, vector<64x256xf32> -> vector<64x256xf32>
    %440 = vector.shape_cast %439 : vector<64x256xf32> to vector<8x8x256xf32>
    %441 = vector.shape_cast %436 : vector<1x256xf32> to vector<1x1x256xf32>
    %442 = vector.broadcast %441 : vector<1x1x256xf32> to vector<8x8x256xf32>
    %443 = arith.addf %440, %442 : vector<8x8x256xf32>
    %444 = math.tanh %443 : vector<8x8x256xf32>
    %445 = vector.shape_cast %437 : vector<1x256xf32> to vector<1x1x256xf32>
    %446 = vector.broadcast %445 : vector<1x1x256xf32> to vector<8x8x256xf32>
    %447 = arith.mulf %444, %446 : vector<8x8x256xf32>
    %cst_147 = arith.constant dense<0.000000e+00> : vector<8x8xf32>
    %448 = vector.multi_reduction <add>, %447, %cst_147 [2] : vector<8x8x256xf32> to vector<8x8xf32>
    %449 = vector.shape_cast %448 : vector<8x8xf32> to vector<8x8x1xf32>
    %cst_148 = arith.constant dense<0xFF800000> : vector<8x1xf32>
    %450 = vector.multi_reduction <maximumf>, %449, %cst_148 [0] : vector<8x8x1xf32> to vector<8x1xf32>
    %451 = vector.shape_cast %450 : vector<8x1xf32> to vector<1x8x1xf32>
    %452 = vector.broadcast %451 : vector<1x8x1xf32> to vector<8x8x1xf32>
    %453 = arith.subf %449, %452 : vector<8x8x1xf32>
    %454 = math.exp %453 : vector<8x8x1xf32>
    %cst_149 = arith.constant dense<0.000000e+00> : vector<8x1xf32>
    %455 = vector.multi_reduction <add>, %454, %cst_149 [0] : vector<8x8x1xf32> to vector<8x1xf32>
    %456 = vector.shape_cast %455 : vector<8x1xf32> to vector<1x8x1xf32>
    %457 = tpu.reciprocal %456 {approx = true} : vector<1x8x1xf32> -> vector<1x8x1xf32>
    %458 = vector.broadcast %457 : vector<1x8x1xf32> to vector<8x8x1xf32>
    %459 = arith.mulf %454, %458 : vector<8x8x1xf32>
    %460 = vector.broadcast %459 : vector<8x8x1xf32> to vector<8x8x256xf32>
    %461 = arith.mulf %460, %434 : vector<8x8x256xf32>
    %cst_150 = arith.constant dense<0.000000e+00> : vector<8x256xf32>
    %462 = vector.multi_reduction <add>, %461, %cst_150 [0] : vector<8x8x256xf32> to vector<8x256xf32>
    %463 = vector.shape_cast %462 : vector<8x256xf32> to vector<1x8x256xf32>
    %c0_151 = arith.constant 0 : index
    %c0_152 = arith.constant 0 : index
    %c0_153 = arith.constant 0 : index
    %464 = vector.load %arg12[%c0_151, %c0_152, %c0_153] : memref<1x8x256xf32, #tpu.memory_space<vmem>>, vector<1x8x256xf32>
    tpu.vector_store %arg12[%c0_151, %c0_152, %c0_153], %463 {strides = array<i32>} : memref<1x8x256xf32, #tpu.memory_space<vmem>>, vector<1x8x256xf32>,
    return
  }
  func.func @transform_0(%arg0: i32) -> (i32, i32, i32, i32) {
    %c0_i32 = arith.constant 0 : i32
    %c0_i32_0 = arith.constant 0 : i32
    %c0_i32_1 = arith.constant 0 : i32
    %c0_i32_2 = arith.constant 0 : i32
    return %arg0, %c0_i32, %c0_i32_0, %c0_i32_1 : i32, i32, i32, i32
  }
  func.func @transform_1(%arg0: i32) -> (i32, i32) {
    %c0_i32 = arith.constant 0 : i32
    %c0_i32_0 = arith.constant 0 : i32
    %c0_i32_1 = arith.constant 0 : i32
    return %c0_i32, %c0_i32_0 : i32, i32
  }
  func.func @transform_2(%arg0: i32) -> (i32, i32) {
    %c0_i32 = arith.constant 0 : i32
    %c0_i32_0 = arith.constant 0 : i32
    %c0_i32_1 = arith.constant 0 : i32
    return %c0_i32, %c0_i32_0 : i32, i32
  }
  func.func @transform_3(%arg0: i32) -> (i32, i32) {
    %c0_i32 = arith.constant 0 : i32
    %c0_i32_0 = arith.constant 0 : i32
    %c0_i32_1 = arith.constant 0 : i32
    return %c0_i32, %c0_i32_0 : i32, i32
  }
  func.func @transform_4(%arg0: i32) -> (i32, i32) {
    %c0_i32 = arith.constant 0 : i32
    %c0_i32_0 = arith.constant 0 : i32
    %c0_i32_1 = arith.constant 0 : i32
    return %c0_i32, %c0_i32_0 : i32, i32
  }
  func.func @transform_5(%arg0: i32) -> (i32, i32) {
    %c0_i32 = arith.constant 0 : i32
    %c0_i32_0 = arith.constant 0 : i32
    %c0_i32_1 = arith.constant 0 : i32
    return %c0_i32, %c0_i32_0 : i32, i32
  }
  func.func @transform_6(%arg0: i32) -> (i32, i32) {
    %c0_i32 = arith.constant 0 : i32
    %c0_i32_0 = arith.constant 0 : i32
    %c0_i32_1 = arith.constant 0 : i32
    return %c0_i32, %c0_i32_0 : i32, i32
  }
  func.func @transform_7(%arg0: i32) -> (i32, i32) {
    %c0_i32 = arith.constant 0 : i32
    %c0_i32_0 = arith.constant 0 : i32
    %c0_i32_1 = arith.constant 0 : i32
    return %c0_i32, %c0_i32_0 : i32, i32
  }
  func.func @transform_8(%arg0: i32) -> (i32, i32) {
    %c0_i32 = arith.constant 0 : i32
    %c0_i32_0 = arith.constant 0 : i32
    %c0_i32_1 = arith.constant 0 : i32
    return %c0_i32, %c0_i32_0 : i32, i32
  }
  func.func @transform_9(%arg0: i32) -> (i32, i32) {
    %c0_i32 = arith.constant 0 : i32
    %c0_i32_0 = arith.constant 0 : i32
    %c0_i32_1 = arith.constant 0 : i32
    return %c0_i32, %c0_i32_0 : i32, i32
  }
  func.func @transform_10(%arg0: i32) -> (i32, i32) {
    %c0_i32 = arith.constant 0 : i32
    %c0_i32_0 = arith.constant 0 : i32
    %c0_i32_1 = arith.constant 0 : i32
    return %c0_i32, %c0_i32_0 : i32, i32
  }
  func.func @transform_11(%arg0: i32) -> (i32, i32, i32) {
    %c0_i32 = arith.constant 0 : i32
    %c0_i32_0 = arith.constant 0 : i32
    %c0_i32_1 = arith.constant 0 : i32
    return %arg0, %c0_i32, %c0_i32_0 : i32, i32, i32
  }
}

module attributes {stable_mosaic.version = 11 : i64} {
  func.func @sent_level_kernel(%arg0: i32, %arg1: memref<4x8x256xf32, #tpu.memory_space<vmem>>, %arg2: memref<4x8x128xf32, #tpu.memory_space<vmem>>, %arg3: memref<256x384xf32, #tpu.memory_space<vmem>>, %arg4: memref<256x384xf32, #tpu.memory_space<vmem>>, %arg5: memref<1x384xf32, #tpu.memory_space<vmem>>, %arg6: memref<1x384xf32, #tpu.memory_space<vmem>>, %arg7: memref<256x384xf32, #tpu.memory_space<vmem>>, %arg8: memref<16x128xf32, #tpu.memory_space<vmem>>, %arg9: memref<16x256xf32, #tpu.memory_space<vmem>>, %arg10: memref<384x384xf32, #tpu.memory_space<vmem>>, %arg11: memref<1x384xf32, #tpu.memory_space<vmem>>, %arg12: memref<1x384xf32, #tpu.memory_space<vmem>>, %arg13: memref<8x384xf32, #tpu.memory_space<vmem>>, %arg14: memref<4x8x384xf32, #tpu.memory_space<vmem>>, %arg15: memref<4x8x384xf32, #tpu.memory_space<vmem>>, %arg16: memref<4x8x128xf32, #tpu.memory_space<vmem>>, %arg17: memref<4x8x128xf32, #tpu.memory_space<vmem>>) attributes {dimension_semantics = [#tpu.dimension_semantics<arbitrary>], iteration_bounds = array<i64: 1>, scalar_prefetch = 0 : i64, scratch_operands = 4 : i64, tpu.core_type = #tpu.core_type<tc>, window_params = [{pipeline_mode = #tpu.pipeline_mode<synchronous>, transform_indices = @transform_0, window_bounds = array<i64: 4, 8, 256>}, {pipeline_mode = #tpu.pipeline_mode<synchronous>, transform_indices = @transform_1, window_bounds = array<i64: 4, 8, 128>}, {pipeline_mode = #tpu.pipeline_mode<synchronous>, transform_indices = @transform_2, window_bounds = array<i64: 256, 384>}, {pipeline_mode = #tpu.pipeline_mode<synchronous>, transform_indices = @transform_3, window_bounds = array<i64: 256, 384>}, {pipeline_mode = #tpu.pipeline_mode<synchronous>, transform_indices = @transform_4, window_bounds = array<i64: 1, 384>}, {pipeline_mode = #tpu.pipeline_mode<synchronous>, transform_indices = @transform_5, window_bounds = array<i64: 1, 384>}, {pipeline_mode = #tpu.pipeline_mode<synchronous>, transform_indices = @transform_6, window_bounds = array<i64: 256, 384>}, {pipeline_mode = #tpu.pipeline_mode<synchronous>, transform_indices = @transform_7, window_bounds = array<i64: 16, 128>}, {pipeline_mode = #tpu.pipeline_mode<synchronous>, transform_indices = @transform_8, window_bounds = array<i64: 16, 256>}, {pipeline_mode = #tpu.pipeline_mode<synchronous>, transform_indices = @transform_9, window_bounds = array<i64: 384, 384>}, {pipeline_mode = #tpu.pipeline_mode<synchronous>, transform_indices = @transform_10, window_bounds = array<i64: 1, 384>}, {pipeline_mode = #tpu.pipeline_mode<synchronous>, transform_indices = @transform_11, window_bounds = array<i64: 1, 384>}, {pipeline_mode = #tpu.pipeline_mode<synchronous>, transform_indices = @transform_12, window_bounds = array<i64: 8, 384>}]} {
    %c0 = arith.constant 0 : index
    %c0_0 = arith.constant 0 : index
    %c0_1 = arith.constant 0 : index
    %0 = vector.load %arg1[%c0, %c0_0, %c0_1] : memref<4x8x256xf32, #tpu.memory_space<vmem>>, vector<4x8x256xf32>
    %1 = vector.shape_cast %0 : vector<4x8x256xf32> to vector<32x256xf32>
    %c0_2 = arith.constant 0 : index
    %c0_3 = arith.constant 0 : index
    %2 = vector.load %arg3[%c0_2, %c0_3] : memref<256x384xf32, #tpu.memory_space<vmem>>, vector<256x384xf32>
    %cst = arith.constant dense<0.000000e+00> : vector<32x384xf32>
    %3 = tpu.matmul %1, %2, %cst {dimension_numbers = #tpu.dot_dimension_numbers<[1], [0], [0], [1], [0, 0, 1, 1], [], []>} : vector<32x256xf32>, vector<256x384xf32>, vector<32x384xf32> -> vector<32x384xf32>
    %c0_4 = arith.constant 0 : index
    %c0_5 = arith.constant 0 : index
    %4 = vector.load %arg5[%c0_4, %c0_5] : memref<1x384xf32, #tpu.memory_space<vmem>>, vector<1x384xf32>
    %5 = vector.broadcast %4 : vector<1x384xf32> to vector<32x384xf32>
    %6 = arith.addf %3, %5 : vector<32x384xf32>
    %7 = vector.shape_cast %6 : vector<32x384xf32> to vector<4x8x384xf32>
    %c0_6 = arith.constant 0 : index
    %c0_7 = arith.constant 0 : index
    %c0_8 = arith.constant 0 : index
    %8 = vector.load %arg14[%c0_6, %c0_7, %c0_8] : memref<4x8x384xf32, #tpu.memory_space<vmem>>, vector<4x8x384xf32>
    tpu.vector_store %arg14[%c0_6, %c0_7, %c0_8], %7 {strides = array<i32>} : memref<4x8x384xf32, #tpu.memory_space<vmem>>, vector<4x8x384xf32>,
    %c0_9 = arith.constant 0 : index
    %c0_10 = arith.constant 0 : index
    %9 = vector.load %arg4[%c0_9, %c0_10] : memref<256x384xf32, #tpu.memory_space<vmem>>, vector<256x384xf32>
    %cst_11 = arith.constant dense<0.000000e+00> : vector<32x384xf32>
    %10 = tpu.matmul %1, %9, %cst_11 {dimension_numbers = #tpu.dot_dimension_numbers<[1], [0], [0], [1], [0, 0, 1, 1], [], []>} : vector<32x256xf32>, vector<256x384xf32>, vector<32x384xf32> -> vector<32x384xf32>
    %c0_12 = arith.constant 0 : index
    %c0_13 = arith.constant 0 : index
    %11 = vector.load %arg6[%c0_12, %c0_13] : memref<1x384xf32, #tpu.memory_space<vmem>>, vector<1x384xf32>
    %12 = vector.broadcast %11 : vector<1x384xf32> to vector<32x384xf32>
    %13 = arith.addf %10, %12 : vector<32x384xf32>
    %14 = vector.shape_cast %13 : vector<32x384xf32> to vector<4x8x384xf32>
    %c0_14 = arith.constant 0 : index
    %c0_15 = arith.constant 0 : index
    %c0_16 = arith.constant 0 : index
    %15 = vector.load %arg15[%c0_14, %c0_15, %c0_16] : memref<4x8x384xf32, #tpu.memory_space<vmem>>, vector<4x8x384xf32>
    tpu.vector_store %arg15[%c0_14, %c0_15, %c0_16], %14 {strides = array<i32>} : memref<4x8x384xf32, #tpu.memory_space<vmem>>, vector<4x8x384xf32>,
    %cst_17 = arith.constant 0.000000e+00 : f32
    %16 = vector.broadcast %cst_17 : f32 to vector<16x256xf32>
    %c0_18 = arith.constant 0 : index
    %c0_19 = arith.constant 0 : index
    %17 = vector.load %arg7[%c0_18, %c0_19] : memref<256x384xf32, #tpu.memory_space<vmem>>, vector<256x384xf32>
    %c0_20 = arith.constant 0 : index
    %c0_21 = arith.constant 0 : index
    %18 = vector.load %arg8[%c0_20, %c0_21] : memref<16x128xf32, #tpu.memory_space<vmem>>, vector<16x128xf32>
    %c0_22 = arith.constant 0 : index
    %c0_23 = arith.constant 0 : index
    %19 = vector.load %arg9[%c0_22, %c0_23] : memref<16x256xf32, #tpu.memory_space<vmem>>, vector<16x256xf32>
    %c0_i32 = arith.constant 0 : i32
    %c3_i32 = arith.constant 3 : i32
    %20 = arith.subi %c3_i32, %c0_i32 : i32
    %21 = arith.index_cast %c0_i32 : i32 to index
    %c0_24 = arith.constant 0 : index
    %c0_25 = arith.constant 0 : index
    %22 = vector.load %arg14[%21, %c0_24, %c0_25] : memref<4x8x384xf32, #tpu.memory_space<vmem>>, vector<1x8x384xf32>
    %23 = vector.shape_cast %22 : vector<1x8x384xf32> to vector<8x384xf32>
    %24 = arith.index_cast %20 : i32 to index
    %c0_26 = arith.constant 0 : index
    %c0_27 = arith.constant 0 : index
    %25 = vector.load %arg15[%24, %c0_26, %c0_27] : memref<4x8x384xf32, #tpu.memory_space<vmem>>, vector<1x8x384xf32>
    %26 = vector.shape_cast %25 : vector<1x8x384xf32> to vector<8x384xf32>
    %27 = tpu.concatenate %23, %26 in 0 : vector<8x384xf32>, vector<8x384xf32> -> vector<16x384xf32>
    %cst_28 = arith.constant dense<0.000000e+00> : vector<16x384xf32>
    %28 = tpu.matmul %16, %17, %cst_28 {dimension_numbers = #tpu.dot_dimension_numbers<[1], [0], [0], [1], [0, 0, 1, 1], [], []>} : vector<16x256xf32>, vector<256x384xf32>, vector<16x384xf32> -> vector<16x384xf32>
    %29 = vector.extract_strided_slice %27 {offsets = [0, 0], sizes = [16, 128], strides = [1, 1]} : vector<16x384xf32> to vector<16x128xf32>
    %30 = vector.extract_strided_slice %28 {offsets = [0, 0], sizes = [16, 128], strides = [1, 1]} : vector<16x384xf32> to vector<16x128xf32>
    %31 = arith.addf %29, %30 : vector<16x128xf32>
    %32 = arith.negf %31 : vector<16x128xf32>
    %33 = math.exp %32 : vector<16x128xf32>
    %cst_29 = arith.constant 1.000000e+00 : f32
    %34 = vector.broadcast %cst_29 : f32 to vector<16x128xf32>
    %35 = arith.addf %34, %33 : vector<16x128xf32>
    %36 = arith.divf %34, %35 : vector<16x128xf32>
    %37 = vector.extract_strided_slice %27 {offsets = [0, 128], sizes = [16, 128], strides = [1, 1]} : vector<16x384xf32> to vector<16x128xf32>
    %38 = vector.extract_strided_slice %28 {offsets = [0, 128], sizes = [16, 128], strides = [1, 1]} : vector<16x384xf32> to vector<16x128xf32>
    %39 = arith.addf %37, %38 : vector<16x128xf32>
    %40 = arith.negf %39 : vector<16x128xf32>
    %41 = math.exp %40 : vector<16x128xf32>
    %cst_30 = arith.constant 1.000000e+00 : f32
    %42 = vector.broadcast %cst_30 : f32 to vector<16x128xf32>
    %43 = arith.addf %42, %41 : vector<16x128xf32>
    %44 = arith.divf %42, %43 : vector<16x128xf32>
    %45 = vector.extract_strided_slice %27 {offsets = [0, 256], sizes = [16, 128], strides = [1, 1]} : vector<16x384xf32> to vector<16x128xf32>
    %46 = vector.extract_strided_slice %28 {offsets = [0, 256], sizes = [16, 128], strides = [1, 1]} : vector<16x384xf32> to vector<16x128xf32>
    %47 = arith.addf %46, %18 : vector<16x128xf32>
    %48 = arith.mulf %36, %47 : vector<16x128xf32>
    %49 = arith.addf %45, %48 : vector<16x128xf32>
    %50 = math.tanh %49 : vector<16x128xf32>
    %cst_31 = arith.constant 1.000000e+00 : f32
    %51 = vector.broadcast %cst_31 : f32 to vector<16x128xf32>
    %52 = arith.subf %51, %44 : vector<16x128xf32>
    %53 = arith.mulf %52, %50 : vector<16x128xf32>
    %54 = vector.extract_strided_slice %16 {offsets = [0, 0], sizes = [16, 128], strides = [1, 1]} : vector<16x256xf32> to vector<16x128xf32>
    %55 = vector.extract_strided_slice %16 {offsets = [0, 128], sizes = [16, 128], strides = [1, 1]} : vector<16x256xf32> to vector<16x128xf32>
    %56 = arith.addf %54, %55 : vector<16x128xf32>
    %57 = arith.mulf %44, %56 : vector<16x128xf32>
    %58 = arith.addf %53, %57 : vector<16x128xf32>
    %59 = vector.extract_strided_slice %58 {offsets = [0, 0], sizes = [8, 128], strides = [1, 1]} : vector<16x128xf32> to vector<8x128xf32>
    %60 = arith.index_cast %c0_i32 : i32 to index
    %c0_32 = arith.constant 0 : index
    %c0_33 = arith.constant 0 : index
    %61 = vector.load %arg16[%60, %c0_32, %c0_33] : memref<4x8x128xf32, #tpu.memory_space<vmem>>, vector<1x8x128xf32>
    %62 = vector.shape_cast %61 : vector<1x8x128xf32> to vector<8x128xf32>
    %63 = vector.shape_cast %59 : vector<8x128xf32> to vector<1x8x128xf32>
    tpu.vector_store %arg16[%60, %c0_32, %c0_33], %63 {strides = array<i32>} : memref<4x8x128xf32, #tpu.memory_space<vmem>>, vector<1x8x128xf32>,
    %64 = vector.extract_strided_slice %58 {offsets = [8, 0], sizes = [8, 128], strides = [1, 1]} : vector<16x128xf32> to vector<8x128xf32>
    %65 = arith.index_cast %20 : i32 to index
    %c0_34 = arith.constant 0 : index
    %c0_35 = arith.constant 0 : index
    %66 = vector.load %arg17[%65, %c0_34, %c0_35] : memref<4x8x128xf32, #tpu.memory_space<vmem>>, vector<1x8x128xf32>
    %67 = vector.shape_cast %66 : vector<1x8x128xf32> to vector<8x128xf32>
    %68 = vector.shape_cast %64 : vector<8x128xf32> to vector<1x8x128xf32>
    tpu.vector_store %arg17[%65, %c0_34, %c0_35], %68 {strides = array<i32>} : memref<4x8x128xf32, #tpu.memory_space<vmem>>, vector<1x8x128xf32>,
    %69 = tpu.concatenate %58, %58 in 1 : vector<16x128xf32>, vector<16x128xf32> -> vector<16x256xf32>
    %70 = arith.mulf %69, %19 : vector<16x256xf32>
    %c1_i32 = arith.constant 1 : i32
    %c3_i32_36 = arith.constant 3 : i32
    %71 = arith.subi %c3_i32_36, %c1_i32 : i32
    %72 = arith.index_cast %c1_i32 : i32 to index
    %c0_37 = arith.constant 0 : index
    %c0_38 = arith.constant 0 : index
    %73 = vector.load %arg14[%72, %c0_37, %c0_38] : memref<4x8x384xf32, #tpu.memory_space<vmem>>, vector<1x8x384xf32>
    %74 = vector.shape_cast %73 : vector<1x8x384xf32> to vector<8x384xf32>
    %75 = arith.index_cast %71 : i32 to index
    %c0_39 = arith.constant 0 : index
    %c0_40 = arith.constant 0 : index
    %76 = vector.load %arg15[%75, %c0_39, %c0_40] : memref<4x8x384xf32, #tpu.memory_space<vmem>>, vector<1x8x384xf32>
    %77 = vector.shape_cast %76 : vector<1x8x384xf32> to vector<8x384xf32>
    %78 = tpu.concatenate %74, %77 in 0 : vector<8x384xf32>, vector<8x384xf32> -> vector<16x384xf32>
    %cst_41 = arith.constant dense<0.000000e+00> : vector<16x384xf32>
    %79 = tpu.matmul %70, %17, %cst_41 {dimension_numbers = #tpu.dot_dimension_numbers<[1], [0], [0], [1], [0, 0, 1, 1], [], []>} : vector<16x256xf32>, vector<256x384xf32>, vector<16x384xf32> -> vector<16x384xf32>
    %80 = vector.extract_strided_slice %78 {offsets = [0, 0], sizes = [16, 128], strides = [1, 1]} : vector<16x384xf32> to vector<16x128xf32>
    %81 = vector.extract_strided_slice %79 {offsets = [0, 0], sizes = [16, 128], strides = [1, 1]} : vector<16x384xf32> to vector<16x128xf32>
    %82 = arith.addf %80, %81 : vector<16x128xf32>
    %83 = arith.negf %82 : vector<16x128xf32>
    %84 = math.exp %83 : vector<16x128xf32>
    %cst_42 = arith.constant 1.000000e+00 : f32
    %85 = vector.broadcast %cst_42 : f32 to vector<16x128xf32>
    %86 = arith.addf %85, %84 : vector<16x128xf32>
    %87 = arith.divf %85, %86 : vector<16x128xf32>
    %88 = vector.extract_strided_slice %78 {offsets = [0, 128], sizes = [16, 128], strides = [1, 1]} : vector<16x384xf32> to vector<16x128xf32>
    %89 = vector.extract_strided_slice %79 {offsets = [0, 128], sizes = [16, 128], strides = [1, 1]} : vector<16x384xf32> to vector<16x128xf32>
    %90 = arith.addf %88, %89 : vector<16x128xf32>
    %91 = arith.negf %90 : vector<16x128xf32>
    %92 = math.exp %91 : vector<16x128xf32>
    %cst_43 = arith.constant 1.000000e+00 : f32
    %93 = vector.broadcast %cst_43 : f32 to vector<16x128xf32>
    %94 = arith.addf %93, %92 : vector<16x128xf32>
    %95 = arith.divf %93, %94 : vector<16x128xf32>
    %96 = vector.extract_strided_slice %78 {offsets = [0, 256], sizes = [16, 128], strides = [1, 1]} : vector<16x384xf32> to vector<16x128xf32>
    %97 = vector.extract_strided_slice %79 {offsets = [0, 256], sizes = [16, 128], strides = [1, 1]} : vector<16x384xf32> to vector<16x128xf32>
    %98 = arith.addf %97, %18 : vector<16x128xf32>
    %99 = arith.mulf %87, %98 : vector<16x128xf32>
    %100 = arith.addf %96, %99 : vector<16x128xf32>
    %101 = math.tanh %100 : vector<16x128xf32>
    %cst_44 = arith.constant 1.000000e+00 : f32
    %102 = vector.broadcast %cst_44 : f32 to vector<16x128xf32>
    %103 = arith.subf %102, %95 : vector<16x128xf32>
    %104 = arith.mulf %103, %101 : vector<16x128xf32>
    %105 = vector.extract_strided_slice %70 {offsets = [0, 0], sizes = [16, 128], strides = [1, 1]} : vector<16x256xf32> to vector<16x128xf32>
    %106 = vector.extract_strided_slice %70 {offsets = [0, 128], sizes = [16, 128], strides = [1, 1]} : vector<16x256xf32> to vector<16x128xf32>
    %107 = arith.addf %105, %106 : vector<16x128xf32>
    %108 = arith.mulf %95, %107 : vector<16x128xf32>
    %109 = arith.addf %104, %108 : vector<16x128xf32>
    %110 = vector.extract_strided_slice %109 {offsets = [0, 0], sizes = [8, 128], strides = [1, 1]} : vector<16x128xf32> to vector<8x128xf32>
    %111 = arith.index_cast %c1_i32 : i32 to index
    %c0_45 = arith.constant 0 : index
    %c0_46 = arith.constant 0 : index
    %112 = vector.load %arg16[%111, %c0_45, %c0_46] : memref<4x8x128xf32, #tpu.memory_space<vmem>>, vector<1x8x128xf32>
    %113 = vector.shape_cast %112 : vector<1x8x128xf32> to vector<8x128xf32>
    %114 = vector.shape_cast %110 : vector<8x128xf32> to vector<1x8x128xf32>
    tpu.vector_store %arg16[%111, %c0_45, %c0_46], %114 {strides = array<i32>} : memref<4x8x128xf32, #tpu.memory_space<vmem>>, vector<1x8x128xf32>,
    %115 = vector.extract_strided_slice %109 {offsets = [8, 0], sizes = [8, 128], strides = [1, 1]} : vector<16x128xf32> to vector<8x128xf32>
    %116 = arith.index_cast %71 : i32 to index
    %c0_47 = arith.constant 0 : index
    %c0_48 = arith.constant 0 : index
    %117 = vector.load %arg17[%116, %c0_47, %c0_48] : memref<4x8x128xf32, #tpu.memory_space<vmem>>, vector<1x8x128xf32>
    %118 = vector.shape_cast %117 : vector<1x8x128xf32> to vector<8x128xf32>
    %119 = vector.shape_cast %115 : vector<8x128xf32> to vector<1x8x128xf32>
    tpu.vector_store %arg17[%116, %c0_47, %c0_48], %119 {strides = array<i32>} : memref<4x8x128xf32, #tpu.memory_space<vmem>>, vector<1x8x128xf32>,
    %120 = tpu.concatenate %109, %109 in 1 : vector<16x128xf32>, vector<16x128xf32> -> vector<16x256xf32>
    %121 = arith.mulf %120, %19 : vector<16x256xf32>
    %c2_i32 = arith.constant 2 : i32
    %c3_i32_49 = arith.constant 3 : i32
    %122 = arith.subi %c3_i32_49, %c2_i32 : i32
    %123 = arith.index_cast %c2_i32 : i32 to index
    %c0_50 = arith.constant 0 : index
    %c0_51 = arith.constant 0 : index
    %124 = vector.load %arg14[%123, %c0_50, %c0_51] : memref<4x8x384xf32, #tpu.memory_space<vmem>>, vector<1x8x384xf32>
    %125 = vector.shape_cast %124 : vector<1x8x384xf32> to vector<8x384xf32>
    %126 = arith.index_cast %122 : i32 to index
    %c0_52 = arith.constant 0 : index
    %c0_53 = arith.constant 0 : index
    %127 = vector.load %arg15[%126, %c0_52, %c0_53] : memref<4x8x384xf32, #tpu.memory_space<vmem>>, vector<1x8x384xf32>
    %128 = vector.shape_cast %127 : vector<1x8x384xf32> to vector<8x384xf32>
    %129 = tpu.concatenate %125, %128 in 0 : vector<8x384xf32>, vector<8x384xf32> -> vector<16x384xf32>
    %cst_54 = arith.constant dense<0.000000e+00> : vector<16x384xf32>
    %130 = tpu.matmul %121, %17, %cst_54 {dimension_numbers = #tpu.dot_dimension_numbers<[1], [0], [0], [1], [0, 0, 1, 1], [], []>} : vector<16x256xf32>, vector<256x384xf32>, vector<16x384xf32> -> vector<16x384xf32>
    %131 = vector.extract_strided_slice %129 {offsets = [0, 0], sizes = [16, 128], strides = [1, 1]} : vector<16x384xf32> to vector<16x128xf32>
    %132 = vector.extract_strided_slice %130 {offsets = [0, 0], sizes = [16, 128], strides = [1, 1]} : vector<16x384xf32> to vector<16x128xf32>
    %133 = arith.addf %131, %132 : vector<16x128xf32>
    %134 = arith.negf %133 : vector<16x128xf32>
    %135 = math.exp %134 : vector<16x128xf32>
    %cst_55 = arith.constant 1.000000e+00 : f32
    %136 = vector.broadcast %cst_55 : f32 to vector<16x128xf32>
    %137 = arith.addf %136, %135 : vector<16x128xf32>
    %138 = arith.divf %136, %137 : vector<16x128xf32>
    %139 = vector.extract_strided_slice %129 {offsets = [0, 128], sizes = [16, 128], strides = [1, 1]} : vector<16x384xf32> to vector<16x128xf32>
    %140 = vector.extract_strided_slice %130 {offsets = [0, 128], sizes = [16, 128], strides = [1, 1]} : vector<16x384xf32> to vector<16x128xf32>
    %141 = arith.addf %139, %140 : vector<16x128xf32>
    %142 = arith.negf %141 : vector<16x128xf32>
    %143 = math.exp %142 : vector<16x128xf32>
    %cst_56 = arith.constant 1.000000e+00 : f32
    %144 = vector.broadcast %cst_56 : f32 to vector<16x128xf32>
    %145 = arith.addf %144, %143 : vector<16x128xf32>
    %146 = arith.divf %144, %145 : vector<16x128xf32>
    %147 = vector.extract_strided_slice %129 {offsets = [0, 256], sizes = [16, 128], strides = [1, 1]} : vector<16x384xf32> to vector<16x128xf32>
    %148 = vector.extract_strided_slice %130 {offsets = [0, 256], sizes = [16, 128], strides = [1, 1]} : vector<16x384xf32> to vector<16x128xf32>
    %149 = arith.addf %148, %18 : vector<16x128xf32>
    %150 = arith.mulf %138, %149 : vector<16x128xf32>
    %151 = arith.addf %147, %150 : vector<16x128xf32>
    %152 = math.tanh %151 : vector<16x128xf32>
    %cst_57 = arith.constant 1.000000e+00 : f32
    %153 = vector.broadcast %cst_57 : f32 to vector<16x128xf32>
    %154 = arith.subf %153, %146 : vector<16x128xf32>
    %155 = arith.mulf %154, %152 : vector<16x128xf32>
    %156 = vector.extract_strided_slice %121 {offsets = [0, 0], sizes = [16, 128], strides = [1, 1]} : vector<16x256xf32> to vector<16x128xf32>
    %157 = vector.extract_strided_slice %121 {offsets = [0, 128], sizes = [16, 128], strides = [1, 1]} : vector<16x256xf32> to vector<16x128xf32>
    %158 = arith.addf %156, %157 : vector<16x128xf32>
    %159 = arith.mulf %146, %158 : vector<16x128xf32>
    %160 = arith.addf %155, %159 : vector<16x128xf32>
    %161 = vector.extract_strided_slice %160 {offsets = [0, 0], sizes = [8, 128], strides = [1, 1]} : vector<16x128xf32> to vector<8x128xf32>
    %162 = arith.index_cast %c2_i32 : i32 to index
    %c0_58 = arith.constant 0 : index
    %c0_59 = arith.constant 0 : index
    %163 = vector.load %arg16[%162, %c0_58, %c0_59] : memref<4x8x128xf32, #tpu.memory_space<vmem>>, vector<1x8x128xf32>
    %164 = vector.shape_cast %163 : vector<1x8x128xf32> to vector<8x128xf32>
    %165 = vector.shape_cast %161 : vector<8x128xf32> to vector<1x8x128xf32>
    tpu.vector_store %arg16[%162, %c0_58, %c0_59], %165 {strides = array<i32>} : memref<4x8x128xf32, #tpu.memory_space<vmem>>, vector<1x8x128xf32>,
    %166 = vector.extract_strided_slice %160 {offsets = [8, 0], sizes = [8, 128], strides = [1, 1]} : vector<16x128xf32> to vector<8x128xf32>
    %167 = arith.index_cast %122 : i32 to index
    %c0_60 = arith.constant 0 : index
    %c0_61 = arith.constant 0 : index
    %168 = vector.load %arg17[%167, %c0_60, %c0_61] : memref<4x8x128xf32, #tpu.memory_space<vmem>>, vector<1x8x128xf32>
    %169 = vector.shape_cast %168 : vector<1x8x128xf32> to vector<8x128xf32>
    %170 = vector.shape_cast %166 : vector<8x128xf32> to vector<1x8x128xf32>
    tpu.vector_store %arg17[%167, %c0_60, %c0_61], %170 {strides = array<i32>} : memref<4x8x128xf32, #tpu.memory_space<vmem>>, vector<1x8x128xf32>,
    %171 = tpu.concatenate %160, %160 in 1 : vector<16x128xf32>, vector<16x128xf32> -> vector<16x256xf32>
    %172 = arith.mulf %171, %19 : vector<16x256xf32>
    %c3_i32_62 = arith.constant 3 : i32
    %c3_i32_63 = arith.constant 3 : i32
    %173 = arith.subi %c3_i32_63, %c3_i32_62 : i32
    %174 = arith.index_cast %c3_i32_62 : i32 to index
    %c0_64 = arith.constant 0 : index
    %c0_65 = arith.constant 0 : index
    %175 = vector.load %arg14[%174, %c0_64, %c0_65] : memref<4x8x384xf32, #tpu.memory_space<vmem>>, vector<1x8x384xf32>
    %176 = vector.shape_cast %175 : vector<1x8x384xf32> to vector<8x384xf32>
    %177 = arith.index_cast %173 : i32 to index
    %c0_66 = arith.constant 0 : index
    %c0_67 = arith.constant 0 : index
    %178 = vector.load %arg15[%177, %c0_66, %c0_67] : memref<4x8x384xf32, #tpu.memory_space<vmem>>, vector<1x8x384xf32>
    %179 = vector.shape_cast %178 : vector<1x8x384xf32> to vector<8x384xf32>
    %180 = tpu.concatenate %176, %179 in 0 : vector<8x384xf32>, vector<8x384xf32> -> vector<16x384xf32>
    %cst_68 = arith.constant dense<0.000000e+00> : vector<16x384xf32>
    %181 = tpu.matmul %172, %17, %cst_68 {dimension_numbers = #tpu.dot_dimension_numbers<[1], [0], [0], [1], [0, 0, 1, 1], [], []>} : vector<16x256xf32>, vector<256x384xf32>, vector<16x384xf32> -> vector<16x384xf32>
    %182 = vector.extract_strided_slice %180 {offsets = [0, 0], sizes = [16, 128], strides = [1, 1]} : vector<16x384xf32> to vector<16x128xf32>
    %183 = vector.extract_strided_slice %181 {offsets = [0, 0], sizes = [16, 128], strides = [1, 1]} : vector<16x384xf32> to vector<16x128xf32>
    %184 = arith.addf %182, %183 : vector<16x128xf32>
    %185 = arith.negf %184 : vector<16x128xf32>
    %186 = math.exp %185 : vector<16x128xf32>
    %cst_69 = arith.constant 1.000000e+00 : f32
    %187 = vector.broadcast %cst_69 : f32 to vector<16x128xf32>
    %188 = arith.addf %187, %186 : vector<16x128xf32>
    %189 = arith.divf %187, %188 : vector<16x128xf32>
    %190 = vector.extract_strided_slice %180 {offsets = [0, 128], sizes = [16, 128], strides = [1, 1]} : vector<16x384xf32> to vector<16x128xf32>
    %191 = vector.extract_strided_slice %181 {offsets = [0, 128], sizes = [16, 128], strides = [1, 1]} : vector<16x384xf32> to vector<16x128xf32>
    %192 = arith.addf %190, %191 : vector<16x128xf32>
    %193 = arith.negf %192 : vector<16x128xf32>
    %194 = math.exp %193 : vector<16x128xf32>
    %cst_70 = arith.constant 1.000000e+00 : f32
    %195 = vector.broadcast %cst_70 : f32 to vector<16x128xf32>
    %196 = arith.addf %195, %194 : vector<16x128xf32>
    %197 = arith.divf %195, %196 : vector<16x128xf32>
    %198 = vector.extract_strided_slice %180 {offsets = [0, 256], sizes = [16, 128], strides = [1, 1]} : vector<16x384xf32> to vector<16x128xf32>
    %199 = vector.extract_strided_slice %181 {offsets = [0, 256], sizes = [16, 128], strides = [1, 1]} : vector<16x384xf32> to vector<16x128xf32>
    %200 = arith.addf %199, %18 : vector<16x128xf32>
    %201 = arith.mulf %189, %200 : vector<16x128xf32>
    %202 = arith.addf %198, %201 : vector<16x128xf32>
    %203 = math.tanh %202 : vector<16x128xf32>
    %cst_71 = arith.constant 1.000000e+00 : f32
    %204 = vector.broadcast %cst_71 : f32 to vector<16x128xf32>
    %205 = arith.subf %204, %197 : vector<16x128xf32>
    %206 = arith.mulf %205, %203 : vector<16x128xf32>
    %207 = vector.extract_strided_slice %172 {offsets = [0, 0], sizes = [16, 128], strides = [1, 1]} : vector<16x256xf32> to vector<16x128xf32>
    %208 = vector.extract_strided_slice %172 {offsets = [0, 128], sizes = [16, 128], strides = [1, 1]} : vector<16x256xf32> to vector<16x128xf32>
    %209 = arith.addf %207, %208 : vector<16x128xf32>
    %210 = arith.mulf %197, %209 : vector<16x128xf32>
    %211 = arith.addf %206, %210 : vector<16x128xf32>
    %212 = vector.extract_strided_slice %211 {offsets = [0, 0], sizes = [8, 128], strides = [1, 1]} : vector<16x128xf32> to vector<8x128xf32>
    %213 = arith.index_cast %c3_i32_62 : i32 to index
    %c0_72 = arith.constant 0 : index
    %c0_73 = arith.constant 0 : index
    %214 = vector.load %arg16[%213, %c0_72, %c0_73] : memref<4x8x128xf32, #tpu.memory_space<vmem>>, vector<1x8x128xf32>
    %215 = vector.shape_cast %214 : vector<1x8x128xf32> to vector<8x128xf32>
    %216 = vector.shape_cast %212 : vector<8x128xf32> to vector<1x8x128xf32>
    tpu.vector_store %arg16[%213, %c0_72, %c0_73], %216 {strides = array<i32>} : memref<4x8x128xf32, #tpu.memory_space<vmem>>, vector<1x8x128xf32>,
    %217 = vector.extract_strided_slice %211 {offsets = [8, 0], sizes = [8, 128], strides = [1, 1]} : vector<16x128xf32> to vector<8x128xf32>
    %218 = arith.index_cast %173 : i32 to index
    %c0_74 = arith.constant 0 : index
    %c0_75 = arith.constant 0 : index
    %219 = vector.load %arg17[%218, %c0_74, %c0_75] : memref<4x8x128xf32, #tpu.memory_space<vmem>>, vector<1x8x128xf32>
    %220 = vector.shape_cast %219 : vector<1x8x128xf32> to vector<8x128xf32>
    %221 = vector.shape_cast %217 : vector<8x128xf32> to vector<1x8x128xf32>
    tpu.vector_store %arg17[%218, %c0_74, %c0_75], %221 {strides = array<i32>} : memref<4x8x128xf32, #tpu.memory_space<vmem>>, vector<1x8x128xf32>,
    %222 = tpu.concatenate %211, %211 in 1 : vector<16x128xf32>, vector<16x128xf32> -> vector<16x256xf32>
    %223 = arith.mulf %222, %19 : vector<16x256xf32>
    %c4_i32 = arith.constant 4 : i32
    %c0_76 = arith.constant 0 : index
    %c0_77 = arith.constant 0 : index
    %c0_78 = arith.constant 0 : index
    %224 = vector.load %arg16[%c0_76, %c0_77, %c0_78] : memref<4x8x128xf32, #tpu.memory_space<vmem>>, vector<4x8x128xf32>
    %c0_79 = arith.constant 0 : index
    %c0_80 = arith.constant 0 : index
    %c0_81 = arith.constant 0 : index
    %225 = vector.load %arg17[%c0_79, %c0_80, %c0_81] : memref<4x8x128xf32, #tpu.memory_space<vmem>>, vector<4x8x128xf32>
    %226 = tpu.concatenate %224, %225 in 2 : vector<4x8x128xf32>, vector<4x8x128xf32> -> vector<4x8x256xf32>
    %c0_82 = arith.constant 0 : index
    %c0_83 = arith.constant 0 : index
    %c0_84 = arith.constant 0 : index
    %227 = vector.load %arg2[%c0_82, %c0_83, %c0_84] : memref<4x8x128xf32, #tpu.memory_space<vmem>>, vector<4x8x128xf32>
    %228 = tpu.concatenate %226, %227 in 2 : vector<4x8x256xf32>, vector<4x8x128xf32> -> vector<4x8x384xf32>
    %c0_85 = arith.constant 0 : index
    %c0_86 = arith.constant 0 : index
    %229 = vector.load %arg10[%c0_85, %c0_86] : memref<384x384xf32, #tpu.memory_space<vmem>>, vector<384x384xf32>
    %c0_87 = arith.constant 0 : index
    %c0_88 = arith.constant 0 : index
    %230 = vector.load %arg11[%c0_87, %c0_88] : memref<1x384xf32, #tpu.memory_space<vmem>>, vector<1x384xf32>
    %c0_89 = arith.constant 0 : index
    %c0_90 = arith.constant 0 : index
    %231 = vector.load %arg12[%c0_89, %c0_90] : memref<1x384xf32, #tpu.memory_space<vmem>>, vector<1x384xf32>
    %232 = vector.shape_cast %228 : vector<4x8x384xf32> to vector<32x384xf32>
    %cst_91 = arith.constant dense<0.000000e+00> : vector<32x384xf32>
    %233 = tpu.matmul %232, %229, %cst_91 {dimension_numbers = #tpu.dot_dimension_numbers<[1], [0], [0], [1], [0, 0, 1, 1], [], []>} : vector<32x384xf32>, vector<384x384xf32>, vector<32x384xf32> -> vector<32x384xf32>
    %234 = vector.shape_cast %233 : vector<32x384xf32> to vector<4x8x384xf32>
    %235 = vector.shape_cast %230 : vector<1x384xf32> to vector<1x1x384xf32>
    %236 = vector.broadcast %235 : vector<1x1x384xf32> to vector<4x8x384xf32>
    %237 = arith.addf %234, %236 : vector<4x8x384xf32>
    %238 = math.tanh %237 : vector<4x8x384xf32>
    %239 = vector.shape_cast %231 : vector<1x384xf32> to vector<1x1x384xf32>
    %240 = vector.broadcast %239 : vector<1x1x384xf32> to vector<4x8x384xf32>
    %241 = arith.mulf %238, %240 : vector<4x8x384xf32>
    %cst_92 = arith.constant dense<0.000000e+00> : vector<4x8xf32>
    %242 = vector.multi_reduction <add>, %241, %cst_92 [2] : vector<4x8x384xf32> to vector<4x8xf32>
    %243 = vector.shape_cast %242 : vector<4x8xf32> to vector<4x8x1xf32>
    %cst_93 = arith.constant dense<0xFF800000> : vector<8x1xf32>
    %244 = vector.multi_reduction <maximumf>, %243, %cst_93 [0] : vector<4x8x1xf32> to vector<8x1xf32>
    %245 = vector.shape_cast %244 : vector<8x1xf32> to vector<1x8x1xf32>
    %246 = vector.broadcast %245 : vector<1x8x1xf32> to vector<4x8x1xf32>
    %247 = arith.subf %243, %246 : vector<4x8x1xf32>
    %248 = math.exp %247 : vector<4x8x1xf32>
    %cst_94 = arith.constant dense<0.000000e+00> : vector<8x1xf32>
    %249 = vector.multi_reduction <add>, %248, %cst_94 [0] : vector<4x8x1xf32> to vector<8x1xf32>
    %250 = vector.shape_cast %249 : vector<8x1xf32> to vector<1x8x1xf32>
    %251 = tpu.reciprocal %250 {approx = true} : vector<1x8x1xf32> -> vector<1x8x1xf32>
    %252 = vector.broadcast %251 : vector<1x8x1xf32> to vector<4x8x1xf32>
    %253 = arith.mulf %248, %252 : vector<4x8x1xf32>
    %254 = vector.broadcast %253 : vector<4x8x1xf32> to vector<4x8x384xf32>
    %255 = arith.mulf %254, %228 : vector<4x8x384xf32>
    %cst_95 = arith.constant dense<0.000000e+00> : vector<8x384xf32>
    %256 = vector.multi_reduction <add>, %255, %cst_95 [0] : vector<4x8x384xf32> to vector<8x384xf32>
    %c0_96 = arith.constant 0 : index
    %c0_97 = arith.constant 0 : index
    %257 = vector.load %arg13[%c0_96, %c0_97] : memref<8x384xf32, #tpu.memory_space<vmem>>, vector<8x384xf32>
    tpu.vector_store %arg13[%c0_96, %c0_97], %256 {strides = array<i32>} : memref<8x384xf32, #tpu.memory_space<vmem>>, vector<8x384xf32>,
    return
  }
  func.func @transform_0(%arg0: i32) -> (i32, i32, i32) {
    %c0_i32 = arith.constant 0 : i32
    %c0_i32_0 = arith.constant 0 : i32
    %c0_i32_1 = arith.constant 0 : i32
    %c0_i32_2 = arith.constant 0 : i32
    return %c0_i32, %c0_i32_0, %c0_i32_1 : i32, i32, i32
  }
  func.func @transform_1(%arg0: i32) -> (i32, i32, i32) {
    %c0_i32 = arith.constant 0 : i32
    %c0_i32_0 = arith.constant 0 : i32
    %c0_i32_1 = arith.constant 0 : i32
    %c0_i32_2 = arith.constant 0 : i32
    return %c0_i32, %c0_i32_0, %c0_i32_1 : i32, i32, i32
  }
  func.func @transform_2(%arg0: i32) -> (i32, i32) {
    %c0_i32 = arith.constant 0 : i32
    %c0_i32_0 = arith.constant 0 : i32
    %c0_i32_1 = arith.constant 0 : i32
    return %c0_i32, %c0_i32_0 : i32, i32
  }
  func.func @transform_3(%arg0: i32) -> (i32, i32) {
    %c0_i32 = arith.constant 0 : i32
    %c0_i32_0 = arith.constant 0 : i32
    %c0_i32_1 = arith.constant 0 : i32
    return %c0_i32, %c0_i32_0 : i32, i32
  }
  func.func @transform_4(%arg0: i32) -> (i32, i32) {
    %c0_i32 = arith.constant 0 : i32
    %c0_i32_0 = arith.constant 0 : i32
    %c0_i32_1 = arith.constant 0 : i32
    return %c0_i32, %c0_i32_0 : i32, i32
  }
  func.func @transform_5(%arg0: i32) -> (i32, i32) {
    %c0_i32 = arith.constant 0 : i32
    %c0_i32_0 = arith.constant 0 : i32
    %c0_i32_1 = arith.constant 0 : i32
    return %c0_i32, %c0_i32_0 : i32, i32
  }
  func.func @transform_6(%arg0: i32) -> (i32, i32) {
    %c0_i32 = arith.constant 0 : i32
    %c0_i32_0 = arith.constant 0 : i32
    %c0_i32_1 = arith.constant 0 : i32
    return %c0_i32, %c0_i32_0 : i32, i32
  }
  func.func @transform_7(%arg0: i32) -> (i32, i32) {
    %c0_i32 = arith.constant 0 : i32
    %c0_i32_0 = arith.constant 0 : i32
    %c0_i32_1 = arith.constant 0 : i32
    return %c0_i32, %c0_i32_0 : i32, i32
  }
  func.func @transform_8(%arg0: i32) -> (i32, i32) {
    %c0_i32 = arith.constant 0 : i32
    %c0_i32_0 = arith.constant 0 : i32
    %c0_i32_1 = arith.constant 0 : i32
    return %c0_i32, %c0_i32_0 : i32, i32
  }
  func.func @transform_9(%arg0: i32) -> (i32, i32) {
    %c0_i32 = arith.constant 0 : i32
    %c0_i32_0 = arith.constant 0 : i32
    %c0_i32_1 = arith.constant 0 : i32
    return %c0_i32, %c0_i32_0 : i32, i32
  }
  func.func @transform_10(%arg0: i32) -> (i32, i32) {
    %c0_i32 = arith.constant 0 : i32
    %c0_i32_0 = arith.constant 0 : i32
    %c0_i32_1 = arith.constant 0 : i32
    return %c0_i32, %c0_i32_0 : i32, i32
  }
  func.func @transform_11(%arg0: i32) -> (i32, i32) {
    %c0_i32 = arith.constant 0 : i32
    %c0_i32_0 = arith.constant 0 : i32
    %c0_i32_1 = arith.constant 0 : i32
    return %c0_i32, %c0_i32_0 : i32, i32
  }
  func.func @transform_12(%arg0: i32) -> (i32, i32) {
    %c0_i32 = arith.constant 0 : i32
    %c0_i32_0 = arith.constant 0 : i32
    %c0_i32_1 = arith.constant 0 : i32
    return %c0_i32, %c0_i32_0 : i32, i32
  }
}

</mosaic_0001>

<llo_original>
// kernel: hier_attn_net_forward.2
$region0: #{hier_attn_net_forward.2}
  #allocation0 [shape = 'u32[]', space=smem, size = 0x4, offset = 0x4, fixed_abs, tag = 'smem constant byte address 0x4 - core index']
  #allocation1 [shape = 'u32[144,128]{1,0:T(1,128)}', space=vmem, size = 0x12000, scoped, tag = 'internal scratch']
  #allocation2 [shape = 'f32[16,256]{1,0:T(8,128)}', space=vmem, size = 0x4000, scoped, tag = 'scratch operand']
  #allocation3 [shape = 'f32[8,8,384]{2,1,0:T(8,128)}', space=vmem, size = 0x18000, scoped, tag = 'scratch operand']
  #allocation4 [shape = 'f32[8,8,384]{2,1,0:T(8,128)}', space=vmem, size = 0x18000, scoped, tag = 'scratch operand']
  #allocation5 [shape = 'f32[8,8,128]{2,1,0:T(8,128)}', space=vmem, size = 0x8000, scoped, tag = 'scratch operand']
  #allocation6 [shape = 'f32[8,8,128]{2,1,0:T(8,128)}', space=vmem, size = 0x8000, scoped, tag = 'scratch operand']
  %s0 = inlined_call_operand.vmem [shape: f32[4,8,8,128], index: 0, kind: input, shape index: {}]
  %s1 = inlined_call_operand.vmem [shape: f32[128,384], index: 1, kind: input, shape index: {}]
  %s2 = inlined_call_operand.vmem [shape: f32[128,384], index: 2, kind: input, shape index: {}]
  %s3 = inlined_call_operand.vmem [shape: f32[1,384], index: 3, kind: input, shape index: {}]
  %s4 = inlined_call_operand.vmem [shape: f32[1,384], index: 4, kind: input, shape index: {}]
  %s5 = inlined_call_operand.vmem [shape: f32[256,384], index: 5, kind: input, shape index: {}]
  %s6 = inlined_call_operand.vmem [shape: f32[16,128], index: 6, kind: input, shape index: {}]
  %s7 = inlined_call_operand.vmem [shape: f32[16,256], index: 7, kind: input, shape index: {}]
  %s8 = inlined_call_operand.vmem [shape: f32[256,256], index: 8, kind: input, shape index: {}]
  %s9 = inlined_call_operand.vmem [shape: f32[1,256], index: 9, kind: input, shape index: {}]
  %s10 = inlined_call_operand.vmem [shape: f32[1,256], index: 10, kind: input, shape index: {}]
  %s11 = inlined_call_operand.vmem [shape: f32[4,8,256], index: 11, kind: output, shape index: {}]
  %s12 = sld [smem:[#allocation0]]
  $region81: #{hier_attn_net_forward.2} parent=0
    _
  %s14 = ssub.s32 1, %s12
  %s15 = scalar_select 0, %s14, %s12
  loop: start=0, step=1, limit=6
  $region2: #{hier_attn_net_forward.2} parent=0 // loop_pre_header
    _
  $region3: #{hier_attn_net_forward.2} parent=0 // loop_header
    %s17 = sphi 0, %s21
    %p18 = scmp.ge.s32.totalorder %s17, 6
    %s27 = sphi 0, %s29
    %s30 = sphi 0, %s27
    %s31 = sphi 0, %s30
    %s47 = sphi 0, %s31
    %s51 = sphi 0, %s51
    %s53 = sphi 0, %s51
    %s54 = sphi 0, %s53
    %s68 = sphi 0, %s54
    %s72 = sphi 0, %s72
    %s74 = sphi 0, %s72
    %s75 = sphi 0, %s74
    %s89 = sphi 0, %s75
    %s93 = sphi 0, %s93
    %s95 = sphi 0, %s93
    %s96 = sphi 0, %s95
    %s110 = sphi 0, %s96
    %s114 = sphi 0, %s114
    %s116 = sphi 0, %s114
    %s117 = sphi 0, %s116
    %s131 = sphi 0, %s117
    %s135 = sphi 0, %s135
    %s137 = sphi 0, %s135
    %s138 = sphi 0, %s137
    %s152 = sphi 0, %s138
    %s156 = sphi 0, %s156
    %s158 = sphi 0, %s156
    %s159 = sphi 0, %s158
    %s173 = sphi 0, %s159
    %s177 = sphi 0, %s177
    %s179 = sphi 0, %s177
    %s180 = sphi 0, %s179
    %s194 = sphi 0, %s180
    %s198 = sphi 0, %s198
    %s200 = sphi 0, %s198
    %s201 = sphi 0, %s200
    %s215 = sphi 0, %s201
    %s219 = sphi 0, %s219
    %s221 = sphi 0, %s219
    %s222 = sphi 0, %s221
    %s236 = sphi 0, %s222
    %s240 = sphi 0, %s240
    %s242 = sphi 0, %s240
    %s243 = sphi 0, %s242
    %s257 = sphi 0, %s243
    %s263 = sphi 0, %s265
    %s266 = sphi 0, %s263
    %s267 = sphi 0, %s266
    %s283 = sphi 0, %s267
  $region4: #{hier_attn_net_forward.2} parent=0 // loop_header_branch
    %20 = sbr.rel (%p18) target = $region8
  $region5: #{hier_attn_net_forward.2} parent=0 // loop_body
    %s22 = ssub.s32 %s17, 1
    %s23 = ssub.s32 %s17, 2
    %s24 = sadd.s32 %s17, 1
    %s25 = ssub.s32 %s17, %s24
    %p26 = scmp.eq.s32.totalorder %s25, 0
    %s28 = sadd.s32 %s27, 1
    %s29 = scalar_select %p26, %s27, %s28
    %p32 = pneg %p26
    %p33 = scmp.eq.s32.totalorder %s17, 3
    %p34 = por %p32, %p33
    %p35 = scmp.ne.s32.totalorder %s27, %s30
    %p36 = scmp.eq.s32.totalorder %s17, 0
    %p37 = por %p35, %p36
    %p38 = scmp.ne.s32.totalorder %s27, %s30
    %p39 = scmp.eq.s32.totalorder %s22, 3
    %p40 = por %p38, %p39
    %p41 = scmp.ne.s32.totalorder %s30, %s31
    %p42 = scmp.eq.s32.totalorder %s22, 0
    %p43 = por %p41, %p42
    %p44 = scmp.ne.s32.totalorder %s30, %s31
    %p45 = scmp.eq.s32.totalorder %s23, 3
    %p46 = por %p44, %p45
    %p48 = scmp.ne.s32.totalorder %s31, %s47
    %p49 = scmp.eq.s32.totalorder %s23, 0
    %p50 = por %p48, %p49
    %s52 = sadd.s32 %s51, 1
    %p55 = scmp.eq.s32.totalorder %s17, 3
    %p56 = scmp.ne.s32.totalorder %s51, %s53
    %p57 = scmp.eq.s32.totalorder %s17, 0
    %p58 = por %p56, %p57
    %p59 = scmp.ne.s32.totalorder %s51, %s53
    %p60 = scmp.eq.s32.totalorder %s22, 3
    %p61 = por %p59, %p60
    %p62 = scmp.ne.s32.totalorder %s53, %s54
    %p63 = scmp.eq.s32.totalorder %s22, 0
    %p64 = por %p62, %p63
    %p65 = scmp.ne.s32.totalorder %s53, %s54
    %p66 = scmp.eq.s32.totalorder %s23, 3
    %p67 = por %p65, %p66
    %p69 = scmp.ne.s32.totalorder %s54, %s68
    %p70 = scmp.eq.s32.totalorder %s23, 0
    %p71 = por %p69, %p70
    %s73 = sadd.s32 %s72, 1
    %p76 = scmp.eq.s32.totalorder %s17, 3
    %p77 = scmp.ne.s32.totalorder %s72, %s74
    %p78 = scmp.eq.s32.totalorder %s17, 0
    %p79 = por %p77, %p78
    %p80 = scmp.ne.s32.totalorder %s72, %s74
    %p81 = scmp.eq.s32.totalorder %s22, 3
    %p82 = por %p80, %p81
    %p83 = scmp.ne.s32.totalorder %s74, %s75
    %p84 = scmp.eq.s32.totalorder %s22, 0
    %p85 = por %p83, %p84
    %p86 = scmp.ne.s32.totalorder %s74, %s75
    %p87 = scmp.eq.s32.totalorder %s23, 3
    %p88 = por %p86, %p87
    %p90 = scmp.ne.s32.totalorder %s75, %s89
    %p91 = scmp.eq.s32.totalorder %s23, 0
    %p92 = por %p90, %p91
    %s94 = sadd.s32 %s93, 1
    %p97 = scmp.eq.s32.totalorder %s17, 3
    %p98 = scmp.ne.s32.totalorder %s93, %s95
    %p99 = scmp.eq.s32.totalorder %s17, 0
    %p100 = por %p98, %p99
    %p101 = scmp.ne.s32.totalorder %s93, %s95
    %p102 = scmp.eq.s32.totalorder %s22, 3
    %p103 = por %p101, %p102
    %p104 = scmp.ne.s32.totalorder %s95, %s96
    %p105 = scmp.eq.s32.totalorder %s22, 0
    %p106 = por %p104, %p105
    %p107 = scmp.ne.s32.totalorder %s95, %s96
    %p108 = scmp.eq.s32.totalorder %s23, 3
    %p109 = por %p107, %p108
    %p111 = scmp.ne.s32.totalorder %s96, %s110
    %p112 = scmp.eq.s32.totalorder %s23, 0
    %p113 = por %p111, %p112
    %s115 = sadd.s32 %s114, 1
    %p118 = scmp.eq.s32.totalorder %s17, 3
    %p119 = scmp.ne.s32.totalorder %s114, %s116
    %p120 = scmp.eq.s32.totalorder %s17, 0
    %p121 = por %p119, %p120
    %p122 = scmp.ne.s32.totalorder %s114, %s116
    %p123 = scmp.eq.s32.totalorder %s22, 3
    %p124 = por %p122, %p123
    %p125 = scmp.ne.s32.totalorder %s116, %s117
    %p126 = scmp.eq.s32.totalorder %s22, 0
    %p127 = por %p125, %p126
    %p128 = scmp.ne.s32.totalorder %s116, %s117
    %p129 = scmp.eq.s32.totalorder %s23, 3
    %p130 = por %p128, %p129
    %p132 = scmp.ne.s32.totalorder %s117, %s131
    %p133 = scmp.eq.s32.totalorder %s23, 0
    %p134 = por %p132, %p133
    %s136 = sadd.s32 %s135, 1
    %p139 = scmp.eq.s32.totalorder %s17, 3
    %p140 = scmp.ne.s32.totalorder %s135, %s137
    %p141 = scmp.eq.s32.totalorder %s17, 0
    %p142 = por %p140, %p141
    %p143 = scmp.ne.s32.totalorder %s135, %s137
    %p144 = scmp.eq.s32.totalorder %s22, 3
    %p145 = por %p143, %p144
    %p146 = scmp.ne.s32.totalorder %s137, %s138
    %p147 = scmp.eq.s32.totalorder %s22, 0
    %p148 = por %p146, %p147
    %p149 = scmp.ne.s32.totalorder %s137, %s138
    %p150 = scmp.eq.s32.totalorder %s23, 3
    %p151 = por %p149, %p150
    %p153 = scmp.ne.s32.totalorder %s138, %s152
    %p154 = scmp.eq.s32.totalorder %s23, 0
    %p155 = por %p153, %p154
    %s157 = sadd.s32 %s156, 1
    %p160 = scmp.eq.s32.totalorder %s17, 3
    %p161 = scmp.ne.s32.totalorder %s156, %s158
    %p162 = scmp.eq.s32.totalorder %s17, 0
    %p163 = por %p161, %p162
    %p164 = scmp.ne.s32.totalorder %s156, %s158
    %p165 = scmp.eq.s32.totalorder %s22, 3
    %p166 = por %p164, %p165
    %p167 = scmp.ne.s32.totalorder %s158, %s159
    %p168 = scmp.eq.s32.totalorder %s22, 0
    %p169 = por %p167, %p168
    %p170 = scmp.ne.s32.totalorder %s158, %s159
    %p171 = scmp.eq.s32.totalorder %s23, 3
    %p172 = por %p170, %p171
    %p174 = scmp.ne.s32.totalorder %s159, %s173
    %p175 = scmp.eq.s32.totalorder %s23, 0
    %p176 = por %p174, %p175
    %s178 = sadd.s32 %s177, 1
    %p181 = scmp.eq.s32.totalorder %s17, 3
    %p182 = scmp.ne.s32.totalorder %s177, %s179
    %p183 = scmp.eq.s32.totalorder %s17, 0
    %p184 = por %p182, %p183
    %p185 = scmp.ne.s32.totalorder %s177, %s179
    %p186 = scmp.eq.s32.totalorder %s22, 3
    %p187 = por %p185, %p186
    %p188 = scmp.ne.s32.totalorder %s179, %s180
    %p189 = scmp.eq.s32.totalorder %s22, 0
    %p190 = por %p188, %p189
    %p191 = scmp.ne.s32.totalorder %s179, %s180
    %p192 = scmp.eq.s32.totalorder %s23, 3
    %p193 = por %p191, %p192
    %p195 = scmp.ne.s32.totalorder %s180, %s194
    %p196 = scmp.eq.s32.totalorder %s23, 0
    %p197 = por %p195, %p196
    %s199 = sadd.s32 %s198, 1
    %p202 = scmp.eq.s32.totalorder %s17, 3
    %p203 = scmp.ne.s32.totalorder %s198, %s200
    %p204 = scmp.eq.s32.totalorder %s17, 0
    %p205 = por %p203, %p204
    %p206 = scmp.ne.s32.totalorder %s198, %s200
    %p207 = scmp.eq.s32.totalorder %s22, 3
    %p208 = por %p206, %p207
    %p209 = scmp.ne.s32.totalorder %s200, %s201
    %p210 = scmp.eq.s32.totalorder %s22, 0
    %p211 = por %p209, %p210
    %p212 = scmp.ne.s32.totalorder %s200, %s201
    %p213 = scmp.eq.s32.totalorder %s23, 3
    %p214 = por %p212, %p213
    %p216 = scmp.ne.s32.totalorder %s201, %s215
    %p217 = scmp.eq.s32.totalorder %s23, 0
    %p218 = por %p216, %p217
    %s220 = sadd.s32 %s219, 1
    %p223 = scmp.eq.s32.totalorder %s17, 3
    %p224 = scmp.ne.s32.totalorder %s219, %s221
    %p225 = scmp.eq.s32.totalorder %s17, 0
    %p226 = por %p224, %p225
    %p227 = scmp.ne.s32.totalorder %s219, %s221
    %p228 = scmp.eq.s32.totalorder %s22, 3
    %p229 = por %p227, %p228
    %p230 = scmp.ne.s32.totalorder %s221, %s222
    %p231 = scmp.eq.s32.totalorder %s22, 0
    %p232 = por %p230, %p231
    %p233 = scmp.ne.s32.totalorder %s221, %s222
    %p234 = scmp.eq.s32.totalorder %s23, 3
    %p235 = por %p233, %p234
    %p237 = scmp.ne.s32.totalorder %s222, %s236
    %p238 = scmp.eq.s32.totalorder %s23, 0
    %p239 = por %p237, %p238
    %s241 = sadd.s32 %s240, 1
    %p244 = scmp.eq.s32.totalorder %s17, 3
    %p245 = scmp.ne.s32.totalorder %s240, %s242
    %p246 = scmp.eq.s32.totalorder %s17, 0
    %p247 = por %p245, %p246
    %p248 = scmp.ne.s32.totalorder %s240, %s242
    %p249 = scmp.eq.s32.totalorder %s22, 3
    %p250 = por %p248, %p249
    %p251 = scmp.ne.s32.totalorder %s242, %s243
    %p252 = scmp.eq.s32.totalorder %s22, 0
    %p253 = por %p251, %p252
    %p254 = scmp.ne.s32.totalorder %s242, %s243
    %p255 = scmp.eq.s32.totalorder %s23, 3
    %p256 = por %p254, %p255
    %p258 = scmp.ne.s32.totalorder %s243, %s257
    %p259 = scmp.eq.s32.totalorder %s23, 0
    %p260 = por %p258, %p259
    %s261 = ssub.s32 %s17, %s24
    %p262 = scmp.eq.s32.totalorder %s261, 0
    %s264 = sadd.s32 %s263, 1
    %s265 = scalar_select %p262, %s263, %s264
    %p268 = pneg %p262
    %p269 = scmp.eq.s32.totalorder %s17, 3
    %p270 = por %p268, %p269
    %p271 = scmp.ne.s32.totalorder %s263, %s266
    %p272 = scmp.eq.s32.totalorder %s17, 0
    %p273 = por %p271, %p272
    %p274 = scmp.ne.s32.totalorder %s263, %s266
    %p275 = scmp.eq.s32.totalorder %s22, 3
    %p276 = por %p274, %p275
    %p277 = scmp.ne.s32.totalorder %s266, %s267
    %p278 = scmp.eq.s32.totalorder %s22, 0
    %p279 = por %p277, %p278
    %p280 = scmp.ne.s32.totalorder %s266, %s267
    %p281 = scmp.eq.s32.totalorder %s23, 3
    %p282 = por %p280, %p281
    %p284 = scmp.ne.s32.totalorder %s267, %s283
    %p285 = scmp.eq.s32.totalorder %s23, 0
    %p286 = por %p284, %p285
    %p287 = scmp.le.s32.totalorder 1, %s17
    %p288 = scmp.lt.s32.totalorder %s17, 5
    %p289 = pnand %p287, %p288
    %p290 = pneg %p289
    // Predicated region
    $region9: #{hier_attn_net_forward.2} parent=5 // pred_check
      _
    $region10: #{hier_attn_net_forward.2} parent=5 // pred_check_branch
      %292 = sbr.rel (%p289) target = $region12
    $region11: #{hier_attn_net_forward.2} parent=5 // pred_region
      %s293 = ssub.s32 %s17, 1
      // Predicated region
      $region13: #{hier_attn_net_forward.2} parent=11 // pred_check
        %p294 = pneg %p64
      $region14: #{hier_attn_net_forward.2} parent=11 // pred_check_branch
        %296 = sbr.rel (%p294) target = $region16
      $region15: #{hier_attn_net_forward.2} parent=11 // pred_region
        _
      $region16: #{hier_attn_net_forward.2} parent=11 // pred_fallthru
        _
      // Predicated region
      $region17: #{hier_attn_net_forward.2} parent=11 // pred_check
        %p297 = pneg %p85
      $region18: #{hier_attn_net_forward.2} parent=11 // pred_check_branch
        %299 = sbr.rel (%p297) target = $region20
      $region19: #{hier_attn_net_forward.2} parent=11 // pred_region
        _
      $region20: #{hier_attn_net_forward.2} parent=11 // pred_fallthru
        _
      // Predicated region
      $region21: #{hier_attn_net_forward.2} parent=11 // pred_check
        %p300 = pneg %p106
      $region22: #{hier_attn_net_forward.2} parent=11 // pred_check_branch
        %302 = sbr.rel (%p300) target = $region24
      $region23: #{hier_attn_net_forward.2} parent=11 // pred_region
        _
      $region24: #{hier_attn_net_forward.2} parent=11 // pred_fallthru
        _
      // Predicated region
      $region25: #{hier_attn_net_forward.2} parent=11 // pred_check
        %p303 = pneg %p127
      $region26: #{hier_attn_net_forward.2} parent=11 // pred_check_branch
        %305 = sbr.rel (%p303) target = $region28
      $region27: #{hier_attn_net_forward.2} parent=11 // pred_region
        _
      $region28: #{hier_attn_net_forward.2} parent=11 // pred_fallthru
        _
      // Predicated region
      $region29: #{hier_attn_net_forward.2} parent=11 // pred_check
        %p306 = pneg %p148
      $region30: #{hier_attn_net_forward.2} parent=11 // pred_check_branch
        %308 = sbr.rel (%p306) target = $region32
      $region31: #{hier_attn_net_forward.2} parent=11 // pred_region
        _
      $region32: #{hier_attn_net_forward.2} parent=11 // pred_fallthru
        _
      // Predicated region
      $region33: #{hier_attn_net_forward.2} parent=11 // pred_check
        %p309 = pneg %p169
      $region34: #{hier_attn_net_forward.2} parent=11 // pred_check_branch
        %311 = sbr.rel (%p309) target = $region36
      $region35: #{hier_attn_net_forward.2} parent=11 // pred_region
        _
      $region36: #{hier_attn_net_forward.2} parent=11 // pred_fallthru
        _
      // Predicated region
      $region37: #{hier_attn_net_forward.2} parent=11 // pred_check
        %p312 = pneg %p190
      $region38: #{hier_attn_net_forward.2} parent=11 // pred_check_branch
        %314 = sbr.rel (%p312) target = $region40
      $region39: #{hier_attn_net_forward.2} parent=11 // pred_region
        _
      $region40: #{hier_attn_net_forward.2} parent=11 // pred_fallthru
        _
      // Predicated region
      $region41: #{hier_attn_net_forward.2} parent=11 // pred_check
        %p315 = pneg %p211
      $region42: #{hier_attn_net_forward.2} parent=11 // pred_check_branch
        %317 = sbr.rel (%p315) target = $region44
      $region43: #{hier_attn_net_forward.2} parent=11 // pred_region
        _
      $region44: #{hier_attn_net_forward.2} parent=11 // pred_fallthru
        _
      // Predicated region
      $region45: #{hier_attn_net_forward.2} parent=11 // pred_check
        %p318 = pneg %p232
      $region46: #{hier_attn_net_forward.2} parent=11 // pred_check_branch
        %320 = sbr.rel (%p318) target = $region48
      $region47: #{hier_attn_net_forward.2} parent=11 // pred_region
        _
      $region48: #{hier_attn_net_forward.2} parent=11 // pred_fallthru
        _
      // Predicated region
      $region49: #{hier_attn_net_forward.2} parent=11 // pred_check
        %p321 = pneg %p253
      $region50: #{hier_attn_net_forward.2} parent=11 // pred_check_branch
        %323 = sbr.rel (%p321) target = $region52
      $region51: #{hier_attn_net_forward.2} parent=11 // pred_region
        _
      $region52: #{hier_attn_net_forward.2} parent=11 // pred_fallthru
        _
    $region12: #{hier_attn_net_forward.2} parent=5 // pred_fallthru
      _
    %p324 = scmp.lt.s32.totalorder %s17, 4
    // Predicated region
    $region53: #{hier_attn_net_forward.2} parent=5 // pred_check
      %p325 = pneg %p324
    $region54: #{hier_attn_net_forward.2} parent=5 // pred_check_branch
      %327 = sbr.rel (%p325) target = $region56
    $region55: #{hier_attn_net_forward.2} parent=5 // pred_region
      // Predicated region
      $region57: #{hier_attn_net_forward.2} parent=55 // pred_check
        %p328 = pneg %p37
      $region58: #{hier_attn_net_forward.2} parent=55 // pred_check_branch
        %330 = sbr.rel (%p328) target = $region60
      $region59: #{hier_attn_net_forward.2} parent=55 // pred_region
        %p331 = scmp.lt.s32.totalorder %s17, 3
        %s332 = scalar_select %p331, %s17, 3
        %s333 = smul.addr %s332, 8
        %s334 = smul.addr %s333, 8
        %s335 = scalar_lea.vmem %s0, %s334
      $region60: #{hier_attn_net_forward.2} parent=55 // pred_fallthru
        _
    $region56: #{hier_attn_net_forward.2} parent=5 // pred_fallthru
      _
    %p336 = scmp.le.s32.totalorder 1, %s17
    %p337 = scmp.lt.s32.totalorder %s17, 5
    %p338 = pnand %p336, %p337
    %p339 = pneg %p338
    // Predicated region
    $region61: #{hier_attn_net_forward.2} parent=5 // pred_check
      _
    $region62: #{hier_attn_net_forward.2} parent=5 // pred_check_branch
      %341 = sbr.rel (%p338) target = $region64
    $region63: #{hier_attn_net_forward.2} parent=5 // pred_region
      %s342 = ssub.s32 %s17, 1
      %p343 = scmp.lt.s32.totalorder %s22, 3
      %s344 = scalar_select %p343, %s22, 3
      %s345 = smul.addr %s344, 8
      %s346 = smul.addr %s345, 8
      %s347 = scalar_lea.vmem %s0, %s346
      %p348 = pneg %p43
      %p349 = pneg %p40
      %p350 = pneg %p64
      %p351 = pneg %p61
      %p352 = pneg %p85
      %p353 = pneg %p82
      %p354 = pneg %p106
      %p355 = pneg %p103
      %p356 = pneg %p127
      %p357 = pneg %p124
      %p358 = pneg %p148
      %p359 = pneg %p145
      %p360 = pneg %p169
      %p361 = pneg %p166
      %p362 = pneg %p190
      %p363 = pneg %p187
      %p364 = pneg %p211
      %p365 = pneg %p208
      %p366 = pneg %p232
      %p367 = pneg %p229
      %p368 = pneg %p253
      %p369 = pneg %p250
      %p370 = pneg %p279
      %p371 = pneg %p276
      %p372 = scmp.lt.s32.totalorder %s22, 3
      %s373 = scalar_select %p372, %s22, 3
      %s374 = smul.addr %s373, 2
      %s375 = smul.addr %s374, 8
      %s376 = scalar_lea.vmem %s11, %s375
      %p377 = scmp.lt.s32.totalorder %s22, 3
      %s378 = scalar_select %p377, %s22, 3
      %s379 = smul.addr %s378, 8
      %s380 = smul.addr %s379, 8
      %s381 = scalar_lea.vmem %s0, %s380
      %p382 = scmp.lt.s32.totalorder %s22, 3
      %s383 = scalar_select %p382, %s22, 3
      %s384 = smul.addr %s383, 2
      %s385 = smul.addr %s384, 8
      %s386 = scalar_lea.vmem %s11, %s385
      %p387 = scmp.eq.s32.totalorder %s22, 0
      // Predicated region
      $region65: #{hier_attn_net_forward.2} parent=63 // pred_check
        %p388 = pneg %p387
      $region66: #{hier_attn_net_forward.2} parent=63 // pred_check_branch
        %390 = sbr.rel (%p388) target = $region68
      $region67: #{hier_attn_net_forward.2} parent=63 // pred_region
        %391 = vst [vmem:[#allocation2] sm:$0xff] 0.0
        %392 = vst [vmem:[#allocation2 + $0x8] sm:$0xff] 0.0
        %393 = vst [vmem:[#allocation2 + $0x10] sm:$0xff] 0.0
        %394 = vst [vmem:[#allocation2 + $0x18] sm:$0xff] 0.0
      $region68: #{hier_attn_net_forward.2} parent=63 // pred_fallthru
        _
      %v395 = vld [vmem:[%s381] sm:$0xff]
      %v396 = vld [vmem:[%s381 + $0x8] sm:$0xff]
      %v397 = vld [vmem:[%s381 + $0x10] sm:$0xff]
      %v398 = vld [vmem:[%s381 + $0x18] sm:$0xff]
      %v399 = vld [vmem:[%s381 + $0x20] sm:$0xff]
      %v400 = vld [vmem:[%s381 + $0x28] sm:$0xff]
      %v401 = vld [vmem:[%s381 + $0x30] sm:$0xff]
      %v402 = vld [vmem:[%s381 + $0x38] sm:$0xff]
      %v403 = vld [vmem:[%s1] sm:$0xff]
      %v404 = vld [vmem:[%s1 + $0x8] sm:$0xff]
      %v405 = vld [vmem:[%s1 + $0x10] sm:$0xff]
      %v406 = vld [vmem:[%s1 + $0x18] sm:$0xff]
      %v407 = vld [vmem:[%s1 + $0x20] sm:$0xff]
      %v408 = vld [vmem:[%s1 + $0x28] sm:$0xff]
      %v409 = vld [vmem:[%s1 + $0x30] sm:$0xff]
      %v410 = vld [vmem:[%s1 + $0x38] sm:$0xff]
      %v411 = vld [vmem:[%s1 + $0x40] sm:$0xff]
      %v412 = vld [vmem:[%s1 + $0x48] sm:$0xff]
      %v413 = vld [vmem:[%s1 + $0x50] sm:$0xff]
      %v414 = vld [vmem:[%s1 + $0x58] sm:$0xff]
      %v415 = vld [vmem:[%s1 + $0x60] sm:$0xff]
      %v416 = vld [vmem:[%s1 + $0x68] sm:$0xff]
      %v417 = vld [vmem:[%s1 + $0x70] sm:$0xff]
      %v418 = vld [vmem:[%s1 + $0x78] sm:$0xff]
      %v419 = vld [vmem:[%s1 + $0x80] sm:$0xff]
      %v420 = vld [vmem:[%s1 + $0x88] sm:$0xff]
      %v421 = vld [vmem:[%s1 + $0x90] sm:$0xff]
      %v422 = vld [vmem:[%s1 + $0x98] sm:$0xff]
      %v423 = vld [vmem:[%s1 + $0xa0] sm:$0xff]
      %v424 = vld [vmem:[%s1 + $0xa8] sm:$0xff]
      %v425 = vld [vmem:[%s1 + $0xb0] sm:$0xff]
      %v426 = vld [vmem:[%s1 + $0xb8] sm:$0xff]
      %v427 = vld [vmem:[%s1 + $0xc0] sm:$0xff]
      %v428 = vld [vmem:[%s1 + $0xc8] sm:$0xff]
      %v429 = vld [vmem:[%s1 + $0xd0] sm:$0xff]
      %v430 = vld [vmem:[%s1 + $0xd8] sm:$0xff]
      %v431 = vld [vmem:[%s1 + $0xe0] sm:$0xff]
      %v432 = vld [vmem:[%s1 + $0xe8] sm:$0xff]
      %v433 = vld [vmem:[%s1 + $0xf0] sm:$0xff]
      %v434 = vld [vmem:[%s1 + $0xf8] sm:$0xff]
      %v435 = vld [vmem:[%s1 + $0x100] sm:$0xff]
      %v436 = vld [vmem:[%s1 + $0x108] sm:$0xff]
      %v437 = vld [vmem:[%s1 + $0x110] sm:$0xff]
      %v438 = vld [vmem:[%s1 + $0x118] sm:$0xff]
      %v439 = vld [vmem:[%s1 + $0x120] sm:$0xff]
      %v440 = vld [vmem:[%s1 + $0x128] sm:$0xff]
      %v441 = vld [vmem:[%s1 + $0x130] sm:$0xff]
      %v442 = vld [vmem:[%s1 + $0x138] sm:$0xff]
      %v443 = vld [vmem:[%s1 + $0x140] sm:$0xff]
      %v444 = vld [vmem:[%s1 + $0x148] sm:$0xff]
      %v445 = vld [vmem:[%s1 + $0x150] sm:$0xff]
      %v446 = vld [vmem:[%s1 + $0x158] sm:$0xff]
      %v447 = vld [vmem:[%s1 + $0x160] sm:$0xff]
      %v448 = vld [vmem:[%s1 + $0x168] sm:$0xff]
      %v449 = vld [vmem:[%s1 + $0x170] sm:$0xff]
      %v450 = vld [vmem:[%s1 + $0x178] sm:$0xff]
      %v451 = vld [vmem:[%s3] sm:$0x7]
      %v453 = vlaneseq
      %v454 = vshrl.u32 %v453, 7
      %v455 = vsub.s32 0, %v454
      %v456 = vrot.slane %v451, %v455
      %v457 = vlaneseq
      %v458 = vshrl.u32 %v457, 7
      %v459 = vsub.s32 1, %v458
      %v460 = vrot.slane %v451, %v459
      %v461 = vlaneseq
      %v462 = vshrl.u32 %v461, 7
      %v463 = vsub.s32 2, %v462
      %v464 = vrot.slane %v451, %v463
      %468 = vmatprep.subr.mxu0 %v449
      %469 = vmatpush1.msra.mxu0 %v448
      %470 = vmatprep.subr.mxu0 %v446
      %471 = vmatpush1.msra.mxu0 %v445
      %472 = vmatprep.subr.mxu0 %v443
      %473 = vmatpush1.msra.mxu0 %v442
      %474 = vmatprep.subr.mxu0 %v440
      %475 = vmatpush1.msra.mxu0 %v439
      %476 = vmatprep.subr.mxu0 %v437
      %477 = vmatpush1.msra.mxu0 %v436
      %478 = vmatprep.subr.mxu0 %v434
      %479 = vmatpush1.msra.mxu0 %v433
      %480 = vmatprep.subr.mxu0 %v431
      %481 = vmatpush1.msra.mxu0 %v430
      %482 = vmatprep.subr.mxu0 %v428
      %483 = vmatpush1.msra.mxu0 %v427
      %484 = vmatprep.subr.mxu0 %v425
      %485 = vmatpush1.msra.mxu0 %v424
      %486 = vmatprep.subr.mxu0 %v422
      %487 = vmatpush1.msra.mxu0 %v421
      %488 = vmatprep.subr.mxu0 %v419
      %489 = vmatpush1.msra.mxu0 %v418
      %490 = vmatprep.subr.mxu0 %v416
      %491 = vmatpush1.msra.mxu0 %v415
      %492 = vmatprep.subr.mxu0 %v413
      %493 = vmatpush1.msra.mxu0 %v412
      %494 = vmatprep.subr.mxu0 %v410
      %495 = vmatpush1.msra.mxu0 %v409
      %496 = vmatprep.subr.mxu0 %v407
      %497 = vmatpush1.msra.mxu0 %v406
      %498 = vmatprep.subr.mxu0 %v404
      %499 = vmatpush1.msra.mxu0 %v403
      %500 = vmatprep.subr.mxu0 0.0
      %501 = vmatpush2.msra.mxu0 0.0
      %502 = vmatprep.subr.mxu0 0.0
      %503 = vmatpush2.msra.mxu0 0.0
      %504 = vmatprep.subr.mxu0 0.0
      %505 = vmatpush2.msra.mxu0 0.0
      %506 = vmatprep.subr.mxu0 0.0
      %507 = vmatpush2.msra.mxu0 0.0
      %508 = vmatprep.subr.mxu0 0.0
      %509 = vmatpush2.msra.mxu0 0.0
      %510 = vmatprep.subr.mxu0 0.0
      %511 = vmatpush2.msra.mxu0 0.0
      %512 = vmatprep.subr.mxu0 0.0
      %513 = vmatpush2.msra.mxu0 0.0
      %514 = vmatprep.subr.mxu0 0.0
      %515 = vmatpush2.msra.mxu0 0.0
      %516 = vmatprep.subr.mxu0 0.0
      %517 = vmatpush2.msra.mxu0 0.0
      %518 = vmatprep.subr.mxu0 0.0
      %519 = vmatpush2.msra.mxu0 0.0
      %520 = vmatprep.subr.mxu0 0.0
      %521 = vmatpush2.msra.mxu0 0.0
      %522 = vmatprep.subr.mxu0 0.0
      %523 = vmatpush2.msra.mxu0 0.0
      %524 = vmatprep.subr.mxu0 0.0
      %525 = vmatpush2.msra.mxu0 0.0
      %526 = vmatprep.subr.mxu0 0.0
      %527 = vmatpush2.msra.mxu0 0.0
      %528 = vmatprep.subr.mxu0 0.0
      %529 = vmatpush2.msra.mxu0 0.0
      %530 = vmatprep.subr.mxu0 0.0
      %531 = vmatpush2.msra.mxu0 0.0
      %532 = vmatprep.mubr.f32.mxu0 0.0
      %533 = vmatmul.mubr.f32.gmra.mxu0 %v395
      %v534 = vpop.f32.mrf.mxu0
      %v535 = vadd.f32 %v456, %v534
      %v536 = vpop.f32.mrf.mxu0
      %v537 = vadd.f32 %v460, %v536
      %538 = vmatprep.mubr.f32.mxu0 0.0
      %539 = vmatmul.mubr.f32.gmra.mxu0 %v396
      %v540 = vpop.f32.mrf.mxu0
      %v541 = vadd.f32 %v456, %v540
      %v542 = vpop.f32.mrf.mxu0
      %v543 = vadd.f32 %v460, %v542
      %544 = vmatprep.mubr.f32.mxu0 0.0
      %545 = vmatmul.mubr.f32.gmra.mxu0 %v397
      %v546 = vpop.f32.mrf.mxu0
      %v547 = vadd.f32 %v456, %v546
      %v548 = vpop.f32.mrf.mxu0
      %v549 = vadd.f32 %v460, %v548
      %550 = vmatprep.mubr.f32.mxu0 0.0
      %551 = vmatmul.mubr.f32.gmra.mxu0 %v398
      %v552 = vpop.f32.mrf.mxu0
      %v553 = vadd.f32 %v456, %v552
      %v554 = vpop.f32.mrf.mxu0
      %v555 = vadd.f32 %v460, %v554
      %556 = vmatprep.mubr.f32.mxu0 0.0
      %557 = vmatmul.mubr.f32.gmra.mxu0 %v399
      %v558 = vpop.f32.mrf.mxu0
      %v559 = vadd.f32 %v456, %v558
      %v560 = vpop.f32.mrf.mxu0
      %v561 = vadd.f32 %v460, %v560
      %562 = vmatprep.mubr.f32.mxu0 0.0
      %563 = vmatmul.mubr.f32.gmra.mxu0 %v400
      %v564 = vpop.f32.mrf.mxu0
      %v565 = vadd.f32 %v456, %v564
      %v566 = vpop.f32.mrf.mxu0
      %v567 = vadd.f32 %v460, %v566
      %568 = vmatprep.mubr.f32.mxu0 0.0
      %569 = vmatmul.mubr.f32.gmra.mxu0 %v401
      %v570 = vpop.f32.mrf.mxu0
      %v571 = vadd.f32 %v456, %v570
      %v572 = vpop.f32.mrf.mxu0
      %v573 = vadd.f32 %v460, %v572
      %574 = vmatprep.mubr.f32.mxu0 0.0
      %575 = vmatmul.mubr.f32.gmra.mxu0 %v402
      %v576 = vpop.f32.mrf.mxu0
      %v577 = vadd.f32 %v456, %v576
      %v578 = vpop.f32.mrf.mxu0
      %v579 = vadd.f32 %v460, %v578
      %580 = vdwg.mxu0
      %581 = vmatprep.subr.mxu0 0.0
      %582 = vmatpush1.msra.mxu0 %v450
      %583 = vmatprep.subr.mxu0 0.0
      %584 = vmatpush1.msra.mxu0 %v447
      %585 = vmatprep.subr.mxu0 0.0
      %586 = vmatpush1.msra.mxu0 %v444
      %587 = vmatprep.subr.mxu0 0.0
      %588 = vmatpush1.msra.mxu0 %v441
      %589 = vmatprep.subr.mxu0 0.0
      %590 = vmatpush1.msra.mxu0 %v438
      %591 = vmatprep.subr.mxu0 0.0
      %592 = vmatpush1.msra.mxu0 %v435
      %593 = vmatprep.subr.mxu0 0.0
      %594 = vmatpush1.msra.mxu0 %v432
      %595 = vmatprep.subr.mxu0 0.0
      %596 = vmatpush1.msra.mxu0 %v429
      %597 = vmatprep.subr.mxu0 0.0
      %598 = vmatpush1.msra.mxu0 %v426
      %599 = vmatprep.subr.mxu0 0.0
      %600 = vmatpush1.msra.mxu0 %v423
      %601 = vmatprep.subr.mxu0 0.0
      %602 = vmatpush1.msra.mxu0 %v420
      %603 = vmatprep.subr.mxu0 0.0
      %604 = vmatpush1.msra.mxu0 %v417
      %605 = vmatprep.subr.mxu0 0.0
      %606 = vmatpush1.msra.mxu0 %v414
      %607 = vmatprep.subr.mxu0 0.0
      %608 = vmatpush1.msra.mxu0 %v411
      %609 = vmatprep.subr.mxu0 0.0
      %610 = vmatpush1.msra.mxu0 %v408
      %611 = vmatprep.subr.mxu0 0.0
      %612 = vmatpush1.msra.mxu0 %v405
      %613 = vmatprep.subr.mxu0 0.0
      %614 = vmatpush2.msra.mxu0 0.0
      %615 = vmatprep.subr.mxu0 0.0
      %616 = vmatpush2.msra.mxu0 0.0
      %617 = vmatprep.subr.mxu0 0.0
      %618 = vmatpush2.msra.mxu0 0.0
      %619 = vmatprep.subr.mxu0 0.0
      %620 = vmatpush2.msra.mxu0 0.0
      %621 = vmatprep.subr.mxu0 0.0
      %622 = vmatpush2.msra.mxu0 0.0
      %623 = vmatprep.subr.mxu0 0.0
      %624 = vmatpush2.msra.mxu0 0.0
      %625 = vmatprep.subr.mxu0 0.0
      %626 = vmatpush2.msra.mxu0 0.0
      %627 = vmatprep.subr.mxu0 0.0
      %628 = vmatpush2.msra.mxu0 0.0
      %629 = vmatprep.subr.mxu0 0.0
      %630 = vmatpush2.msra.mxu0 0.0
      %631 = vmatprep.subr.mxu0 0.0
      %632 = vmatpush2.msra.mxu0 0.0
      %633 = vmatprep.subr.mxu0 0.0
      %634 = vmatpush2.msra.mxu0 0.0
      %635 = vmatprep.subr.mxu0 0.0
      %636 = vmatpush2.msra.mxu0 0.0
      %637 = vmatprep.subr.mxu0 0.0
      %638 = vmatpush2.msra.mxu0 0.0
      %639 = vmatprep.subr.mxu0 0.0
      %640 = vmatpush2.msra.mxu0 0.0
      %641 = vmatprep.subr.mxu0 0.0
      %642 = vmatpush2.msra.mxu0 0.0
      %643 = vmatprep.subr.mxu0 0.0
      %644 = vmatpush2.msra.mxu0 0.0
      %645 = vmatprep.mubr.f32.mxu0 0.0
      %646 = vmatmul.mubr.f32.gmra.mxu0 %v395
      %v647 = vpop.f32.mrf.mxu0
      %v648 = vadd.f32 %v464, %v647
      %v649 = vpop.f32.mrf.mxu0
      %650 = vmatprep.mubr.f32.mxu0 0.0
      %651 = vmatmul.mubr.f32.gmra.mxu0 %v396
      %v652 = vpop.f32.mrf.mxu0
      %v653 = vadd.f32 %v464, %v652
      %v654 = vpop.f32.mrf.mxu0
      %655 = vmatprep.mubr.f32.mxu0 0.0
      %656 = vmatmul.mubr.f32.gmra.mxu0 %v397
      %v657 = vpop.f32.mrf.mxu0
      %v658 = vadd.f32 %v464, %v657
      %v659 = vpop.f32.mrf.mxu0
      %660 = vmatprep.mubr.f32.mxu0 0.0
      %661 = vmatmul.mubr.f32.gmra.mxu0 %v398
      %v662 = vpop.f32.mrf.mxu0
      %v663 = vadd.f32 %v464, %v662
      %v664 = vpop.f32.mrf.mxu0
      %665 = vmatprep.mubr.f32.mxu0 0.0
      %666 = vmatmul.mubr.f32.gmra.mxu0 %v399
      %v667 = vpop.f32.mrf.mxu0
      %v668 = vadd.f32 %v464, %v667
      %v669 = vpop.f32.mrf.mxu0
      %670 = vmatprep.mubr.f32.mxu0 0.0
      %671 = vmatmul.mubr.f32.gmra.mxu0 %v400
      %v672 = vpop.f32.mrf.mxu0
      %v673 = vadd.f32 %v464, %v672
      %v674 = vpop.f32.mrf.mxu0
      %675 = vmatprep.mubr.f32.mxu0 0.0
      %676 = vmatmul.mubr.f32.gmra.mxu0 %v401
      %v677 = vpop.f32.mrf.mxu0
      %v678 = vadd.f32 %v464, %v677
      %v679 = vpop.f32.mrf.mxu0
      %680 = vmatprep.mubr.f32.mxu0 0.0
      %681 = vmatmul.mubr.f32.gmra.mxu0 %v402
      %v682 = vpop.f32.mrf.mxu0
      %v683 = vadd.f32 %v464, %v682
      %v684 = vpop.f32.mrf.mxu0
      %685 = vdwg.mxu0
      %686 = vst [vmem:[#allocation3] sm:$0xff] %v535
      %687 = vst [vmem:[#allocation3 + $0x8] sm:$0xff] %v537
      %688 = vst [vmem:[#allocation3 + $0x10] sm:$0xff] %v648
      %689 = vst [vmem:[#allocation3 + $0x18] sm:$0xff] %v541
      %690 = vst [vmem:[#allocation3 + $0x20] sm:$0xff] %v543
      %691 = vst [vmem:[#allocation3 + $0x28] sm:$0xff] %v653
      %692 = vst [vmem:[#allocation3 + $0x30] sm:$0xff] %v547
      %693 = vst [vmem:[#allocation3 + $0x38] sm:$0xff] %v549
      %694 = vst [vmem:[#allocation3 + $0x40] sm:$0xff] %v658
      %695 = vst [vmem:[#allocation3 + $0x48] sm:$0xff] %v553
      %696 = vst [vmem:[#allocation3 + $0x50] sm:$0xff] %v555
      %697 = vst [vmem:[#allocation3 + $0x58] sm:$0xff] %v663
      %698 = vst [vmem:[#allocation3 + $0x60] sm:$0xff] %v559
      %699 = vst [vmem:[#allocation3 + $0x68] sm:$0xff] %v561
      %700 = vst [vmem:[#allocation3 + $0x70] sm:$0xff] %v668
      %701 = vst [vmem:[#allocation3 + $0x78] sm:$0xff] %v565
      %702 = vst [vmem:[#allocation3 + $0x80] sm:$0xff] %v567
      %703 = vst [vmem:[#allocation3 + $0x88] sm:$0xff] %v673
      %704 = vst [vmem:[#allocation3 + $0x90] sm:$0xff] %v571
      %705 = vst [vmem:[#allocation3 + $0x98] sm:$0xff] %v573
      %706 = vst [vmem:[#allocation3 + $0xa0] sm:$0xff] %v678
      %707 = vst [vmem:[#allocation3 + $0xa8] sm:$0xff] %v577
      %708 = vst [vmem:[#allocation3 + $0xb0] sm:$0xff] %v579
      %709 = vst [vmem:[#allocation3 + $0xb8] sm:$0xff] %v683
      %v710 = vld [vmem:[%s2] sm:$0xff]
      %v711 = vld [vmem:[%s2 + $0x8] sm:$0xff]
      %v712 = vld [vmem:[%s2 + $0x10] sm:$0xff]
      %v713 = vld [vmem:[%s2 + $0x18] sm:$0xff]
      %v714 = vld [vmem:[%s2 + $0x20] sm:$0xff]
      %v715 = vld [vmem:[%s2 + $0x28] sm:$0xff]
      %v716 = vld [vmem:[%s2 + $0x30] sm:$0xff]
      %v717 = vld [vmem:[%s2 + $0x38] sm:$0xff]
      %v718 = vld [vmem:[%s2 + $0x40] sm:$0xff]
      %v719 = vld [vmem:[%s2 + $0x48] sm:$0xff]
      %v720 = vld [vmem:[%s2 + $0x50] sm:$0xff]
      %v721 = vld [vmem:[%s2 + $0x58] sm:$0xff]
      %v722 = vld [vmem:[%s2 + $0x60] sm:$0xff]
      %v723 = vld [vmem:[%s2 + $0x68] sm:$0xff]
      %v724 = vld [vmem:[%s2 + $0x70] sm:$0xff]
      %v725 = vld [vmem:[%s2 + $0x78] sm:$0xff]
      %v726 = vld [vmem:[%s2 + $0x80] sm:$0xff]
      %v727 = vld [vmem:[%s2 + $0x88] sm:$0xff]
      %v728 = vld [vmem:[%s2 + $0x90] sm:$0xff]
      %v729 = vld [vmem:[%s2 + $0x98] sm:$0xff]
      %v730 = vld [vmem:[%s2 + $0xa0] sm:$0xff]
      %v731 = vld [vmem:[%s2 + $0xa8] sm:$0xff]
      %v732 = vld [vmem:[%s2 + $0xb0] sm:$0xff]
      %v733 = vld [vmem:[%s2 + $0xb8] sm:$0xff]
      %v734 = vld [vmem:[%s2 + $0xc0] sm:$0xff]
      %v735 = vld [vmem:[%s2 + $0xc8] sm:$0xff]
      %v736 = vld [vmem:[%s2 + $0xd0] sm:$0xff]
      %v737 = vld [vmem:[%s2 + $0xd8] sm:$0xff]
      %v738 = vld [vmem:[%s2 + $0xe0] sm:$0xff]
      %v739 = vld [vmem:[%s2 + $0xe8] sm:$0xff]
      %v740 = vld [vmem:[%s2 + $0xf0] sm:$0xff]
      %v741 = vld [vmem:[%s2 + $0xf8] sm:$0xff]
      %v742 = vld [vmem:[%s2 + $0x100] sm:$0xff]
      %v743 = vld [vmem:[%s2 + $0x108] sm:$0xff]
      %v744 = vld [vmem:[%s2 + $0x110] sm:$0xff]
      %v745 = vld [vmem:[%s2 + $0x118] sm:$0xff]
      %v746 = vld [vmem:[%s2 + $0x120] sm:$0xff]
      %v747 = vld [vmem:[%s2 + $0x128] sm:$0xff]
      %v748 = vld [vmem:[%s2 + $0x130] sm:$0xff]
      %v749 = vld [vmem:[%s2 + $0x138] sm:$0xff]
      %v750 = vld [vmem:[%s2 + $0x140] sm:$0xff]
      %v751 = vld [vmem:[%s2 + $0x148] sm:$0xff]
      %v752 = vld [vmem:[%s2 + $0x150] sm:$0xff]
      %v753 = vld [vmem:[%s2 + $0x158] sm:$0xff]
      %v754 = vld [vmem:[%s2 + $0x160] sm:$0xff]
      %v755 = vld [vmem:[%s2 + $0x168] sm:$0xff]
      %v756 = vld [vmem:[%s2 + $0x170] sm:$0xff]
      %v757 = vld [vmem:[%s2 + $0x178] sm:$0xff]
      %v758 = vld [vmem:[%s4] sm:$0x7]
      %v760 = vlaneseq
      %v761 = vshrl.u32 %v760, 7
      %v762 = vsub.s32 0, %v761
      %v763 = vrot.slane %v758, %v762
      %v764 = vlaneseq
      %v765 = vshrl.u32 %v764, 7
      %v766 = vsub.s32 1, %v765
      %v767 = vrot.slane %v758, %v766
      %v768 = vlaneseq
      %v769 = vshrl.u32 %v768, 7
      %v770 = vsub.s32 2, %v769
      %v771 = vrot.slane %v758, %v770
      %775 = vmatprep.subr.mxu0 %v756
      %776 = vmatpush1.msra.mxu0 %v755
      %777 = vmatprep.subr.mxu0 %v753
      %778 = vmatpush1.msra.mxu0 %v752
      %779 = vmatprep.subr.mxu0 %v750
      %780 = vmatpush1.msra.mxu0 %v749
      %781 = vmatprep.subr.mxu0 %v747
      %782 = vmatpush1.msra.mxu0 %v746
      %783 = vmatprep.subr.mxu0 %v744
      %784 = vmatpush1.msra.mxu0 %v743
      %785 = vmatprep.subr.mxu0 %v741
      %786 = vmatpush1.msra.mxu0 %v740
      %787 = vmatprep.subr.mxu0 %v738
      %788 = vmatpush1.msra.mxu0 %v737
      %789 = vmatprep.subr.mxu0 %v735
      %790 = vmatpush1.msra.mxu0 %v734
      %791 = vmatprep.subr.mxu0 %v732
      %792 = vmatpush1.msra.mxu0 %v731
      %793 = vmatprep.subr.mxu0 %v729
      %794 = vmatpush1.msra.mxu0 %v728
      %795 = vmatprep.subr.mxu0 %v726
      %796 = vmatpush1.msra.mxu0 %v725
      %797 = vmatprep.subr.mxu0 %v723
      %798 = vmatpush1.msra.mxu0 %v722
      %799 = vmatprep.subr.mxu0 %v720
      %800 = vmatpush1.msra.mxu0 %v719
      %801 = vmatprep.subr.mxu0 %v717
      %802 = vmatpush1.msra.mxu0 %v716
      %803 = vmatprep.subr.mxu0 %v714
      %804 = vmatpush1.msra.mxu0 %v713
      %805 = vmatprep.subr.mxu0 %v711
      %806 = vmatpush1.msra.mxu0 %v710
      %807 = vmatprep.subr.mxu0 0.0
      %808 = vmatpush2.msra.mxu0 0.0
      %809 = vmatprep.subr.mxu0 0.0
      %810 = vmatpush2.msra.mxu0 0.0
      %811 = vmatprep.subr.mxu0 0.0
      %812 = vmatpush2.msra.mxu0 0.0
      %813 = vmatprep.subr.mxu0 0.0
      %814 = vmatpush2.msra.mxu0 0.0
      %815 = vmatprep.subr.mxu0 0.0
      %816 = vmatpush2.msra.mxu0 0.0
      %817 = vmatprep.subr.mxu0 0.0
      %818 = vmatpush2.msra.mxu0 0.0
      %819 = vmatprep.subr.mxu0 0.0
      %820 = vmatpush2.msra.mxu0 0.0
      %821 = vmatprep.subr.mxu0 0.0
      %822 = vmatpush2.msra.mxu0 0.0
      %823 = vmatprep.subr.mxu0 0.0
      %824 = vmatpush2.msra.mxu0 0.0
      %825 = vmatprep.subr.mxu0 0.0
      %826 = vmatpush2.msra.mxu0 0.0
      %827 = vmatprep.subr.mxu0 0.0
      %828 = vmatpush2.msra.mxu0 0.0
      %829 = vmatprep.subr.mxu0 0.0
      %830 = vmatpush2.msra.mxu0 0.0
      %831 = vmatprep.subr.mxu0 0.0
      %832 = vmatpush2.msra.mxu0 0.0
      %833 = vmatprep.subr.mxu0 0.0
      %834 = vmatpush2.msra.mxu0 0.0
      %835 = vmatprep.subr.mxu0 0.0
      %836 = vmatpush2.msra.mxu0 0.0
      %837 = vmatprep.subr.mxu0 0.0
      %838 = vmatpush2.msra.mxu0 0.0
      %839 = vmatprep.mubr.f32.mxu0 0.0
      %840 = vmatmul.mubr.f32.gmra.mxu0 %v395
      %v841 = vpop.f32.mrf.mxu0
      %v842 = vadd.f32 %v763, %v841
      %v843 = vpop.f32.mrf.mxu0
      %v844 = vadd.f32 %v767, %v843
      %845 = vmatprep.mubr.f32.mxu0 0.0
      %846 = vmatmul.mubr.f32.gmra.mxu0 %v396
      %v847 = vpop.f32.mrf.mxu0
      %v848 = vadd.f32 %v763, %v847
      %v849 = vpop.f32.mrf.mxu0
      %v850 = vadd.f32 %v767, %v849
      %851 = vmatprep.mubr.f32.mxu0 0.0
      %852 = vmatmul.mubr.f32.gmra.mxu0 %v397
      %v853 = vpop.f32.mrf.mxu0
      %v854 = vadd.f32 %v763, %v853
      %v855 = vpop.f32.mrf.mxu0
      %v856 = vadd.f32 %v767, %v855
      %857 = vmatprep.mubr.f32.mxu0 0.0
      %858 = vmatmul.mubr.f32.gmra.mxu0 %v398
      %v859 = vpop.f32.mrf.mxu0
      %v860 = vadd.f32 %v763, %v859
      %v861 = vpop.f32.mrf.mxu0
      %v862 = vadd.f32 %v767, %v861
      %863 = vmatprep.mubr.f32.mxu0 0.0
      %864 = vmatmul.mubr.f32.gmra.mxu0 %v399
      %v865 = vpop.f32.mrf.mxu0
      %v866 = vadd.f32 %v763, %v865
      %v867 = vpop.f32.mrf.mxu0
      %v868 = vadd.f32 %v767, %v867
      %869 = vmatprep.mubr.f32.mxu0 0.0
      %870 = vmatmul.mubr.f32.gmra.mxu0 %v400
      %v871 = vpop.f32.mrf.mxu0
      %v872 = vadd.f32 %v763, %v871
      %v873 = vpop.f32.mrf.mxu0
      %v874 = vadd.f32 %v767, %v873
      %875 = vmatprep.mubr.f32.mxu0 0.0
      %876 = vmatmul.mubr.f32.gmra.mxu0 %v401
      %v877 = vpop.f32.mrf.mxu0
      %v878 = vadd.f32 %v763, %v877
      %v879 = vpop.f32.mrf.mxu0
      %v880 = vadd.f32 %v767, %v879
      %881 = vmatprep.mubr.f32.mxu0 0.0
      %882 = vmatmul.mubr.f32.gmra.mxu0 %v402
      %v883 = vpop.f32.mrf.mxu0
      %v884 = vadd.f32 %v763, %v883
      %v885 = vpop.f32.mrf.mxu0
      %v886 = vadd.f32 %v767, %v885
      %887 = vdwg.mxu0
      %888 = vmatprep.subr.mxu0 0.0
      %889 = vmatpush1.msra.mxu0 %v757
      %890 = vmatprep.subr.mxu0 0.0
      %891 = vmatpush1.msra.mxu0 %v754
      %892 = vmatprep.subr.mxu0 0.0
      %893 = vmatpush1.msra.mxu0 %v751
      %894 = vmatprep.subr.mxu0 0.0
      %895 = vmatpush1.msra.mxu0 %v748
      %896 = vmatprep.subr.mxu0 0.0
      %897 = vmatpush1.msra.mxu0 %v745
      %898 = vmatprep.subr.mxu0 0.0
      %899 = vmatpush1.msra.mxu0 %v742
      %900 = vmatprep.subr.mxu0 0.0
      %901 = vmatpush1.msra.mxu0 %v739
      %902 = vmatprep.subr.mxu0 0.0
      %903 = vmatpush1.msra.mxu0 %v736
      %904 = vmatprep.subr.mxu0 0.0
      %905 = vmatpush1.msra.mxu0 %v733
      %906 = vmatprep.subr.mxu0 0.0
      %907 = vmatpush1.msra.mxu0 %v730
      %908 = vmatprep.subr.mxu0 0.0
      %909 = vmatpush1.msra.mxu0 %v727
      %910 = vmatprep.subr.mxu0 0.0
      %911 = vmatpush1.msra.mxu0 %v724
      %912 = vmatprep.subr.mxu0 0.0
      %913 = vmatpush1.msra.mxu0 %v721
      %914 = vmatprep.subr.mxu0 0.0
      %915 = vmatpush1.msra.mxu0 %v718
      %916 = vmatprep.subr.mxu0 0.0
      %917 = vmatpush1.msra.mxu0 %v715
      %918 = vmatprep.subr.mxu0 0.0
      %919 = vmatpush1.msra.mxu0 %v712
      %920 = vmatprep.subr.mxu0 0.0
      %921 = vmatpush2.msra.mxu0 0.0
      %922 = vmatprep.subr.mxu0 0.0
      %923 = vmatpush2.msra.mxu0 0.0
      %924 = vmatprep.subr.mxu0 0.0
      %925 = vmatpush2.msra.mxu0 0.0
      %926 = vmatprep.subr.mxu0 0.0
      %927 = vmatpush2.msra.mxu0 0.0
      %928 = vmatprep.subr.mxu0 0.0
      %929 = vmatpush2.msra.mxu0 0.0
      %930 = vmatprep.subr.mxu0 0.0
      %931 = vmatpush2.msra.mxu0 0.0
      %932 = vmatprep.subr.mxu0 0.0
      %933 = vmatpush2.msra.mxu0 0.0
      %934 = vmatprep.subr.mxu0 0.0
      %935 = vmatpush2.msra.mxu0 0.0
      %936 = vmatprep.subr.mxu0 0.0
      %937 = vmatpush2.msra.mxu0 0.0
      %938 = vmatprep.subr.mxu0 0.0
      %939 = vmatpush2.msra.mxu0 0.0
      %940 = vmatprep.subr.mxu0 0.0
      %941 = vmatpush2.msra.mxu0 0.0
      %942 = vmatprep.subr.mxu0 0.0
      %943 = vmatpush2.msra.mxu0 0.0
      %944 = vmatprep.subr.mxu0 0.0
      %945 = vmatpush2.msra.mxu0 0.0
      %946 = vmatprep.subr.mxu0 0.0
      %947 = vmatpush2.msra.mxu0 0.0
      %948 = vmatprep.subr.mxu0 0.0
      %949 = vmatpush2.msra.mxu0 0.0
      %950 = vmatprep.subr.mxu0 0.0
      %951 = vmatpush2.msra.mxu0 0.0
      %952 = vmatprep.mubr.f32.mxu0 0.0
      %953 = vmatmul.mubr.f32.gmra.mxu0 %v395
      %v954 = vpop.f32.mrf.mxu0
      %v955 = vadd.f32 %v771, %v954
      %v956 = vpop.f32.mrf.mxu0
      %957 = vmatprep.mubr.f32.mxu0 0.0
      %958 = vmatmul.mubr.f32.gmra.mxu0 %v396
      %v959 = vpop.f32.mrf.mxu0
      %v960 = vadd.f32 %v771, %v959
      %v961 = vpop.f32.mrf.mxu0
      %962 = vmatprep.mubr.f32.mxu0 0.0
      %963 = vmatmul.mubr.f32.gmra.mxu0 %v397
      %v964 = vpop.f32.mrf.mxu0
      %v965 = vadd.f32 %v771, %v964
      %v966 = vpop.f32.mrf.mxu0
      %967 = vmatprep.mubr.f32.mxu0 0.0
      %968 = vmatmul.mubr.f32.gmra.mxu0 %v398
      %v969 = vpop.f32.mrf.mxu0
      %v970 = vadd.f32 %v771, %v969
      %v971 = vpop.f32.mrf.mxu0
      %972 = vmatprep.mubr.f32.mxu0 0.0
      %973 = vmatmul.mubr.f32.gmra.mxu0 %v399
      %v974 = vpop.f32.mrf.mxu0
      %v975 = vadd.f32 %v771, %v974
      %v976 = vpop.f32.mrf.mxu0
      %977 = vmatprep.mubr.f32.mxu0 0.0
      %978 = vmatmul.mubr.f32.gmra.mxu0 %v400
      %v979 = vpop.f32.mrf.mxu0
      %v980 = vadd.f32 %v771, %v979
      %v981 = vpop.f32.mrf.mxu0
      %982 = vmatprep.mubr.f32.mxu0 0.0
      %983 = vmatmul.mubr.f32.gmra.mxu0 %v401
      %v984 = vpop.f32.mrf.mxu0
      %v985 = vadd.f32 %v771, %v984
      %v986 = vpop.f32.mrf.mxu0
      %987 = vmatprep.mubr.f32.mxu0 0.0
      %988 = vmatmul.mubr.f32.gmra.mxu0 %v402
      %v989 = vpop.f32.mrf.mxu0
      %v990 = vadd.f32 %v771, %v989
      %v991 = vpop.f32.mrf.mxu0
      %992 = vdwg.mxu0
      %993 = vst [vmem:[#allocation4] sm:$0xff] %v842
      %994 = vst [vmem:[#allocation4 + $0x8] sm:$0xff] %v844
      %995 = vst [vmem:[#allocation4 + $0x10] sm:$0xff] %v955
      %996 = vst [vmem:[#allocation4 + $0x18] sm:$0xff] %v848
      %997 = vst [vmem:[#allocation4 + $0x20] sm:$0xff] %v850
      %998 = vst [vmem:[#allocation4 + $0x28] sm:$0xff] %v960
      %999 = vst [vmem:[#allocation4 + $0x30] sm:$0xff] %v854
      %1000 = vst [vmem:[#allocation4 + $0x38] sm:$0xff] %v856
      %1001 = vst [vmem:[#allocation4 + $0x40] sm:$0xff] %v965
      %1002 = vst [vmem:[#allocation4 + $0x48] sm:$0xff] %v860
      %1003 = vst [vmem:[#allocation4 + $0x50] sm:$0xff] %v862
      %1004 = vst [vmem:[#allocation4 + $0x58] sm:$0xff] %v970
      %1005 = vst [vmem:[#allocation4 + $0x60] sm:$0xff] %v866
      %1006 = vst [vmem:[#allocation4 + $0x68] sm:$0xff] %v868
      %1007 = vst [vmem:[#allocation4 + $0x70] sm:$0xff] %v975
      %1008 = vst [vmem:[#allocation4 + $0x78] sm:$0xff] %v872
      %1009 = vst [vmem:[#allocation4 + $0x80] sm:$0xff] %v874
      %1010 = vst [vmem:[#allocation4 + $0x88] sm:$0xff] %v980
      %1011 = vst [vmem:[#allocation4 + $0x90] sm:$0xff] %v878
      %1012 = vst [vmem:[#allocation4 + $0x98] sm:$0xff] %v880
      %1013 = vst [vmem:[#allocation4 + $0xa0] sm:$0xff] %v985
      %1014 = vst [vmem:[#allocation4 + $0xa8] sm:$0xff] %v884
      %1015 = vst [vmem:[#allocation4 + $0xb0] sm:$0xff] %v886
      %1016 = vst [vmem:[#allocation4 + $0xb8] sm:$0xff] %v990
      %v1017 = vld [vmem:[%s5] sm:$0xff]
      %v1018 = vld [vmem:[%s5 + $0x8] sm:$0xff]
      %v1019 = vld [vmem:[%s5 + $0x10] sm:$0xff]
      %v1020 = vld [vmem:[%s5 + $0x18] sm:$0xff]
      %v1021 = vld [vmem:[%s5 + $0x20] sm:$0xff]
      %v1022 = vld [vmem:[%s5 + $0x28] sm:$0xff]
      %v1023 = vld [vmem:[%s5 + $0x30] sm:$0xff]
      %v1024 = vld [vmem:[%s5 + $0x38] sm:$0xff]
      %v1025 = vld [vmem:[%s5 + $0x40] sm:$0xff]
      %v1026 = vld [vmem:[%s5 + $0x48] sm:$0xff]
      %v1027 = vld [vmem:[%s5 + $0x50] sm:$0xff]
      %v1028 = vld [vmem:[%s5 + $0x58] sm:$0xff]
      %v1029 = vld [vmem:[%s5 + $0x60] sm:$0xff]
      %v1030 = vld [vmem:[%s5 + $0x68] sm:$0xff]
      %v1031 = vld [vmem:[%s5 + $0x70] sm:$0xff]
      %v1032 = vld [vmem:[%s5 + $0x78] sm:$0xff]
      %v1033 = vld [vmem:[%s5 + $0x80] sm:$0xff]
      %v1034 = vld [vmem:[%s5 + $0x88] sm:$0xff]
      %v1035 = vld [vmem:[%s5 + $0x90] sm:$0xff]
      %v1036 = vld [vmem:[%s5 + $0x98] sm:$0xff]
      %v1037 = vld [vmem:[%s5 + $0xa0] sm:$0xff]
      %v1038 = vld [vmem:[%s5 + $0xa8] sm:$0xff]
      %v1039 = vld [vmem:[%s5 + $0xb0] sm:$0xff]
      %v1040 = vld [vmem:[%s5 + $0xb8] sm:$0xff]
      %v1041 = vld [vmem:[%s5 + $0xc0] sm:$0xff]
      %v1042 = vld [vmem:[%s5 + $0xc8] sm:$0xff]
      %v1043 = vld [vmem:[%s5 + $0xd0] sm:$0xff]
      %v1044 = vld [vmem:[%s5 + $0xd8] sm:$0xff]
      %v1045 = vld [vmem:[%s5 + $0xe0] sm:$0xff]
      %v1046 = vld [vmem:[%s5 + $0xe8] sm:$0xff]
      %v1047 = vld [vmem:[%s5 + $0xf0] sm:$0xff]
      %v1048 = vld [vmem:[%s5 + $0xf8] sm:$0xff]
      %v1049 = vld [vmem:[%s5 + $0x100] sm:$0xff]
      %v1050 = vld [vmem:[%s5 + $0x108] sm:$0xff]
      %v1051 = vld [vmem:[%s5 + $0x110] sm:$0xff]
      %v1052 = vld [vmem:[%s5 + $0x118] sm:$0xff]
      %v1053 = vld [vmem:[%s5 + $0x120] sm:$0xff]
      %v1054 = vld [vmem:[%s5 + $0x128] sm:$0xff]
      %v1055 = vld [vmem:[%s5 + $0x130] sm:$0xff]
      %v1056 = vld [vmem:[%s5 + $0x138] sm:$0xff]
      %v1057 = vld [vmem:[%s5 + $0x140] sm:$0xff]
      %v1058 = vld [vmem:[%s5 + $0x148] sm:$0xff]
      %v1059 = vld [vmem:[%s5 + $0x150] sm:$0xff]
      %v1060 = vld [vmem:[%s5 + $0x158] sm:$0xff]
      %v1061 = vld [vmem:[%s5 + $0x160] sm:$0xff]
      %v1062 = vld [vmem:[%s5 + $0x168] sm:$0xff]
      %v1063 = vld [vmem:[%s5 + $0x170] sm:$0xff]
      %v1064 = vld [vmem:[%s5 + $0x178] sm:$0xff]
      %v1065 = vld [vmem:[%s5 + $0x180] sm:$0xff]
      %v1066 = vld [vmem:[%s5 + $0x188] sm:$0xff]
      %v1067 = vld [vmem:[%s5 + $0x190] sm:$0xff]
      %v1068 = vld [vmem:[%s5 + $0x198] sm:$0xff]
      %v1069 = vld [vmem:[%s5 + $0x1a0] sm:$0xff]
      %v1070 = vld [vmem:[%s5 + $0x1a8] sm:$0xff]
      %v1071 = vld [vmem:[%s5 + $0x1b0] sm:$0xff]
      %v1072 = vld [vmem:[%s5 + $0x1b8] sm:$0xff]
      %v1073 = vld [vmem:[%s5 + $0x1c0] sm:$0xff]
      %v1074 = vld [vmem:[%s5 + $0x1c8] sm:$0xff]
      %v1075 = vld [vmem:[%s5 + $0x1d0] sm:$0xff]
      %v1076 = vld [vmem:[%s5 + $0x1d8] sm:$0xff]
      %v1077 = vld [vmem:[%s5 + $0x1e0] sm:$0xff]
      %v1078 = vld [vmem:[%s5 + $0x1e8] sm:$0xff]
      %v1079 = vld [vmem:[%s5 + $0x1f0] sm:$0xff]
      %v1080 = vld [vmem:[%s5 + $0x1f8] sm:$0xff]
      %v1081 = vld [vmem:[%s5 + $0x200] sm:$0xff]
      %v1082 = vld [vmem:[%s5 + $0x208] sm:$0xff]
      %v1083 = vld [vmem:[%s5 + $0x210] sm:$0xff]
      %v1084 = vld [vmem:[%s5 + $0x218] sm:$0xff]
      %v1085 = vld [vmem:[%s5 + $0x220] sm:$0xff]
      %v1086 = vld [vmem:[%s5 + $0x228] sm:$0xff]
      %v1087 = vld [vmem:[%s5 + $0x230] sm:$0xff]
      %v1088 = vld [vmem:[%s5 + $0x238] sm:$0xff]
      %v1089 = vld [vmem:[%s5 + $0x240] sm:$0xff]
      %v1090 = vld [vmem:[%s5 + $0x248] sm:$0xff]
      %v1091 = vld [vmem:[%s5 + $0x250] sm:$0xff]
      %v1092 = vld [vmem:[%s5 + $0x258] sm:$0xff]
      %v1093 = vld [vmem:[%s5 + $0x260] sm:$0xff]
      %v1094 = vld [vmem:[%s5 + $0x268] sm:$0xff]
      %v1095 = vld [vmem:[%s5 + $0x270] sm:$0xff]
      %v1096 = vld [vmem:[%s5 + $0x278] sm:$0xff]
      %v1097 = vld [vmem:[%s5 + $0x280] sm:$0xff]
      %v1098 = vld [vmem:[%s5 + $0x288] sm:$0xff]
      %v1099 = vld [vmem:[%s5 + $0x290] sm:$0xff]
      %v1100 = vld [vmem:[%s5 + $0x298] sm:$0xff]
      %v1101 = vld [vmem:[%s5 + $0x2a0] sm:$0xff]
      %v1102 = vld [vmem:[%s5 + $0x2a8] sm:$0xff]
      %v1103 = vld [vmem:[%s5 + $0x2b0] sm:$0xff]
      %v1104 = vld [vmem:[%s5 + $0x2b8] sm:$0xff]
      %v1105 = vld [vmem:[%s5 + $0x2c0] sm:$0xff]
      %v1106 = vld [vmem:[%s5 + $0x2c8] sm:$0xff]
      %v1107 = vld [vmem:[%s5 + $0x2d0] sm:$0xff]
      %v1108 = vld [vmem:[%s5 + $0x2d8] sm:$0xff]
      %v1109 = vld [vmem:[%s5 + $0x2e0] sm:$0xff]
      %v1110 = vld [vmem:[%s5 + $0x2e8] sm:$0xff]
      %v1111 = vld [vmem:[%s5 + $0x2f0] sm:$0xff]
      %v1112 = vld [vmem:[%s5 + $0x2f8] sm:$0xff]
      %v1113 = vld [vmem:[%s6] sm:$0xff]
      %v1114 = vld [vmem:[%s6 + $0x8] sm:$0xff]
      %v1115 = vld [vmem:[%s7] sm:$0xff]
      %v1116 = vld [vmem:[%s7 + $0x8] sm:$0xff]
      %v1117 = vld [vmem:[%s7 + $0x10] sm:$0xff]
      %v1118 = vld [vmem:[%s7 + $0x18] sm:$0xff]
      %v1119 = vld [vmem:[#allocation2] sm:$0xff]
      %v1120 = vld [vmem:[#allocation2 + $0x8] sm:$0xff]
      %v1121 = vld [vmem:[#allocation2 + $0x10] sm:$0xff]
      %v1122 = vld [vmem:[#allocation2 + $0x18] sm:$0xff]
      %v1123 = vld [vmem:[#allocation3] sm:$0xff]
      %v1124 = vld [vmem:[#allocation3 + $0x8] sm:$0xff]
      %v1125 = vld [vmem:[#allocation3 + $0x10] sm:$0xff]
      %s1126 = scalar_lea.vmem [#allocation4], 168
      %v1127 = vld [vmem:[%s1126] sm:$0xff]
      %v1128 = vld [vmem:[%s1126 + $0x8] sm:$0xff]
      %v1129 = vld [vmem:[%s1126 + $0x10] sm:$0xff]
      %1130 = vmatprep.subr.mxu0 %v1063
      %1131 = vmatpush1.msra.mxu0 %v1062
      %1132 = vmatprep.subr.mxu0 %v1060
      %1133 = vmatpush1.msra.mxu0 %v1059
      %1134 = vmatprep.subr.mxu0 %v1057
      %1135 = vmatpush1.msra.mxu0 %v1056
      %1136 = vmatprep.subr.mxu0 %v1054
      %1137 = vmatpush1.msra.mxu0 %v1053
      %1138 = vmatprep.subr.mxu0 %v1051
      %1139 = vmatpush1.msra.mxu0 %v1050
      %1140 = vmatprep.subr.mxu0 %v1048
      %1141 = vmatpush1.msra.mxu0 %v1047
      %1142 = vmatprep.subr.mxu0 %v1045
      %1143 = vmatpush1.msra.mxu0 %v1044
      %1144 = vmatprep.subr.mxu0 %v1042
      %1145 = vmatpush1.msra.mxu0 %v1041
      %1146 = vmatprep.subr.mxu0 %v1039
      %1147 = vmatpush1.msra.mxu0 %v1038
      %1148 = vmatprep.subr.mxu0 %v1036
      %1149 = vmatpush1.msra.mxu0 %v1035
      %1150 = vmatprep.subr.mxu0 %v1033
      %1151 = vmatpush1.msra.mxu0 %v1032
      %1152 = vmatprep.subr.mxu0 %v1030
      %1153 = vmatpush1.msra.mxu0 %v1029
      %1154 = vmatprep.subr.mxu0 %v1027
      %1155 = vmatpush1.msra.mxu0 %v1026
      %1156 = vmatprep.subr.mxu0 %v1024
      %1157 = vmatpush1.msra.mxu0 %v1023
      %1158 = vmatprep.subr.mxu0 %v1021
      %1159 = vmatpush1.msra.mxu0 %v1020
      %1160 = vmatprep.subr.mxu0 %v1018
      %1161 = vmatpush1.msra.mxu0 %v1017
      %1162 = vmatprep.subr.mxu0 %v1111
      %1163 = vmatpush2.msra.mxu0 %v1110
      %1164 = vmatprep.subr.mxu0 %v1108
      %1165 = vmatpush2.msra.mxu0 %v1107
      %1166 = vmatprep.subr.mxu0 %v1105
      %1167 = vmatpush2.msra.mxu0 %v1104
      %1168 = vmatprep.subr.mxu0 %v1102
      %1169 = vmatpush2.msra.mxu0 %v1101
      %1170 = vmatprep.subr.mxu0 %v1099
      %1171 = vmatpush2.msra.mxu0 %v1098
      %1172 = vmatprep.subr.mxu0 %v1096
      %1173 = vmatpush2.msra.mxu0 %v1095
      %1174 = vmatprep.subr.mxu0 %v1093
      %1175 = vmatpush2.msra.mxu0 %v1092
      %1176 = vmatprep.subr.mxu0 %v1090
      %1177 = vmatpush2.msra.mxu0 %v1089
      %1178 = vmatprep.subr.mxu0 %v1087
      %1179 = vmatpush2.msra.mxu0 %v1086
      %1180 = vmatprep.subr.mxu0 %v1084
      %1181 = vmatpush2.msra.mxu0 %v1083
      %1182 = vmatprep.subr.mxu0 %v1081
      %1183 = vmatpush2.msra.mxu0 %v1080
      %1184 = vmatprep.subr.mxu0 %v1078
      %1185 = vmatpush2.msra.mxu0 %v1077
      %1186 = vmatprep.subr.mxu0 %v1075
      %1187 = vmatpush2.msra.mxu0 %v1074
      %1188 = vmatprep.subr.mxu0 %v1072
      %1189 = vmatpush2.msra.mxu0 %v1071
      %1190 = vmatprep.subr.mxu0 %v1069
      %1191 = vmatpush2.msra.mxu0 %v1068
      %1192 = vmatprep.subr.mxu0 %v1066
      %1193 = vmatpush2.msra.mxu0 %v1065
      %1194 = vmatprep.mubr.f32.mxu0 %v1120
      %1195 = vmatmul.mubr.f32.gmra.mxu0 %v1119
      %v1196 = vpop.f32.mrf.mxu0
      %v1197 = vadd.f32 0.0, %v1196
      %v1198 = vpop.f32.mrf.mxu0
      %v1199 = vadd.f32 0.0, %v1198
      %1200 = vmatprep.mubr.f32.mxu0 %v1122
      %1201 = vmatmul.mubr.f32.gmra.mxu0 %v1121
      %v1202 = vpop.f32.mrf.mxu0
      %v1203 = vadd.f32 0.0, %v1202
      %v1204 = vpop.f32.mrf.mxu0
      %v1205 = vadd.f32 0.0, %v1204
      %1206 = vdwg.mxu0
      %1207 = vmatprep.subr.mxu0 0.0
      %1208 = vmatpush1.msra.mxu0 %v1064
      %1209 = vmatprep.subr.mxu0 0.0
      %1210 = vmatpush1.msra.mxu0 %v1061
      %1211 = vmatprep.subr.mxu0 0.0
      %1212 = vmatpush1.msra.mxu0 %v1058
      %1213 = vmatprep.subr.mxu0 0.0
      %1214 = vmatpush1.msra.mxu0 %v1055
      %1215 = vmatprep.subr.mxu0 0.0
      %1216 = vmatpush1.msra.mxu0 %v1052
      %1217 = vmatprep.subr.mxu0 0.0
      %1218 = vmatpush1.msra.mxu0 %v1049
      %1219 = vmatprep.subr.mxu0 0.0
      %1220 = vmatpush1.msra.mxu0 %v1046
      %1221 = vmatprep.subr.mxu0 0.0
      %1222 = vmatpush1.msra.mxu0 %v1043
      %1223 = vmatprep.subr.mxu0 0.0
      %1224 = vmatpush1.msra.mxu0 %v1040
      %1225 = vmatprep.subr.mxu0 0.0
      %1226 = vmatpush1.msra.mxu0 %v1037
      %1227 = vmatprep.subr.mxu0 0.0
      %1228 = vmatpush1.msra.mxu0 %v1034
      %1229 = vmatprep.subr.mxu0 0.0
      %1230 = vmatpush1.msra.mxu0 %v1031
      %1231 = vmatprep.subr.mxu0 0.0
      %1232 = vmatpush1.msra.mxu0 %v1028
      %1233 = vmatprep.subr.mxu0 0.0
      %1234 = vmatpush1.msra.mxu0 %v1025
      %1235 = vmatprep.subr.mxu0 0.0
      %1236 = vmatpush1.msra.mxu0 %v1022
      %1237 = vmatprep.subr.mxu0 0.0
      %1238 = vmatpush1.msra.mxu0 %v1019
      %1239 = vmatprep.subr.mxu0 0.0
      %1240 = vmatpush2.msra.mxu0 %v1112
      %1241 = vmatprep.subr.mxu0 0.0
      %1242 = vmatpush2.msra.mxu0 %v1109
      %1243 = vmatprep.subr.mxu0 0.0
      %1244 = vmatpush2.msra.mxu0 %v1106
      %1245 = vmatprep.subr.mxu0 0.0
      %1246 = vmatpush2.msra.mxu0 %v1103
      %1247 = vmatprep.subr.mxu0 0.0
      %1248 = vmatpush2.msra.mxu0 %v1100
      %1249 = vmatprep.subr.mxu0 0.0
      %1250 = vmatpush2.msra.mxu0 %v1097
      %1251 = vmatprep.subr.mxu0 0.0
      %1252 = vmatpush2.msra.mxu0 %v1094
      %1253 = vmatprep.subr.mxu0 0.0
      %1254 = vmatpush2.msra.mxu0 %v1091
      %1255 = vmatprep.subr.mxu0 0.0
      %1256 = vmatpush2.msra.mxu0 %v1088
      %1257 = vmatprep.subr.mxu0 0.0
      %1258 = vmatpush2.msra.mxu0 %v1085
      %1259 = vmatprep.subr.mxu0 0.0
      %1260 = vmatpush2.msra.mxu0 %v1082
      %1261 = vmatprep.subr.mxu0 0.0
      %1262 = vmatpush2.msra.mxu0 %v1079
      %1263 = vmatprep.subr.mxu0 0.0
      %1264 = vmatpush2.msra.mxu0 %v1076
      %1265 = vmatprep.subr.mxu0 0.0
      %1266 = vmatpush2.msra.mxu0 %v1073
      %1267 = vmatprep.subr.mxu0 0.0
      %1268 = vmatpush2.msra.mxu0 %v1070
      %1269 = vmatprep.subr.mxu0 0.0
      %1270 = vmatpush2.msra.mxu0 %v1067
      %1271 = vmatprep.mubr.f32.mxu0 %v1120
      %1272 = vmatmul.mubr.f32.gmra.mxu0 %v1119
      %v1273 = vpop.f32.mrf.mxu0
      %v1274 = vadd.f32 0.0, %v1273
      %v1275 = vpop.f32.mrf.mxu0
      %1276 = vmatprep.mubr.f32.mxu0 %v1122
      %1277 = vmatmul.mubr.f32.gmra.mxu0 %v1121
      %v1278 = vpop.f32.mrf.mxu0
      %v1279 = vadd.f32 0.0, %v1278
      %v1280 = vpop.f32.mrf.mxu0
      %1281 = vdwg.mxu0
      %v1282 = vadd.f32 %v1123, %v1197
      %v1283 = vadd.f32 %v1127, %v1203
      %v1284 = vxor.u32 %v1282, 2147483648
      %v1285 = vxor.u32 %v1283, 2147483648
      %v1286 = vmul.f32 %v1284, 1.442695
      %v1287 = vpow.pop %v1286
      %v1288 = vmul.f32 %v1285, 1.442695
      %v1289 = vpow.pop %v1288
      %v1290 = vadd.f32 %v1287, 1.0
      %v1291 = vadd.f32 %v1289, 1.0
      %v1292 = vrcp.pop %v1290
      %v1293 = vmul.f32 1.0, %v1292
      %v1294 = vrcp.pop %v1291
      %v1295 = vmul.f32 1.0, %v1294
      %v1296 = vadd.f32 %v1124, %v1199
      %v1297 = vadd.f32 %v1128, %v1205
      %v1298 = vxor.u32 %v1296, 2147483648
      %v1299 = vxor.u32 %v1297, 2147483648
      %v1300 = vmul.f32 %v1298, 1.442695
      %v1301 = vpow.pop %v1300
      %v1302 = vmul.f32 %v1299, 1.442695
      %v1303 = vpow.pop %v1302
      %v1304 = vadd.f32 %v1301, 1.0
      %v1305 = vadd.f32 %v1303, 1.0
      %v1306 = vrcp.pop %v1304
      %v1307 = vmul.f32 1.0, %v1306
      %v1308 = vrcp.pop %v1305
      %v1309 = vmul.f32 1.0, %v1308
      %v1310 = vadd.f32 %v1274, %v1113
      %v1311 = vadd.f32 %v1279, %v1114
      %v1312 = vmul.f32 %v1293, %v1310
      %v1313 = vmul.f32 %v1295, %v1311
      %v1314 = vadd.f32 %v1125, %v1312
      %v1315 = vadd.f32 %v1129, %v1313
      %v1316 = vtanh.pop %v1314
      %v1317 = vtanh.pop %v1315
      %v1318 = vsub.f32 1.0, %v1307
      %v1319 = vsub.f32 1.0, %v1309
      %v1320 = vmul.f32 %v1318, %v1316
      %v1321 = vmul.f32 %v1319, %v1317
      %v1322 = vadd.f32 %v1119, %v1120
      %v1323 = vadd.f32 %v1121, %v1122
      %v1324 = vmul.f32 %v1307, %v1322
      %v1325 = vmul.f32 %v1309, %v1323
      %v1326 = vadd.f32 %v1320, %v1324
      %v1327 = vadd.f32 %v1321, %v1325
      %1328 = vst [vmem:[#allocation5] sm:$0xff] %v1326
      %s1329 = scalar_lea.vmem [#allocation6], 56
      %1330 = vst [vmem:[%s1329] sm:$0xff] %v1327
      %v1331 = vmul.f32 %v1326, %v1115
      %v1332 = vmul.f32 %v1326, %v1116
      %v1333 = vmul.f32 %v1327, %v1117
      %v1334 = vmul.f32 %v1327, %v1118
      %s1335 = scalar_lea.vmem [#allocation3], 24
      %v1336 = vld [vmem:[%s1335] sm:$0xff]
      %v1337 = vld [vmem:[%s1335 + $0x8] sm:$0xff]
      %v1338 = vld [vmem:[%s1335 + $0x10] sm:$0xff]
      %s1339 = scalar_lea.vmem [#allocation4], 144
      %v1340 = vld [vmem:[%s1339] sm:$0xff]
      %v1341 = vld [vmem:[%s1339 + $0x8] sm:$0xff]
      %v1342 = vld [vmem:[%s1339 + $0x10] sm:$0xff]
      %1343 = vmatprep.subr.mxu0 %v1063
      %1344 = vmatpush1.msra.mxu0 %v1062
      %1345 = vmatprep.subr.mxu0 %v1060
      %1346 = vmatpush1.msra.mxu0 %v1059
      %1347 = vmatprep.subr.mxu0 %v1057
      %1348 = vmatpush1.msra.mxu0 %v1056
      %1349 = vmatprep.subr.mxu0 %v1054
      %1350 = vmatpush1.msra.mxu0 %v1053
      %1351 = vmatprep.subr.mxu0 %v1051
      %1352 = vmatpush1.msra.mxu0 %v1050
      %1353 = vmatprep.subr.mxu0 %v1048
      %1354 = vmatpush1.msra.mxu0 %v1047
      %1355 = vmatprep.subr.mxu0 %v1045
      %1356 = vmatpush1.msra.mxu0 %v1044
      %1357 = vmatprep.subr.mxu0 %v1042
      %1358 = vmatpush1.msra.mxu0 %v1041
      %1359 = vmatprep.subr.mxu0 %v1039
      %1360 = vmatpush1.msra.mxu0 %v1038
      %1361 = vmatprep.subr.mxu0 %v1036
      %1362 = vmatpush1.msra.mxu0 %v1035
      %1363 = vmatprep.subr.mxu0 %v1033
      %1364 = vmatpush1.msra.mxu0 %v1032
      %1365 = vmatprep.subr.mxu0 %v1030
      %1366 = vmatpush1.msra.mxu0 %v1029
      %1367 = vmatprep.subr.mxu0 %v1027
      %1368 = vmatpush1.msra.mxu0 %v1026
      %1369 = vmatprep.subr.mxu0 %v1024
      %1370 = vmatpush1.msra.mxu0 %v1023
      %1371 = vmatprep.subr.mxu0 %v1021
      %1372 = vmatpush1.msra.mxu0 %v1020
      %1373 = vmatprep.subr.mxu0 %v1018
      %1374 = vmatpush1.msra.mxu0 %v1017
      %1375 = vmatprep.subr.mxu0 %v1111
      %1376 = vmatpush2.msra.mxu0 %v1110
      %1377 = vmatprep.subr.mxu0 %v1108
      %1378 = vmatpush2.msra.mxu0 %v1107
      %1379 = vmatprep.subr.mxu0 %v1105
      %1380 = vmatpush2.msra.mxu0 %v1104
      %1381 = vmatprep.subr.mxu0 %v1102
      %1382 = vmatpush2.msra.mxu0 %v1101
      %1383 = vmatprep.subr.mxu0 %v1099
      %1384 = vmatpush2.msra.mxu0 %v1098
      %1385 = vmatprep.subr.mxu0 %v1096
      %1386 = vmatpush2.msra.mxu0 %v1095
      %1387 = vmatprep.subr.mxu0 %v1093
      %1388 = vmatpush2.msra.mxu0 %v1092
      %1389 = vmatprep.subr.mxu0 %v1090
      %1390 = vmatpush2.msra.mxu0 %v1089
      %1391 = vmatprep.subr.mxu0 %v1087
      %1392 = vmatpush2.msra.mxu0 %v1086
      %1393 = vmatprep.subr.mxu0 %v1084
      %1394 = vmatpush2.msra.mxu0 %v1083
      %1395 = vmatprep.subr.mxu0 %v1081
      %1396 = vmatpush2.msra.mxu0 %v1080
      %1397 = vmatprep.subr.mxu0 %v1078
      %1398 = vmatpush2.msra.mxu0 %v1077
      %1399 = vmatprep.subr.mxu0 %v1075
      %1400 = vmatpush2.msra.mxu0 %v1074
      %1401 = vmatprep.subr.mxu0 %v1072
      %1402 = vmatpush2.msra.mxu0 %v1071
      %1403 = vmatprep.subr.mxu0 %v1069
      %1404 = vmatpush2.msra.mxu0 %v1068
      %1405 = vmatprep.subr.mxu0 %v1066
      %1406 = vmatpush2.msra.mxu0 %v1065
      %1407 = vmatprep.mubr.f32.mxu0 %v1332
      %1408 = vmatmul.mubr.f32.gmra.mxu0 %v1331
      %v1409 = vpop.f32.mrf.mxu0
      %v1410 = vadd.f32 0.0, %v1409
      %v1411 = vpop.f32.mrf.mxu0
      %v1412 = vadd.f32 0.0, %v1411
      %1413 = vmatprep.mubr.f32.mxu0 %v1334
      %1414 = vmatmul.mubr.f32.gmra.mxu0 %v1333
      %v1415 = vpop.f32.mrf.mxu0
      %v1416 = vadd.f32 0.0, %v1415
      %v1417 = vpop.f32.mrf.mxu0
      %v1418 = vadd.f32 0.0, %v1417
      %1419 = vdwg.mxu0
      %1420 = vmatprep.subr.mxu0 0.0
      %1421 = vmatpush1.msra.mxu0 %v1064
      %1422 = vmatprep.subr.mxu0 0.0
      %1423 = vmatpush1.msra.mxu0 %v1061
      %1424 = vmatprep.subr.mxu0 0.0
      %1425 = vmatpush1.msra.mxu0 %v1058
      %1426 = vmatprep.subr.mxu0 0.0
      %1427 = vmatpush1.msra.mxu0 %v1055
      %1428 = vmatprep.subr.mxu0 0.0
      %1429 = vmatpush1.msra.mxu0 %v1052
      %1430 = vmatprep.subr.mxu0 0.0
      %1431 = vmatpush1.msra.mxu0 %v1049
      %1432 = vmatprep.subr.mxu0 0.0
      %1433 = vmatpush1.msra.mxu0 %v1046
      %1434 = vmatprep.subr.mxu0 0.0
      %1435 = vmatpush1.msra.mxu0 %v1043
      %1436 = vmatprep.subr.mxu0 0.0
      %1437 = vmatpush1.msra.mxu0 %v1040
      %1438 = vmatprep.subr.mxu0 0.0
      %1439 = vmatpush1.msra.mxu0 %v1037
      %1440 = vmatprep.subr.mxu0 0.0
      %1441 = vmatpush1.msra.mxu0 %v1034
      %1442 = vmatprep.subr.mxu0 0.0
      %1443 = vmatpush1.msra.mxu0 %v1031
      %1444 = vmatprep.subr.mxu0 0.0
      %1445 = vmatpush1.msra.mxu0 %v1028
      %1446 = vmatprep.subr.mxu0 0.0
      %1447 = vmatpush1.msra.mxu0 %v1025
      %1448 = vmatprep.subr.mxu0 0.0
      %1449 = vmatpush1.msra.mxu0 %v1022
      %1450 = vmatprep.subr.mxu0 0.0
      %1451 = vmatpush1.msra.mxu0 %v1019
      %1452 = vmatprep.subr.mxu0 0.0
      %1453 = vmatpush2.msra.mxu0 %v1112
      %1454 = vmatprep.subr.mxu0 0.0
      %1455 = vmatpush2.msra.mxu0 %v1109
      %1456 = vmatprep.subr.mxu0 0.0
      %1457 = vmatpush2.msra.mxu0 %v1106
      %1458 = vmatprep.subr.mxu0 0.0
      %1459 = vmatpush2.msra.mxu0 %v1103
      %1460 = vmatprep.subr.mxu0 0.0
      %1461 = vmatpush2.msra.mxu0 %v1100
      %1462 = vmatprep.subr.mxu0 0.0
      %1463 = vmatpush2.msra.mxu0 %v1097
      %1464 = vmatprep.subr.mxu0 0.0
      %1465 = vmatpush2.msra.mxu0 %v1094
      %1466 = vmatprep.subr.mxu0 0.0
      %1467 = vmatpush2.msra.mxu0 %v1091
      %1468 = vmatprep.subr.mxu0 0.0
      %1469 = vmatpush2.msra.mxu0 %v1088
      %1470 = vmatprep.subr.mxu0 0.0
      %1471 = vmatpush2.msra.mxu0 %v1085
      %1472 = vmatprep.subr.mxu0 0.0
      %1473 = vmatpush2.msra.mxu0 %v1082
      %1474 = vmatprep.subr.mxu0 0.0
      %1475 = vmatpush2.msra.mxu0 %v1079
      %1476 = vmatprep.subr.mxu0 0.0
      %1477 = vmatpush2.msra.mxu0 %v1076
      %1478 = vmatprep.subr.mxu0 0.0
      %1479 = vmatpush2.msra.mxu0 %v1073
      %1480 = vmatprep.subr.mxu0 0.0
      %1481 = vmatpush2.msra.mxu0 %v1070
      %1482 = vmatprep.subr.mxu0 0.0
      %1483 = vmatpush2.msra.mxu0 %v1067
      %1484 = vmatprep.mubr.f32.mxu0 %v1332
      %1485 = vmatmul.mubr.f32.gmra.mxu0 %v1331
      %v1486 = vpop.f32.mrf.mxu0
      %v1487 = vadd.f32 0.0, %v1486
      %v1488 = vpop.f32.mrf.mxu0
      %1489 = vmatprep.mubr.f32.mxu0 %v1334
      %1490 = vmatmul.mubr.f32.gmra.mxu0 %v1333
      %v1491 = vpop.f32.mrf.mxu0
      %v1492 = vadd.f32 0.0, %v1491
      %v1493 = vpop.f32.mrf.mxu0
      %1494 = vdwg.mxu0
      %v1495 = vadd.f32 %v1336, %v1410
      %v1496 = vadd.f32 %v1340, %v1416
      %v1497 = vxor.u32 %v1495, 2147483648
      %v1498 = vxor.u32 %v1496, 2147483648
      %v1499 = vmul.f32 %v1497, 1.442695
      %v1500 = vpow.pop %v1499
      %v1501 = vmul.f32 %v1498, 1.442695
      %v1502 = vpow.pop %v1501
      %v1503 = vadd.f32 %v1500, 1.0
      %v1504 = vadd.f32 %v1502, 1.0
      %v1505 = vrcp.pop %v1503
      %v1506 = vmul.f32 1.0, %v1505
      %v1507 = vrcp.pop %v1504
      %v1508 = vmul.f32 1.0, %v1507
      %v1509 = vadd.f32 %v1337, %v1412
      %v1510 = vadd.f32 %v1341, %v1418
      %v1511 = vxor.u32 %v1509, 2147483648
      %v1512 = vxor.u32 %v1510, 2147483648
      %v1513 = vmul.f32 %v1511, 1.442695
      %v1514 = vpow.pop %v1513
      %v1515 = vmul.f32 %v1512, 1.442695
      %v1516 = vpow.pop %v1515
      %v1517 = vadd.f32 %v1514, 1.0
      %v1518 = vadd.f32 %v1516, 1.0
      %v1519 = vrcp.pop %v1517
      %v1520 = vmul.f32 1.0, %v1519
      %v1521 = vrcp.pop %v1518
      %v1522 = vmul.f32 1.0, %v1521
      %v1523 = vadd.f32 %v1487, %v1113
      %v1524 = vadd.f32 %v1492, %v1114
      %v1525 = vmul.f32 %v1506, %v1523
      %v1526 = vmul.f32 %v1508, %v1524
      %v1527 = vadd.f32 %v1338, %v1525
      %v1528 = vadd.f32 %v1342, %v1526
      %v1529 = vtanh.pop %v1527
      %v1530 = vtanh.pop %v1528
      %v1531 = vsub.f32 1.0, %v1520
      %v1532 = vsub.f32 1.0, %v1522
      %v1533 = vmul.f32 %v1531, %v1529
      %v1534 = vmul.f32 %v1532, %v1530
      %v1535 = vadd.f32 %v1331, %v1332
      %v1536 = vadd.f32 %v1333, %v1334
      %v1537 = vmul.f32 %v1520, %v1535
      %v1538 = vmul.f32 %v1522, %v1536
      %v1539 = vadd.f32 %v1533, %v1537
      %v1540 = vadd.f32 %v1534, %v1538
      %s1541 = scalar_lea.vmem [#allocation5], 8
      %1542 = vst [vmem:[%s1541] sm:$0xff] %v1539
      %s1543 = scalar_lea.vmem [#allocation6], 48
      %1544 = vst [vmem:[%s1543] sm:$0xff] %v1540
      %v1545 = vmul.f32 %v1539, %v1115
      %v1546 = vmul.f32 %v1539, %v1116
      %v1547 = vmul.f32 %v1540, %v1117
      %v1548 = vmul.f32 %v1540, %v1118
      %s1549 = scalar_lea.vmem [#allocation3], 48
      %v1550 = vld [vmem:[%s1549] sm:$0xff]
      %v1551 = vld [vmem:[%s1549 + $0x8] sm:$0xff]
      %v1552 = vld [vmem:[%s1549 + $0x10] sm:$0xff]
      %s1553 = scalar_lea.vmem [#allocation4], 120
      %v1554 = vld [vmem:[%s1553] sm:$0xff]
      %v1555 = vld [vmem:[%s1553 + $0x8] sm:$0xff]
      %v1556 = vld [vmem:[%s1553 + $0x10] sm:$0xff]
      %1557 = vmatprep.subr.mxu0 %v1063
      %1558 = vmatpush1.msra.mxu0 %v1062
      %1559 = vmatprep.subr.mxu0 %v1060
      %1560 = vmatpush1.msra.mxu0 %v1059
      %1561 = vmatprep.subr.mxu0 %v1057
      %1562 = vmatpush1.msra.mxu0 %v1056
      %1563 = vmatprep.subr.mxu0 %v1054
      %1564 = vmatpush1.msra.mxu0 %v1053
      %1565 = vmatprep.subr.mxu0 %v1051
      %1566 = vmatpush1.msra.mxu0 %v1050
      %1567 = vmatprep.subr.mxu0 %v1048
      %1568 = vmatpush1.msra.mxu0 %v1047
      %1569 = vmatprep.subr.mxu0 %v1045
      %1570 = vmatpush1.msra.mxu0 %v1044
      %1571 = vmatprep.subr.mxu0 %v1042
      %1572 = vmatpush1.msra.mxu0 %v1041
      %1573 = vmatprep.subr.mxu0 %v1039
      %1574 = vmatpush1.msra.mxu0 %v1038
      %1575 = vmatprep.subr.mxu0 %v1036
      %1576 = vmatpush1.msra.mxu0 %v1035
      %1577 = vmatprep.subr.mxu0 %v1033
      %1578 = vmatpush1.msra.mxu0 %v1032
      %1579 = vmatprep.subr.mxu0 %v1030
      %1580 = vmatpush1.msra.mxu0 %v1029
      %1581 = vmatprep.subr.mxu0 %v1027
      %1582 = vmatpush1.msra.mxu0 %v1026
      %1583 = vmatprep.subr.mxu0 %v1024
      %1584 = vmatpush1.msra.mxu0 %v1023
      %1585 = vmatprep.subr.mxu0 %v1021
      %1586 = vmatpush1.msra.mxu0 %v1020
      %1587 = vmatprep.subr.mxu0 %v1018
      %1588 = vmatpush1.msra.mxu0 %v1017
      %1589 = vmatprep.subr.mxu0 %v1111
      %1590 = vmatpush2.msra.mxu0 %v1110
      %1591 = vmatprep.subr.mxu0 %v1108
      %1592 = vmatpush2.msra.mxu0 %v1107
      %1593 = vmatprep.subr.mxu0 %v1105
      %1594 = vmatpush2.msra.mxu0 %v1104
      %1595 = vmatprep.subr.mxu0 %v1102
      %1596 = vmatpush2.msra.mxu0 %v1101
      %1597 = vmatprep.subr.mxu0 %v1099
      %1598 = vmatpush2.msra.mxu0 %v1098
      %1599 = vmatprep.subr.mxu0 %v1096
      %1600 = vmatpush2.msra.mxu0 %v1095
      %1601 = vmatprep.subr.mxu0 %v1093
      %1602 = vmatpush2.msra.mxu0 %v1092
      %1603 = vmatprep.subr.mxu0 %v1090
      %1604 = vmatpush2.msra.mxu0 %v1089
      %1605 = vmatprep.subr.mxu0 %v1087
      %1606 = vmatpush2.msra.mxu0 %v1086
      %1607 = vmatprep.subr.mxu0 %v1084
      %1608 = vmatpush2.msra.mxu0 %v1083
      %1609 = vmatprep.subr.mxu0 %v1081
      %1610 = vmatpush2.msra.mxu0 %v1080
      %1611 = vmatprep.subr.mxu0 %v1078
      %1612 = vmatpush2.msra.mxu0 %v1077
      %1613 = vmatprep.subr.mxu0 %v1075
      %1614 = vmatpush2.msra.mxu0 %v1074
      %1615 = vmatprep.subr.mxu0 %v1072
      %1616 = vmatpush2.msra.mxu0 %v1071
      %1617 = vmatprep.subr.mxu0 %v1069
      %1618 = vmatpush2.msra.mxu0 %v1068
      %1619 = vmatprep.subr.mxu0 %v1066
      %1620 = vmatpush2.msra.mxu0 %v1065
      %1621 = vmatprep.mubr.f32.mxu0 %v1546
      %1622 = vmatmul.mubr.f32.gmra.mxu0 %v1545
      %v1623 = vpop.f32.mrf.mxu0
      %v1624 = vadd.f32 0.0, %v1623
      %v1625 = vpop.f32.mrf.mxu0
      %v1626 = vadd.f32 0.0, %v1625
      %1627 = vmatprep.mubr.f32.mxu0 %v1548
      %1628 = vmatmul.mubr.f32.gmra.mxu0 %v1547
      %v1629 = vpop.f32.mrf.mxu0
      %v1630 = vadd.f32 0.0, %v1629
      %v1631 = vpop.f32.mrf.mxu0
      %v1632 = vadd.f32 0.0, %v1631
      %1633 = vdwg.mxu0
      %1634 = vmatprep.subr.mxu0 0.0
      %1635 = vmatpush1.msra.mxu0 %v1064
      %1636 = vmatprep.subr.mxu0 0.0
      %1637 = vmatpush1.msra.mxu0 %v1061
      %1638 = vmatprep.subr.mxu0 0.0
      %1639 = vmatpush1.msra.mxu0 %v1058
      %1640 = vmatprep.subr.mxu0 0.0
      %1641 = vmatpush1.msra.mxu0 %v1055
      %1642 = vmatprep.subr.mxu0 0.0
      %1643 = vmatpush1.msra.mxu0 %v1052
      %1644 = vmatprep.subr.mxu0 0.0
      %1645 = vmatpush1.msra.mxu0 %v1049
      %1646 = vmatprep.subr.mxu0 0.0
      %1647 = vmatpush1.msra.mxu0 %v1046
      %1648 = vmatprep.subr.mxu0 0.0
      %1649 = vmatpush1.msra.mxu0 %v1043
      %1650 = vmatprep.subr.mxu0 0.0
      %1651 = vmatpush1.msra.mxu0 %v1040
      %1652 = vmatprep.subr.mxu0 0.0
      %1653 = vmatpush1.msra.mxu0 %v1037
      %1654 = vmatprep.subr.mxu0 0.0
      %1655 = vmatpush1.msra.mxu0 %v1034
      %1656 = vmatprep.subr.mxu0 0.0
      %1657 = vmatpush1.msra.mxu0 %v1031
      %1658 = vmatprep.subr.mxu0 0.0
      %1659 = vmatpush1.msra.mxu0 %v1028
      %1660 = vmatprep.subr.mxu0 0.0
      %1661 = vmatpush1.msra.mxu0 %v1025
      %1662 = vmatprep.subr.mxu0 0.0
      %1663 = vmatpush1.msra.mxu0 %v1022
      %1664 = vmatprep.subr.mxu0 0.0
      %1665 = vmatpush1.msra.mxu0 %v1019
      %1666 = vmatprep.subr.mxu0 0.0
      %1667 = vmatpush2.msra.mxu0 %v1112
      %1668 = vmatprep.subr.mxu0 0.0
      %1669 = vmatpush2.msra.mxu0 %v1109
      %1670 = vmatprep.subr.mxu0 0.0
      %1671 = vmatpush2.msra.mxu0 %v1106
      %1672 = vmatprep.subr.mxu0 0.0
      %1673 = vmatpush2.msra.mxu0 %v1103
      %1674 = vmatprep.subr.mxu0 0.0
      %1675 = vmatpush2.msra.mxu0 %v1100
      %1676 = vmatprep.subr.mxu0 0.0
      %1677 = vmatpush2.msra.mxu0 %v1097
      %1678 = vmatprep.subr.mxu0 0.0
      %1679 = vmatpush2.msra.mxu0 %v1094
      %1680 = vmatprep.subr.mxu0 0.0
      %1681 = vmatpush2.msra.mxu0 %v1091
      %1682 = vmatprep.subr.mxu0 0.0
      %1683 = vmatpush2.msra.mxu0 %v1088
      %1684 = vmatprep.subr.mxu0 0.0
      %1685 = vmatpush2.msra.mxu0 %v1085
      %1686 = vmatprep.subr.mxu0 0.0
      %1687 = vmatpush2.msra.mxu0 %v1082
      %1688 = vmatprep.subr.mxu0 0.0
      %1689 = vmatpush2.msra.mxu0 %v1079
      %1690 = vmatprep.subr.mxu0 0.0
      %1691 = vmatpush2.msra.mxu0 %v1076
      %1692 = vmatprep.subr.mxu0 0.0
      %1693 = vmatpush2.msra.mxu0 %v1073
      %1694 = vmatprep.subr.mxu0 0.0
      %1695 = vmatpush2.msra.mxu0 %v1070
      %1696 = vmatprep.subr.mxu0 0.0
      %1697 = vmatpush2.msra.mxu0 %v1067
      %1698 = vmatprep.mubr.f32.mxu0 %v1546
      %1699 = vmatmul.mubr.f32.gmra.mxu0 %v1545
      %v1700 = vpop.f32.mrf.mxu0
      %v1701 = vadd.f32 0.0, %v1700
      %v1702 = vpop.f32.mrf.mxu0
      %1703 = vmatprep.mubr.f32.mxu0 %v1548
      %1704 = vmatmul.mubr.f32.gmra.mxu0 %v1547
      %v1705 = vpop.f32.mrf.mxu0
      %v1706 = vadd.f32 0.0, %v1705
      %v1707 = vpop.f32.mrf.mxu0
      %1708 = vdwg.mxu0
      %v1709 = vadd.f32 %v1550, %v1624
      %v1710 = vadd.f32 %v1554, %v1630
      %v1711 = vxor.u32 %v1709, 2147483648
      %v1712 = vxor.u32 %v1710, 2147483648
      %v1713 = vmul.f32 %v1711, 1.442695
      %v1714 = vpow.pop %v1713
      %v1715 = vmul.f32 %v1712, 1.442695
      %v1716 = vpow.pop %v1715
      %v1717 = vadd.f32 %v1714, 1.0
      %v1718 = vadd.f32 %v1716, 1.0
      %v1719 = vrcp.pop %v1717
      %v1720 = vmul.f32 1.0, %v1719
      %v1721 = vrcp.pop %v1718
      %v1722 = vmul.f32 1.0, %v1721
      %v1723 = vadd.f32 %v1551, %v1626
      %v1724 = vadd.f32 %v1555, %v1632
      %v1725 = vxor.u32 %v1723, 2147483648
      %v1726 = vxor.u32 %v1724, 2147483648
      %v1727 = vmul.f32 %v1725, 1.442695
      %v1728 = vpow.pop %v1727
      %v1729 = vmul.f32 %v1726, 1.442695
      %v1730 = vpow.pop %v1729
      %v1731 = vadd.f32 %v1728, 1.0
      %v1732 = vadd.f32 %v1730, 1.0
      %v1733 = vrcp.pop %v1731
      %v1734 = vmul.f32 1.0, %v1733
      %v1735 = vrcp.pop %v1732
      %v1736 = vmul.f32 1.0, %v1735
      %v1737 = vadd.f32 %v1701, %v1113
      %v1738 = vadd.f32 %v1706, %v1114
      %v1739 = vmul.f32 %v1720, %v1737
      %v1740 = vmul.f32 %v1722, %v1738
      %v1741 = vadd.f32 %v1552, %v1739
      %v1742 = vadd.f32 %v1556, %v1740
      %v1743 = vtanh.pop %v1741
      %v1744 = vtanh.pop %v1742
      %v1745 = vsub.f32 1.0, %v1734
      %v1746 = vsub.f32 1.0, %v1736
      %v1747 = vmul.f32 %v1745, %v1743
      %v1748 = vmul.f32 %v1746, %v1744
      %v1749 = vadd.f32 %v1545, %v1546
      %v1750 = vadd.f32 %v1547, %v1548
      %v1751 = vmul.f32 %v1734, %v1749
      %v1752 = vmul.f32 %v1736, %v1750
      %v1753 = vadd.f32 %v1747, %v1751
      %v1754 = vadd.f32 %v1748, %v1752
      %s1755 = scalar_lea.vmem [#allocation5], 16
      %1756 = vst [vmem:[%s1755] sm:$0xff] %v1753
      %s1757 = scalar_lea.vmem [#allocation6], 40
      %1758 = vst [vmem:[%s1757] sm:$0xff] %v1754
      %v1759 = vmul.f32 %v1753, %v1115
      %v1760 = vmul.f32 %v1753, %v1116
      %v1761 = vmul.f32 %v1754, %v1117
      %v1762 = vmul.f32 %v1754, %v1118
      %s1763 = scalar_lea.vmem [#allocation3], 72
      %v1764 = vld [vmem:[%s1763] sm:$0xff]
      %v1765 = vld [vmem:[%s1763 + $0x8] sm:$0xff]
      %v1766 = vld [vmem:[%s1763 + $0x10] sm:$0xff]
      %s1767 = scalar_lea.vmem [#allocation4], 96
      %v1768 = vld [vmem:[%s1767] sm:$0xff]
      %v1769 = vld [vmem:[%s1767 + $0x8] sm:$0xff]
      %v1770 = vld [vmem:[%s1767 + $0x10] sm:$0xff]
      %1771 = vmatprep.subr.mxu0 %v1063
      %1772 = vmatpush1.msra.mxu0 %v1062
      %1773 = vmatprep.subr.mxu0 %v1060
      %1774 = vmatpush1.msra.mxu0 %v1059
      %1775 = vmatprep.subr.mxu0 %v1057
      %1776 = vmatpush1.msra.mxu0 %v1056
      %1777 = vmatprep.subr.mxu0 %v1054
      %1778 = vmatpush1.msra.mxu0 %v1053
      %1779 = vmatprep.subr.mxu0 %v1051
      %1780 = vmatpush1.msra.mxu0 %v1050
      %1781 = vmatprep.subr.mxu0 %v1048
      %1782 = vmatpush1.msra.mxu0 %v1047
      %1783 = vmatprep.subr.mxu0 %v1045
      %1784 = vmatpush1.msra.mxu0 %v1044
      %1785 = vmatprep.subr.mxu0 %v1042
      %1786 = vmatpush1.msra.mxu0 %v1041
      %1787 = vmatprep.subr.mxu0 %v1039
      %1788 = vmatpush1.msra.mxu0 %v1038
      %1789 = vmatprep.subr.mxu0 %v1036
      %1790 = vmatpush1.msra.mxu0 %v1035
      %1791 = vmatprep.subr.mxu0 %v1033
      %1792 = vmatpush1.msra.mxu0 %v1032
      %1793 = vmatprep.subr.mxu0 %v1030
      %1794 = vmatpush1.msra.mxu0 %v1029
      %1795 = vmatprep.subr.mxu0 %v1027
      %1796 = vmatpush1.msra.mxu0 %v1026
      %1797 = vmatprep.subr.mxu0 %v1024
      %1798 = vmatpush1.msra.mxu0 %v1023
      %1799 = vmatprep.subr.mxu0 %v1021
      %1800 = vmatpush1.msra.mxu0 %v1020
      %1801 = vmatprep.subr.mxu0 %v1018
      %1802 = vmatpush1.msra.mxu0 %v1017
      %1803 = vmatprep.subr.mxu0 %v1111
      %1804 = vmatpush2.msra.mxu0 %v1110
      %1805 = vmatprep.subr.mxu0 %v1108
      %1806 = vmatpush2.msra.mxu0 %v1107
      %1807 = vmatprep.subr.mxu0 %v1105
      %1808 = vmatpush2.msra.mxu0 %v1104
      %1809 = vmatprep.subr.mxu0 %v1102
      %1810 = vmatpush2.msra.mxu0 %v1101
      %1811 = vmatprep.subr.mxu0 %v1099
      %1812 = vmatpush2.msra.mxu0 %v1098
      %1813 = vmatprep.subr.mxu0 %v1096
      %1814 = vmatpush2.msra.mxu0 %v1095
      %1815 = vmatprep.subr.mxu0 %v1093
      %1816 = vmatpush2.msra.mxu0 %v1092
      %1817 = vmatprep.subr.mxu0 %v1090
      %1818 = vmatpush2.msra.mxu0 %v1089
      %1819 = vmatprep.subr.mxu0 %v1087
      %1820 = vmatpush2.msra.mxu0 %v1086
      %1821 = vmatprep.subr.mxu0 %v1084
      %1822 = vmatpush2.msra.mxu0 %v1083
      %1823 = vmatprep.subr.mxu0 %v1081
      %1824 = vmatpush2.msra.mxu0 %v1080
      %1825 = vmatprep.subr.mxu0 %v1078
      %1826 = vmatpush2.msra.mxu0 %v1077
      %1827 = vmatprep.subr.mxu0 %v1075
      %1828 = vmatpush2.msra.mxu0 %v1074
      %1829 = vmatprep.subr.mxu0 %v1072
      %1830 = vmatpush2.msra.mxu0 %v1071
      %1831 = vmatprep.subr.mxu0 %v1069
      %1832 = vmatpush2.msra.mxu0 %v1068
      %1833 = vmatprep.subr.mxu0 %v1066
      %1834 = vmatpush2.msra.mxu0 %v1065
      %1835 = vmatprep.mubr.f32.mxu0 %v1760
      %1836 = vmatmul.mubr.f32.gmra.mxu0 %v1759
      %v1837 = vpop.f32.mrf.mxu0
      %v1838 = vadd.f32 0.0, %v1837
      %v1839 = vpop.f32.mrf.mxu0
      %v1840 = vadd.f32 0.0, %v1839
      %1841 = vmatprep.mubr.f32.mxu0 %v1762
      %1842 = vmatmul.mubr.f32.gmra.mxu0 %v1761
      %v1843 = vpop.f32.mrf.mxu0
      %v1844 = vadd.f32 0.0, %v1843
      %v1845 = vpop.f32.mrf.mxu0
      %v1846 = vadd.f32 0.0, %v1845
      %1847 = vdwg.mxu0
      %1848 = vmatprep.subr.mxu0 0.0
      %1849 = vmatpush1.msra.mxu0 %v1064
      %1850 = vmatprep.subr.mxu0 0.0
      %1851 = vmatpush1.msra.mxu0 %v1061
      %1852 = vmatprep.subr.mxu0 0.0
      %1853 = vmatpush1.msra.mxu0 %v1058
      %1854 = vmatprep.subr.mxu0 0.0
      %1855 = vmatpush1.msra.mxu0 %v1055
      %1856 = vmatprep.subr.mxu0 0.0
      %1857 = vmatpush1.msra.mxu0 %v1052
      %1858 = vmatprep.subr.mxu0 0.0
      %1859 = vmatpush1.msra.mxu0 %v1049
      %1860 = vmatprep.subr.mxu0 0.0
      %1861 = vmatpush1.msra.mxu0 %v1046
      %1862 = vmatprep.subr.mxu0 0.0
      %1863 = vmatpush1.msra.mxu0 %v1043
      %1864 = vmatprep.subr.mxu0 0.0
      %1865 = vmatpush1.msra.mxu0 %v1040
      %1866 = vmatprep.subr.mxu0 0.0
      %1867 = vmatpush1.msra.mxu0 %v1037
      %1868 = vmatprep.subr.mxu0 0.0
      %1869 = vmatpush1.msra.mxu0 %v1034
      %1870 = vmatprep.subr.mxu0 0.0
      %1871 = vmatpush1.msra.mxu0 %v1031
      %1872 = vmatprep.subr.mxu0 0.0
      %1873 = vmatpush1.msra.mxu0 %v1028
      %1874 = vmatprep.subr.mxu0 0.0
      %1875 = vmatpush1.msra.mxu0 %v1025
      %1876 = vmatprep.subr.mxu0 0.0
      %1877 = vmatpush1.msra.mxu0 %v1022
      %1878 = vmatprep.subr.mxu0 0.0
      %1879 = vmatpush1.msra.mxu0 %v1019
      %1880 = vmatprep.subr.mxu0 0.0
      %1881 = vmatpush2.msra.mxu0 %v1112
      %1882 = vmatprep.subr.mxu0 0.0
      %1883 = vmatpush2.msra.mxu0 %v1109
      %1884 = vmatprep.subr.mxu0 0.0
      %1885 = vmatpush2.msra.mxu0 %v1106
      %1886 = vmatprep.subr.mxu0 0.0
      %1887 = vmatpush2.msra.mxu0 %v1103
      %1888 = vmatprep.subr.mxu0 0.0
      %1889 = vmatpush2.msra.mxu0 %v1100
      %1890 = vmatprep.subr.mxu0 0.0
      %1891 = vmatpush2.msra.mxu0 %v1097
      %1892 = vmatprep.subr.mxu0 0.0
      %1893 = vmatpush2.msra.mxu0 %v1094
      %1894 = vmatprep.subr.mxu0 0.0
      %1895 = vmatpush2.msra.mxu0 %v1091
      %1896 = vmatprep.subr.mxu0 0.0
      %1897 = vmatpush2.msra.mxu0 %v1088
      %1898 = vmatprep.subr.mxu0 0.0
      %1899 = vmatpush2.msra.mxu0 %v1085
      %1900 = vmatprep.subr.mxu0 0.0
      %1901 = vmatpush2.msra.mxu0 %v1082
      %1902 = vmatprep.subr.mxu0 0.0
      %1903 = vmatpush2.msra.mxu0 %v1079
      %1904 = vmatprep.subr.mxu0 0.0
      %1905 = vmatpush2.msra.mxu0 %v1076
      %1906 = vmatprep.subr.mxu0 0.0
      %1907 = vmatpush2.msra.mxu0 %v1073
      %1908 = vmatprep.subr.mxu0 0.0
      %1909 = vmatpush2.msra.mxu0 %v1070
      %1910 = vmatprep.subr.mxu0 0.0
      %1911 = vmatpush2.msra.mxu0 %v1067
      %1912 = vmatprep.mubr.f32.mxu0 %v1760
      %1913 = vmatmul.mubr.f32.gmra.mxu0 %v1759
      %v1914 = vpop.f32.mrf.mxu0
      %v1915 = vadd.f32 0.0, %v1914
      %v1916 = vpop.f32.mrf.mxu0
      %1917 = vmatprep.mubr.f32.mxu0 %v1762
      %1918 = vmatmul.mubr.f32.gmra.mxu0 %v1761
      %v1919 = vpop.f32.mrf.mxu0
      %v1920 = vadd.f32 0.0, %v1919
      %v1921 = vpop.f32.mrf.mxu0
      %1922 = vdwg.mxu0
      %v1923 = vadd.f32 %v1764, %v1838
      %v1924 = vadd.f32 %v1768, %v1844
      %v1925 = vxor.u32 %v1923, 2147483648
      %v1926 = vxor.u32 %v1924, 2147483648
      %v1927 = vmul.f32 %v1925, 1.442695
      %v1928 = vpow.pop %v1927
      %v1929 = vmul.f32 %v1926, 1.442695
      %v1930 = vpow.pop %v1929
      %v1931 = vadd.f32 %v1928, 1.0
      %v1932 = vadd.f32 %v1930, 1.0
      %v1933 = vrcp.pop %v1931
      %v1934 = vmul.f32 1.0, %v1933
      %v1935 = vrcp.pop %v1932
      %v1936 = vmul.f32 1.0, %v1935
      %v1937 = vadd.f32 %v1765, %v1840
      %v1938 = vadd.f32 %v1769, %v1846
      %v1939 = vxor.u32 %v1937, 2147483648
      %v1940 = vxor.u32 %v1938, 2147483648
      %v1941 = vmul.f32 %v1939, 1.442695
      %v1942 = vpow.pop %v1941
      %v1943 = vmul.f32 %v1940, 1.442695
      %v1944 = vpow.pop %v1943
      %v1945 = vadd.f32 %v1942, 1.0
      %v1946 = vadd.f32 %v1944, 1.0
      %v1947 = vrcp.pop %v1945
      %v1948 = vmul.f32 1.0, %v1947
      %v1949 = vrcp.pop %v1946
      %v1950 = vmul.f32 1.0, %v1949
      %v1951 = vadd.f32 %v1915, %v1113
      %v1952 = vadd.f32 %v1920, %v1114
      %v1953 = vmul.f32 %v1934, %v1951
      %v1954 = vmul.f32 %v1936, %v1952
      %v1955 = vadd.f32 %v1766, %v1953
      %v1956 = vadd.f32 %v1770, %v1954
      %v1957 = vtanh.pop %v1955
      %v1958 = vtanh.pop %v1956
      %v1959 = vsub.f32 1.0, %v1948
      %v1960 = vsub.f32 1.0, %v1950
      %v1961 = vmul.f32 %v1959, %v1957
      %v1962 = vmul.f32 %v1960, %v1958
      %v1963 = vadd.f32 %v1759, %v1760
      %v1964 = vadd.f32 %v1761, %v1762
      %v1965 = vmul.f32 %v1948, %v1963
      %v1966 = vmul.f32 %v1950, %v1964
      %v1967 = vadd.f32 %v1961, %v1965
      %v1968 = vadd.f32 %v1962, %v1966
      %s1969 = scalar_lea.vmem [#allocation5], 24
      %1970 = vst [vmem:[%s1969] sm:$0xff] %v1967
      %s1971 = scalar_lea.vmem [#allocation6], 32
      %1972 = vst [vmem:[%s1971] sm:$0xff] %v1968
      %v1973 = vmul.f32 %v1967, %v1115
      %v1974 = vmul.f32 %v1967, %v1116
      %v1975 = vmul.f32 %v1968, %v1117
      %v1976 = vmul.f32 %v1968, %v1118
      %s1977 = scalar_lea.vmem [#allocation3], 96
      %v1978 = vld [vmem:[%s1977] sm:$0xff]
      %v1979 = vld [vmem:[%s1977 + $0x8] sm:$0xff]
      %v1980 = vld [vmem:[%s1977 + $0x10] sm:$0xff]
      %s1981 = scalar_lea.vmem [#allocation4], 72
      %v1982 = vld [vmem:[%s1981] sm:$0xff]
      %v1983 = vld [vmem:[%s1981 + $0x8] sm:$0xff]
      %v1984 = vld [vmem:[%s1981 + $0x10] sm:$0xff]
      %1985 = vmatprep.subr.mxu0 %v1063
      %1986 = vmatpush1.msra.mxu0 %v1062
      %1987 = vmatprep.subr.mxu0 %v1060
      %1988 = vmatpush1.msra.mxu0 %v1059
      %1989 = vmatprep.subr.mxu0 %v1057
      %1990 = vmatpush1.msra.mxu0 %v1056
      %1991 = vmatprep.subr.mxu0 %v1054
      %1992 = vmatpush1.msra.mxu0 %v1053
      %1993 = vmatprep.subr.mxu0 %v1051
      %1994 = vmatpush1.msra.mxu0 %v1050
      %1995 = vmatprep.subr.mxu0 %v1048
      %1996 = vmatpush1.msra.mxu0 %v1047
      %1997 = vmatprep.subr.mxu0 %v1045
      %1998 = vmatpush1.msra.mxu0 %v1044
      %1999 = vmatprep.subr.mxu0 %v1042
      %2000 = vmatpush1.msra.mxu0 %v1041
      %2001 = vmatprep.subr.mxu0 %v1039
      %2002 = vmatpush1.msra.mxu0 %v1038
      %2003 = vmatprep.subr.mxu0 %v1036
      %2004 = vmatpush1.msra.mxu0 %v1035
      %2005 = vmatprep.subr.mxu0 %v1033
      %2006 = vmatpush1.msra.mxu0 %v1032
      %2007 = vmatprep.subr.mxu0 %v1030
      %2008 = vmatpush1.msra.mxu0 %v1029
      %2009 = vmatprep.subr.mxu0 %v1027
      %2010 = vmatpush1.msra.mxu0 %v1026
      %2011 = vmatprep.subr.mxu0 %v1024
      %2012 = vmatpush1.msra.mxu0 %v1023
      %2013 = vmatprep.subr.mxu0 %v1021
      %2014 = vmatpush1.msra.mxu0 %v1020
      %2015 = vmatprep.subr.mxu0 %v1018
      %2016 = vmatpush1.msra.mxu0 %v1017
      %2017 = vmatprep.subr.mxu0 %v1111
      %2018 = vmatpush2.msra.mxu0 %v1110
      %2019 = vmatprep.subr.mxu0 %v1108
      %2020 = vmatpush2.msra.mxu0 %v1107
      %2021 = vmatprep.subr.mxu0 %v1105
      %2022 = vmatpush2.msra.mxu0 %v1104
      %2023 = vmatprep.subr.mxu0 %v1102
      %2024 = vmatpush2.msra.mxu0 %v1101
      %2025 = vmatprep.subr.mxu0 %v1099
      %2026 = vmatpush2.msra.mxu0 %v1098
      %2027 = vmatprep.subr.mxu0 %v1096
      %2028 = vmatpush2.msra.mxu0 %v1095
      %2029 = vmatprep.subr.mxu0 %v1093
      %2030 = vmatpush2.msra.mxu0 %v1092
      %2031 = vmatprep.subr.mxu0 %v1090
      %2032 = vmatpush2.msra.mxu0 %v1089
      %2033 = vmatprep.subr.mxu0 %v1087
      %2034 = vmatpush2.msra.mxu0 %v1086
      %2035 = vmatprep.subr.mxu0 %v1084
      %2036 = vmatpush2.msra.mxu0 %v1083
      %2037 = vmatprep.subr.mxu0 %v1081
      %2038 = vmatpush2.msra.mxu0 %v1080
      %2039 = vmatprep.subr.mxu0 %v1078
      %2040 = vmatpush2.msra.mxu0 %v1077
      %2041 = vmatprep.subr.mxu0 %v1075
      %2042 = vmatpush2.msra.mxu0 %v1074
      %2043 = vmatprep.subr.mxu0 %v1072
      %2044 = vmatpush2.msra.mxu0 %v1071
      %2045 = vmatprep.subr.mxu0 %v1069
      %2046 = vmatpush2.msra.mxu0 %v1068
      %2047 = vmatprep.subr.mxu0 %v1066
      %2048 = vmatpush2.msra.mxu0 %v1065
      %2049 = vmatprep.mubr.f32.mxu0 %v1974
      %2050 = vmatmul.mubr.f32.gmra.mxu0 %v1973
      %v2051 = vpop.f32.mrf.mxu0
      %v2052 = vadd.f32 0.0, %v2051
      %v2053 = vpop.f32.mrf.mxu0
      %v2054 = vadd.f32 0.0, %v2053
      %2055 = vmatprep.mubr.f32.mxu0 %v1976
      %2056 = vmatmul.mubr.f32.gmra.mxu0 %v1975
      %v2057 = vpop.f32.mrf.mxu0
      %v2058 = vadd.f32 0.0, %v2057
      %v2059 = vpop.f32.mrf.mxu0
      %v2060 = vadd.f32 0.0, %v2059
      %2061 = vdwg.mxu0
      %2062 = vmatprep.subr.mxu0 0.0
      %2063 = vmatpush1.msra.mxu0 %v1064
      %2064 = vmatprep.subr.mxu0 0.0
      %2065 = vmatpush1.msra.mxu0 %v1061
      %2066 = vmatprep.subr.mxu0 0.0
      %2067 = vmatpush1.msra.mxu0 %v1058
      %2068 = vmatprep.subr.mxu0 0.0
      %2069 = vmatpush1.msra.mxu0 %v1055
      %2070 = vmatprep.subr.mxu0 0.0
      %2071 = vmatpush1.msra.mxu0 %v1052
      %2072 = vmatprep.subr.mxu0 0.0
      %2073 = vmatpush1.msra.mxu0 %v1049
      %2074 = vmatprep.subr.mxu0 0.0
      %2075 = vmatpush1.msra.mxu0 %v1046
      %2076 = vmatprep.subr.mxu0 0.0
      %2077 = vmatpush1.msra.mxu0 %v1043
      %2078 = vmatprep.subr.mxu0 0.0
      %2079 = vmatpush1.msra.mxu0 %v1040
      %2080 = vmatprep.subr.mxu0 0.0
      %2081 = vmatpush1.msra.mxu0 %v1037
      %2082 = vmatprep.subr.mxu0 0.0
      %2083 = vmatpush1.msra.mxu0 %v1034
      %2084 = vmatprep.subr.mxu0 0.0
      %2085 = vmatpush1.msra.mxu0 %v1031
      %2086 = vmatprep.subr.mxu0 0.0
      %2087 = vmatpush1.msra.mxu0 %v1028
      %2088 = vmatprep.subr.mxu0 0.0
      %2089 = vmatpush1.msra.mxu0 %v1025
      %2090 = vmatprep.subr.mxu0 0.0
      %2091 = vmatpush1.msra.mxu0 %v1022
      %2092 = vmatprep.subr.mxu0 0.0
      %2093 = vmatpush1.msra.mxu0 %v1019
      %2094 = vmatprep.subr.mxu0 0.0
      %2095 = vmatpush2.msra.mxu0 %v1112
      %2096 = vmatprep.subr.mxu0 0.0
      %2097 = vmatpush2.msra.mxu0 %v1109
      %2098 = vmatprep.subr.mxu0 0.0
      %2099 = vmatpush2.msra.mxu0 %v1106
      %2100 = vmatprep.subr.mxu0 0.0
      %2101 = vmatpush2.msra.mxu0 %v1103
      %2102 = vmatprep.subr.mxu0 0.0
      %2103 = vmatpush2.msra.mxu0 %v1100
      %2104 = vmatprep.subr.mxu0 0.0
      %2105 = vmatpush2.msra.mxu0 %v1097
      %2106 = vmatprep.subr.mxu0 0.0
      %2107 = vmatpush2.msra.mxu0 %v1094
      %2108 = vmatprep.subr.mxu0 0.0
      %2109 = vmatpush2.msra.mxu0 %v1091
      %2110 = vmatprep.subr.mxu0 0.0
      %2111 = vmatpush2.msra.mxu0 %v1088
      %2112 = vmatprep.subr.mxu0 0.0
      %2113 = vmatpush2.msra.mxu0 %v1085
      %2114 = vmatprep.subr.mxu0 0.0
      %2115 = vmatpush2.msra.mxu0 %v1082
      %2116 = vmatprep.subr.mxu0 0.0
      %2117 = vmatpush2.msra.mxu0 %v1079
      %2118 = vmatprep.subr.mxu0 0.0
      %2119 = vmatpush2.msra.mxu0 %v1076
      %2120 = vmatprep.subr.mxu0 0.0
      %2121 = vmatpush2.msra.mxu0 %v1073
      %2122 = vmatprep.subr.mxu0 0.0
      %2123 = vmatpush2.msra.mxu0 %v1070
      %2124 = vmatprep.subr.mxu0 0.0
      %2125 = vmatpush2.msra.mxu0 %v1067
      %2126 = vmatprep.mubr.f32.mxu0 %v1974
      %2127 = vmatmul.mubr.f32.gmra.mxu0 %v1973
      %v2128 = vpop.f32.mrf.mxu0
      %v2129 = vadd.f32 0.0, %v2128
      %v2130 = vpop.f32.mrf.mxu0
      %2131 = vmatprep.mubr.f32.mxu0 %v1976
      %2132 = vmatmul.mubr.f32.gmra.mxu0 %v1975
      %v2133 = vpop.f32.mrf.mxu0
      %v2134 = vadd.f32 0.0, %v2133
      %v2135 = vpop.f32.mrf.mxu0
      %2136 = vdwg.mxu0
      %v2137 = vadd.f32 %v1978, %v2052
      %v2138 = vadd.f32 %v1982, %v2058
      %v2139 = vxor.u32 %v2137, 2147483648
      %v2140 = vxor.u32 %v2138, 2147483648
      %v2141 = vmul.f32 %v2139, 1.442695
      %v2142 = vpow.pop %v2141
      %v2143 = vmul.f32 %v2140, 1.442695
      %v2144 = vpow.pop %v2143
      %v2145 = vadd.f32 %v2142, 1.0
      %v2146 = vadd.f32 %v2144, 1.0
      %v2147 = vrcp.pop %v2145
      %v2148 = vmul.f32 1.0, %v2147
      %v2149 = vrcp.pop %v2146
      %v2150 = vmul.f32 1.0, %v2149
      %v2151 = vadd.f32 %v1979, %v2054
      %v2152 = vadd.f32 %v1983, %v2060
      %v2153 = vxor.u32 %v2151, 2147483648
      %v2154 = vxor.u32 %v2152, 2147483648
      %v2155 = vmul.f32 %v2153, 1.442695
      %v2156 = vpow.pop %v2155
      %v2157 = vmul.f32 %v2154, 1.442695
      %v2158 = vpow.pop %v2157
      %v2159 = vadd.f32 %v2156, 1.0
      %v2160 = vadd.f32 %v2158, 1.0
      %v2161 = vrcp.pop %v2159
      %v2162 = vmul.f32 1.0, %v2161
      %v2163 = vrcp.pop %v2160
      %v2164 = vmul.f32 1.0, %v2163
      %v2165 = vadd.f32 %v2129, %v1113
      %v2166 = vadd.f32 %v2134, %v1114
      %v2167 = vmul.f32 %v2148, %v2165
      %v2168 = vmul.f32 %v2150, %v2166
      %v2169 = vadd.f32 %v1980, %v2167
      %v2170 = vadd.f32 %v1984, %v2168
      %v2171 = vtanh.pop %v2169
      %v2172 = vtanh.pop %v2170
      %v2173 = vsub.f32 1.0, %v2162
      %v2174 = vsub.f32 1.0, %v2164
      %v2175 = vmul.f32 %v2173, %v2171
      %v2176 = vmul.f32 %v2174, %v2172
      %v2177 = vadd.f32 %v1973, %v1974
      %v2178 = vadd.f32 %v1975, %v1976
      %v2179 = vmul.f32 %v2162, %v2177
      %v2180 = vmul.f32 %v2164, %v2178
      %v2181 = vadd.f32 %v2175, %v2179
      %v2182 = vadd.f32 %v2176, %v2180
      %s2183 = scalar_lea.vmem [#allocation5], 32
      %2184 = vst [vmem:[%s2183] sm:$0xff] %v2181
      %s2185 = scalar_lea.vmem [#allocation6], 24
      %2186 = vst [vmem:[%s2185] sm:$0xff] %v2182
      %v2187 = vmul.f32 %v2181, %v1115
      %v2188 = vmul.f32 %v2181, %v1116
      %v2189 = vmul.f32 %v2182, %v1117
      %v2190 = vmul.f32 %v2182, %v1118
      %s2191 = scalar_lea.vmem [#allocation3], 120
      %v2192 = vld [vmem:[%s2191] sm:$0xff]
      %v2193 = vld [vmem:[%s2191 + $0x8] sm:$0xff]
      %v2194 = vld [vmem:[%s2191 + $0x10] sm:$0xff]
      %s2195 = scalar_lea.vmem [#allocation4], 48
      %v2196 = vld [vmem:[%s2195] sm:$0xff]
      %v2197 = vld [vmem:[%s2195 + $0x8] sm:$0xff]
      %v2198 = vld [vmem:[%s2195 + $0x10] sm:$0xff]
      %2199 = vmatprep.subr.mxu0 %v1063
      %2200 = vmatpush1.msra.mxu0 %v1062
      %2201 = vmatprep.subr.mxu0 %v1060
      %2202 = vmatpush1.msra.mxu0 %v1059
      %2203 = vmatprep.subr.mxu0 %v1057
      %2204 = vmatpush1.msra.mxu0 %v1056
      %2205 = vmatprep.subr.mxu0 %v1054
      %2206 = vmatpush1.msra.mxu0 %v1053
      %2207 = vmatprep.subr.mxu0 %v1051
      %2208 = vmatpush1.msra.mxu0 %v1050
      %2209 = vmatprep.subr.mxu0 %v1048
      %2210 = vmatpush1.msra.mxu0 %v1047
      %2211 = vmatprep.subr.mxu0 %v1045
      %2212 = vmatpush1.msra.mxu0 %v1044
      %2213 = vmatprep.subr.mxu0 %v1042
      %2214 = vmatpush1.msra.mxu0 %v1041
      %2215 = vmatprep.subr.mxu0 %v1039
      %2216 = vmatpush1.msra.mxu0 %v1038
      %2217 = vmatprep.subr.mxu0 %v1036
      %2218 = vmatpush1.msra.mxu0 %v1035
      %2219 = vmatprep.subr.mxu0 %v1033
      %2220 = vmatpush1.msra.mxu0 %v1032
      %2221 = vmatprep.subr.mxu0 %v1030
      %2222 = vmatpush1.msra.mxu0 %v1029
      %2223 = vmatprep.subr.mxu0 %v1027
      %2224 = vmatpush1.msra.mxu0 %v1026
      %2225 = vmatprep.subr.mxu0 %v1024
      %2226 = vmatpush1.msra.mxu0 %v1023
      %2227 = vmatprep.subr.mxu0 %v1021
      %2228 = vmatpush1.msra.mxu0 %v1020
      %2229 = vmatprep.subr.mxu0 %v1018
      %2230 = vmatpush1.msra.mxu0 %v1017
      %2231 = vmatprep.subr.mxu0 %v1111
      %2232 = vmatpush2.msra.mxu0 %v1110
      %2233 = vmatprep.subr.mxu0 %v1108
      %2234 = vmatpush2.msra.mxu0 %v1107
      %2235 = vmatprep.subr.mxu0 %v1105
      %2236 = vmatpush2.msra.mxu0 %v1104
      %2237 = vmatprep.subr.mxu0 %v1102
      %2238 = vmatpush2.msra.mxu0 %v1101
      %2239 = vmatprep.subr.mxu0 %v1099
      %2240 = vmatpush2.msra.mxu0 %v1098
      %2241 = vmatprep.subr.mxu0 %v1096
      %2242 = vmatpush2.msra.mxu0 %v1095
      %2243 = vmatprep.subr.mxu0 %v1093
      %2244 = vmatpush2.msra.mxu0 %v1092
      %2245 = vmatprep.subr.mxu0 %v1090
      %2246 = vmatpush2.msra.mxu0 %v1089
      %2247 = vmatprep.subr.mxu0 %v1087
      %2248 = vmatpush2.msra.mxu0 %v1086
      %2249 = vmatprep.subr.mxu0 %v1084
      %2250 = vmatpush2.msra.mxu0 %v1083
      %2251 = vmatprep.subr.mxu0 %v1081
      %2252 = vmatpush2.msra.mxu0 %v1080
      %2253 = vmatprep.subr.mxu0 %v1078
      %2254 = vmatpush2.msra.mxu0 %v1077
      %2255 = vmatprep.subr.mxu0 %v1075
      %2256 = vmatpush2.msra.mxu0 %v1074
      %2257 = vmatprep.subr.mxu0 %v1072
      %2258 = vmatpush2.msra.mxu0 %v1071
      %2259 = vmatprep.subr.mxu0 %v1069
      %2260 = vmatpush2.msra.mxu0 %v1068
      %2261 = vmatprep.subr.mxu0 %v1066
      %2262 = vmatpush2.msra.mxu0 %v1065
      %2263 = vmatprep.mubr.f32.mxu0 %v2188
      %2264 = vmatmul.mubr.f32.gmra.mxu0 %v2187
      %v2265 = vpop.f32.mrf.mxu0
      %v2266 = vadd.f32 0.0, %v2265
      %v2267 = vpop.f32.mrf.mxu0
      %v2268 = vadd.f32 0.0, %v2267
      %2269 = vmatprep.mubr.f32.mxu0 %v2190
      %2270 = vmatmul.mubr.f32.gmra.mxu0 %v2189
      %v2271 = vpop.f32.mrf.mxu0
      %v2272 = vadd.f32 0.0, %v2271
      %v2273 = vpop.f32.mrf.mxu0
      %v2274 = vadd.f32 0.0, %v2273
      %2275 = vdwg.mxu0
      %2276 = vmatprep.subr.mxu0 0.0
      %2277 = vmatpush1.msra.mxu0 %v1064
      %2278 = vmatprep.subr.mxu0 0.0
      %2279 = vmatpush1.msra.mxu0 %v1061
      %2280 = vmatprep.subr.mxu0 0.0
      %2281 = vmatpush1.msra.mxu0 %v1058
      %2282 = vmatprep.subr.mxu0 0.0
      %2283 = vmatpush1.msra.mxu0 %v1055
      %2284 = vmatprep.subr.mxu0 0.0
      %2285 = vmatpush1.msra.mxu0 %v1052
      %2286 = vmatprep.subr.mxu0 0.0
      %2287 = vmatpush1.msra.mxu0 %v1049
      %2288 = vmatprep.subr.mxu0 0.0
      %2289 = vmatpush1.msra.mxu0 %v1046
      %2290 = vmatprep.subr.mxu0 0.0
      %2291 = vmatpush1.msra.mxu0 %v1043
      %2292 = vmatprep.subr.mxu0 0.0
      %2293 = vmatpush1.msra.mxu0 %v1040
      %2294 = vmatprep.subr.mxu0 0.0
      %2295 = vmatpush1.msra.mxu0 %v1037
      %2296 = vmatprep.subr.mxu0 0.0
      %2297 = vmatpush1.msra.mxu0 %v1034
      %2298 = vmatprep.subr.mxu0 0.0
      %2299 = vmatpush1.msra.mxu0 %v1031
      %2300 = vmatprep.subr.mxu0 0.0
      %2301 = vmatpush1.msra.mxu0 %v1028
      %2302 = vmatprep.subr.mxu0 0.0
      %2303 = vmatpush1.msra.mxu0 %v1025
      %2304 = vmatprep.subr.mxu0 0.0
      %2305 = vmatpush1.msra.mxu0 %v1022
      %2306 = vmatprep.subr.mxu0 0.0
      %2307 = vmatpush1.msra.mxu0 %v1019
      %2308 = vmatprep.subr.mxu0 0.0
      %2309 = vmatpush2.msra.mxu0 %v1112
      %2310 = vmatprep.subr.mxu0 0.0
      %2311 = vmatpush2.msra.mxu0 %v1109
      %2312 = vmatprep.subr.mxu0 0.0
      %2313 = vmatpush2.msra.mxu0 %v1106
      %2314 = vmatprep.subr.mxu0 0.0
      %2315 = vmatpush2.msra.mxu0 %v1103
      %2316 = vmatprep.subr.mxu0 0.0
      %2317 = vmatpush2.msra.mxu0 %v1100
      %2318 = vmatprep.subr.mxu0 0.0
      %2319 = vmatpush2.msra.mxu0 %v1097
      %2320 = vmatprep.subr.mxu0 0.0
      %2321 = vmatpush2.msra.mxu0 %v1094
      %2322 = vmatprep.subr.mxu0 0.0
      %2323 = vmatpush2.msra.mxu0 %v1091
      %2324 = vmatprep.subr.mxu0 0.0
      %2325 = vmatpush2.msra.mxu0 %v1088
      %2326 = vmatprep.subr.mxu0 0.0
      %2327 = vmatpush2.msra.mxu0 %v1085
      %2328 = vmatprep.subr.mxu0 0.0
      %2329 = vmatpush2.msra.mxu0 %v1082
      %2330 = vmatprep.subr.mxu0 0.0
      %2331 = vmatpush2.msra.mxu0 %v1079
      %2332 = vmatprep.subr.mxu0 0.0
      %2333 = vmatpush2.msra.mxu0 %v1076
      %2334 = vmatprep.subr.mxu0 0.0
      %2335 = vmatpush2.msra.mxu0 %v1073
      %2336 = vmatprep.subr.mxu0 0.0
      %2337 = vmatpush2.msra.mxu0 %v1070
      %2338 = vmatprep.subr.mxu0 0.0
      %2339 = vmatpush2.msra.mxu0 %v1067
      %2340 = vmatprep.mubr.f32.mxu0 %v2188
      %2341 = vmatmul.mubr.f32.gmra.mxu0 %v2187
      %v2342 = vpop.f32.mrf.mxu0
      %v2343 = vadd.f32 0.0, %v2342
      %v2344 = vpop.f32.mrf.mxu0
      %2345 = vmatprep.mubr.f32.mxu0 %v2190
      %2346 = vmatmul.mubr.f32.gmra.mxu0 %v2189
      %v2347 = vpop.f32.mrf.mxu0
      %v2348 = vadd.f32 0.0, %v2347
      %v2349 = vpop.f32.mrf.mxu0
      %2350 = vdwg.mxu0
      %v2351 = vadd.f32 %v2192, %v2266
      %v2352 = vadd.f32 %v2196, %v2272
      %v2353 = vxor.u32 %v2351, 2147483648
      %v2354 = vxor.u32 %v2352, 2147483648
      %v2355 = vmul.f32 %v2353, 1.442695
      %v2356 = vpow.pop %v2355
      %v2357 = vmul.f32 %v2354, 1.442695
      %v2358 = vpow.pop %v2357
      %v2359 = vadd.f32 %v2356, 1.0
      %v2360 = vadd.f32 %v2358, 1.0
      %v2361 = vrcp.pop %v2359
      %v2362 = vmul.f32 1.0, %v2361
      %v2363 = vrcp.pop %v2360
      %v2364 = vmul.f32 1.0, %v2363
      %v2365 = vadd.f32 %v2193, %v2268
      %v2366 = vadd.f32 %v2197, %v2274
      %v2367 = vxor.u32 %v2365, 2147483648
      %v2368 = vxor.u32 %v2366, 2147483648
      %v2369 = vmul.f32 %v2367, 1.442695
      %v2370 = vpow.pop %v2369
      %v2371 = vmul.f32 %v2368, 1.442695
      %v2372 = vpow.pop %v2371
      %v2373 = vadd.f32 %v2370, 1.0
      %v2374 = vadd.f32 %v2372, 1.0
      %v2375 = vrcp.pop %v2373
      %v2376 = vmul.f32 1.0, %v2375
      %v2377 = vrcp.pop %v2374
      %v2378 = vmul.f32 1.0, %v2377
      %v2379 = vadd.f32 %v2343, %v1113
      %v2380 = vadd.f32 %v2348, %v1114
      %v2381 = vmul.f32 %v2362, %v2379
      %v2382 = vmul.f32 %v2364, %v2380
      %v2383 = vadd.f32 %v2194, %v2381
      %v2384 = vadd.f32 %v2198, %v2382
      %v2385 = vtanh.pop %v2383
      %v2386 = vtanh.pop %v2384
      %v2387 = vsub.f32 1.0, %v2376
      %v2388 = vsub.f32 1.0, %v2378
      %v2389 = vmul.f32 %v2387, %v2385
      %v2390 = vmul.f32 %v2388, %v2386
      %v2391 = vadd.f32 %v2187, %v2188
      %v2392 = vadd.f32 %v2189, %v2190
      %v2393 = vmul.f32 %v2376, %v2391
      %v2394 = vmul.f32 %v2378, %v2392
      %v2395 = vadd.f32 %v2389, %v2393
      %v2396 = vadd.f32 %v2390, %v2394
      %s2397 = scalar_lea.vmem [#allocation5], 40
      %2398 = vst [vmem:[%s2397] sm:$0xff] %v2395
      %s2399 = scalar_lea.vmem [#allocation6], 16
      %2400 = vst [vmem:[%s2399] sm:$0xff] %v2396
      %v2401 = vmul.f32 %v2395, %v1115
      %v2402 = vmul.f32 %v2395, %v1116
      %v2403 = vmul.f32 %v2396, %v1117
      %v2404 = vmul.f32 %v2396, %v1118
      %s2405 = scalar_lea.vmem [#allocation3], 144
      %v2406 = vld [vmem:[%s2405] sm:$0xff]
      %v2407 = vld [vmem:[%s2405 + $0x8] sm:$0xff]
      %v2408 = vld [vmem:[%s2405 + $0x10] sm:$0xff]
      %s2409 = scalar_lea.vmem [#allocation4], 24
      %v2410 = vld [vmem:[%s2409] sm:$0xff]
      %v2411 = vld [vmem:[%s2409 + $0x8] sm:$0xff]
      %v2412 = vld [vmem:[%s2409 + $0x10] sm:$0xff]
      %2413 = vmatprep.subr.mxu0 %v1063
      %2414 = vmatpush1.msra.mxu0 %v1062
      %2415 = vmatprep.subr.mxu0 %v1060
      %2416 = vmatpush1.msra.mxu0 %v1059
      %2417 = vmatprep.subr.mxu0 %v1057
      %2418 = vmatpush1.msra.mxu0 %v1056
      %2419 = vmatprep.subr.mxu0 %v1054
      %2420 = vmatpush1.msra.mxu0 %v1053
      %2421 = vmatprep.subr.mxu0 %v1051
      %2422 = vmatpush1.msra.mxu0 %v1050
      %2423 = vmatprep.subr.mxu0 %v1048
      %2424 = vmatpush1.msra.mxu0 %v1047
      %2425 = vmatprep.subr.mxu0 %v1045
      %2426 = vmatpush1.msra.mxu0 %v1044
      %2427 = vmatprep.subr.mxu0 %v1042
      %2428 = vmatpush1.msra.mxu0 %v1041
      %2429 = vmatprep.subr.mxu0 %v1039
      %2430 = vmatpush1.msra.mxu0 %v1038
      %2431 = vmatprep.subr.mxu0 %v1036
      %2432 = vmatpush1.msra.mxu0 %v1035
      %2433 = vmatprep.subr.mxu0 %v1033
      %2434 = vmatpush1.msra.mxu0 %v1032
      %2435 = vmatprep.subr.mxu0 %v1030
      %2436 = vmatpush1.msra.mxu0 %v1029
      %2437 = vmatprep.subr.mxu0 %v1027
      %2438 = vmatpush1.msra.mxu0 %v1026
      %2439 = vmatprep.subr.mxu0 %v1024
      %2440 = vmatpush1.msra.mxu0 %v1023
      %2441 = vmatprep.subr.mxu0 %v1021
      %2442 = vmatpush1.msra.mxu0 %v1020
      %2443 = vmatprep.subr.mxu0 %v1018
      %2444 = vmatpush1.msra.mxu0 %v1017
      %2445 = vmatprep.subr.mxu0 %v1111
      %2446 = vmatpush2.msra.mxu0 %v1110
      %2447 = vmatprep.subr.mxu0 %v1108
      %2448 = vmatpush2.msra.mxu0 %v1107
      %2449 = vmatprep.subr.mxu0 %v1105
      %2450 = vmatpush2.msra.mxu0 %v1104
      %2451 = vmatprep.subr.mxu0 %v1102
      %2452 = vmatpush2.msra.mxu0 %v1101
      %2453 = vmatprep.subr.mxu0 %v1099
      %2454 = vmatpush2.msra.mxu0 %v1098
      %2455 = vmatprep.subr.mxu0 %v1096
      %2456 = vmatpush2.msra.mxu0 %v1095
      %2457 = vmatprep.subr.mxu0 %v1093
      %2458 = vmatpush2.msra.mxu0 %v1092
      %2459 = vmatprep.subr.mxu0 %v1090
      %2460 = vmatpush2.msra.mxu0 %v1089
      %2461 = vmatprep.subr.mxu0 %v1087
      %2462 = vmatpush2.msra.mxu0 %v1086
      %2463 = vmatprep.subr.mxu0 %v1084
      %2464 = vmatpush2.msra.mxu0 %v1083
      %2465 = vmatprep.subr.mxu0 %v1081
      %2466 = vmatpush2.msra.mxu0 %v1080
      %2467 = vmatprep.subr.mxu0 %v1078
      %2468 = vmatpush2.msra.mxu0 %v1077
      %2469 = vmatprep.subr.mxu0 %v1075
      %2470 = vmatpush2.msra.mxu0 %v1074
      %2471 = vmatprep.subr.mxu0 %v1072
      %2472 = vmatpush2.msra.mxu0 %v1071
      %2473 = vmatprep.subr.mxu0 %v1069
      %2474 = vmatpush2.msra.mxu0 %v1068
      %2475 = vmatprep.subr.mxu0 %v1066
      %2476 = vmatpush2.msra.mxu0 %v1065
      %2477 = vmatprep.mubr.f32.mxu0 %v2402
      %2478 = vmatmul.mubr.f32.gmra.mxu0 %v2401
      %v2479 = vpop.f32.mrf.mxu0
      %v2480 = vadd.f32 0.0, %v2479
      %v2481 = vpop.f32.mrf.mxu0
      %v2482 = vadd.f32 0.0, %v2481
      %2483 = vmatprep.mubr.f32.mxu0 %v2404
      %2484 = vmatmul.mubr.f32.gmra.mxu0 %v2403
      %v2485 = vpop.f32.mrf.mxu0
      %v2486 = vadd.f32 0.0, %v2485
      %v2487 = vpop.f32.mrf.mxu0
      %v2488 = vadd.f32 0.0, %v2487
      %2489 = vdwg.mxu0
      %2490 = vmatprep.subr.mxu0 0.0
      %2491 = vmatpush1.msra.mxu0 %v1064
      %2492 = vmatprep.subr.mxu0 0.0
      %2493 = vmatpush1.msra.mxu0 %v1061
      %2494 = vmatprep.subr.mxu0 0.0
      %2495 = vmatpush1.msra.mxu0 %v1058
      %2496 = vmatprep.subr.mxu0 0.0
      %2497 = vmatpush1.msra.mxu0 %v1055
      %2498 = vmatprep.subr.mxu0 0.0
      %2499 = vmatpush1.msra.mxu0 %v1052
      %2500 = vmatprep.subr.mxu0 0.0
      %2501 = vmatpush1.msra.mxu0 %v1049
      %2502 = vmatprep.subr.mxu0 0.0
      %2503 = vmatpush1.msra.mxu0 %v1046
      %2504 = vmatprep.subr.mxu0 0.0
      %2505 = vmatpush1.msra.mxu0 %v1043
      %2506 = vmatprep.subr.mxu0 0.0
      %2507 = vmatpush1.msra.mxu0 %v1040
      %2508 = vmatprep.subr.mxu0 0.0
      %2509 = vmatpush1.msra.mxu0 %v1037
      %2510 = vmatprep.subr.mxu0 0.0
      %2511 = vmatpush1.msra.mxu0 %v1034
      %2512 = vmatprep.subr.mxu0 0.0
      %2513 = vmatpush1.msra.mxu0 %v1031
      %2514 = vmatprep.subr.mxu0 0.0
      %2515 = vmatpush1.msra.mxu0 %v1028
      %2516 = vmatprep.subr.mxu0 0.0
      %2517 = vmatpush1.msra.mxu0 %v1025
      %2518 = vmatprep.subr.mxu0 0.0
      %2519 = vmatpush1.msra.mxu0 %v1022
      %2520 = vmatprep.subr.mxu0 0.0
      %2521 = vmatpush1.msra.mxu0 %v1019
      %2522 = vmatprep.subr.mxu0 0.0
      %2523 = vmatpush2.msra.mxu0 %v1112
      %2524 = vmatprep.subr.mxu0 0.0
      %2525 = vmatpush2.msra.mxu0 %v1109
      %2526 = vmatprep.subr.mxu0 0.0
      %2527 = vmatpush2.msra.mxu0 %v1106
      %2528 = vmatprep.subr.mxu0 0.0
      %2529 = vmatpush2.msra.mxu0 %v1103
      %2530 = vmatprep.subr.mxu0 0.0
      %2531 = vmatpush2.msra.mxu0 %v1100
      %2532 = vmatprep.subr.mxu0 0.0
      %2533 = vmatpush2.msra.mxu0 %v1097
      %2534 = vmatprep.subr.mxu0 0.0
      %2535 = vmatpush2.msra.mxu0 %v1094
      %2536 = vmatprep.subr.mxu0 0.0
      %2537 = vmatpush2.msra.mxu0 %v1091
      %2538 = vmatprep.subr.mxu0 0.0
      %2539 = vmatpush2.msra.mxu0 %v1088
      %2540 = vmatprep.subr.mxu0 0.0
      %2541 = vmatpush2.msra.mxu0 %v1085
      %2542 = vmatprep.subr.mxu0 0.0
      %2543 = vmatpush2.msra.mxu0 %v1082
      %2544 = vmatprep.subr.mxu0 0.0
      %2545 = vmatpush2.msra.mxu0 %v1079
      %2546 = vmatprep.subr.mxu0 0.0
      %2547 = vmatpush2.msra.mxu0 %v1076
      %2548 = vmatprep.subr.mxu0 0.0
      %2549 = vmatpush2.msra.mxu0 %v1073
      %2550 = vmatprep.subr.mxu0 0.0
      %2551 = vmatpush2.msra.mxu0 %v1070
      %2552 = vmatprep.subr.mxu0 0.0
      %2553 = vmatpush2.msra.mxu0 %v1067
      %2554 = vmatprep.mubr.f32.mxu0 %v2402
      %2555 = vmatmul.mubr.f32.gmra.mxu0 %v2401
      %v2556 = vpop.f32.mrf.mxu0
      %v2557 = vadd.f32 0.0, %v2556
      %v2558 = vpop.f32.mrf.mxu0
      %2559 = vmatprep.mubr.f32.mxu0 %v2404
      %2560 = vmatmul.mubr.f32.gmra.mxu0 %v2403
      %v2561 = vpop.f32.mrf.mxu0
      %v2562 = vadd.f32 0.0, %v2561
      %v2563 = vpop.f32.mrf.mxu0
      %2564 = vdwg.mxu0
      %v2565 = vadd.f32 %v2406, %v2480
      %v2566 = vadd.f32 %v2410, %v2486
      %v2567 = vxor.u32 %v2565, 2147483648
      %v2568 = vxor.u32 %v2566, 2147483648
      %v2569 = vmul.f32 %v2567, 1.442695
      %v2570 = vpow.pop %v2569
      %v2571 = vmul.f32 %v2568, 1.442695
      %v2572 = vpow.pop %v2571
      %v2573 = vadd.f32 %v2570, 1.0
      %v2574 = vadd.f32 %v2572, 1.0
      %v2575 = vrcp.pop %v2573
      %v2576 = vmul.f32 1.0, %v2575
      %v2577 = vrcp.pop %v2574
      %v2578 = vmul.f32 1.0, %v2577
      %v2579 = vadd.f32 %v2407, %v2482
      %v2580 = vadd.f32 %v2411, %v2488
      %v2581 = vxor.u32 %v2579, 2147483648
      %v2582 = vxor.u32 %v2580, 2147483648
      %v2583 = vmul.f32 %v2581, 1.442695
      %v2584 = vpow.pop %v2583
      %v2585 = vmul.f32 %v2582, 1.442695
      %v2586 = vpow.pop %v2585
      %v2587 = vadd.f32 %v2584, 1.0
      %v2588 = vadd.f32 %v2586, 1.0
      %v2589 = vrcp.pop %v2587
      %v2590 = vmul.f32 1.0, %v2589
      %v2591 = vrcp.pop %v2588
      %v2592 = vmul.f32 1.0, %v2591
      %v2593 = vadd.f32 %v2557, %v1113
      %v2594 = vadd.f32 %v2562, %v1114
      %v2595 = vmul.f32 %v2576, %v2593
      %v2596 = vmul.f32 %v2578, %v2594
      %v2597 = vadd.f32 %v2408, %v2595
      %v2598 = vadd.f32 %v2412, %v2596
      %v2599 = vtanh.pop %v2597
      %v2600 = vtanh.pop %v2598
      %v2601 = vsub.f32 1.0, %v2590
      %v2602 = vsub.f32 1.0, %v2592
      %v2603 = vmul.f32 %v2601, %v2599
      %v2604 = vmul.f32 %v2602, %v2600
      %v2605 = vadd.f32 %v2401, %v2402
      %v2606 = vadd.f32 %v2403, %v2404
      %v2607 = vmul.f32 %v2590, %v2605
      %v2608 = vmul.f32 %v2592, %v2606
      %v2609 = vadd.f32 %v2603, %v2607
      %v2610 = vadd.f32 %v2604, %v2608
      %s2611 = scalar_lea.vmem [#allocation5], 48
      %2612 = vst [vmem:[%s2611] sm:$0xff] %v2609
      %s2613 = scalar_lea.vmem [#allocation6], 8
      %2614 = vst [vmem:[%s2613] sm:$0xff] %v2610
      %v2615 = vmul.f32 %v2609, %v1115
      %v2616 = vmul.f32 %v2609, %v1116
      %v2617 = vmul.f32 %v2610, %v1117
      %v2618 = vmul.f32 %v2610, %v1118
      %s2619 = scalar_lea.vmem [#allocation3], 168
      %v2620 = vld [vmem:[%s2619] sm:$0xff]
      %v2621 = vld [vmem:[%s2619 + $0x8] sm:$0xff]
      %v2622 = vld [vmem:[%s2619 + $0x10] sm:$0xff]
      %v2623 = vld [vmem:[#allocation4] sm:$0xff]
      %v2624 = vld [vmem:[#allocation4 + $0x8] sm:$0xff]
      %v2625 = vld [vmem:[#allocation4 + $0x10] sm:$0xff]
      %2626 = vmatprep.subr.mxu0 %v1063
      %2627 = vmatpush1.msra.mxu0 %v1062
      %2628 = vmatprep.subr.mxu0 %v1060
      %2629 = vmatpush1.msra.mxu0 %v1059
      %2630 = vmatprep.subr.mxu0 %v1057
      %2631 = vmatpush1.msra.mxu0 %v1056
      %2632 = vmatprep.subr.mxu0 %v1054
      %2633 = vmatpush1.msra.mxu0 %v1053
      %2634 = vmatprep.subr.mxu0 %v1051
      %2635 = vmatpush1.msra.mxu0 %v1050
      %2636 = vmatprep.subr.mxu0 %v1048
      %2637 = vmatpush1.msra.mxu0 %v1047
      %2638 = vmatprep.subr.mxu0 %v1045
      %2639 = vmatpush1.msra.mxu0 %v1044
      %2640 = vmatprep.subr.mxu0 %v1042
      %2641 = vmatpush1.msra.mxu0 %v1041
      %2642 = vmatprep.subr.mxu0 %v1039
      %2643 = vmatpush1.msra.mxu0 %v1038
      %2644 = vmatprep.subr.mxu0 %v1036
      %2645 = vmatpush1.msra.mxu0 %v1035
      %2646 = vmatprep.subr.mxu0 %v1033
      %2647 = vmatpush1.msra.mxu0 %v1032
      %2648 = vmatprep.subr.mxu0 %v1030
      %2649 = vmatpush1.msra.mxu0 %v1029
      %2650 = vmatprep.subr.mxu0 %v1027
      %2651 = vmatpush1.msra.mxu0 %v1026
      %2652 = vmatprep.subr.mxu0 %v1024
      %2653 = vmatpush1.msra.mxu0 %v1023
      %2654 = vmatprep.subr.mxu0 %v1021
      %2655 = vmatpush1.msra.mxu0 %v1020
      %2656 = vmatprep.subr.mxu0 %v1018
      %2657 = vmatpush1.msra.mxu0 %v1017
      %2658 = vmatprep.subr.mxu0 %v1111
      %2659 = vmatpush2.msra.mxu0 %v1110
      %2660 = vmatprep.subr.mxu0 %v1108
      %2661 = vmatpush2.msra.mxu0 %v1107
      %2662 = vmatprep.subr.mxu0 %v1105
      %2663 = vmatpush2.msra.mxu0 %v1104
      %2664 = vmatprep.subr.mxu0 %v1102
      %2665 = vmatpush2.msra.mxu0 %v1101
      %2666 = vmatprep.subr.mxu0 %v1099
      %2667 = vmatpush2.msra.mxu0 %v1098
      %2668 = vmatprep.subr.mxu0 %v1096
      %2669 = vmatpush2.msra.mxu0 %v1095
      %2670 = vmatprep.subr.mxu0 %v1093
      %2671 = vmatpush2.msra.mxu0 %v1092
      %2672 = vmatprep.subr.mxu0 %v1090
      %2673 = vmatpush2.msra.mxu0 %v1089
      %2674 = vmatprep.subr.mxu0 %v1087
      %2675 = vmatpush2.msra.mxu0 %v1086
      %2676 = vmatprep.subr.mxu0 %v1084
      %2677 = vmatpush2.msra.mxu0 %v1083
      %2678 = vmatprep.subr.mxu0 %v1081
      %2679 = vmatpush2.msra.mxu0 %v1080
      %2680 = vmatprep.subr.mxu0 %v1078
      %2681 = vmatpush2.msra.mxu0 %v1077
      %2682 = vmatprep.subr.mxu0 %v1075
      %2683 = vmatpush2.msra.mxu0 %v1074
      %2684 = vmatprep.subr.mxu0 %v1072
      %2685 = vmatpush2.msra.mxu0 %v1071
      %2686 = vmatprep.subr.mxu0 %v1069
      %2687 = vmatpush2.msra.mxu0 %v1068
      %2688 = vmatprep.subr.mxu0 %v1066
      %2689 = vmatpush2.msra.mxu0 %v1065
      %2690 = vmatprep.mubr.f32.mxu0 %v2616
      %2691 = vmatmul.mubr.f32.gmra.mxu0 %v2615
      %v2692 = vpop.f32.mrf.mxu0
      %v2693 = vadd.f32 0.0, %v2692
      %v2694 = vpop.f32.mrf.mxu0
      %v2695 = vadd.f32 0.0, %v2694
      %2696 = vmatprep.mubr.f32.mxu0 %v2618
      %2697 = vmatmul.mubr.f32.gmra.mxu0 %v2617
      %v2698 = vpop.f32.mrf.mxu0
      %v2699 = vadd.f32 0.0, %v2698
      %v2700 = vpop.f32.mrf.mxu0
      %v2701 = vadd.f32 0.0, %v2700
      %2702 = vdwg.mxu0
      %2703 = vmatprep.subr.mxu0 0.0
      %2704 = vmatpush1.msra.mxu0 %v1064
      %2705 = vmatprep.subr.mxu0 0.0
      %2706 = vmatpush1.msra.mxu0 %v1061
      %2707 = vmatprep.subr.mxu0 0.0
      %2708 = vmatpush1.msra.mxu0 %v1058
      %2709 = vmatprep.subr.mxu0 0.0
      %2710 = vmatpush1.msra.mxu0 %v1055
      %2711 = vmatprep.subr.mxu0 0.0
      %2712 = vmatpush1.msra.mxu0 %v1052
      %2713 = vmatprep.subr.mxu0 0.0
      %2714 = vmatpush1.msra.mxu0 %v1049
      %2715 = vmatprep.subr.mxu0 0.0
      %2716 = vmatpush1.msra.mxu0 %v1046
      %2717 = vmatprep.subr.mxu0 0.0
      %2718 = vmatpush1.msra.mxu0 %v1043
      %2719 = vmatprep.subr.mxu0 0.0
      %2720 = vmatpush1.msra.mxu0 %v1040
      %2721 = vmatprep.subr.mxu0 0.0
      %2722 = vmatpush1.msra.mxu0 %v1037
      %2723 = vmatprep.subr.mxu0 0.0
      %2724 = vmatpush1.msra.mxu0 %v1034
      %2725 = vmatprep.subr.mxu0 0.0
      %2726 = vmatpush1.msra.mxu0 %v1031
      %2727 = vmatprep.subr.mxu0 0.0
      %2728 = vmatpush1.msra.mxu0 %v1028
      %2729 = vmatprep.subr.mxu0 0.0
      %2730 = vmatpush1.msra.mxu0 %v1025
      %2731 = vmatprep.subr.mxu0 0.0
      %2732 = vmatpush1.msra.mxu0 %v1022
      %2733 = vmatprep.subr.mxu0 0.0
      %2734 = vmatpush1.msra.mxu0 %v1019
      %2735 = vmatprep.subr.mxu0 0.0
      %2736 = vmatpush2.msra.mxu0 %v1112
      %2737 = vmatprep.subr.mxu0 0.0
      %2738 = vmatpush2.msra.mxu0 %v1109
      %2739 = vmatprep.subr.mxu0 0.0
      %2740 = vmatpush2.msra.mxu0 %v1106
      %2741 = vmatprep.subr.mxu0 0.0
      %2742 = vmatpush2.msra.mxu0 %v1103
      %2743 = vmatprep.subr.mxu0 0.0
      %2744 = vmatpush2.msra.mxu0 %v1100
      %2745 = vmatprep.subr.mxu0 0.0
      %2746 = vmatpush2.msra.mxu0 %v1097
      %2747 = vmatprep.subr.mxu0 0.0
      %2748 = vmatpush2.msra.mxu0 %v1094
      %2749 = vmatprep.subr.mxu0 0.0
      %2750 = vmatpush2.msra.mxu0 %v1091
      %2751 = vmatprep.subr.mxu0 0.0
      %2752 = vmatpush2.msra.mxu0 %v1088
      %2753 = vmatprep.subr.mxu0 0.0
      %2754 = vmatpush2.msra.mxu0 %v1085
      %2755 = vmatprep.subr.mxu0 0.0
      %2756 = vmatpush2.msra.mxu0 %v1082
      %2757 = vmatprep.subr.mxu0 0.0
      %2758 = vmatpush2.msra.mxu0 %v1079
      %2759 = vmatprep.subr.mxu0 0.0
      %2760 = vmatpush2.msra.mxu0 %v1076
      %2761 = vmatprep.subr.mxu0 0.0
      %2762 = vmatpush2.msra.mxu0 %v1073
      %2763 = vmatprep.subr.mxu0 0.0
      %2764 = vmatpush2.msra.mxu0 %v1070
      %2765 = vmatprep.subr.mxu0 0.0
      %2766 = vmatpush2.msra.mxu0 %v1067
      %2767 = vmatprep.mubr.f32.mxu0 %v2616
      %2768 = vmatmul.mubr.f32.gmra.mxu0 %v2615
      %v2769 = vpop.f32.mrf.mxu0
      %v2770 = vadd.f32 0.0, %v2769
      %v2771 = vpop.f32.mrf.mxu0
      %2772 = vmatprep.mubr.f32.mxu0 %v2618
      %2773 = vmatmul.mubr.f32.gmra.mxu0 %v2617
      %v2774 = vpop.f32.mrf.mxu0
      %v2775 = vadd.f32 0.0, %v2774
      %v2776 = vpop.f32.mrf.mxu0
      %2777 = vdwg.mxu0
      %v2778 = vadd.f32 %v2620, %v2693
      %v2779 = vadd.f32 %v2623, %v2699
      %v2780 = vxor.u32 %v2778, 2147483648
      %v2781 = vxor.u32 %v2779, 2147483648
      %v2782 = vmul.f32 %v2780, 1.442695
      %v2783 = vpow.pop %v2782
      %v2784 = vmul.f32 %v2781, 1.442695
      %v2785 = vpow.pop %v2784
      %v2786 = vadd.f32 %v2783, 1.0
      %v2787 = vadd.f32 %v2785, 1.0
      %v2788 = vrcp.pop %v2786
      %v2789 = vmul.f32 1.0, %v2788
      %v2790 = vrcp.pop %v2787
      %v2791 = vmul.f32 1.0, %v2790
      %v2792 = vadd.f32 %v2621, %v2695
      %v2793 = vadd.f32 %v2624, %v2701
      %v2794 = vxor.u32 %v2792, 2147483648
      %v2795 = vxor.u32 %v2793, 2147483648
      %v2796 = vmul.f32 %v2794, 1.442695
      %v2797 = vpow.pop %v2796
      %v2798 = vmul.f32 %v2795, 1.442695
      %v2799 = vpow.pop %v2798
      %v2800 = vadd.f32 %v2797, 1.0
      %v2801 = vadd.f32 %v2799, 1.0
      %v2802 = vrcp.pop %v2800
      %v2803 = vmul.f32 1.0, %v2802
      %v2804 = vrcp.pop %v2801
      %v2805 = vmul.f32 1.0, %v2804
      %v2806 = vadd.f32 %v2770, %v1113
      %v2807 = vadd.f32 %v2775, %v1114
      %v2808 = vmul.f32 %v2789, %v2806
      %v2809 = vmul.f32 %v2791, %v2807
      %v2810 = vadd.f32 %v2622, %v2808
      %v2811 = vadd.f32 %v2625, %v2809
      %v2812 = vtanh.pop %v2810
      %v2813 = vtanh.pop %v2811
      %v2814 = vsub.f32 1.0, %v2803
      %v2815 = vsub.f32 1.0, %v2805
      %v2816 = vmul.f32 %v2814, %v2812
      %v2817 = vmul.f32 %v2815, %v2813
      %v2818 = vadd.f32 %v2615, %v2616
      %v2819 = vadd.f32 %v2617, %v2618
      %v2820 = vmul.f32 %v2803, %v2818
      %v2821 = vmul.f32 %v2805, %v2819
      %v2822 = vadd.f32 %v2816, %v2820
      %v2823 = vadd.f32 %v2817, %v2821
      %s2824 = scalar_lea.vmem [#allocation5], 56
      %2825 = vst [vmem:[%s2824] sm:$0xff] %v2822
      %2826 = vst [vmem:[#allocation6] sm:$0xff] %v2823
      %v2827 = vmul.f32 %v2822, %v1115
      %v2828 = vmul.f32 %v2822, %v1116
      %v2829 = vmul.f32 %v2823, %v1117
      %v2830 = vmul.f32 %v2823, %v1118
      %2831 = vst [vmem:[#allocation2] sm:$0xff] %v2827
      %2832 = vst [vmem:[#allocation2 + $0x8] sm:$0xff] %v2828
      %2833 = vst [vmem:[#allocation2 + $0x10] sm:$0xff] %v2829
      %2834 = vst [vmem:[#allocation2 + $0x18] sm:$0xff] %v2830
      %v2835 = vld [vmem:[#allocation5] sm:$0xff]
      %v2836 = vld [vmem:[#allocation5 + $0x8] sm:$0xff]
      %v2837 = vld [vmem:[#allocation5 + $0x10] sm:$0xff]
      %v2838 = vld [vmem:[#allocation5 + $0x18] sm:$0xff]
      %v2839 = vld [vmem:[#allocation5 + $0x20] sm:$0xff]
      %v2840 = vld [vmem:[#allocation5 + $0x28] sm:$0xff]
      %v2841 = vld [vmem:[#allocation5 + $0x30] sm:$0xff]
      %v2842 = vld [vmem:[#allocation5 + $0x38] sm:$0xff]
      %v2843 = vld [vmem:[#allocation6] sm:$0xff]
      %v2844 = vld [vmem:[#allocation6 + $0x8] sm:$0xff]
      %v2845 = vld [vmem:[#allocation6 + $0x10] sm:$0xff]
      %v2846 = vld [vmem:[#allocation6 + $0x18] sm:$0xff]
      %v2847 = vld [vmem:[#allocation6 + $0x20] sm:$0xff]
      %v2848 = vld [vmem:[#allocation6 + $0x28] sm:$0xff]
      %v2849 = vld [vmem:[#allocation6 + $0x30] sm:$0xff]
      %v2850 = vld [vmem:[#allocation6 + $0x38] sm:$0xff]
      %v2851 = vld [vmem:[%s8] sm:$0xff]
      %v2852 = vld [vmem:[%s8 + $0x8] sm:$0xff]
      %v2853 = vld [vmem:[%s8 + $0x10] sm:$0xff]
      %v2854 = vld [vmem:[%s8 + $0x18] sm:$0xff]
      %v2855 = vld [vmem:[%s8 + $0x20] sm:$0xff]
      %v2856 = vld [vmem:[%s8 + $0x28] sm:$0xff]
      %v2857 = vld [vmem:[%s8 + $0x30] sm:$0xff]
      %v2858 = vld [vmem:[%s8 + $0x38] sm:$0xff]
      %v2859 = vld [vmem:[%s8 + $0x40] sm:$0xff]
      %v2860 = vld [vmem:[%s8 + $0x48] sm:$0xff]
      %v2861 = vld [vmem:[%s8 + $0x50] sm:$0xff]
      %v2862 = vld [vmem:[%s8 + $0x58] sm:$0xff]
      %v2863 = vld [vmem:[%s8 + $0x60] sm:$0xff]
      %v2864 = vld [vmem:[%s8 + $0x68] sm:$0xff]
      %v2865 = vld [vmem:[%s8 + $0x70] sm:$0xff]
      %v2866 = vld [vmem:[%s8 + $0x78] sm:$0xff]
      %v2867 = vld [vmem:[%s8 + $0x80] sm:$0xff]
      %v2868 = vld [vmem:[%s8 + $0x88] sm:$0xff]
      %v2869 = vld [vmem:[%s8 + $0x90] sm:$0xff]
      %v2870 = vld [vmem:[%s8 + $0x98] sm:$0xff]
      %v2871 = vld [vmem:[%s8 + $0xa0] sm:$0xff]
      %v2872 = vld [vmem:[%s8 + $0xa8] sm:$0xff]
      %v2873 = vld [vmem:[%s8 + $0xb0] sm:$0xff]
      %v2874 = vld [vmem:[%s8 + $0xb8] sm:$0xff]
      %v2875 = vld [vmem:[%s8 + $0xc0] sm:$0xff]
      %v2876 = vld [vmem:[%s8 + $0xc8] sm:$0xff]
      %v2877 = vld [vmem:[%s8 + $0xd0] sm:$0xff]
      %v2878 = vld [vmem:[%s8 + $0xd8] sm:$0xff]
      %v2879 = vld [vmem:[%s8 + $0xe0] sm:$0xff]
      %v2880 = vld [vmem:[%s8 + $0xe8] sm:$0xff]
      %v2881 = vld [vmem:[%s8 + $0xf0] sm:$0xff]
      %v2882 = vld [vmem:[%s8 + $0xf8] sm:$0xff]
      %v2883 = vld [vmem:[%s8 + $0x100] sm:$0xff]
      %v2884 = vld [vmem:[%s8 + $0x108] sm:$0xff]
      %v2885 = vld [vmem:[%s8 + $0x110] sm:$0xff]
      %v2886 = vld [vmem:[%s8 + $0x118] sm:$0xff]
      %v2887 = vld [vmem:[%s8 + $0x120] sm:$0xff]
      %v2888 = vld [vmem:[%s8 + $0x128] sm:$0xff]
      %v2889 = vld [vmem:[%s8 + $0x130] sm:$0xff]
      %v2890 = vld [vmem:[%s8 + $0x138] sm:$0xff]
      %v2891 = vld [vmem:[%s8 + $0x140] sm:$0xff]
      %v2892 = vld [vmem:[%s8 + $0x148] sm:$0xff]
      %v2893 = vld [vmem:[%s8 + $0x150] sm:$0xff]
      %v2894 = vld [vmem:[%s8 + $0x158] sm:$0xff]
      %v2895 = vld [vmem:[%s8 + $0x160] sm:$0xff]
      %v2896 = vld [vmem:[%s8 + $0x168] sm:$0xff]
      %v2897 = vld [vmem:[%s8 + $0x170] sm:$0xff]
      %v2898 = vld [vmem:[%s8 + $0x178] sm:$0xff]
      %v2899 = vld [vmem:[%s8 + $0x180] sm:$0xff]
      %v2900 = vld [vmem:[%s8 + $0x188] sm:$0xff]
      %v2901 = vld [vmem:[%s8 + $0x190] sm:$0xff]
      %v2902 = vld [vmem:[%s8 + $0x198] sm:$0xff]
      %v2903 = vld [vmem:[%s8 + $0x1a0] sm:$0xff]
      %v2904 = vld [vmem:[%s8 + $0x1a8] sm:$0xff]
      %v2905 = vld [vmem:[%s8 + $0x1b0] sm:$0xff]
      %v2906 = vld [vmem:[%s8 + $0x1b8] sm:$0xff]
      %v2907 = vld [vmem:[%s8 + $0x1c0] sm:$0xff]
      %v2908 = vld [vmem:[%s8 + $0x1c8] sm:$0xff]
      %v2909 = vld [vmem:[%s8 + $0x1d0] sm:$0xff]
      %v2910 = vld [vmem:[%s8 + $0x1d8] sm:$0xff]
      %v2911 = vld [vmem:[%s8 + $0x1e0] sm:$0xff]
      %v2912 = vld [vmem:[%s8 + $0x1e8] sm:$0xff]
      %v2913 = vld [vmem:[%s8 + $0x1f0] sm:$0xff]
      %v2914 = vld [vmem:[%s8 + $0x1f8] sm:$0xff]
      %v2915 = vld [vmem:[%s9] sm:$0x3]
      %v2916 = vld [vmem:[%s10] sm:$0x3]
      %2917 = vmatprep.subr.mxu0 %v2882
      %2918 = vmatpush1.msra.mxu0 %v2881
      %2919 = vmatprep.subr.mxu0 %v2880
      %2920 = vmatpush1.msra.mxu0 %v2879
      %2921 = vmatprep.subr.mxu0 %v2878
      %2922 = vmatpush1.msra.mxu0 %v2877
      %2923 = vmatprep.subr.mxu0 %v2876
      %2924 = vmatpush1.msra.mxu0 %v2875
      %2925 = vmatprep.subr.mxu0 %v2874
      %2926 = vmatpush1.msra.mxu0 %v2873
      %2927 = vmatprep.subr.mxu0 %v2872
      %2928 = vmatpush1.msra.mxu0 %v2871
      %2929 = vmatprep.subr.mxu0 %v2870
      %2930 = vmatpush1.msra.mxu0 %v2869
      %2931 = vmatprep.subr.mxu0 %v2868
      %2932 = vmatpush1.msra.mxu0 %v2867
      %2933 = vmatprep.subr.mxu0 %v2866
      %2934 = vmatpush1.msra.mxu0 %v2865
      %2935 = vmatprep.subr.mxu0 %v2864
      %2936 = vmatpush1.msra.mxu0 %v2863
      %2937 = vmatprep.subr.mxu0 %v2862
      %2938 = vmatpush1.msra.mxu0 %v2861
      %2939 = vmatprep.subr.mxu0 %v2860
      %2940 = vmatpush1.msra.mxu0 %v2859
      %2941 = vmatprep.subr.mxu0 %v2858
      %2942 = vmatpush1.msra.mxu0 %v2857
      %2943 = vmatprep.subr.mxu0 %v2856
      %2944 = vmatpush1.msra.mxu0 %v2855
      %2945 = vmatprep.subr.mxu0 %v2854
      %2946 = vmatpush1.msra.mxu0 %v2853
      %2947 = vmatprep.subr.mxu0 %v2852
      %2948 = vmatpush1.msra.mxu0 %v2851
      %2949 = vmatprep.subr.mxu0 %v2914
      %2950 = vmatpush2.msra.mxu0 %v2913
      %2951 = vmatprep.subr.mxu0 %v2912
      %2952 = vmatpush2.msra.mxu0 %v2911
      %2953 = vmatprep.subr.mxu0 %v2910
      %2954 = vmatpush2.msra.mxu0 %v2909
      %2955 = vmatprep.subr.mxu0 %v2908
      %2956 = vmatpush2.msra.mxu0 %v2907
      %2957 = vmatprep.subr.mxu0 %v2906
      %2958 = vmatpush2.msra.mxu0 %v2905
      %2959 = vmatprep.subr.mxu0 %v2904
      %2960 = vmatpush2.msra.mxu0 %v2903
      %2961 = vmatprep.subr.mxu0 %v2902
      %2962 = vmatpush2.msra.mxu0 %v2901
      %2963 = vmatprep.subr.mxu0 %v2900
      %2964 = vmatpush2.msra.mxu0 %v2899
      %2965 = vmatprep.subr.mxu0 %v2898
      %2966 = vmatpush2.msra.mxu0 %v2897
      %2967 = vmatprep.subr.mxu0 %v2896
      %2968 = vmatpush2.msra.mxu0 %v2895
      %2969 = vmatprep.subr.mxu0 %v2894
      %2970 = vmatpush2.msra.mxu0 %v2893
      %2971 = vmatprep.subr.mxu0 %v2892
      %2972 = vmatpush2.msra.mxu0 %v2891
      %2973 = vmatprep.subr.mxu0 %v2890
      %2974 = vmatpush2.msra.mxu0 %v2889
      %2975 = vmatprep.subr.mxu0 %v2888
      %2976 = vmatpush2.msra.mxu0 %v2887
      %2977 = vmatprep.subr.mxu0 %v2886
      %2978 = vmatpush2.msra.mxu0 %v2885
      %2979 = vmatprep.subr.mxu0 %v2884
      %2980 = vmatpush2.msra.mxu0 %v2883
      %2981 = vmatprep.mubr.f32.mxu0 %v2843
      %2982 = vmatmul.mubr.f32.gmra.mxu0 %v2835
      %v2983 = vpop.f32.mrf.mxu0
      %v2984 = vadd.f32 0.0, %v2983
      %v2985 = vpop.f32.mrf.mxu0
      %v2986 = vadd.f32 0.0, %v2985
      %2987 = vmatprep.mubr.f32.mxu0 %v2844
      %2988 = vmatmul.mubr.f32.gmra.mxu0 %v2836
      %v2989 = vpop.f32.mrf.mxu0
      %v2990 = vadd.f32 0.0, %v2989
      %v2991 = vpop.f32.mrf.mxu0
      %v2992 = vadd.f32 0.0, %v2991
      %2993 = vmatprep.mubr.f32.mxu0 %v2845
      %2994 = vmatmul.mubr.f32.gmra.mxu0 %v2837
      %v2995 = vpop.f32.mrf.mxu0
      %v2996 = vadd.f32 0.0, %v2995
      %v2997 = vpop.f32.mrf.mxu0
      %v2998 = vadd.f32 0.0, %v2997
      %2999 = vmatprep.mubr.f32.mxu0 %v2846
      %3000 = vmatmul.mubr.f32.gmra.mxu0 %v2838
      %v3001 = vpop.f32.mrf.mxu0
      %v3002 = vadd.f32 0.0, %v3001
      %v3003 = vpop.f32.mrf.mxu0
      %v3004 = vadd.f32 0.0, %v3003
      %3005 = vmatprep.mubr.f32.mxu0 %v2847
      %3006 = vmatmul.mubr.f32.gmra.mxu0 %v2839
      %v3007 = vpop.f32.mrf.mxu0
      %v3008 = vadd.f32 0.0, %v3007
      %v3009 = vpop.f32.mrf.mxu0
      %v3010 = vadd.f32 0.0, %v3009
      %3011 = vmatprep.mubr.f32.mxu0 %v2848
      %3012 = vmatmul.mubr.f32.gmra.mxu0 %v2840
      %v3013 = vpop.f32.mrf.mxu0
      %v3014 = vadd.f32 0.0, %v3013
      %v3015 = vpop.f32.mrf.mxu0
      %v3016 = vadd.f32 0.0, %v3015
      %3017 = vmatprep.mubr.f32.mxu0 %v2849
      %3018 = vmatmul.mubr.f32.gmra.mxu0 %v2841
      %v3019 = vpop.f32.mrf.mxu0
      %v3020 = vadd.f32 0.0, %v3019
      %v3021 = vpop.f32.mrf.mxu0
      %v3022 = vadd.f32 0.0, %v3021
      %3023 = vmatprep.mubr.f32.mxu0 %v2850
      %3024 = vmatmul.mubr.f32.gmra.mxu0 %v2842
      %v3025 = vpop.f32.mrf.mxu0
      %v3026 = vadd.f32 0.0, %v3025
      %v3027 = vpop.f32.mrf.mxu0
      %v3028 = vadd.f32 0.0, %v3027
      %3029 = vdwg.mxu0
      %v3031 = vlaneseq
      %v3032 = vshrl.u32 %v3031, 7
      %v3033 = vsub.s32 0, %v3032
      %v3034 = vrot.slane %v2915, %v3033
      %v3035 = vlaneseq
      %v3036 = vshrl.u32 %v3035, 7
      %v3037 = vsub.s32 1, %v3036
      %v3038 = vrot.slane %v2915, %v3037
      %v3041 = vadd.f32 %v2984, %v3034
      %v3042 = vadd.f32 %v2986, %v3038
      %v3043 = vadd.f32 %v2990, %v3034
      %v3044 = vadd.f32 %v2992, %v3038
      %v3045 = vadd.f32 %v2996, %v3034
      %v3046 = vadd.f32 %v2998, %v3038
      %v3047 = vadd.f32 %v3002, %v3034
      %v3048 = vadd.f32 %v3004, %v3038
      %v3049 = vadd.f32 %v3008, %v3034
      %v3050 = vadd.f32 %v3010, %v3038
      %v3051 = vadd.f32 %v3014, %v3034
      %v3052 = vadd.f32 %v3016, %v3038
      %v3053 = vadd.f32 %v3020, %v3034
      %v3054 = vadd.f32 %v3022, %v3038
      %v3055 = vadd.f32 %v3026, %v3034
      %v3056 = vadd.f32 %v3028, %v3038
      %v3057 = vtanh.pop %v3041
      %v3058 = vtanh.pop %v3042
      %v3059 = vtanh.pop %v3043
      %v3060 = vtanh.pop %v3044
      %v3061 = vtanh.pop %v3045
      %v3062 = vtanh.pop %v3046
      %v3063 = vtanh.pop %v3047
      %v3064 = vtanh.pop %v3048
      %v3065 = vtanh.pop %v3049
      %v3066 = vtanh.pop %v3050
      %v3067 = vtanh.pop %v3051
      %v3068 = vtanh.pop %v3052
      %v3069 = vtanh.pop %v3053
      %v3070 = vtanh.pop %v3054
      %v3071 = vtanh.pop %v3055
      %v3072 = vtanh.pop %v3056
      %v3074 = vlaneseq
      %v3075 = vshrl.u32 %v3074, 7
      %v3076 = vsub.s32 0, %v3075
      %v3077 = vrot.slane %v2916, %v3076
      %v3078 = vlaneseq
      %v3079 = vshrl.u32 %v3078, 7
      %v3080 = vsub.s32 1, %v3079
      %v3081 = vrot.slane %v2916, %v3080
      %v3084 = vmul.f32 %v3057, %v3077
      %v3085 = vmul.f32 %v3058, %v3081
      %v3086 = vmul.f32 %v3059, %v3077
      %v3087 = vmul.f32 %v3060, %v3081
      %v3088 = vmul.f32 %v3061, %v3077
      %v3089 = vmul.f32 %v3062, %v3081
      %v3090 = vmul.f32 %v3063, %v3077
      %v3091 = vmul.f32 %v3064, %v3081
      %v3092 = vmul.f32 %v3065, %v3077
      %v3093 = vmul.f32 %v3066, %v3081
      %v3094 = vmul.f32 %v3067, %v3077
      %v3095 = vmul.f32 %v3068, %v3081
      %v3096 = vmul.f32 %v3069, %v3077
      %v3097 = vmul.f32 %v3070, %v3081
      %v3098 = vmul.f32 %v3071, %v3077
      %v3099 = vmul.f32 %v3072, %v3081
      %v3100 = vadd.f32 %v3084, %v3085
      %3101 = vadd.xlane.f32.xlu0 %v3100
      %v3102 = vpop.xlane.xlu0 %3101
      %v3103 = vadd.f32 %v3086, %v3087
      %3104 = vadd.xlane.f32.xlu0 %v3103
      %v3105 = vpop.xlane.xlu0 %3104
      %v3106 = vadd.f32 %v3088, %v3089
      %3107 = vadd.xlane.f32.xlu0 %v3106
      %v3108 = vpop.xlane.xlu0 %3107
      %v3109 = vadd.f32 %v3090, %v3091
      %3110 = vadd.xlane.f32.xlu0 %v3109
      %v3111 = vpop.xlane.xlu0 %3110
      %v3112 = vadd.f32 %v3092, %v3093
      %3113 = vadd.xlane.f32.xlu0 %v3112
      %v3114 = vpop.xlane.xlu0 %3113
      %v3115 = vadd.f32 %v3094, %v3095
      %3116 = vadd.xlane.f32.xlu0 %v3115
      %v3117 = vpop.xlane.xlu0 %3116
      %v3118 = vadd.f32 %v3096, %v3097
      %3119 = vadd.xlane.f32.xlu0 %v3118
      %v3120 = vpop.xlane.xlu0 %3119
      %v3121 = vadd.f32 %v3098, %v3099
      %3122 = vadd.xlane.f32.xlu0 %v3121
      %v3123 = vpop.xlane.xlu0 %3122
      %v3124 = vmax.f32 %v3102, %v3114
      %v3125 = vmax.f32 %v3105, %v3117
      %v3126 = vmax.f32 %v3108, %v3120
      %v3127 = vmax.f32 %v3111, %v3123
      %v3128 = vmax.f32 %v3124, %v3125
      %v3129 = vmax.f32 %v3126, %v3127
      %v3130 = vmax.f32 %v3128, %v3129
      %v3131 = vsub.f32 %v3102, %v3130
      %v3132 = vsub.f32 %v3105, %v3130
      %v3133 = vsub.f32 %v3108, %v3130
      %v3134 = vsub.f32 %v3111, %v3130
      %v3135 = vsub.f32 %v3114, %v3130
      %v3136 = vsub.f32 %v3117, %v3130
      %v3137 = vsub.f32 %v3120, %v3130
      %v3138 = vsub.f32 %v3123, %v3130
      %v3139 = vmul.f32 %v3131, 1.442695
      %v3140 = vpow.pop %v3139
      %v3141 = vmul.f32 %v3132, 1.442695
      %v3142 = vpow.pop %v3141
      %v3143 = vmul.f32 %v3133, 1.442695
      %v3144 = vpow.pop %v3143
      %v3145 = vmul.f32 %v3134, 1.442695
      %v3146 = vpow.pop %v3145
      %v3147 = vmul.f32 %v3135, 1.442695
      %v3148 = vpow.pop %v3147
      %v3149 = vmul.f32 %v3136, 1.442695
      %v3150 = vpow.pop %v3149
      %v3151 = vmul.f32 %v3137, 1.442695
      %v3152 = vpow.pop %v3151
      %v3153 = vmul.f32 %v3138, 1.442695
      %v3154 = vpow.pop %v3153
      %v3155 = vadd.f32 %v3140, %v3142
      %v3156 = vadd.f32 %v3155, %v3144
      %v3157 = vadd.f32 %v3156, %v3146
      %v3158 = vadd.f32 %v3157, %v3148
      %v3159 = vadd.f32 %v3158, %v3150
      %v3160 = vadd.f32 %v3159, %v3152
      %v3161 = vadd.f32 %v3160, %v3154
      %v3162 = vrcp.pop %v3161
      %v3163 = vmul.f32 %v3140, %v3162
      %v3164 = vmul.f32 %v3142, %v3162
      %v3165 = vmul.f32 %v3144, %v3162
      %v3166 = vmul.f32 %v3146, %v3162
      %v3167 = vmul.f32 %v3148, %v3162
      %v3168 = vmul.f32 %v3150, %v3162
      %v3169 = vmul.f32 %v3152, %v3162
      %v3170 = vmul.f32 %v3154, %v3162
      %v3171 = vmul.f32 %v3163, %v2835
      %v3172 = vmul.f32 %v3163, %v2843
      %v3173 = vmul.f32 %v3164, %v2836
      %v3174 = vmul.f32 %v3164, %v2844
      %v3175 = vmul.f32 %v3165, %v2837
      %v3176 = vmul.f32 %v3165, %v2845
      %v3177 = vmul.f32 %v3166, %v2838
      %v3178 = vmul.f32 %v3166, %v2846
      %v3179 = vmul.f32 %v3167, %v2839
      %v3180 = vmul.f32 %v3167, %v2847
      %v3181 = vmul.f32 %v3168, %v2840
      %v3182 = vmul.f32 %v3168, %v2848
      %v3183 = vmul.f32 %v3169, %v2841
      %v3184 = vmul.f32 %v3169, %v2849
      %v3185 = vmul.f32 %v3170, %v2842
      %v3186 = vmul.f32 %v3170, %v2850
      %v3187 = vadd.f32 %v3171, %v3173
      %v3188 = vadd.f32 %v3187, %v3175
      %v3189 = vadd.f32 %v3188, %v3177
      %v3190 = vadd.f32 %v3189, %v3179
      %v3191 = vadd.f32 %v3190, %v3181
      %v3192 = vadd.f32 %v3191, %v3183
      %v3193 = vadd.f32 %v3192, %v3185
      %v3194 = vadd.f32 %v3172, %v3174
      %v3195 = vadd.f32 %v3194, %v3176
      %v3196 = vadd.f32 %v3195, %v3178
      %v3197 = vadd.f32 %v3196, %v3180
      %v3198 = vadd.f32 %v3197, %v3182
      %v3199 = vadd.f32 %v3198, %v3184
      %v3200 = vadd.f32 %v3199, %v3186
      %3201 = vst [vmem:[%s386] sm:$0xff] %v3193
      %3202 = vst [vmem:[%s386 + $0x8] sm:$0xff] %v3200
      %p3203 = scmp.lt.s32.totalorder %s22, 3
      %s3204 = scalar_select %p3203, %s22, 3
      %s3205 = smul.addr %s3204, 2
      %s3206 = smul.addr %s3205, 8
      %s3207 = scalar_lea.vmem %s11, %s3206
      // Predicated region
      $region69: #{hier_attn_net_forward.2} parent=63 // pred_check
        %p3208 = pneg %p276
      $region70: #{hier_attn_net_forward.2} parent=63 // pred_check_branch
        %3210 = sbr.rel (%p3208) target = $region72
      $region71: #{hier_attn_net_forward.2} parent=63 // pred_region
        _
      $region72: #{hier_attn_net_forward.2} parent=63 // pred_fallthru
        _
    $region64: #{hier_attn_net_forward.2} parent=5 // pred_fallthru
      _
    %p3211 = scmp.le.s32.totalorder 2, %s17
    // Predicated region
    $region73: #{hier_attn_net_forward.2} parent=5 // pred_check
      %p3212 = pneg %p3211
    $region74: #{hier_attn_net_forward.2} parent=5 // pred_check_branch
      %3214 = sbr.rel (%p3212) target = $region76
    $region75: #{hier_attn_net_forward.2} parent=5 // pred_region
      %s3215 = ssub.s32 %s17, 2
      // Predicated region
      $region77: #{hier_attn_net_forward.2} parent=75 // pred_check
        %p3216 = pneg %p282
      $region78: #{hier_attn_net_forward.2} parent=75 // pred_check_branch
        %3218 = sbr.rel (%p3216) target = $region80
      $region79: #{hier_attn_net_forward.2} parent=75 // pred_region
        %p3219 = scmp.lt.s32.totalorder %s23, 3
        %s3220 = scalar_select %p3219, %s23, 3
        %s3221 = smul.addr %s3220, 2
        %s3222 = smul.addr %s3221, 8
        %s3223 = scalar_lea.vmem %s11, %s3222
      $region80: #{hier_attn_net_forward.2} parent=75 // pred_fallthru
        _
    $region76: #{hier_attn_net_forward.2} parent=5 // pred_fallthru
      _
  $region6: #{hier_attn_net_forward.2} parent=0 // loop_footer
    %s21 = sadd.s32 1, %s17
  $region7: #{hier_attn_net_forward.2} parent=0 // loop_footer_branch
    %16 = sbr.rel target = $region3
  $region8: #{hier_attn_net_forward.2} parent=0 // loop_exit
    _

// kernel: hier_attn_net_forward.3
$region0: #{hier_attn_net_forward.3}
  #allocation0 [shape = 'u32[]', space=smem, size = 0x4, offset = 0x4, fixed_abs, tag = 'smem constant byte address 0x4 - core index']
  #allocation1 [shape = 'u32[144,128]{1,0:T(1,128)}', space=vmem, size = 0x12000, scoped, tag = 'internal scratch']
  #allocation2 [shape = 'f32[4,8,384]{2,1,0:T(8,128)}', space=vmem, size = 0xc000, scoped, tag = 'scratch operand']
  #allocation3 [shape = 'f32[4,8,384]{2,1,0:T(8,128)}', space=vmem, size = 0xc000, scoped, tag = 'scratch operand']
  #allocation4 [shape = 'f32[4,8,128]{2,1,0:T(8,128)}', space=vmem, size = 0x4000, scoped, tag = 'scratch operand']
  #allocation5 [shape = 'f32[4,8,128]{2,1,0:T(8,128)}', space=vmem, size = 0x4000, scoped, tag = 'scratch operand']
  %s0 = inlined_call_operand.vmem [shape: f32[4,8,256], index: 0, kind: input, shape index: {}]
  %s1 = inlined_call_operand.vmem [shape: f32[4,8,128], index: 1, kind: input, shape index: {}]
  %s2 = inlined_call_operand.vmem [shape: f32[256,384], index: 2, kind: input, shape index: {}]
  %s3 = inlined_call_operand.vmem [shape: f32[256,384], index: 3, kind: input, shape index: {}]
  %s4 = inlined_call_operand.vmem [shape: f32[1,384], index: 4, kind: input, shape index: {}]
  %s5 = inlined_call_operand.vmem [shape: f32[1,384], index: 5, kind: input, shape index: {}]
  %s6 = inlined_call_operand.vmem [shape: f32[256,384], index: 6, kind: input, shape index: {}]
  %s7 = inlined_call_operand.vmem [shape: f32[16,128], index: 7, kind: input, shape index: {}]
  %s8 = inlined_call_operand.vmem [shape: f32[16,256], index: 8, kind: input, shape index: {}]
  %s9 = inlined_call_operand.vmem [shape: f32[384,384], index: 9, kind: input, shape index: {}]
  %s10 = inlined_call_operand.vmem [shape: f32[1,384], index: 10, kind: input, shape index: {}]
  %s11 = inlined_call_operand.vmem [shape: f32[1,384], index: 11, kind: input, shape index: {}]
  %s12 = inlined_call_operand.vmem [shape: f32[8,384], index: 12, kind: output, shape index: {}]
  %s13 = sld [smem:[#allocation0]]
  $region58: #{hier_attn_net_forward.3} parent=0
    _
  %s15 = ssub.s32 1, %s13
  %s16 = scalar_select 0, %s15, %s13
  // Predicated region
  $region2: #{hier_attn_net_forward.3} parent=0 // pred_check
    _
  $region3: #{hier_attn_net_forward.3} parent=0 // pred_check_branch
    %18 = sbr.rel (0) target = $region5
  $region4: #{hier_attn_net_forward.3} parent=0 // pred_region
    _
  $region5: #{hier_attn_net_forward.3} parent=0 // pred_fallthru
    _
  // Predicated region
  $region6: #{hier_attn_net_forward.3} parent=0 // pred_check
    _
  $region7: #{hier_attn_net_forward.3} parent=0 // pred_check_branch
    %20 = sbr.rel (0) target = $region9
  $region8: #{hier_attn_net_forward.3} parent=0 // pred_region
    _
  $region9: #{hier_attn_net_forward.3} parent=0 // pred_fallthru
    _
  // Predicated region
  $region10: #{hier_attn_net_forward.3} parent=0 // pred_check
    _
  $region11: #{hier_attn_net_forward.3} parent=0 // pred_check_branch
    %22 = sbr.rel (0) target = $region13
  $region12: #{hier_attn_net_forward.3} parent=0 // pred_region
    _
  $region13: #{hier_attn_net_forward.3} parent=0 // pred_fallthru
    _
  // Predicated region
  $region14: #{hier_attn_net_forward.3} parent=0 // pred_check
    _
  $region15: #{hier_attn_net_forward.3} parent=0 // pred_check_branch
    %24 = sbr.rel (0) target = $region17
  $region16: #{hier_attn_net_forward.3} parent=0 // pred_region
    _
  $region17: #{hier_attn_net_forward.3} parent=0 // pred_fallthru
    _
  // Predicated region
  $region18: #{hier_attn_net_forward.3} parent=0 // pred_check
    _
  $region19: #{hier_attn_net_forward.3} parent=0 // pred_check_branch
    %26 = sbr.rel (0) target = $region21
  $region20: #{hier_attn_net_forward.3} parent=0 // pred_region
    _
  $region21: #{hier_attn_net_forward.3} parent=0 // pred_fallthru
    _
  // Predicated region
  $region22: #{hier_attn_net_forward.3} parent=0 // pred_check
    _
  $region23: #{hier_attn_net_forward.3} parent=0 // pred_check_branch
    %28 = sbr.rel (0) target = $region25
  $region24: #{hier_attn_net_forward.3} parent=0 // pred_region
    _
  $region25: #{hier_attn_net_forward.3} parent=0 // pred_fallthru
    _
  // Predicated region
  $region26: #{hier_attn_net_forward.3} parent=0 // pred_check
    _
  $region27: #{hier_attn_net_forward.3} parent=0 // pred_check_branch
    %30 = sbr.rel (0) target = $region29
  $region28: #{hier_attn_net_forward.3} parent=0 // pred_region
    _
  $region29: #{hier_attn_net_forward.3} parent=0 // pred_fallthru
    _
  // Predicated region
  $region30: #{hier_attn_net_forward.3} parent=0 // pred_check
    _
  $region31: #{hier_attn_net_forward.3} parent=0 // pred_check_branch
    %32 = sbr.rel (0) target = $region33
  $region32: #{hier_attn_net_forward.3} parent=0 // pred_region
    _
  $region33: #{hier_attn_net_forward.3} parent=0 // pred_fallthru
    _
  // Predicated region
  $region34: #{hier_attn_net_forward.3} parent=0 // pred_check
    _
  $region35: #{hier_attn_net_forward.3} parent=0 // pred_check_branch
    %34 = sbr.rel (0) target = $region37
  $region36: #{hier_attn_net_forward.3} parent=0 // pred_region
    _
  $region37: #{hier_attn_net_forward.3} parent=0 // pred_fallthru
    _
  // Predicated region
  $region38: #{hier_attn_net_forward.3} parent=0 // pred_check
    _
  $region39: #{hier_attn_net_forward.3} parent=0 // pred_check_branch
    %36 = sbr.rel (0) target = $region41
  $region40: #{hier_attn_net_forward.3} parent=0 // pred_region
    _
  $region41: #{hier_attn_net_forward.3} parent=0 // pred_fallthru
    _
  // Predicated region
  $region42: #{hier_attn_net_forward.3} parent=0 // pred_check
    _
  $region43: #{hier_attn_net_forward.3} parent=0 // pred_check_branch
    %38 = sbr.rel (0) target = $region45
  $region44: #{hier_attn_net_forward.3} parent=0 // pred_region
    _
  $region45: #{hier_attn_net_forward.3} parent=0 // pred_fallthru
    _
  // Predicated region
  $region46: #{hier_attn_net_forward.3} parent=0 // pred_check
    _
  $region47: #{hier_attn_net_forward.3} parent=0 // pred_check_branch
    %40 = sbr.rel (0) target = $region49
  $region48: #{hier_attn_net_forward.3} parent=0 // pred_region
    _
  $region49: #{hier_attn_net_forward.3} parent=0 // pred_fallthru
    _
  %v41 = vld [vmem:[%s0] sm:$0xff]
  %v42 = vld [vmem:[%s0 + $0x8] sm:$0xff]
  %v43 = vld [vmem:[%s0 + $0x10] sm:$0xff]
  %v44 = vld [vmem:[%s0 + $0x18] sm:$0xff]
  %v45 = vld [vmem:[%s0 + $0x20] sm:$0xff]
  %v46 = vld [vmem:[%s0 + $0x28] sm:$0xff]
  %v47 = vld [vmem:[%s0 + $0x30] sm:$0xff]
  %v48 = vld [vmem:[%s0 + $0x38] sm:$0xff]
  %v49 = vld [vmem:[%s2] sm:$0xff]
  %v50 = vld [vmem:[%s2 + $0x8] sm:$0xff]
  %v51 = vld [vmem:[%s2 + $0x10] sm:$0xff]
  %v52 = vld [vmem:[%s2 + $0x18] sm:$0xff]
  %v53 = vld [vmem:[%s2 + $0x20] sm:$0xff]
  %v54 = vld [vmem:[%s2 + $0x28] sm:$0xff]
  %v55 = vld [vmem:[%s2 + $0x30] sm:$0xff]
  %v56 = vld [vmem:[%s2 + $0x38] sm:$0xff]
  %v57 = vld [vmem:[%s2 + $0x40] sm:$0xff]
  %v58 = vld [vmem:[%s2 + $0x48] sm:$0xff]
  %v59 = vld [vmem:[%s2 + $0x50] sm:$0xff]
  %v60 = vld [vmem:[%s2 + $0x58] sm:$0xff]
  %v61 = vld [vmem:[%s2 + $0x60] sm:$0xff]
  %v62 = vld [vmem:[%s2 + $0x68] sm:$0xff]
  %v63 = vld [vmem:[%s2 + $0x70] sm:$0xff]
  %v64 = vld [vmem:[%s2 + $0x78] sm:$0xff]
  %v65 = vld [vmem:[%s2 + $0x80] sm:$0xff]
  %v66 = vld [vmem:[%s2 + $0x88] sm:$0xff]
  %v67 = vld [vmem:[%s2 + $0x90] sm:$0xff]
  %v68 = vld [vmem:[%s2 + $0x98] sm:$0xff]
  %v69 = vld [vmem:[%s2 + $0xa0] sm:$0xff]
  %v70 = vld [vmem:[%s2 + $0xa8] sm:$0xff]
  %v71 = vld [vmem:[%s2 + $0xb0] sm:$0xff]
  %v72 = vld [vmem:[%s2 + $0xb8] sm:$0xff]
  %v73 = vld [vmem:[%s2 + $0xc0] sm:$0xff]
  %v74 = vld [vmem:[%s2 + $0xc8] sm:$0xff]
  %v75 = vld [vmem:[%s2 + $0xd0] sm:$0xff]
  %v76 = vld [vmem:[%s2 + $0xd8] sm:$0xff]
  %v77 = vld [vmem:[%s2 + $0xe0] sm:$0xff]
  %v78 = vld [vmem:[%s2 + $0xe8] sm:$0xff]
  %v79 = vld [vmem:[%s2 + $0xf0] sm:$0xff]
  %v80 = vld [vmem:[%s2 + $0xf8] sm:$0xff]
  %v81 = vld [vmem:[%s2 + $0x100] sm:$0xff]
  %v82 = vld [vmem:[%s2 + $0x108] sm:$0xff]
  %v83 = vld [vmem:[%s2 + $0x110] sm:$0xff]
  %v84 = vld [vmem:[%s2 + $0x118] sm:$0xff]
  %v85 = vld [vmem:[%s2 + $0x120] sm:$0xff]
  %v86 = vld [vmem:[%s2 + $0x128] sm:$0xff]
  %v87 = vld [vmem:[%s2 + $0x130] sm:$0xff]
  %v88 = vld [vmem:[%s2 + $0x138] sm:$0xff]
  %v89 = vld [vmem:[%s2 + $0x140] sm:$0xff]
  %v90 = vld [vmem:[%s2 + $0x148] sm:$0xff]
  %v91 = vld [vmem:[%s2 + $0x150] sm:$0xff]
  %v92 = vld [vmem:[%s2 + $0x158] sm:$0xff]
  %v93 = vld [vmem:[%s2 + $0x160] sm:$0xff]
  %v94 = vld [vmem:[%s2 + $0x168] sm:$0xff]
  %v95 = vld [vmem:[%s2 + $0x170] sm:$0xff]
  %v96 = vld [vmem:[%s2 + $0x178] sm:$0xff]
  %v97 = vld [vmem:[%s2 + $0x180] sm:$0xff]
  %v98 = vld [vmem:[%s2 + $0x188] sm:$0xff]
  %v99 = vld [vmem:[%s2 + $0x190] sm:$0xff]
  %v100 = vld [vmem:[%s2 + $0x198] sm:$0xff]
  %v101 = vld [vmem:[%s2 + $0x1a0] sm:$0xff]
  %v102 = vld [vmem:[%s2 + $0x1a8] sm:$0xff]
  %v103 = vld [vmem:[%s2 + $0x1b0] sm:$0xff]
  %v104 = vld [vmem:[%s2 + $0x1b8] sm:$0xff]
  %v105 = vld [vmem:[%s2 + $0x1c0] sm:$0xff]
  %v106 = vld [vmem:[%s2 + $0x1c8] sm:$0xff]
  %v107 = vld [vmem:[%s2 + $0x1d0] sm:$0xff]
  %v108 = vld [vmem:[%s2 + $0x1d8] sm:$0xff]
  %v109 = vld [vmem:[%s2 + $0x1e0] sm:$0xff]
  %v110 = vld [vmem:[%s2 + $0x1e8] sm:$0xff]
  %v111 = vld [vmem:[%s2 + $0x1f0] sm:$0xff]
  %v112 = vld [vmem:[%s2 + $0x1f8] sm:$0xff]
  %v113 = vld [vmem:[%s2 + $0x200] sm:$0xff]
  %v114 = vld [vmem:[%s2 + $0x208] sm:$0xff]
  %v115 = vld [vmem:[%s2 + $0x210] sm:$0xff]
  %v116 = vld [vmem:[%s2 + $0x218] sm:$0xff]
  %v117 = vld [vmem:[%s2 + $0x220] sm:$0xff]
  %v118 = vld [vmem:[%s2 + $0x228] sm:$0xff]
  %v119 = vld [vmem:[%s2 + $0x230] sm:$0xff]
  %v120 = vld [vmem:[%s2 + $0x238] sm:$0xff]
  %v121 = vld [vmem:[%s2 + $0x240] sm:$0xff]
  %v122 = vld [vmem:[%s2 + $0x248] sm:$0xff]
  %v123 = vld [vmem:[%s2 + $0x250] sm:$0xff]
  %v124 = vld [vmem:[%s2 + $0x258] sm:$0xff]
  %v125 = vld [vmem:[%s2 + $0x260] sm:$0xff]
  %v126 = vld [vmem:[%s2 + $0x268] sm:$0xff]
  %v127 = vld [vmem:[%s2 + $0x270] sm:$0xff]
  %v128 = vld [vmem:[%s2 + $0x278] sm:$0xff]
  %v129 = vld [vmem:[%s2 + $0x280] sm:$0xff]
  %v130 = vld [vmem:[%s2 + $0x288] sm:$0xff]
  %v131 = vld [vmem:[%s2 + $0x290] sm:$0xff]
  %v132 = vld [vmem:[%s2 + $0x298] sm:$0xff]
  %v133 = vld [vmem:[%s2 + $0x2a0] sm:$0xff]
  %v134 = vld [vmem:[%s2 + $0x2a8] sm:$0xff]
  %v135 = vld [vmem:[%s2 + $0x2b0] sm:$0xff]
  %v136 = vld [vmem:[%s2 + $0x2b8] sm:$0xff]
  %v137 = vld [vmem:[%s2 + $0x2c0] sm:$0xff]
  %v138 = vld [vmem:[%s2 + $0x2c8] sm:$0xff]
  %v139 = vld [vmem:[%s2 + $0x2d0] sm:$0xff]
  %v140 = vld [vmem:[%s2 + $0x2d8] sm:$0xff]
  %v141 = vld [vmem:[%s2 + $0x2e0] sm:$0xff]
  %v142 = vld [vmem:[%s2 + $0x2e8] sm:$0xff]
  %v143 = vld [vmem:[%s2 + $0x2f0] sm:$0xff]
  %v144 = vld [vmem:[%s2 + $0x2f8] sm:$0xff]
  %v145 = vld [vmem:[%s4] sm:$0x7]
  %v147 = vlaneseq
  %v148 = vshrl.u32 %v147, 7
  %v149 = vsub.s32 0, %v148
  %v150 = vrot.slane %v145, %v149
  %v151 = vlaneseq
  %v152 = vshrl.u32 %v151, 7
  %v153 = vsub.s32 1, %v152
  %v154 = vrot.slane %v145, %v153
  %v155 = vlaneseq
  %v156 = vshrl.u32 %v155, 7
  %v157 = vsub.s32 2, %v156
  %v158 = vrot.slane %v145, %v157
  %162 = vmatprep.subr.mxu0 %v95
  %163 = vmatpush1.msra.mxu0 %v94
  %164 = vmatprep.subr.mxu0 %v92
  %165 = vmatpush1.msra.mxu0 %v91
  %166 = vmatprep.subr.mxu0 %v89
  %167 = vmatpush1.msra.mxu0 %v88
  %168 = vmatprep.subr.mxu0 %v86
  %169 = vmatpush1.msra.mxu0 %v85
  %170 = vmatprep.subr.mxu0 %v83
  %171 = vmatpush1.msra.mxu0 %v82
  %172 = vmatprep.subr.mxu0 %v80
  %173 = vmatpush1.msra.mxu0 %v79
  %174 = vmatprep.subr.mxu0 %v77
  %175 = vmatpush1.msra.mxu0 %v76
  %176 = vmatprep.subr.mxu0 %v74
  %177 = vmatpush1.msra.mxu0 %v73
  %178 = vmatprep.subr.mxu0 %v71
  %179 = vmatpush1.msra.mxu0 %v70
  %180 = vmatprep.subr.mxu0 %v68
  %181 = vmatpush1.msra.mxu0 %v67
  %182 = vmatprep.subr.mxu0 %v65
  %183 = vmatpush1.msra.mxu0 %v64
  %184 = vmatprep.subr.mxu0 %v62
  %185 = vmatpush1.msra.mxu0 %v61
  %186 = vmatprep.subr.mxu0 %v59
  %187 = vmatpush1.msra.mxu0 %v58
  %188 = vmatprep.subr.mxu0 %v56
  %189 = vmatpush1.msra.mxu0 %v55
  %190 = vmatprep.subr.mxu0 %v53
  %191 = vmatpush1.msra.mxu0 %v52
  %192 = vmatprep.subr.mxu0 %v50
  %193 = vmatpush1.msra.mxu0 %v49
  %194 = vmatprep.subr.mxu0 %v143
  %195 = vmatpush2.msra.mxu0 %v142
  %196 = vmatprep.subr.mxu0 %v140
  %197 = vmatpush2.msra.mxu0 %v139
  %198 = vmatprep.subr.mxu0 %v137
  %199 = vmatpush2.msra.mxu0 %v136
  %200 = vmatprep.subr.mxu0 %v134
  %201 = vmatpush2.msra.mxu0 %v133
  %202 = vmatprep.subr.mxu0 %v131
  %203 = vmatpush2.msra.mxu0 %v130
  %204 = vmatprep.subr.mxu0 %v128
  %205 = vmatpush2.msra.mxu0 %v127
  %206 = vmatprep.subr.mxu0 %v125
  %207 = vmatpush2.msra.mxu0 %v124
  %208 = vmatprep.subr.mxu0 %v122
  %209 = vmatpush2.msra.mxu0 %v121
  %210 = vmatprep.subr.mxu0 %v119
  %211 = vmatpush2.msra.mxu0 %v118
  %212 = vmatprep.subr.mxu0 %v116
  %213 = vmatpush2.msra.mxu0 %v115
  %214 = vmatprep.subr.mxu0 %v113
  %215 = vmatpush2.msra.mxu0 %v112
  %216 = vmatprep.subr.mxu0 %v110
  %217 = vmatpush2.msra.mxu0 %v109
  %218 = vmatprep.subr.mxu0 %v107
  %219 = vmatpush2.msra.mxu0 %v106
  %220 = vmatprep.subr.mxu0 %v104
  %221 = vmatpush2.msra.mxu0 %v103
  %222 = vmatprep.subr.mxu0 %v101
  %223 = vmatpush2.msra.mxu0 %v100
  %224 = vmatprep.subr.mxu0 %v98
  %225 = vmatpush2.msra.mxu0 %v97
  %226 = vmatprep.mubr.f32.mxu0 %v42
  %227 = vmatmul.mubr.f32.gmra.mxu0 %v41
  %v228 = vpop.f32.mrf.mxu0
  %v229 = vadd.f32 %v150, %v228
  %v230 = vpop.f32.mrf.mxu0
  %v231 = vadd.f32 %v154, %v230
  %232 = vmatprep.mubr.f32.mxu0 %v44
  %233 = vmatmul.mubr.f32.gmra.mxu0 %v43
  %v234 = vpop.f32.mrf.mxu0
  %v235 = vadd.f32 %v150, %v234
  %v236 = vpop.f32.mrf.mxu0
  %v237 = vadd.f32 %v154, %v236
  %238 = vmatprep.mubr.f32.mxu0 %v46
  %239 = vmatmul.mubr.f32.gmra.mxu0 %v45
  %v240 = vpop.f32.mrf.mxu0
  %v241 = vadd.f32 %v150, %v240
  %v242 = vpop.f32.mrf.mxu0
  %v243 = vadd.f32 %v154, %v242
  %244 = vmatprep.mubr.f32.mxu0 %v48
  %245 = vmatmul.mubr.f32.gmra.mxu0 %v47
  %v246 = vpop.f32.mrf.mxu0
  %v247 = vadd.f32 %v150, %v246
  %v248 = vpop.f32.mrf.mxu0
  %v249 = vadd.f32 %v154, %v248
  %250 = vdwg.mxu0
  %251 = vmatprep.subr.mxu0 0.0
  %252 = vmatpush1.msra.mxu0 %v96
  %253 = vmatprep.subr.mxu0 0.0
  %254 = vmatpush1.msra.mxu0 %v93
  %255 = vmatprep.subr.mxu0 0.0
  %256 = vmatpush1.msra.mxu0 %v90
  %257 = vmatprep.subr.mxu0 0.0
  %258 = vmatpush1.msra.mxu0 %v87
  %259 = vmatprep.subr.mxu0 0.0
  %260 = vmatpush1.msra.mxu0 %v84
  %261 = vmatprep.subr.mxu0 0.0
  %262 = vmatpush1.msra.mxu0 %v81
  %263 = vmatprep.subr.mxu0 0.0
  %264 = vmatpush1.msra.mxu0 %v78
  %265 = vmatprep.subr.mxu0 0.0
  %266 = vmatpush1.msra.mxu0 %v75
  %267 = vmatprep.subr.mxu0 0.0
  %268 = vmatpush1.msra.mxu0 %v72
  %269 = vmatprep.subr.mxu0 0.0
  %270 = vmatpush1.msra.mxu0 %v69
  %271 = vmatprep.subr.mxu0 0.0
  %272 = vmatpush1.msra.mxu0 %v66
  %273 = vmatprep.subr.mxu0 0.0
  %274 = vmatpush1.msra.mxu0 %v63
  %275 = vmatprep.subr.mxu0 0.0
  %276 = vmatpush1.msra.mxu0 %v60
  %277 = vmatprep.subr.mxu0 0.0
  %278 = vmatpush1.msra.mxu0 %v57
  %279 = vmatprep.subr.mxu0 0.0
  %280 = vmatpush1.msra.mxu0 %v54
  %281 = vmatprep.subr.mxu0 0.0
  %282 = vmatpush1.msra.mxu0 %v51
  %283 = vmatprep.subr.mxu0 0.0
  %284 = vmatpush2.msra.mxu0 %v144
  %285 = vmatprep.subr.mxu0 0.0
  %286 = vmatpush2.msra.mxu0 %v141
  %287 = vmatprep.subr.mxu0 0.0
  %288 = vmatpush2.msra.mxu0 %v138
  %289 = vmatprep.subr.mxu0 0.0
  %290 = vmatpush2.msra.mxu0 %v135
  %291 = vmatprep.subr.mxu0 0.0
  %292 = vmatpush2.msra.mxu0 %v132
  %293 = vmatprep.subr.mxu0 0.0
  %294 = vmatpush2.msra.mxu0 %v129
  %295 = vmatprep.subr.mxu0 0.0
  %296 = vmatpush2.msra.mxu0 %v126
  %297 = vmatprep.subr.mxu0 0.0
  %298 = vmatpush2.msra.mxu0 %v123
  %299 = vmatprep.subr.mxu0 0.0
  %300 = vmatpush2.msra.mxu0 %v120
  %301 = vmatprep.subr.mxu0 0.0
  %302 = vmatpush2.msra.mxu0 %v117
  %303 = vmatprep.subr.mxu0 0.0
  %304 = vmatpush2.msra.mxu0 %v114
  %305 = vmatprep.subr.mxu0 0.0
  %306 = vmatpush2.msra.mxu0 %v111
  %307 = vmatprep.subr.mxu0 0.0
  %308 = vmatpush2.msra.mxu0 %v108
  %309 = vmatprep.subr.mxu0 0.0
  %310 = vmatpush2.msra.mxu0 %v105
  %311 = vmatprep.subr.mxu0 0.0
  %312 = vmatpush2.msra.mxu0 %v102
  %313 = vmatprep.subr.mxu0 0.0
  %314 = vmatpush2.msra.mxu0 %v99
  %315 = vmatprep.mubr.f32.mxu0 %v42
  %316 = vmatmul.mubr.f32.gmra.mxu0 %v41
  %v317 = vpop.f32.mrf.mxu0
  %v318 = vadd.f32 %v158, %v317
  %v319 = vpop.f32.mrf.mxu0
  %320 = vmatprep.mubr.f32.mxu0 %v44
  %321 = vmatmul.mubr.f32.gmra.mxu0 %v43
  %v322 = vpop.f32.mrf.mxu0
  %v323 = vadd.f32 %v158, %v322
  %v324 = vpop.f32.mrf.mxu0
  %325 = vmatprep.mubr.f32.mxu0 %v46
  %326 = vmatmul.mubr.f32.gmra.mxu0 %v45
  %v327 = vpop.f32.mrf.mxu0
  %v328 = vadd.f32 %v158, %v327
  %v329 = vpop.f32.mrf.mxu0
  %330 = vmatprep.mubr.f32.mxu0 %v48
  %331 = vmatmul.mubr.f32.gmra.mxu0 %v47
  %v332 = vpop.f32.mrf.mxu0
  %v333 = vadd.f32 %v158, %v332
  %v334 = vpop.f32.mrf.mxu0
  %335 = vdwg.mxu0
  %336 = vst [vmem:[#allocation2] sm:$0xff] %v229
  %337 = vst [vmem:[#allocation2 + $0x8] sm:$0xff] %v231
  %338 = vst [vmem:[#allocation2 + $0x10] sm:$0xff] %v318
  %339 = vst [vmem:[#allocation2 + $0x18] sm:$0xff] %v235
  %340 = vst [vmem:[#allocation2 + $0x20] sm:$0xff] %v237
  %341 = vst [vmem:[#allocation2 + $0x28] sm:$0xff] %v323
  %342 = vst [vmem:[#allocation2 + $0x30] sm:$0xff] %v241
  %343 = vst [vmem:[#allocation2 + $0x38] sm:$0xff] %v243
  %344 = vst [vmem:[#allocation2 + $0x40] sm:$0xff] %v328
  %345 = vst [vmem:[#allocation2 + $0x48] sm:$0xff] %v247
  %346 = vst [vmem:[#allocation2 + $0x50] sm:$0xff] %v249
  %347 = vst [vmem:[#allocation2 + $0x58] sm:$0xff] %v333
  %v348 = vld [vmem:[%s3] sm:$0xff]
  %v349 = vld [vmem:[%s3 + $0x8] sm:$0xff]
  %v350 = vld [vmem:[%s3 + $0x10] sm:$0xff]
  %v351 = vld [vmem:[%s3 + $0x18] sm:$0xff]
  %v352 = vld [vmem:[%s3 + $0x20] sm:$0xff]
  %v353 = vld [vmem:[%s3 + $0x28] sm:$0xff]
  %v354 = vld [vmem:[%s3 + $0x30] sm:$0xff]
  %v355 = vld [vmem:[%s3 + $0x38] sm:$0xff]
  %v356 = vld [vmem:[%s3 + $0x40] sm:$0xff]
  %v357 = vld [vmem:[%s3 + $0x48] sm:$0xff]
  %v358 = vld [vmem:[%s3 + $0x50] sm:$0xff]
  %v359 = vld [vmem:[%s3 + $0x58] sm:$0xff]
  %v360 = vld [vmem:[%s3 + $0x60] sm:$0xff]
  %v361 = vld [vmem:[%s3 + $0x68] sm:$0xff]
  %v362 = vld [vmem:[%s3 + $0x70] sm:$0xff]
  %v363 = vld [vmem:[%s3 + $0x78] sm:$0xff]
  %v364 = vld [vmem:[%s3 + $0x80] sm:$0xff]
  %v365 = vld [vmem:[%s3 + $0x88] sm:$0xff]
  %v366 = vld [vmem:[%s3 + $0x90] sm:$0xff]
  %v367 = vld [vmem:[%s3 + $0x98] sm:$0xff]
  %v368 = vld [vmem:[%s3 + $0xa0] sm:$0xff]
  %v369 = vld [vmem:[%s3 + $0xa8] sm:$0xff]
  %v370 = vld [vmem:[%s3 + $0xb0] sm:$0xff]
  %v371 = vld [vmem:[%s3 + $0xb8] sm:$0xff]
  %v372 = vld [vmem:[%s3 + $0xc0] sm:$0xff]
  %v373 = vld [vmem:[%s3 + $0xc8] sm:$0xff]
  %v374 = vld [vmem:[%s3 + $0xd0] sm:$0xff]
  %v375 = vld [vmem:[%s3 + $0xd8] sm:$0xff]
  %v376 = vld [vmem:[%s3 + $0xe0] sm:$0xff]
  %v377 = vld [vmem:[%s3 + $0xe8] sm:$0xff]
  %v378 = vld [vmem:[%s3 + $0xf0] sm:$0xff]
  %v379 = vld [vmem:[%s3 + $0xf8] sm:$0xff]
  %v380 = vld [vmem:[%s3 + $0x100] sm:$0xff]
  %v381 = vld [vmem:[%s3 + $0x108] sm:$0xff]
  %v382 = vld [vmem:[%s3 + $0x110] sm:$0xff]
  %v383 = vld [vmem:[%s3 + $0x118] sm:$0xff]
  %v384 = vld [vmem:[%s3 + $0x120] sm:$0xff]
  %v385 = vld [vmem:[%s3 + $0x128] sm:$0xff]
  %v386 = vld [vmem:[%s3 + $0x130] sm:$0xff]
  %v387 = vld [vmem:[%s3 + $0x138] sm:$0xff]
  %v388 = vld [vmem:[%s3 + $0x140] sm:$0xff]
  %v389 = vld [vmem:[%s3 + $0x148] sm:$0xff]
  %v390 = vld [vmem:[%s3 + $0x150] sm:$0xff]
  %v391 = vld [vmem:[%s3 + $0x158] sm:$0xff]
  %v392 = vld [vmem:[%s3 + $0x160] sm:$0xff]
  %v393 = vld [vmem:[%s3 + $0x168] sm:$0xff]
  %v394 = vld [vmem:[%s3 + $0x170] sm:$0xff]
  %v395 = vld [vmem:[%s3 + $0x178] sm:$0xff]
  %v396 = vld [vmem:[%s3 + $0x180] sm:$0xff]
  %v397 = vld [vmem:[%s3 + $0x188] sm:$0xff]
  %v398 = vld [vmem:[%s3 + $0x190] sm:$0xff]
  %v399 = vld [vmem:[%s3 + $0x198] sm:$0xff]
  %v400 = vld [vmem:[%s3 + $0x1a0] sm:$0xff]
  %v401 = vld [vmem:[%s3 + $0x1a8] sm:$0xff]
  %v402 = vld [vmem:[%s3 + $0x1b0] sm:$0xff]
  %v403 = vld [vmem:[%s3 + $0x1b8] sm:$0xff]
  %v404 = vld [vmem:[%s3 + $0x1c0] sm:$0xff]
  %v405 = vld [vmem:[%s3 + $0x1c8] sm:$0xff]
  %v406 = vld [vmem:[%s3 + $0x1d0] sm:$0xff]
  %v407 = vld [vmem:[%s3 + $0x1d8] sm:$0xff]
  %v408 = vld [vmem:[%s3 + $0x1e0] sm:$0xff]
  %v409 = vld [vmem:[%s3 + $0x1e8] sm:$0xff]
  %v410 = vld [vmem:[%s3 + $0x1f0] sm:$0xff]
  %v411 = vld [vmem:[%s3 + $0x1f8] sm:$0xff]
  %v412 = vld [vmem:[%s3 + $0x200] sm:$0xff]
  %v413 = vld [vmem:[%s3 + $0x208] sm:$0xff]
  %v414 = vld [vmem:[%s3 + $0x210] sm:$0xff]
  %v415 = vld [vmem:[%s3 + $0x218] sm:$0xff]
  %v416 = vld [vmem:[%s3 + $0x220] sm:$0xff]
  %v417 = vld [vmem:[%s3 + $0x228] sm:$0xff]
  %v418 = vld [vmem:[%s3 + $0x230] sm:$0xff]
  %v419 = vld [vmem:[%s3 + $0x238] sm:$0xff]
  %v420 = vld [vmem:[%s3 + $0x240] sm:$0xff]
  %v421 = vld [vmem:[%s3 + $0x248] sm:$0xff]
  %v422 = vld [vmem:[%s3 + $0x250] sm:$0xff]
  %v423 = vld [vmem:[%s3 + $0x258] sm:$0xff]
  %v424 = vld [vmem:[%s3 + $0x260] sm:$0xff]
  %v425 = vld [vmem:[%s3 + $0x268] sm:$0xff]
  %v426 = vld [vmem:[%s3 + $0x270] sm:$0xff]
  %v427 = vld [vmem:[%s3 + $0x278] sm:$0xff]
  %v428 = vld [vmem:[%s3 + $0x280] sm:$0xff]
  %v429 = vld [vmem:[%s3 + $0x288] sm:$0xff]
  %v430 = vld [vmem:[%s3 + $0x290] sm:$0xff]
  %v431 = vld [vmem:[%s3 + $0x298] sm:$0xff]
  %v432 = vld [vmem:[%s3 + $0x2a0] sm:$0xff]
  %v433 = vld [vmem:[%s3 + $0x2a8] sm:$0xff]
  %v434 = vld [vmem:[%s3 + $0x2b0] sm:$0xff]
  %v435 = vld [vmem:[%s3 + $0x2b8] sm:$0xff]
  %v436 = vld [vmem:[%s3 + $0x2c0] sm:$0xff]
  %v437 = vld [vmem:[%s3 + $0x2c8] sm:$0xff]
  %v438 = vld [vmem:[%s3 + $0x2d0] sm:$0xff]
  %v439 = vld [vmem:[%s3 + $0x2d8] sm:$0xff]
  %v440 = vld [vmem:[%s3 + $0x2e0] sm:$0xff]
  %v441 = vld [vmem:[%s3 + $0x2e8] sm:$0xff]
  %v442 = vld [vmem:[%s3 + $0x2f0] sm:$0xff]
  %v443 = vld [vmem:[%s3 + $0x2f8] sm:$0xff]
  %v444 = vld [vmem:[%s5] sm:$0x7]
  %v446 = vlaneseq
  %v447 = vshrl.u32 %v446, 7
  %v448 = vsub.s32 0, %v447
  %v449 = vrot.slane %v444, %v448
  %v450 = vlaneseq
  %v451 = vshrl.u32 %v450, 7
  %v452 = vsub.s32 1, %v451
  %v453 = vrot.slane %v444, %v452
  %v454 = vlaneseq
  %v455 = vshrl.u32 %v454, 7
  %v456 = vsub.s32 2, %v455
  %v457 = vrot.slane %v444, %v456
  %461 = vmatprep.subr.mxu0 %v394
  %462 = vmatpush1.msra.mxu0 %v393
  %463 = vmatprep.subr.mxu0 %v391
  %464 = vmatpush1.msra.mxu0 %v390
  %465 = vmatprep.subr.mxu0 %v388
  %466 = vmatpush1.msra.mxu0 %v387
  %467 = vmatprep.subr.mxu0 %v385
  %468 = vmatpush1.msra.mxu0 %v384
  %469 = vmatprep.subr.mxu0 %v382
  %470 = vmatpush1.msra.mxu0 %v381
  %471 = vmatprep.subr.mxu0 %v379
  %472 = vmatpush1.msra.mxu0 %v378
  %473 = vmatprep.subr.mxu0 %v376
  %474 = vmatpush1.msra.mxu0 %v375
  %475 = vmatprep.subr.mxu0 %v373
  %476 = vmatpush1.msra.mxu0 %v372
  %477 = vmatprep.subr.mxu0 %v370
  %478 = vmatpush1.msra.mxu0 %v369
  %479 = vmatprep.subr.mxu0 %v367
  %480 = vmatpush1.msra.mxu0 %v366
  %481 = vmatprep.subr.mxu0 %v364
  %482 = vmatpush1.msra.mxu0 %v363
  %483 = vmatprep.subr.mxu0 %v361
  %484 = vmatpush1.msra.mxu0 %v360
  %485 = vmatprep.subr.mxu0 %v358
  %486 = vmatpush1.msra.mxu0 %v357
  %487 = vmatprep.subr.mxu0 %v355
  %488 = vmatpush1.msra.mxu0 %v354
  %489 = vmatprep.subr.mxu0 %v352
  %490 = vmatpush1.msra.mxu0 %v351
  %491 = vmatprep.subr.mxu0 %v349
  %492 = vmatpush1.msra.mxu0 %v348
  %493 = vmatprep.subr.mxu0 %v442
  %494 = vmatpush2.msra.mxu0 %v441
  %495 = vmatprep.subr.mxu0 %v439
  %496 = vmatpush2.msra.mxu0 %v438
  %497 = vmatprep.subr.mxu0 %v436
  %498 = vmatpush2.msra.mxu0 %v435
  %499 = vmatprep.subr.mxu0 %v433
  %500 = vmatpush2.msra.mxu0 %v432
  %501 = vmatprep.subr.mxu0 %v430
  %502 = vmatpush2.msra.mxu0 %v429
  %503 = vmatprep.subr.mxu0 %v427
  %504 = vmatpush2.msra.mxu0 %v426
  %505 = vmatprep.subr.mxu0 %v424
  %506 = vmatpush2.msra.mxu0 %v423
  %507 = vmatprep.subr.mxu0 %v421
  %508 = vmatpush2.msra.mxu0 %v420
  %509 = vmatprep.subr.mxu0 %v418
  %510 = vmatpush2.msra.mxu0 %v417
  %511 = vmatprep.subr.mxu0 %v415
  %512 = vmatpush2.msra.mxu0 %v414
  %513 = vmatprep.subr.mxu0 %v412
  %514 = vmatpush2.msra.mxu0 %v411
  %515 = vmatprep.subr.mxu0 %v409
  %516 = vmatpush2.msra.mxu0 %v408
  %517 = vmatprep.subr.mxu0 %v406
  %518 = vmatpush2.msra.mxu0 %v405
  %519 = vmatprep.subr.mxu0 %v403
  %520 = vmatpush2.msra.mxu0 %v402
  %521 = vmatprep.subr.mxu0 %v400
  %522 = vmatpush2.msra.mxu0 %v399
  %523 = vmatprep.subr.mxu0 %v397
  %524 = vmatpush2.msra.mxu0 %v396
  %525 = vmatprep.mubr.f32.mxu0 %v42
  %526 = vmatmul.mubr.f32.gmra.mxu0 %v41
  %v527 = vpop.f32.mrf.mxu0
  %v528 = vadd.f32 %v449, %v527
  %v529 = vpop.f32.mrf.mxu0
  %v530 = vadd.f32 %v453, %v529
  %531 = vmatprep.mubr.f32.mxu0 %v44
  %532 = vmatmul.mubr.f32.gmra.mxu0 %v43
  %v533 = vpop.f32.mrf.mxu0
  %v534 = vadd.f32 %v449, %v533
  %v535 = vpop.f32.mrf.mxu0
  %v536 = vadd.f32 %v453, %v535
  %537 = vmatprep.mubr.f32.mxu0 %v46
  %538 = vmatmul.mubr.f32.gmra.mxu0 %v45
  %v539 = vpop.f32.mrf.mxu0
  %v540 = vadd.f32 %v449, %v539
  %v541 = vpop.f32.mrf.mxu0
  %v542 = vadd.f32 %v453, %v541
  %543 = vmatprep.mubr.f32.mxu0 %v48
  %544 = vmatmul.mubr.f32.gmra.mxu0 %v47
  %v545 = vpop.f32.mrf.mxu0
  %v546 = vadd.f32 %v449, %v545
  %v547 = vpop.f32.mrf.mxu0
  %v548 = vadd.f32 %v453, %v547
  %549 = vdwg.mxu0
  %550 = vmatprep.subr.mxu0 0.0
  %551 = vmatpush1.msra.mxu0 %v395
  %552 = vmatprep.subr.mxu0 0.0
  %553 = vmatpush1.msra.mxu0 %v392
  %554 = vmatprep.subr.mxu0 0.0
  %555 = vmatpush1.msra.mxu0 %v389
  %556 = vmatprep.subr.mxu0 0.0
  %557 = vmatpush1.msra.mxu0 %v386
  %558 = vmatprep.subr.mxu0 0.0
  %559 = vmatpush1.msra.mxu0 %v383
  %560 = vmatprep.subr.mxu0 0.0
  %561 = vmatpush1.msra.mxu0 %v380
  %562 = vmatprep.subr.mxu0 0.0
  %563 = vmatpush1.msra.mxu0 %v377
  %564 = vmatprep.subr.mxu0 0.0
  %565 = vmatpush1.msra.mxu0 %v374
  %566 = vmatprep.subr.mxu0 0.0
  %567 = vmatpush1.msra.mxu0 %v371
  %568 = vmatprep.subr.mxu0 0.0
  %569 = vmatpush1.msra.mxu0 %v368
  %570 = vmatprep.subr.mxu0 0.0
  %571 = vmatpush1.msra.mxu0 %v365
  %572 = vmatprep.subr.mxu0 0.0
  %573 = vmatpush1.msra.mxu0 %v362
  %574 = vmatprep.subr.mxu0 0.0
  %575 = vmatpush1.msra.mxu0 %v359
  %576 = vmatprep.subr.mxu0 0.0
  %577 = vmatpush1.msra.mxu0 %v356
  %578 = vmatprep.subr.mxu0 0.0
  %579 = vmatpush1.msra.mxu0 %v353
  %580 = vmatprep.subr.mxu0 0.0
  %581 = vmatpush1.msra.mxu0 %v350
  %582 = vmatprep.subr.mxu0 0.0
  %583 = vmatpush2.msra.mxu0 %v443
  %584 = vmatprep.subr.mxu0 0.0
  %585 = vmatpush2.msra.mxu0 %v440
  %586 = vmatprep.subr.mxu0 0.0
  %587 = vmatpush2.msra.mxu0 %v437
  %588 = vmatprep.subr.mxu0 0.0
  %589 = vmatpush2.msra.mxu0 %v434
  %590 = vmatprep.subr.mxu0 0.0
  %591 = vmatpush2.msra.mxu0 %v431
  %592 = vmatprep.subr.mxu0 0.0
  %593 = vmatpush2.msra.mxu0 %v428
  %594 = vmatprep.subr.mxu0 0.0
  %595 = vmatpush2.msra.mxu0 %v425
  %596 = vmatprep.subr.mxu0 0.0
  %597 = vmatpush2.msra.mxu0 %v422
  %598 = vmatprep.subr.mxu0 0.0
  %599 = vmatpush2.msra.mxu0 %v419
  %600 = vmatprep.subr.mxu0 0.0
  %601 = vmatpush2.msra.mxu0 %v416
  %602 = vmatprep.subr.mxu0 0.0
  %603 = vmatpush2.msra.mxu0 %v413
  %604 = vmatprep.subr.mxu0 0.0
  %605 = vmatpush2.msra.mxu0 %v410
  %606 = vmatprep.subr.mxu0 0.0
  %607 = vmatpush2.msra.mxu0 %v407
  %608 = vmatprep.subr.mxu0 0.0
  %609 = vmatpush2.msra.mxu0 %v404
  %610 = vmatprep.subr.mxu0 0.0
  %611 = vmatpush2.msra.mxu0 %v401
  %612 = vmatprep.subr.mxu0 0.0
  %613 = vmatpush2.msra.mxu0 %v398
  %614 = vmatprep.mubr.f32.mxu0 %v42
  %615 = vmatmul.mubr.f32.gmra.mxu0 %v41
  %v616 = vpop.f32.mrf.mxu0
  %v617 = vadd.f32 %v457, %v616
  %v618 = vpop.f32.mrf.mxu0
  %619 = vmatprep.mubr.f32.mxu0 %v44
  %620 = vmatmul.mubr.f32.gmra.mxu0 %v43
  %v621 = vpop.f32.mrf.mxu0
  %v622 = vadd.f32 %v457, %v621
  %v623 = vpop.f32.mrf.mxu0
  %624 = vmatprep.mubr.f32.mxu0 %v46
  %625 = vmatmul.mubr.f32.gmra.mxu0 %v45
  %v626 = vpop.f32.mrf.mxu0
  %v627 = vadd.f32 %v457, %v626
  %v628 = vpop.f32.mrf.mxu0
  %629 = vmatprep.mubr.f32.mxu0 %v48
  %630 = vmatmul.mubr.f32.gmra.mxu0 %v47
  %v631 = vpop.f32.mrf.mxu0
  %v632 = vadd.f32 %v457, %v631
  %v633 = vpop.f32.mrf.mxu0
  %634 = vdwg.mxu0
  %635 = vst [vmem:[#allocation3] sm:$0xff] %v528
  %636 = vst [vmem:[#allocation3 + $0x8] sm:$0xff] %v530
  %637 = vst [vmem:[#allocation3 + $0x10] sm:$0xff] %v617
  %638 = vst [vmem:[#allocation3 + $0x18] sm:$0xff] %v534
  %639 = vst [vmem:[#allocation3 + $0x20] sm:$0xff] %v536
  %640 = vst [vmem:[#allocation3 + $0x28] sm:$0xff] %v622
  %641 = vst [vmem:[#allocation3 + $0x30] sm:$0xff] %v540
  %642 = vst [vmem:[#allocation3 + $0x38] sm:$0xff] %v542
  %643 = vst [vmem:[#allocation3 + $0x40] sm:$0xff] %v627
  %644 = vst [vmem:[#allocation3 + $0x48] sm:$0xff] %v546
  %645 = vst [vmem:[#allocation3 + $0x50] sm:$0xff] %v548
  %646 = vst [vmem:[#allocation3 + $0x58] sm:$0xff] %v632
  %v647 = vld [vmem:[%s6] sm:$0xff]
  %v648 = vld [vmem:[%s6 + $0x8] sm:$0xff]
  %v649 = vld [vmem:[%s6 + $0x10] sm:$0xff]
  %v650 = vld [vmem:[%s6 + $0x18] sm:$0xff]
  %v651 = vld [vmem:[%s6 + $0x20] sm:$0xff]
  %v652 = vld [vmem:[%s6 + $0x28] sm:$0xff]
  %v653 = vld [vmem:[%s6 + $0x30] sm:$0xff]
  %v654 = vld [vmem:[%s6 + $0x38] sm:$0xff]
  %v655 = vld [vmem:[%s6 + $0x40] sm:$0xff]
  %v656 = vld [vmem:[%s6 + $0x48] sm:$0xff]
  %v657 = vld [vmem:[%s6 + $0x50] sm:$0xff]
  %v658 = vld [vmem:[%s6 + $0x58] sm:$0xff]
  %v659 = vld [vmem:[%s6 + $0x60] sm:$0xff]
  %v660 = vld [vmem:[%s6 + $0x68] sm:$0xff]
  %v661 = vld [vmem:[%s6 + $0x70] sm:$0xff]
  %v662 = vld [vmem:[%s6 + $0x78] sm:$0xff]
  %v663 = vld [vmem:[%s6 + $0x80] sm:$0xff]
  %v664 = vld [vmem:[%s6 + $0x88] sm:$0xff]
  %v665 = vld [vmem:[%s6 + $0x90] sm:$0xff]
  %v666 = vld [vmem:[%s6 + $0x98] sm:$0xff]
  %v667 = vld [vmem:[%s6 + $0xa0] sm:$0xff]
  %v668 = vld [vmem:[%s6 + $0xa8] sm:$0xff]
  %v669 = vld [vmem:[%s6 + $0xb0] sm:$0xff]
  %v670 = vld [vmem:[%s6 + $0xb8] sm:$0xff]
  %v671 = vld [vmem:[%s6 + $0xc0] sm:$0xff]
  %v672 = vld [vmem:[%s6 + $0xc8] sm:$0xff]
  %v673 = vld [vmem:[%s6 + $0xd0] sm:$0xff]
  %v674 = vld [vmem:[%s6 + $0xd8] sm:$0xff]
  %v675 = vld [vmem:[%s6 + $0xe0] sm:$0xff]
  %v676 = vld [vmem:[%s6 + $0xe8] sm:$0xff]
  %v677 = vld [vmem:[%s6 + $0xf0] sm:$0xff]
  %v678 = vld [vmem:[%s6 + $0xf8] sm:$0xff]
  %v679 = vld [vmem:[%s6 + $0x100] sm:$0xff]
  %v680 = vld [vmem:[%s6 + $0x108] sm:$0xff]
  %v681 = vld [vmem:[%s6 + $0x110] sm:$0xff]
  %v682 = vld [vmem:[%s6 + $0x118] sm:$0xff]
  %v683 = vld [vmem:[%s6 + $0x120] sm:$0xff]
  %v684 = vld [vmem:[%s6 + $0x128] sm:$0xff]
  %v685 = vld [vmem:[%s6 + $0x130] sm:$0xff]
  %v686 = vld [vmem:[%s6 + $0x138] sm:$0xff]
  %v687 = vld [vmem:[%s6 + $0x140] sm:$0xff]
  %v688 = vld [vmem:[%s6 + $0x148] sm:$0xff]
  %v689 = vld [vmem:[%s6 + $0x150] sm:$0xff]
  %v690 = vld [vmem:[%s6 + $0x158] sm:$0xff]
  %v691 = vld [vmem:[%s6 + $0x160] sm:$0xff]
  %v692 = vld [vmem:[%s6 + $0x168] sm:$0xff]
  %v693 = vld [vmem:[%s6 + $0x170] sm:$0xff]
  %v694 = vld [vmem:[%s6 + $0x178] sm:$0xff]
  %v695 = vld [vmem:[%s6 + $0x180] sm:$0xff]
  %v696 = vld [vmem:[%s6 + $0x188] sm:$0xff]
  %v697 = vld [vmem:[%s6 + $0x190] sm:$0xff]
  %v698 = vld [vmem:[%s6 + $0x198] sm:$0xff]
  %v699 = vld [vmem:[%s6 + $0x1a0] sm:$0xff]
  %v700 = vld [vmem:[%s6 + $0x1a8] sm:$0xff]
  %v701 = vld [vmem:[%s6 + $0x1b0] sm:$0xff]
  %v702 = vld [vmem:[%s6 + $0x1b8] sm:$0xff]
  %v703 = vld [vmem:[%s6 + $0x1c0] sm:$0xff]
  %v704 = vld [vmem:[%s6 + $0x1c8] sm:$0xff]
  %v705 = vld [vmem:[%s6 + $0x1d0] sm:$0xff]
  %v706 = vld [vmem:[%s6 + $0x1d8] sm:$0xff]
  %v707 = vld [vmem:[%s6 + $0x1e0] sm:$0xff]
  %v708 = vld [vmem:[%s6 + $0x1e8] sm:$0xff]
  %v709 = vld [vmem:[%s6 + $0x1f0] sm:$0xff]
  %v710 = vld [vmem:[%s6 + $0x1f8] sm:$0xff]
  %v711 = vld [vmem:[%s6 + $0x200] sm:$0xff]
  %v712 = vld [vmem:[%s6 + $0x208] sm:$0xff]
  %v713 = vld [vmem:[%s6 + $0x210] sm:$0xff]
  %v714 = vld [vmem:[%s6 + $0x218] sm:$0xff]
  %v715 = vld [vmem:[%s6 + $0x220] sm:$0xff]
  %v716 = vld [vmem:[%s6 + $0x228] sm:$0xff]
  %v717 = vld [vmem:[%s6 + $0x230] sm:$0xff]
  %v718 = vld [vmem:[%s6 + $0x238] sm:$0xff]
  %v719 = vld [vmem:[%s6 + $0x240] sm:$0xff]
  %v720 = vld [vmem:[%s6 + $0x248] sm:$0xff]
  %v721 = vld [vmem:[%s6 + $0x250] sm:$0xff]
  %v722 = vld [vmem:[%s6 + $0x258] sm:$0xff]
  %v723 = vld [vmem:[%s6 + $0x260] sm:$0xff]
  %v724 = vld [vmem:[%s6 + $0x268] sm:$0xff]
  %v725 = vld [vmem:[%s6 + $0x270] sm:$0xff]
  %v726 = vld [vmem:[%s6 + $0x278] sm:$0xff]
  %v727 = vld [vmem:[%s6 + $0x280] sm:$0xff]
  %v728 = vld [vmem:[%s6 + $0x288] sm:$0xff]
  %v729 = vld [vmem:[%s6 + $0x290] sm:$0xff]
  %v730 = vld [vmem:[%s6 + $0x298] sm:$0xff]
  %v731 = vld [vmem:[%s6 + $0x2a0] sm:$0xff]
  %v732 = vld [vmem:[%s6 + $0x2a8] sm:$0xff]
  %v733 = vld [vmem:[%s6 + $0x2b0] sm:$0xff]
  %v734 = vld [vmem:[%s6 + $0x2b8] sm:$0xff]
  %v735 = vld [vmem:[%s6 + $0x2c0] sm:$0xff]
  %v736 = vld [vmem:[%s6 + $0x2c8] sm:$0xff]
  %v737 = vld [vmem:[%s6 + $0x2d0] sm:$0xff]
  %v738 = vld [vmem:[%s6 + $0x2d8] sm:$0xff]
  %v739 = vld [vmem:[%s6 + $0x2e0] sm:$0xff]
  %v740 = vld [vmem:[%s6 + $0x2e8] sm:$0xff]
  %v741 = vld [vmem:[%s6 + $0x2f0] sm:$0xff]
  %v742 = vld [vmem:[%s6 + $0x2f8] sm:$0xff]
  %v743 = vld [vmem:[%s7] sm:$0xff]
  %v744 = vld [vmem:[%s7 + $0x8] sm:$0xff]
  %v745 = vld [vmem:[%s8] sm:$0xff]
  %v746 = vld [vmem:[%s8 + $0x8] sm:$0xff]
  %v747 = vld [vmem:[%s8 + $0x10] sm:$0xff]
  %v748 = vld [vmem:[%s8 + $0x18] sm:$0xff]
  %v749 = vld [vmem:[#allocation2] sm:$0xff]
  %v750 = vld [vmem:[#allocation2 + $0x8] sm:$0xff]
  %v751 = vld [vmem:[#allocation2 + $0x10] sm:$0xff]
  %s752 = scalar_lea.vmem [#allocation3], 72
  %v753 = vld [vmem:[%s752] sm:$0xff]
  %v754 = vld [vmem:[%s752 + $0x8] sm:$0xff]
  %v755 = vld [vmem:[%s752 + $0x10] sm:$0xff]
  %756 = vmatprep.subr.mxu0 %v693
  %757 = vmatpush1.msra.mxu0 %v692
  %758 = vmatprep.subr.mxu0 %v690
  %759 = vmatpush1.msra.mxu0 %v689
  %760 = vmatprep.subr.mxu0 %v687
  %761 = vmatpush1.msra.mxu0 %v686
  %762 = vmatprep.subr.mxu0 %v684
  %763 = vmatpush1.msra.mxu0 %v683
  %764 = vmatprep.subr.mxu0 %v681
  %765 = vmatpush1.msra.mxu0 %v680
  %766 = vmatprep.subr.mxu0 %v678
  %767 = vmatpush1.msra.mxu0 %v677
  %768 = vmatprep.subr.mxu0 %v675
  %769 = vmatpush1.msra.mxu0 %v674
  %770 = vmatprep.subr.mxu0 %v672
  %771 = vmatpush1.msra.mxu0 %v671
  %772 = vmatprep.subr.mxu0 %v669
  %773 = vmatpush1.msra.mxu0 %v668
  %774 = vmatprep.subr.mxu0 %v666
  %775 = vmatpush1.msra.mxu0 %v665
  %776 = vmatprep.subr.mxu0 %v663
  %777 = vmatpush1.msra.mxu0 %v662
  %778 = vmatprep.subr.mxu0 %v660
  %779 = vmatpush1.msra.mxu0 %v659
  %780 = vmatprep.subr.mxu0 %v657
  %781 = vmatpush1.msra.mxu0 %v656
  %782 = vmatprep.subr.mxu0 %v654
  %783 = vmatpush1.msra.mxu0 %v653
  %784 = vmatprep.subr.mxu0 %v651
  %785 = vmatpush1.msra.mxu0 %v650
  %786 = vmatprep.subr.mxu0 %v648
  %787 = vmatpush1.msra.mxu0 %v647
  %788 = vmatprep.subr.mxu0 %v741
  %789 = vmatpush2.msra.mxu0 %v740
  %790 = vmatprep.subr.mxu0 %v738
  %791 = vmatpush2.msra.mxu0 %v737
  %792 = vmatprep.subr.mxu0 %v735
  %793 = vmatpush2.msra.mxu0 %v734
  %794 = vmatprep.subr.mxu0 %v732
  %795 = vmatpush2.msra.mxu0 %v731
  %796 = vmatprep.subr.mxu0 %v729
  %797 = vmatpush2.msra.mxu0 %v728
  %798 = vmatprep.subr.mxu0 %v726
  %799 = vmatpush2.msra.mxu0 %v725
  %800 = vmatprep.subr.mxu0 %v723
  %801 = vmatpush2.msra.mxu0 %v722
  %802 = vmatprep.subr.mxu0 %v720
  %803 = vmatpush2.msra.mxu0 %v719
  %804 = vmatprep.subr.mxu0 %v717
  %805 = vmatpush2.msra.mxu0 %v716
  %806 = vmatprep.subr.mxu0 %v714
  %807 = vmatpush2.msra.mxu0 %v713
  %808 = vmatprep.subr.mxu0 %v711
  %809 = vmatpush2.msra.mxu0 %v710
  %810 = vmatprep.subr.mxu0 %v708
  %811 = vmatpush2.msra.mxu0 %v707
  %812 = vmatprep.subr.mxu0 %v705
  %813 = vmatpush2.msra.mxu0 %v704
  %814 = vmatprep.subr.mxu0 %v702
  %815 = vmatpush2.msra.mxu0 %v701
  %816 = vmatprep.subr.mxu0 %v699
  %817 = vmatpush2.msra.mxu0 %v698
  %818 = vmatprep.subr.mxu0 %v696
  %819 = vmatpush2.msra.mxu0 %v695
  %820 = vmatprep.mubr.f32.mxu0 0.0
  %821 = vmatmul.mubr.f32.gmra.mxu0 0.0
  %v822 = vpop.f32.mrf.mxu0
  %v823 = vadd.f32 0.0, %v822
  %v824 = vpop.f32.mrf.mxu0
  %v825 = vadd.f32 0.0, %v824
  %826 = vmatprep.mubr.f32.mxu0 0.0
  %827 = vmatmul.mubr.f32.gmra.mxu0 0.0
  %v828 = vpop.f32.mrf.mxu0
  %v829 = vadd.f32 0.0, %v828
  %v830 = vpop.f32.mrf.mxu0
  %v831 = vadd.f32 0.0, %v830
  %832 = vdwg.mxu0
  %833 = vmatprep.subr.mxu0 0.0
  %834 = vmatpush1.msra.mxu0 %v694
  %835 = vmatprep.subr.mxu0 0.0
  %836 = vmatpush1.msra.mxu0 %v691
  %837 = vmatprep.subr.mxu0 0.0
  %838 = vmatpush1.msra.mxu0 %v688
  %839 = vmatprep.subr.mxu0 0.0
  %840 = vmatpush1.msra.mxu0 %v685
  %841 = vmatprep.subr.mxu0 0.0
  %842 = vmatpush1.msra.mxu0 %v682
  %843 = vmatprep.subr.mxu0 0.0
  %844 = vmatpush1.msra.mxu0 %v679
  %845 = vmatprep.subr.mxu0 0.0
  %846 = vmatpush1.msra.mxu0 %v676
  %847 = vmatprep.subr.mxu0 0.0
  %848 = vmatpush1.msra.mxu0 %v673
  %849 = vmatprep.subr.mxu0 0.0
  %850 = vmatpush1.msra.mxu0 %v670
  %851 = vmatprep.subr.mxu0 0.0
  %852 = vmatpush1.msra.mxu0 %v667
  %853 = vmatprep.subr.mxu0 0.0
  %854 = vmatpush1.msra.mxu0 %v664
  %855 = vmatprep.subr.mxu0 0.0
  %856 = vmatpush1.msra.mxu0 %v661
  %857 = vmatprep.subr.mxu0 0.0
  %858 = vmatpush1.msra.mxu0 %v658
  %859 = vmatprep.subr.mxu0 0.0
  %860 = vmatpush1.msra.mxu0 %v655
  %861 = vmatprep.subr.mxu0 0.0
  %862 = vmatpush1.msra.mxu0 %v652
  %863 = vmatprep.subr.mxu0 0.0
  %864 = vmatpush1.msra.mxu0 %v649
  %865 = vmatprep.subr.mxu0 0.0
  %866 = vmatpush2.msra.mxu0 %v742
  %867 = vmatprep.subr.mxu0 0.0
  %868 = vmatpush2.msra.mxu0 %v739
  %869 = vmatprep.subr.mxu0 0.0
  %870 = vmatpush2.msra.mxu0 %v736
  %871 = vmatprep.subr.mxu0 0.0
  %872 = vmatpush2.msra.mxu0 %v733
  %873 = vmatprep.subr.mxu0 0.0
  %874 = vmatpush2.msra.mxu0 %v730
  %875 = vmatprep.subr.mxu0 0.0
  %876 = vmatpush2.msra.mxu0 %v727
  %877 = vmatprep.subr.mxu0 0.0
  %878 = vmatpush2.msra.mxu0 %v724
  %879 = vmatprep.subr.mxu0 0.0
  %880 = vmatpush2.msra.mxu0 %v721
  %881 = vmatprep.subr.mxu0 0.0
  %882 = vmatpush2.msra.mxu0 %v718
  %883 = vmatprep.subr.mxu0 0.0
  %884 = vmatpush2.msra.mxu0 %v715
  %885 = vmatprep.subr.mxu0 0.0
  %886 = vmatpush2.msra.mxu0 %v712
  %887 = vmatprep.subr.mxu0 0.0
  %888 = vmatpush2.msra.mxu0 %v709
  %889 = vmatprep.subr.mxu0 0.0
  %890 = vmatpush2.msra.mxu0 %v706
  %891 = vmatprep.subr.mxu0 0.0
  %892 = vmatpush2.msra.mxu0 %v703
  %893 = vmatprep.subr.mxu0 0.0
  %894 = vmatpush2.msra.mxu0 %v700
  %895 = vmatprep.subr.mxu0 0.0
  %896 = vmatpush2.msra.mxu0 %v697
  %897 = vmatprep.mubr.f32.mxu0 0.0
  %898 = vmatmul.mubr.f32.gmra.mxu0 0.0
  %v899 = vpop.f32.mrf.mxu0
  %v900 = vadd.f32 0.0, %v899
  %v901 = vpop.f32.mrf.mxu0
  %902 = vmatprep.mubr.f32.mxu0 0.0
  %903 = vmatmul.mubr.f32.gmra.mxu0 0.0
  %v904 = vpop.f32.mrf.mxu0
  %v905 = vadd.f32 0.0, %v904
  %v906 = vpop.f32.mrf.mxu0
  %907 = vdwg.mxu0
  %v908 = vadd.f32 %v749, %v823
  %v909 = vadd.f32 %v753, %v829
  %v910 = vxor.u32 %v908, 2147483648
  %v911 = vxor.u32 %v909, 2147483648
  %v912 = vmul.f32 %v910, 1.442695
  %v913 = vpow.pop %v912
  %v914 = vmul.f32 %v911, 1.442695
  %v915 = vpow.pop %v914
  %v916 = vadd.f32 %v913, 1.0
  %v917 = vadd.f32 %v915, 1.0
  %v918 = vrcp.pop %v916
  %v919 = vmul.f32 1.0, %v918
  %v920 = vrcp.pop %v917
  %v921 = vmul.f32 1.0, %v920
  %v922 = vadd.f32 %v750, %v825
  %v923 = vadd.f32 %v754, %v831
  %v924 = vxor.u32 %v922, 2147483648
  %v925 = vxor.u32 %v923, 2147483648
  %v926 = vmul.f32 %v924, 1.442695
  %v927 = vpow.pop %v926
  %v928 = vmul.f32 %v925, 1.442695
  %v929 = vpow.pop %v928
  %v930 = vadd.f32 %v927, 1.0
  %v931 = vadd.f32 %v929, 1.0
  %v932 = vrcp.pop %v930
  %v933 = vmul.f32 1.0, %v932
  %v934 = vrcp.pop %v931
  %v935 = vmul.f32 1.0, %v934
  %v936 = vadd.f32 %v900, %v743
  %v937 = vadd.f32 %v905, %v744
  %v938 = vmul.f32 %v919, %v936
  %v939 = vmul.f32 %v921, %v937
  %v940 = vadd.f32 %v751, %v938
  %v941 = vadd.f32 %v755, %v939
  %v942 = vtanh.pop %v940
  %v943 = vtanh.pop %v941
  %v944 = vsub.f32 1.0, %v933
  %v945 = vsub.f32 1.0, %v935
  %v946 = vmul.f32 %v944, %v942
  %v947 = vmul.f32 %v945, %v943
  %v948 = vmul.f32 %v933, 0.0
  %v949 = vmul.f32 %v935, 0.0
  %v950 = vadd.f32 %v946, %v948
  %v951 = vadd.f32 %v947, %v949
  %952 = vst [vmem:[#allocation4] sm:$0xff] %v950
  %s953 = scalar_lea.vmem [#allocation5], 24
  %954 = vst [vmem:[%s953] sm:$0xff] %v951
  %v955 = vmul.f32 %v950, %v745
  %v956 = vmul.f32 %v950, %v746
  %v957 = vmul.f32 %v951, %v747
  %v958 = vmul.f32 %v951, %v748
  %s959 = scalar_lea.vmem [#allocation2], 24
  %v960 = vld [vmem:[%s959] sm:$0xff]
  %v961 = vld [vmem:[%s959 + $0x8] sm:$0xff]
  %v962 = vld [vmem:[%s959 + $0x10] sm:$0xff]
  %s963 = scalar_lea.vmem [#allocation3], 48
  %v964 = vld [vmem:[%s963] sm:$0xff]
  %v965 = vld [vmem:[%s963 + $0x8] sm:$0xff]
  %v966 = vld [vmem:[%s963 + $0x10] sm:$0xff]
  %967 = vmatprep.subr.mxu0 %v693
  %968 = vmatpush1.msra.mxu0 %v692
  %969 = vmatprep.subr.mxu0 %v690
  %970 = vmatpush1.msra.mxu0 %v689
  %971 = vmatprep.subr.mxu0 %v687
  %972 = vmatpush1.msra.mxu0 %v686
  %973 = vmatprep.subr.mxu0 %v684
  %974 = vmatpush1.msra.mxu0 %v683
  %975 = vmatprep.subr.mxu0 %v681
  %976 = vmatpush1.msra.mxu0 %v680
  %977 = vmatprep.subr.mxu0 %v678
  %978 = vmatpush1.msra.mxu0 %v677
  %979 = vmatprep.subr.mxu0 %v675
  %980 = vmatpush1.msra.mxu0 %v674
  %981 = vmatprep.subr.mxu0 %v672
  %982 = vmatpush1.msra.mxu0 %v671
  %983 = vmatprep.subr.mxu0 %v669
  %984 = vmatpush1.msra.mxu0 %v668
  %985 = vmatprep.subr.mxu0 %v666
  %986 = vmatpush1.msra.mxu0 %v665
  %987 = vmatprep.subr.mxu0 %v663
  %988 = vmatpush1.msra.mxu0 %v662
  %989 = vmatprep.subr.mxu0 %v660
  %990 = vmatpush1.msra.mxu0 %v659
  %991 = vmatprep.subr.mxu0 %v657
  %992 = vmatpush1.msra.mxu0 %v656
  %993 = vmatprep.subr.mxu0 %v654
  %994 = vmatpush1.msra.mxu0 %v653
  %995 = vmatprep.subr.mxu0 %v651
  %996 = vmatpush1.msra.mxu0 %v650
  %997 = vmatprep.subr.mxu0 %v648
  %998 = vmatpush1.msra.mxu0 %v647
  %999 = vmatprep.subr.mxu0 %v741
  %1000 = vmatpush2.msra.mxu0 %v740
  %1001 = vmatprep.subr.mxu0 %v738
  %1002 = vmatpush2.msra.mxu0 %v737
  %1003 = vmatprep.subr.mxu0 %v735
  %1004 = vmatpush2.msra.mxu0 %v734
  %1005 = vmatprep.subr.mxu0 %v732
  %1006 = vmatpush2.msra.mxu0 %v731
  %1007 = vmatprep.subr.mxu0 %v729
  %1008 = vmatpush2.msra.mxu0 %v728
  %1009 = vmatprep.subr.mxu0 %v726
  %1010 = vmatpush2.msra.mxu0 %v725
  %1011 = vmatprep.subr.mxu0 %v723
  %1012 = vmatpush2.msra.mxu0 %v722
  %1013 = vmatprep.subr.mxu0 %v720
  %1014 = vmatpush2.msra.mxu0 %v719
  %1015 = vmatprep.subr.mxu0 %v717
  %1016 = vmatpush2.msra.mxu0 %v716
  %1017 = vmatprep.subr.mxu0 %v714
  %1018 = vmatpush2.msra.mxu0 %v713
  %1019 = vmatprep.subr.mxu0 %v711
  %1020 = vmatpush2.msra.mxu0 %v710
  %1021 = vmatprep.subr.mxu0 %v708
  %1022 = vmatpush2.msra.mxu0 %v707
  %1023 = vmatprep.subr.mxu0 %v705
  %1024 = vmatpush2.msra.mxu0 %v704
  %1025 = vmatprep.subr.mxu0 %v702
  %1026 = vmatpush2.msra.mxu0 %v701
  %1027 = vmatprep.subr.mxu0 %v699
  %1028 = vmatpush2.msra.mxu0 %v698
  %1029 = vmatprep.subr.mxu0 %v696
  %1030 = vmatpush2.msra.mxu0 %v695
  %1031 = vmatprep.mubr.f32.mxu0 %v956
  %1032 = vmatmul.mubr.f32.gmra.mxu0 %v955
  %v1033 = vpop.f32.mrf.mxu0
  %v1034 = vadd.f32 0.0, %v1033
  %v1035 = vpop.f32.mrf.mxu0
  %v1036 = vadd.f32 0.0, %v1035
  %1037 = vmatprep.mubr.f32.mxu0 %v958
  %1038 = vmatmul.mubr.f32.gmra.mxu0 %v957
  %v1039 = vpop.f32.mrf.mxu0
  %v1040 = vadd.f32 0.0, %v1039
  %v1041 = vpop.f32.mrf.mxu0
  %v1042 = vadd.f32 0.0, %v1041
  %1043 = vdwg.mxu0
  %1044 = vmatprep.subr.mxu0 0.0
  %1045 = vmatpush1.msra.mxu0 %v694
  %1046 = vmatprep.subr.mxu0 0.0
  %1047 = vmatpush1.msra.mxu0 %v691
  %1048 = vmatprep.subr.mxu0 0.0
  %1049 = vmatpush1.msra.mxu0 %v688
  %1050 = vmatprep.subr.mxu0 0.0
  %1051 = vmatpush1.msra.mxu0 %v685
  %1052 = vmatprep.subr.mxu0 0.0
  %1053 = vmatpush1.msra.mxu0 %v682
  %1054 = vmatprep.subr.mxu0 0.0
  %1055 = vmatpush1.msra.mxu0 %v679
  %1056 = vmatprep.subr.mxu0 0.0
  %1057 = vmatpush1.msra.mxu0 %v676
  %1058 = vmatprep.subr.mxu0 0.0
  %1059 = vmatpush1.msra.mxu0 %v673
  %1060 = vmatprep.subr.mxu0 0.0
  %1061 = vmatpush1.msra.mxu0 %v670
  %1062 = vmatprep.subr.mxu0 0.0
  %1063 = vmatpush1.msra.mxu0 %v667
  %1064 = vmatprep.subr.mxu0 0.0
  %1065 = vmatpush1.msra.mxu0 %v664
  %1066 = vmatprep.subr.mxu0 0.0
  %1067 = vmatpush1.msra.mxu0 %v661
  %1068 = vmatprep.subr.mxu0 0.0
  %1069 = vmatpush1.msra.mxu0 %v658
  %1070 = vmatprep.subr.mxu0 0.0
  %1071 = vmatpush1.msra.mxu0 %v655
  %1072 = vmatprep.subr.mxu0 0.0
  %1073 = vmatpush1.msra.mxu0 %v652
  %1074 = vmatprep.subr.mxu0 0.0
  %1075 = vmatpush1.msra.mxu0 %v649
  %1076 = vmatprep.subr.mxu0 0.0
  %1077 = vmatpush2.msra.mxu0 %v742
  %1078 = vmatprep.subr.mxu0 0.0
  %1079 = vmatpush2.msra.mxu0 %v739
  %1080 = vmatprep.subr.mxu0 0.0
  %1081 = vmatpush2.msra.mxu0 %v736
  %1082 = vmatprep.subr.mxu0 0.0
  %1083 = vmatpush2.msra.mxu0 %v733
  %1084 = vmatprep.subr.mxu0 0.0
  %1085 = vmatpush2.msra.mxu0 %v730
  %1086 = vmatprep.subr.mxu0 0.0
  %1087 = vmatpush2.msra.mxu0 %v727
  %1088 = vmatprep.subr.mxu0 0.0
  %1089 = vmatpush2.msra.mxu0 %v724
  %1090 = vmatprep.subr.mxu0 0.0
  %1091 = vmatpush2.msra.mxu0 %v721
  %1092 = vmatprep.subr.mxu0 0.0
  %1093 = vmatpush2.msra.mxu0 %v718
  %1094 = vmatprep.subr.mxu0 0.0
  %1095 = vmatpush2.msra.mxu0 %v715
  %1096 = vmatprep.subr.mxu0 0.0
  %1097 = vmatpush2.msra.mxu0 %v712
  %1098 = vmatprep.subr.mxu0 0.0
  %1099 = vmatpush2.msra.mxu0 %v709
  %1100 = vmatprep.subr.mxu0 0.0
  %1101 = vmatpush2.msra.mxu0 %v706
  %1102 = vmatprep.subr.mxu0 0.0
  %1103 = vmatpush2.msra.mxu0 %v703
  %1104 = vmatprep.subr.mxu0 0.0
  %1105 = vmatpush2.msra.mxu0 %v700
  %1106 = vmatprep.subr.mxu0 0.0
  %1107 = vmatpush2.msra.mxu0 %v697
  %1108 = vmatprep.mubr.f32.mxu0 %v956
  %1109 = vmatmul.mubr.f32.gmra.mxu0 %v955
  %v1110 = vpop.f32.mrf.mxu0
  %v1111 = vadd.f32 0.0, %v1110
  %v1112 = vpop.f32.mrf.mxu0
  %1113 = vmatprep.mubr.f32.mxu0 %v958
  %1114 = vmatmul.mubr.f32.gmra.mxu0 %v957
  %v1115 = vpop.f32.mrf.mxu0
  %v1116 = vadd.f32 0.0, %v1115
  %v1117 = vpop.f32.mrf.mxu0
  %1118 = vdwg.mxu0
  %v1119 = vadd.f32 %v960, %v1034
  %v1120 = vadd.f32 %v964, %v1040
  %v1121 = vxor.u32 %v1119, 2147483648
  %v1122 = vxor.u32 %v1120, 2147483648
  %v1123 = vmul.f32 %v1121, 1.442695
  %v1124 = vpow.pop %v1123
  %v1125 = vmul.f32 %v1122, 1.442695
  %v1126 = vpow.pop %v1125
  %v1127 = vadd.f32 %v1124, 1.0
  %v1128 = vadd.f32 %v1126, 1.0
  %v1129 = vrcp.pop %v1127
  %v1130 = vmul.f32 1.0, %v1129
  %v1131 = vrcp.pop %v1128
  %v1132 = vmul.f32 1.0, %v1131
  %v1133 = vadd.f32 %v961, %v1036
  %v1134 = vadd.f32 %v965, %v1042
  %v1135 = vxor.u32 %v1133, 2147483648
  %v1136 = vxor.u32 %v1134, 2147483648
  %v1137 = vmul.f32 %v1135, 1.442695
  %v1138 = vpow.pop %v1137
  %v1139 = vmul.f32 %v1136, 1.442695
  %v1140 = vpow.pop %v1139
  %v1141 = vadd.f32 %v1138, 1.0
  %v1142 = vadd.f32 %v1140, 1.0
  %v1143 = vrcp.pop %v1141
  %v1144 = vmul.f32 1.0, %v1143
  %v1145 = vrcp.pop %v1142
  %v1146 = vmul.f32 1.0, %v1145
  %v1147 = vadd.f32 %v1111, %v743
  %v1148 = vadd.f32 %v1116, %v744
  %v1149 = vmul.f32 %v1130, %v1147
  %v1150 = vmul.f32 %v1132, %v1148
  %v1151 = vadd.f32 %v962, %v1149
  %v1152 = vadd.f32 %v966, %v1150
  %v1153 = vtanh.pop %v1151
  %v1154 = vtanh.pop %v1152
  %v1155 = vsub.f32 1.0, %v1144
  %v1156 = vsub.f32 1.0, %v1146
  %v1157 = vmul.f32 %v1155, %v1153
  %v1158 = vmul.f32 %v1156, %v1154
  %v1159 = vadd.f32 %v955, %v956
  %v1160 = vadd.f32 %v957, %v958
  %v1161 = vmul.f32 %v1144, %v1159
  %v1162 = vmul.f32 %v1146, %v1160
  %v1163 = vadd.f32 %v1157, %v1161
  %v1164 = vadd.f32 %v1158, %v1162
  %s1165 = scalar_lea.vmem [#allocation4], 8
  %1166 = vst [vmem:[%s1165] sm:$0xff] %v1163
  %s1167 = scalar_lea.vmem [#allocation5], 16
  %1168 = vst [vmem:[%s1167] sm:$0xff] %v1164
  %v1169 = vmul.f32 %v1163, %v745
  %v1170 = vmul.f32 %v1163, %v746
  %v1171 = vmul.f32 %v1164, %v747
  %v1172 = vmul.f32 %v1164, %v748
  %s1173 = scalar_lea.vmem [#allocation2], 48
  %v1174 = vld [vmem:[%s1173] sm:$0xff]
  %v1175 = vld [vmem:[%s1173 + $0x8] sm:$0xff]
  %v1176 = vld [vmem:[%s1173 + $0x10] sm:$0xff]
  %s1177 = scalar_lea.vmem [#allocation3], 24
  %v1178 = vld [vmem:[%s1177] sm:$0xff]
  %v1179 = vld [vmem:[%s1177 + $0x8] sm:$0xff]
  %v1180 = vld [vmem:[%s1177 + $0x10] sm:$0xff]
  %1181 = vmatprep.subr.mxu0 %v693
  %1182 = vmatpush1.msra.mxu0 %v692
  %1183 = vmatprep.subr.mxu0 %v690
  %1184 = vmatpush1.msra.mxu0 %v689
  %1185 = vmatprep.subr.mxu0 %v687
  %1186 = vmatpush1.msra.mxu0 %v686
  %1187 = vmatprep.subr.mxu0 %v684
  %1188 = vmatpush1.msra.mxu0 %v683
  %1189 = vmatprep.subr.mxu0 %v681
  %1190 = vmatpush1.msra.mxu0 %v680
  %1191 = vmatprep.subr.mxu0 %v678
  %1192 = vmatpush1.msra.mxu0 %v677
  %1193 = vmatprep.subr.mxu0 %v675
  %1194 = vmatpush1.msra.mxu0 %v674
  %1195 = vmatprep.subr.mxu0 %v672
  %1196 = vmatpush1.msra.mxu0 %v671
  %1197 = vmatprep.subr.mxu0 %v669
  %1198 = vmatpush1.msra.mxu0 %v668
  %1199 = vmatprep.subr.mxu0 %v666
  %1200 = vmatpush1.msra.mxu0 %v665
  %1201 = vmatprep.subr.mxu0 %v663
  %1202 = vmatpush1.msra.mxu0 %v662
  %1203 = vmatprep.subr.mxu0 %v660
  %1204 = vmatpush1.msra.mxu0 %v659
  %1205 = vmatprep.subr.mxu0 %v657
  %1206 = vmatpush1.msra.mxu0 %v656
  %1207 = vmatprep.subr.mxu0 %v654
  %1208 = vmatpush1.msra.mxu0 %v653
  %1209 = vmatprep.subr.mxu0 %v651
  %1210 = vmatpush1.msra.mxu0 %v650
  %1211 = vmatprep.subr.mxu0 %v648
  %1212 = vmatpush1.msra.mxu0 %v647
  %1213 = vmatprep.subr.mxu0 %v741
  %1214 = vmatpush2.msra.mxu0 %v740
  %1215 = vmatprep.subr.mxu0 %v738
  %1216 = vmatpush2.msra.mxu0 %v737
  %1217 = vmatprep.subr.mxu0 %v735
  %1218 = vmatpush2.msra.mxu0 %v734
  %1219 = vmatprep.subr.mxu0 %v732
  %1220 = vmatpush2.msra.mxu0 %v731
  %1221 = vmatprep.subr.mxu0 %v729
  %1222 = vmatpush2.msra.mxu0 %v728
  %1223 = vmatprep.subr.mxu0 %v726
  %1224 = vmatpush2.msra.mxu0 %v725
  %1225 = vmatprep.subr.mxu0 %v723
  %1226 = vmatpush2.msra.mxu0 %v722
  %1227 = vmatprep.subr.mxu0 %v720
  %1228 = vmatpush2.msra.mxu0 %v719
  %1229 = vmatprep.subr.mxu0 %v717
  %1230 = vmatpush2.msra.mxu0 %v716
  %1231 = vmatprep.subr.mxu0 %v714
  %1232 = vmatpush2.msra.mxu0 %v713
  %1233 = vmatprep.subr.mxu0 %v711
  %1234 = vmatpush2.msra.mxu0 %v710
  %1235 = vmatprep.subr.mxu0 %v708
  %1236 = vmatpush2.msra.mxu0 %v707
  %1237 = vmatprep.subr.mxu0 %v705
  %1238 = vmatpush2.msra.mxu0 %v704
  %1239 = vmatprep.subr.mxu0 %v702
  %1240 = vmatpush2.msra.mxu0 %v701
  %1241 = vmatprep.subr.mxu0 %v699
  %1242 = vmatpush2.msra.mxu0 %v698
  %1243 = vmatprep.subr.mxu0 %v696
  %1244 = vmatpush2.msra.mxu0 %v695
  %1245 = vmatprep.mubr.f32.mxu0 %v1170
  %1246 = vmatmul.mubr.f32.gmra.mxu0 %v1169
  %v1247 = vpop.f32.mrf.mxu0
  %v1248 = vadd.f32 0.0, %v1247
  %v1249 = vpop.f32.mrf.mxu0
  %v1250 = vadd.f32 0.0, %v1249
  %1251 = vmatprep.mubr.f32.mxu0 %v1172
  %1252 = vmatmul.mubr.f32.gmra.mxu0 %v1171
  %v1253 = vpop.f32.mrf.mxu0
  %v1254 = vadd.f32 0.0, %v1253
  %v1255 = vpop.f32.mrf.mxu0
  %v1256 = vadd.f32 0.0, %v1255
  %1257 = vdwg.mxu0
  %1258 = vmatprep.subr.mxu0 0.0
  %1259 = vmatpush1.msra.mxu0 %v694
  %1260 = vmatprep.subr.mxu0 0.0
  %1261 = vmatpush1.msra.mxu0 %v691
  %1262 = vmatprep.subr.mxu0 0.0
  %1263 = vmatpush1.msra.mxu0 %v688
  %1264 = vmatprep.subr.mxu0 0.0
  %1265 = vmatpush1.msra.mxu0 %v685
  %1266 = vmatprep.subr.mxu0 0.0
  %1267 = vmatpush1.msra.mxu0 %v682
  %1268 = vmatprep.subr.mxu0 0.0
  %1269 = vmatpush1.msra.mxu0 %v679
  %1270 = vmatprep.subr.mxu0 0.0
  %1271 = vmatpush1.msra.mxu0 %v676
  %1272 = vmatprep.subr.mxu0 0.0
  %1273 = vmatpush1.msra.mxu0 %v673
  %1274 = vmatprep.subr.mxu0 0.0
  %1275 = vmatpush1.msra.mxu0 %v670
  %1276 = vmatprep.subr.mxu0 0.0
  %1277 = vmatpush1.msra.mxu0 %v667
  %1278 = vmatprep.subr.mxu0 0.0
  %1279 = vmatpush1.msra.mxu0 %v664
  %1280 = vmatprep.subr.mxu0 0.0
  %1281 = vmatpush1.msra.mxu0 %v661
  %1282 = vmatprep.subr.mxu0 0.0
  %1283 = vmatpush1.msra.mxu0 %v658
  %1284 = vmatprep.subr.mxu0 0.0
  %1285 = vmatpush1.msra.mxu0 %v655
  %1286 = vmatprep.subr.mxu0 0.0
  %1287 = vmatpush1.msra.mxu0 %v652
  %1288 = vmatprep.subr.mxu0 0.0
  %1289 = vmatpush1.msra.mxu0 %v649
  %1290 = vmatprep.subr.mxu0 0.0
  %1291 = vmatpush2.msra.mxu0 %v742
  %1292 = vmatprep.subr.mxu0 0.0
  %1293 = vmatpush2.msra.mxu0 %v739
  %1294 = vmatprep.subr.mxu0 0.0
  %1295 = vmatpush2.msra.mxu0 %v736
  %1296 = vmatprep.subr.mxu0 0.0
  %1297 = vmatpush2.msra.mxu0 %v733
  %1298 = vmatprep.subr.mxu0 0.0
  %1299 = vmatpush2.msra.mxu0 %v730
  %1300 = vmatprep.subr.mxu0 0.0
  %1301 = vmatpush2.msra.mxu0 %v727
  %1302 = vmatprep.subr.mxu0 0.0
  %1303 = vmatpush2.msra.mxu0 %v724
  %1304 = vmatprep.subr.mxu0 0.0
  %1305 = vmatpush2.msra.mxu0 %v721
  %1306 = vmatprep.subr.mxu0 0.0
  %1307 = vmatpush2.msra.mxu0 %v718
  %1308 = vmatprep.subr.mxu0 0.0
  %1309 = vmatpush2.msra.mxu0 %v715
  %1310 = vmatprep.subr.mxu0 0.0
  %1311 = vmatpush2.msra.mxu0 %v712
  %1312 = vmatprep.subr.mxu0 0.0
  %1313 = vmatpush2.msra.mxu0 %v709
  %1314 = vmatprep.subr.mxu0 0.0
  %1315 = vmatpush2.msra.mxu0 %v706
  %1316 = vmatprep.subr.mxu0 0.0
  %1317 = vmatpush2.msra.mxu0 %v703
  %1318 = vmatprep.subr.mxu0 0.0
  %1319 = vmatpush2.msra.mxu0 %v700
  %1320 = vmatprep.subr.mxu0 0.0
  %1321 = vmatpush2.msra.mxu0 %v697
  %1322 = vmatprep.mubr.f32.mxu0 %v1170
  %1323 = vmatmul.mubr.f32.gmra.mxu0 %v1169
  %v1324 = vpop.f32.mrf.mxu0
  %v1325 = vadd.f32 0.0, %v1324
  %v1326 = vpop.f32.mrf.mxu0
  %1327 = vmatprep.mubr.f32.mxu0 %v1172
  %1328 = vmatmul.mubr.f32.gmra.mxu0 %v1171
  %v1329 = vpop.f32.mrf.mxu0
  %v1330 = vadd.f32 0.0, %v1329
  %v1331 = vpop.f32.mrf.mxu0
  %1332 = vdwg.mxu0
  %v1333 = vadd.f32 %v1174, %v1248
  %v1334 = vadd.f32 %v1178, %v1254
  %v1335 = vxor.u32 %v1333, 2147483648
  %v1336 = vxor.u32 %v1334, 2147483648
  %v1337 = vmul.f32 %v1335, 1.442695
  %v1338 = vpow.pop %v1337
  %v1339 = vmul.f32 %v1336, 1.442695
  %v1340 = vpow.pop %v1339
  %v1341 = vadd.f32 %v1338, 1.0
  %v1342 = vadd.f32 %v1340, 1.0
  %v1343 = vrcp.pop %v1341
  %v1344 = vmul.f32 1.0, %v1343
  %v1345 = vrcp.pop %v1342
  %v1346 = vmul.f32 1.0, %v1345
  %v1347 = vadd.f32 %v1175, %v1250
  %v1348 = vadd.f32 %v1179, %v1256
  %v1349 = vxor.u32 %v1347, 2147483648
  %v1350 = vxor.u32 %v1348, 2147483648
  %v1351 = vmul.f32 %v1349, 1.442695
  %v1352 = vpow.pop %v1351
  %v1353 = vmul.f32 %v1350, 1.442695
  %v1354 = vpow.pop %v1353
  %v1355 = vadd.f32 %v1352, 1.0
  %v1356 = vadd.f32 %v1354, 1.0
  %v1357 = vrcp.pop %v1355
  %v1358 = vmul.f32 1.0, %v1357
  %v1359 = vrcp.pop %v1356
  %v1360 = vmul.f32 1.0, %v1359
  %v1361 = vadd.f32 %v1325, %v743
  %v1362 = vadd.f32 %v1330, %v744
  %v1363 = vmul.f32 %v1344, %v1361
  %v1364 = vmul.f32 %v1346, %v1362
  %v1365 = vadd.f32 %v1176, %v1363
  %v1366 = vadd.f32 %v1180, %v1364
  %v1367 = vtanh.pop %v1365
  %v1368 = vtanh.pop %v1366
  %v1369 = vsub.f32 1.0, %v1358
  %v1370 = vsub.f32 1.0, %v1360
  %v1371 = vmul.f32 %v1369, %v1367
  %v1372 = vmul.f32 %v1370, %v1368
  %v1373 = vadd.f32 %v1169, %v1170
  %v1374 = vadd.f32 %v1171, %v1172
  %v1375 = vmul.f32 %v1358, %v1373
  %v1376 = vmul.f32 %v1360, %v1374
  %v1377 = vadd.f32 %v1371, %v1375
  %v1378 = vadd.f32 %v1372, %v1376
  %s1379 = scalar_lea.vmem [#allocation4], 16
  %1380 = vst [vmem:[%s1379] sm:$0xff] %v1377
  %s1381 = scalar_lea.vmem [#allocation5], 8
  %1382 = vst [vmem:[%s1381] sm:$0xff] %v1378
  %v1383 = vmul.f32 %v1377, %v745
  %v1384 = vmul.f32 %v1377, %v746
  %v1385 = vmul.f32 %v1378, %v747
  %v1386 = vmul.f32 %v1378, %v748
  %s1387 = scalar_lea.vmem [#allocation2], 72
  %v1388 = vld [vmem:[%s1387] sm:$0xff]
  %v1389 = vld [vmem:[%s1387 + $0x8] sm:$0xff]
  %v1390 = vld [vmem:[%s1387 + $0x10] sm:$0xff]
  %v1391 = vld [vmem:[#allocation3] sm:$0xff]
  %v1392 = vld [vmem:[#allocation3 + $0x8] sm:$0xff]
  %v1393 = vld [vmem:[#allocation3 + $0x10] sm:$0xff]
  %1394 = vmatprep.subr.mxu0 %v693
  %1395 = vmatpush1.msra.mxu0 %v692
  %1396 = vmatprep.subr.mxu0 %v690
  %1397 = vmatpush1.msra.mxu0 %v689
  %1398 = vmatprep.subr.mxu0 %v687
  %1399 = vmatpush1.msra.mxu0 %v686
  %1400 = vmatprep.subr.mxu0 %v684
  %1401 = vmatpush1.msra.mxu0 %v683
  %1402 = vmatprep.subr.mxu0 %v681
  %1403 = vmatpush1.msra.mxu0 %v680
  %1404 = vmatprep.subr.mxu0 %v678
  %1405 = vmatpush1.msra.mxu0 %v677
  %1406 = vmatprep.subr.mxu0 %v675
  %1407 = vmatpush1.msra.mxu0 %v674
  %1408 = vmatprep.subr.mxu0 %v672
  %1409 = vmatpush1.msra.mxu0 %v671
  %1410 = vmatprep.subr.mxu0 %v669
  %1411 = vmatpush1.msra.mxu0 %v668
  %1412 = vmatprep.subr.mxu0 %v666
  %1413 = vmatpush1.msra.mxu0 %v665
  %1414 = vmatprep.subr.mxu0 %v663
  %1415 = vmatpush1.msra.mxu0 %v662
  %1416 = vmatprep.subr.mxu0 %v660
  %1417 = vmatpush1.msra.mxu0 %v659
  %1418 = vmatprep.subr.mxu0 %v657
  %1419 = vmatpush1.msra.mxu0 %v656
  %1420 = vmatprep.subr.mxu0 %v654
  %1421 = vmatpush1.msra.mxu0 %v653
  %1422 = vmatprep.subr.mxu0 %v651
  %1423 = vmatpush1.msra.mxu0 %v650
  %1424 = vmatprep.subr.mxu0 %v648
  %1425 = vmatpush1.msra.mxu0 %v647
  %1426 = vmatprep.subr.mxu0 %v741
  %1427 = vmatpush2.msra.mxu0 %v740
  %1428 = vmatprep.subr.mxu0 %v738
  %1429 = vmatpush2.msra.mxu0 %v737
  %1430 = vmatprep.subr.mxu0 %v735
  %1431 = vmatpush2.msra.mxu0 %v734
  %1432 = vmatprep.subr.mxu0 %v732
  %1433 = vmatpush2.msra.mxu0 %v731
  %1434 = vmatprep.subr.mxu0 %v729
  %1435 = vmatpush2.msra.mxu0 %v728
  %1436 = vmatprep.subr.mxu0 %v726
  %1437 = vmatpush2.msra.mxu0 %v725
  %1438 = vmatprep.subr.mxu0 %v723
  %1439 = vmatpush2.msra.mxu0 %v722
  %1440 = vmatprep.subr.mxu0 %v720
  %1441 = vmatpush2.msra.mxu0 %v719
  %1442 = vmatprep.subr.mxu0 %v717
  %1443 = vmatpush2.msra.mxu0 %v716
  %1444 = vmatprep.subr.mxu0 %v714
  %1445 = vmatpush2.msra.mxu0 %v713
  %1446 = vmatprep.subr.mxu0 %v711
  %1447 = vmatpush2.msra.mxu0 %v710
  %1448 = vmatprep.subr.mxu0 %v708
  %1449 = vmatpush2.msra.mxu0 %v707
  %1450 = vmatprep.subr.mxu0 %v705
  %1451 = vmatpush2.msra.mxu0 %v704
  %1452 = vmatprep.subr.mxu0 %v702
  %1453 = vmatpush2.msra.mxu0 %v701
  %1454 = vmatprep.subr.mxu0 %v699
  %1455 = vmatpush2.msra.mxu0 %v698
  %1456 = vmatprep.subr.mxu0 %v696
  %1457 = vmatpush2.msra.mxu0 %v695
  %1458 = vmatprep.mubr.f32.mxu0 %v1384
  %1459 = vmatmul.mubr.f32.gmra.mxu0 %v1383
  %v1460 = vpop.f32.mrf.mxu0
  %v1461 = vadd.f32 0.0, %v1460
  %v1462 = vpop.f32.mrf.mxu0
  %v1463 = vadd.f32 0.0, %v1462
  %1464 = vmatprep.mubr.f32.mxu0 %v1386
  %1465 = vmatmul.mubr.f32.gmra.mxu0 %v1385
  %v1466 = vpop.f32.mrf.mxu0
  %v1467 = vadd.f32 0.0, %v1466
  %v1468 = vpop.f32.mrf.mxu0
  %v1469 = vadd.f32 0.0, %v1468
  %1470 = vdwg.mxu0
  %1471 = vmatprep.subr.mxu0 0.0
  %1472 = vmatpush1.msra.mxu0 %v694
  %1473 = vmatprep.subr.mxu0 0.0
  %1474 = vmatpush1.msra.mxu0 %v691
  %1475 = vmatprep.subr.mxu0 0.0
  %1476 = vmatpush1.msra.mxu0 %v688
  %1477 = vmatprep.subr.mxu0 0.0
  %1478 = vmatpush1.msra.mxu0 %v685
  %1479 = vmatprep.subr.mxu0 0.0
  %1480 = vmatpush1.msra.mxu0 %v682
  %1481 = vmatprep.subr.mxu0 0.0
  %1482 = vmatpush1.msra.mxu0 %v679
  %1483 = vmatprep.subr.mxu0 0.0
  %1484 = vmatpush1.msra.mxu0 %v676
  %1485 = vmatprep.subr.mxu0 0.0
  %1486 = vmatpush1.msra.mxu0 %v673
  %1487 = vmatprep.subr.mxu0 0.0
  %1488 = vmatpush1.msra.mxu0 %v670
  %1489 = vmatprep.subr.mxu0 0.0
  %1490 = vmatpush1.msra.mxu0 %v667
  %1491 = vmatprep.subr.mxu0 0.0
  %1492 = vmatpush1.msra.mxu0 %v664
  %1493 = vmatprep.subr.mxu0 0.0
  %1494 = vmatpush1.msra.mxu0 %v661
  %1495 = vmatprep.subr.mxu0 0.0
  %1496 = vmatpush1.msra.mxu0 %v658
  %1497 = vmatprep.subr.mxu0 0.0
  %1498 = vmatpush1.msra.mxu0 %v655
  %1499 = vmatprep.subr.mxu0 0.0
  %1500 = vmatpush1.msra.mxu0 %v652
  %1501 = vmatprep.subr.mxu0 0.0
  %1502 = vmatpush1.msra.mxu0 %v649
  %1503 = vmatprep.subr.mxu0 0.0
  %1504 = vmatpush2.msra.mxu0 %v742
  %1505 = vmatprep.subr.mxu0 0.0
  %1506 = vmatpush2.msra.mxu0 %v739
  %1507 = vmatprep.subr.mxu0 0.0
  %1508 = vmatpush2.msra.mxu0 %v736
  %1509 = vmatprep.subr.mxu0 0.0
  %1510 = vmatpush2.msra.mxu0 %v733
  %1511 = vmatprep.subr.mxu0 0.0
  %1512 = vmatpush2.msra.mxu0 %v730
  %1513 = vmatprep.subr.mxu0 0.0
  %1514 = vmatpush2.msra.mxu0 %v727
  %1515 = vmatprep.subr.mxu0 0.0
  %1516 = vmatpush2.msra.mxu0 %v724
  %1517 = vmatprep.subr.mxu0 0.0
  %1518 = vmatpush2.msra.mxu0 %v721
  %1519 = vmatprep.subr.mxu0 0.0
  %1520 = vmatpush2.msra.mxu0 %v718
  %1521 = vmatprep.subr.mxu0 0.0
  %1522 = vmatpush2.msra.mxu0 %v715
  %1523 = vmatprep.subr.mxu0 0.0
  %1524 = vmatpush2.msra.mxu0 %v712
  %1525 = vmatprep.subr.mxu0 0.0
  %1526 = vmatpush2.msra.mxu0 %v709
  %1527 = vmatprep.subr.mxu0 0.0
  %1528 = vmatpush2.msra.mxu0 %v706
  %1529 = vmatprep.subr.mxu0 0.0
  %1530 = vmatpush2.msra.mxu0 %v703
  %1531 = vmatprep.subr.mxu0 0.0
  %1532 = vmatpush2.msra.mxu0 %v700
  %1533 = vmatprep.subr.mxu0 0.0
  %1534 = vmatpush2.msra.mxu0 %v697
  %1535 = vmatprep.mubr.f32.mxu0 %v1384
  %1536 = vmatmul.mubr.f32.gmra.mxu0 %v1383
  %v1537 = vpop.f32.mrf.mxu0
  %v1538 = vadd.f32 0.0, %v1537
  %v1539 = vpop.f32.mrf.mxu0
  %1540 = vmatprep.mubr.f32.mxu0 %v1386
  %1541 = vmatmul.mubr.f32.gmra.mxu0 %v1385
  %v1542 = vpop.f32.mrf.mxu0
  %v1543 = vadd.f32 0.0, %v1542
  %v1544 = vpop.f32.mrf.mxu0
  %1545 = vdwg.mxu0
  %v1546 = vadd.f32 %v1388, %v1461
  %v1547 = vadd.f32 %v1391, %v1467
  %v1548 = vxor.u32 %v1546, 2147483648
  %v1549 = vxor.u32 %v1547, 2147483648
  %v1550 = vmul.f32 %v1548, 1.442695
  %v1551 = vpow.pop %v1550
  %v1552 = vmul.f32 %v1549, 1.442695
  %v1553 = vpow.pop %v1552
  %v1554 = vadd.f32 %v1551, 1.0
  %v1555 = vadd.f32 %v1553, 1.0
  %v1556 = vrcp.pop %v1554
  %v1557 = vmul.f32 1.0, %v1556
  %v1558 = vrcp.pop %v1555
  %v1559 = vmul.f32 1.0, %v1558
  %v1560 = vadd.f32 %v1389, %v1463
  %v1561 = vadd.f32 %v1392, %v1469
  %v1562 = vxor.u32 %v1560, 2147483648
  %v1563 = vxor.u32 %v1561, 2147483648
  %v1564 = vmul.f32 %v1562, 1.442695
  %v1565 = vpow.pop %v1564
  %v1566 = vmul.f32 %v1563, 1.442695
  %v1567 = vpow.pop %v1566
  %v1568 = vadd.f32 %v1565, 1.0
  %v1569 = vadd.f32 %v1567, 1.0
  %v1570 = vrcp.pop %v1568
  %v1571 = vmul.f32 1.0, %v1570
  %v1572 = vrcp.pop %v1569
  %v1573 = vmul.f32 1.0, %v1572
  %v1574 = vadd.f32 %v1538, %v743
  %v1575 = vadd.f32 %v1543, %v744
  %v1576 = vmul.f32 %v1557, %v1574
  %v1577 = vmul.f32 %v1559, %v1575
  %v1578 = vadd.f32 %v1390, %v1576
  %v1579 = vadd.f32 %v1393, %v1577
  %v1580 = vtanh.pop %v1578
  %v1581 = vtanh.pop %v1579
  %v1582 = vsub.f32 1.0, %v1571
  %v1583 = vsub.f32 1.0, %v1573
  %v1584 = vmul.f32 %v1582, %v1580
  %v1585 = vmul.f32 %v1583, %v1581
  %v1586 = vadd.f32 %v1383, %v1384
  %v1587 = vadd.f32 %v1385, %v1386
  %v1588 = vmul.f32 %v1571, %v1586
  %v1589 = vmul.f32 %v1573, %v1587
  %v1590 = vadd.f32 %v1584, %v1588
  %v1591 = vadd.f32 %v1585, %v1589
  %s1592 = scalar_lea.vmem [#allocation4], 24
  %1593 = vst [vmem:[%s1592] sm:$0xff] %v1590
  %1594 = vst [vmem:[#allocation5] sm:$0xff] %v1591
  %v1595 = vld [vmem:[#allocation4] sm:$0xff]
  %v1596 = vld [vmem:[#allocation4 + $0x8] sm:$0xff]
  %v1597 = vld [vmem:[#allocation4 + $0x10] sm:$0xff]
  %v1598 = vld [vmem:[#allocation4 + $0x18] sm:$0xff]
  %v1599 = vld [vmem:[#allocation5] sm:$0xff]
  %v1600 = vld [vmem:[#allocation5 + $0x8] sm:$0xff]
  %v1601 = vld [vmem:[#allocation5 + $0x10] sm:$0xff]
  %v1602 = vld [vmem:[#allocation5 + $0x18] sm:$0xff]
  %v1603 = vld [vmem:[%s1] sm:$0xff]
  %v1604 = vld [vmem:[%s1 + $0x8] sm:$0xff]
  %v1605 = vld [vmem:[%s1 + $0x10] sm:$0xff]
  %v1606 = vld [vmem:[%s1 + $0x18] sm:$0xff]
  %v1607 = vld [vmem:[%s9] sm:$0xff]
  %v1608 = vld [vmem:[%s9 + $0x8] sm:$0xff]
  %v1609 = vld [vmem:[%s9 + $0x10] sm:$0xff]
  %v1610 = vld [vmem:[%s9 + $0x18] sm:$0xff]
  %v1611 = vld [vmem:[%s9 + $0x20] sm:$0xff]
  %v1612 = vld [vmem:[%s9 + $0x28] sm:$0xff]
  %v1613 = vld [vmem:[%s9 + $0x30] sm:$0xff]
  %v1614 = vld [vmem:[%s9 + $0x38] sm:$0xff]
  %v1615 = vld [vmem:[%s9 + $0x40] sm:$0xff]
  %v1616 = vld [vmem:[%s9 + $0x48] sm:$0xff]
  %v1617 = vld [vmem:[%s9 + $0x50] sm:$0xff]
  %v1618 = vld [vmem:[%s9 + $0x58] sm:$0xff]
  %v1619 = vld [vmem:[%s9 + $0x60] sm:$0xff]
  %v1620 = vld [vmem:[%s9 + $0x68] sm:$0xff]
  %v1621 = vld [vmem:[%s9 + $0x70] sm:$0xff]
  %v1622 = vld [vmem:[%s9 + $0x78] sm:$0xff]
  %v1623 = vld [vmem:[%s9 + $0x80] sm:$0xff]
  %v1624 = vld [vmem:[%s9 + $0x88] sm:$0xff]
  %v1625 = vld [vmem:[%s9 + $0x90] sm:$0xff]
  %v1626 = vld [vmem:[%s9 + $0x98] sm:$0xff]
  %v1627 = vld [vmem:[%s9 + $0xa0] sm:$0xff]
  %v1628 = vld [vmem:[%s9 + $0xa8] sm:$0xff]
  %v1629 = vld [vmem:[%s9 + $0xb0] sm:$0xff]
  %v1630 = vld [vmem:[%s9 + $0xb8] sm:$0xff]
  %v1631 = vld [vmem:[%s9 + $0xc0] sm:$0xff]
  %v1632 = vld [vmem:[%s9 + $0xc8] sm:$0xff]
  %v1633 = vld [vmem:[%s9 + $0xd0] sm:$0xff]
  %v1634 = vld [vmem:[%s9 + $0xd8] sm:$0xff]
  %v1635 = vld [vmem:[%s9 + $0xe0] sm:$0xff]
  %v1636 = vld [vmem:[%s9 + $0xe8] sm:$0xff]
  %v1637 = vld [vmem:[%s9 + $0xf0] sm:$0xff]
  %v1638 = vld [vmem:[%s9 + $0xf8] sm:$0xff]
  %v1639 = vld [vmem:[%s9 + $0x100] sm:$0xff]
  %v1640 = vld [vmem:[%s9 + $0x108] sm:$0xff]
  %v1641 = vld [vmem:[%s9 + $0x110] sm:$0xff]
  %v1642 = vld [vmem:[%s9 + $0x118] sm:$0xff]
  %v1643 = vld [vmem:[%s9 + $0x120] sm:$0xff]
  %v1644 = vld [vmem:[%s9 + $0x128] sm:$0xff]
  %v1645 = vld [vmem:[%s9 + $0x130] sm:$0xff]
  %v1646 = vld [vmem:[%s9 + $0x138] sm:$0xff]
  %v1647 = vld [vmem:[%s9 + $0x140] sm:$0xff]
  %v1648 = vld [vmem:[%s9 + $0x148] sm:$0xff]
  %v1649 = vld [vmem:[%s9 + $0x150] sm:$0xff]
  %v1650 = vld [vmem:[%s9 + $0x158] sm:$0xff]
  %v1651 = vld [vmem:[%s9 + $0x160] sm:$0xff]
  %v1652 = vld [vmem:[%s9 + $0x168] sm:$0xff]
  %v1653 = vld [vmem:[%s9 + $0x170] sm:$0xff]
  %v1654 = vld [vmem:[%s9 + $0x178] sm:$0xff]
  %v1655 = vld [vmem:[%s9 + $0x180] sm:$0xff]
  %v1656 = vld [vmem:[%s9 + $0x188] sm:$0xff]
  %v1657 = vld [vmem:[%s9 + $0x190] sm:$0xff]
  %v1658 = vld [vmem:[%s9 + $0x198] sm:$0xff]
  %v1659 = vld [vmem:[%s9 + $0x1a0] sm:$0xff]
  %v1660 = vld [vmem:[%s9 + $0x1a8] sm:$0xff]
  %v1661 = vld [vmem:[%s9 + $0x1b0] sm:$0xff]
  %v1662 = vld [vmem:[%s9 + $0x1b8] sm:$0xff]
  %v1663 = vld [vmem:[%s9 + $0x1c0] sm:$0xff]
  %v1664 = vld [vmem:[%s9 + $0x1c8] sm:$0xff]
  %v1665 = vld [vmem:[%s9 + $0x1d0] sm:$0xff]
  %v1666 = vld [vmem:[%s9 + $0x1d8] sm:$0xff]
  %v1667 = vld [vmem:[%s9 + $0x1e0] sm:$0xff]
  %v1668 = vld [vmem:[%s9 + $0x1e8] sm:$0xff]
  %v1669 = vld [vmem:[%s9 + $0x1f0] sm:$0xff]
  %v1670 = vld [vmem:[%s9 + $0x1f8] sm:$0xff]
  %v1671 = vld [vmem:[%s9 + $0x200] sm:$0xff]
  %v1672 = vld [vmem:[%s9 + $0x208] sm:$0xff]
  %v1673 = vld [vmem:[%s9 + $0x210] sm:$0xff]
  %v1674 = vld [vmem:[%s9 + $0x218] sm:$0xff]
  %v1675 = vld [vmem:[%s9 + $0x220] sm:$0xff]
  %v1676 = vld [vmem:[%s9 + $0x228] sm:$0xff]
  %v1677 = vld [vmem:[%s9 + $0x230] sm:$0xff]
  %v1678 = vld [vmem:[%s9 + $0x238] sm:$0xff]
  %v1679 = vld [vmem:[%s9 + $0x240] sm:$0xff]
  %v1680 = vld [vmem:[%s9 + $0x248] sm:$0xff]
  %v1681 = vld [vmem:[%s9 + $0x250] sm:$0xff]
  %v1682 = vld [vmem:[%s9 + $0x258] sm:$0xff]
  %v1683 = vld [vmem:[%s9 + $0x260] sm:$0xff]
  %v1684 = vld [vmem:[%s9 + $0x268] sm:$0xff]
  %v1685 = vld [vmem:[%s9 + $0x270] sm:$0xff]
  %v1686 = vld [vmem:[%s9 + $0x278] sm:$0xff]
  %v1687 = vld [vmem:[%s9 + $0x280] sm:$0xff]
  %v1688 = vld [vmem:[%s9 + $0x288] sm:$0xff]
  %v1689 = vld [vmem:[%s9 + $0x290] sm:$0xff]
  %v1690 = vld [vmem:[%s9 + $0x298] sm:$0xff]
  %v1691 = vld [vmem:[%s9 + $0x2a0] sm:$0xff]
  %v1692 = vld [vmem:[%s9 + $0x2a8] sm:$0xff]
  %v1693 = vld [vmem:[%s9 + $0x2b0] sm:$0xff]
  %v1694 = vld [vmem:[%s9 + $0x2b8] sm:$0xff]
  %v1695 = vld [vmem:[%s9 + $0x2c0] sm:$0xff]
  %v1696 = vld [vmem:[%s9 + $0x2c8] sm:$0xff]
  %v1697 = vld [vmem:[%s9 + $0x2d0] sm:$0xff]
  %v1698 = vld [vmem:[%s9 + $0x2d8] sm:$0xff]
  %v1699 = vld [vmem:[%s9 + $0x2e0] sm:$0xff]
  %v1700 = vld [vmem:[%s9 + $0x2e8] sm:$0xff]
  %v1701 = vld [vmem:[%s9 + $0x2f0] sm:$0xff]
  %v1702 = vld [vmem:[%s9 + $0x2f8] sm:$0xff]
  %v1703 = vld [vmem:[%s9 + $0x300] sm:$0xff]
  %v1704 = vld [vmem:[%s9 + $0x308] sm:$0xff]
  %v1705 = vld [vmem:[%s9 + $0x310] sm:$0xff]
  %v1706 = vld [vmem:[%s9 + $0x318] sm:$0xff]
  %v1707 = vld [vmem:[%s9 + $0x320] sm:$0xff]
  %v1708 = vld [vmem:[%s9 + $0x328] sm:$0xff]
  %v1709 = vld [vmem:[%s9 + $0x330] sm:$0xff]
  %v1710 = vld [vmem:[%s9 + $0x338] sm:$0xff]
  %v1711 = vld [vmem:[%s9 + $0x340] sm:$0xff]
  %v1712 = vld [vmem:[%s9 + $0x348] sm:$0xff]
  %v1713 = vld [vmem:[%s9 + $0x350] sm:$0xff]
  %v1714 = vld [vmem:[%s9 + $0x358] sm:$0xff]
  %v1715 = vld [vmem:[%s9 + $0x360] sm:$0xff]
  %v1716 = vld [vmem:[%s9 + $0x368] sm:$0xff]
  %v1717 = vld [vmem:[%s9 + $0x370] sm:$0xff]
  %v1718 = vld [vmem:[%s9 + $0x378] sm:$0xff]
  %v1719 = vld [vmem:[%s9 + $0x380] sm:$0xff]
  %v1720 = vld [vmem:[%s9 + $0x388] sm:$0xff]
  %v1721 = vld [vmem:[%s9 + $0x390] sm:$0xff]
  %v1722 = vld [vmem:[%s9 + $0x398] sm:$0xff]
  %v1723 = vld [vmem:[%s9 + $0x3a0] sm:$0xff]
  %v1724 = vld [vmem:[%s9 + $0x3a8] sm:$0xff]
  %v1725 = vld [vmem:[%s9 + $0x3b0] sm:$0xff]
  %v1726 = vld [vmem:[%s9 + $0x3b8] sm:$0xff]
  %v1727 = vld [vmem:[%s9 + $0x3c0] sm:$0xff]
  %v1728 = vld [vmem:[%s9 + $0x3c8] sm:$0xff]
  %v1729 = vld [vmem:[%s9 + $0x3d0] sm:$0xff]
  %v1730 = vld [vmem:[%s9 + $0x3d8] sm:$0xff]
  %v1731 = vld [vmem:[%s9 + $0x3e0] sm:$0xff]
  %v1732 = vld [vmem:[%s9 + $0x3e8] sm:$0xff]
  %v1733 = vld [vmem:[%s9 + $0x3f0] sm:$0xff]
  %v1734 = vld [vmem:[%s9 + $0x3f8] sm:$0xff]
  %v1735 = vld [vmem:[%s9 + $0x400] sm:$0xff]
  %v1736 = vld [vmem:[%s9 + $0x408] sm:$0xff]
  %v1737 = vld [vmem:[%s9 + $0x410] sm:$0xff]
  %v1738 = vld [vmem:[%s9 + $0x418] sm:$0xff]
  %v1739 = vld [vmem:[%s9 + $0x420] sm:$0xff]
  %v1740 = vld [vmem:[%s9 + $0x428] sm:$0xff]
  %v1741 = vld [vmem:[%s9 + $0x430] sm:$0xff]
  %v1742 = vld [vmem:[%s9 + $0x438] sm:$0xff]
  %v1743 = vld [vmem:[%s9 + $0x440] sm:$0xff]
  %v1744 = vld [vmem:[%s9 + $0x448] sm:$0xff]
  %v1745 = vld [vmem:[%s9 + $0x450] sm:$0xff]
  %v1746 = vld [vmem:[%s9 + $0x458] sm:$0xff]
  %v1747 = vld [vmem:[%s9 + $0x460] sm:$0xff]
  %v1748 = vld [vmem:[%s9 + $0x468] sm:$0xff]
  %v1749 = vld [vmem:[%s9 + $0x470] sm:$0xff]
  %v1750 = vld [vmem:[%s9 + $0x478] sm:$0xff]
  %v1751 = vld [vmem:[%s10] sm:$0x7]
  %v1752 = vld [vmem:[%s11] sm:$0x7]
  %1753 = vmatprep.subr.mxu0 %v1653
  %1754 = vmatpush1.msra.mxu0 %v1652
  %1755 = vmatprep.subr.mxu0 %v1650
  %1756 = vmatpush1.msra.mxu0 %v1649
  %1757 = vmatprep.subr.mxu0 %v1647
  %1758 = vmatpush1.msra.mxu0 %v1646
  %1759 = vmatprep.subr.mxu0 %v1644
  %1760 = vmatpush1.msra.mxu0 %v1643
  %1761 = vmatprep.subr.mxu0 %v1641
  %1762 = vmatpush1.msra.mxu0 %v1640
  %1763 = vmatprep.subr.mxu0 %v1638
  %1764 = vmatpush1.msra.mxu0 %v1637
  %1765 = vmatprep.subr.mxu0 %v1635
  %1766 = vmatpush1.msra.mxu0 %v1634
  %1767 = vmatprep.subr.mxu0 %v1632
  %1768 = vmatpush1.msra.mxu0 %v1631
  %1769 = vmatprep.subr.mxu0 %v1629
  %1770 = vmatpush1.msra.mxu0 %v1628
  %1771 = vmatprep.subr.mxu0 %v1626
  %1772 = vmatpush1.msra.mxu0 %v1625
  %1773 = vmatprep.subr.mxu0 %v1623
  %1774 = vmatpush1.msra.mxu0 %v1622
  %1775 = vmatprep.subr.mxu0 %v1620
  %1776 = vmatpush1.msra.mxu0 %v1619
  %1777 = vmatprep.subr.mxu0 %v1617
  %1778 = vmatpush1.msra.mxu0 %v1616
  %1779 = vmatprep.subr.mxu0 %v1614
  %1780 = vmatpush1.msra.mxu0 %v1613
  %1781 = vmatprep.subr.mxu0 %v1611
  %1782 = vmatpush1.msra.mxu0 %v1610
  %1783 = vmatprep.subr.mxu0 %v1608
  %1784 = vmatpush1.msra.mxu0 %v1607
  %1785 = vmatprep.subr.mxu0 %v1701
  %1786 = vmatpush2.msra.mxu0 %v1700
  %1787 = vmatprep.subr.mxu0 %v1698
  %1788 = vmatpush2.msra.mxu0 %v1697
  %1789 = vmatprep.subr.mxu0 %v1695
  %1790 = vmatpush2.msra.mxu0 %v1694
  %1791 = vmatprep.subr.mxu0 %v1692
  %1792 = vmatpush2.msra.mxu0 %v1691
  %1793 = vmatprep.subr.mxu0 %v1689
  %1794 = vmatpush2.msra.mxu0 %v1688
  %1795 = vmatprep.subr.mxu0 %v1686
  %1796 = vmatpush2.msra.mxu0 %v1685
  %1797 = vmatprep.subr.mxu0 %v1683
  %1798 = vmatpush2.msra.mxu0 %v1682
  %1799 = vmatprep.subr.mxu0 %v1680
  %1800 = vmatpush2.msra.mxu0 %v1679
  %1801 = vmatprep.subr.mxu0 %v1677
  %1802 = vmatpush2.msra.mxu0 %v1676
  %1803 = vmatprep.subr.mxu0 %v1674
  %1804 = vmatpush2.msra.mxu0 %v1673
  %1805 = vmatprep.subr.mxu0 %v1671
  %1806 = vmatpush2.msra.mxu0 %v1670
  %1807 = vmatprep.subr.mxu0 %v1668
  %1808 = vmatpush2.msra.mxu0 %v1667
  %1809 = vmatprep.subr.mxu0 %v1665
  %1810 = vmatpush2.msra.mxu0 %v1664
  %1811 = vmatprep.subr.mxu0 %v1662
  %1812 = vmatpush2.msra.mxu0 %v1661
  %1813 = vmatprep.subr.mxu0 %v1659
  %1814 = vmatpush2.msra.mxu0 %v1658
  %1815 = vmatprep.subr.mxu0 %v1656
  %1816 = vmatpush2.msra.mxu0 %v1655
  %1817 = vmatprep.mubr.f32.mxu0 %v1599
  %1818 = vmatmul.mubr.f32.gmra.mxu0 %v1595
  %v1819 = vpop.f32.mrf.mxu0
  %v1820 = vadd.f32 0.0, %v1819
  %v1821 = vpop.f32.mrf.mxu0
  %v1822 = vadd.f32 0.0, %v1821
  %1823 = vmatprep.mubr.f32.mxu0 %v1600
  %1824 = vmatmul.mubr.f32.gmra.mxu0 %v1596
  %v1825 = vpop.f32.mrf.mxu0
  %v1826 = vadd.f32 0.0, %v1825
  %v1827 = vpop.f32.mrf.mxu0
  %v1828 = vadd.f32 0.0, %v1827
  %1829 = vmatprep.mubr.f32.mxu0 %v1601
  %1830 = vmatmul.mubr.f32.gmra.mxu0 %v1597
  %v1831 = vpop.f32.mrf.mxu0
  %v1832 = vadd.f32 0.0, %v1831
  %v1833 = vpop.f32.mrf.mxu0
  %v1834 = vadd.f32 0.0, %v1833
  %1835 = vmatprep.mubr.f32.mxu0 %v1602
  %1836 = vmatmul.mubr.f32.gmra.mxu0 %v1598
  %v1837 = vpop.f32.mrf.mxu0
  %v1838 = vadd.f32 0.0, %v1837
  %v1839 = vpop.f32.mrf.mxu0
  %v1840 = vadd.f32 0.0, %v1839
  %1841 = vdwg.mxu0
  %1842 = vmatprep.subr.mxu0 %v1749
  %1843 = vmatpush1.msra.mxu0 %v1748
  %1844 = vmatprep.subr.mxu0 %v1746
  %1845 = vmatpush1.msra.mxu0 %v1745
  %1846 = vmatprep.subr.mxu0 %v1743
  %1847 = vmatpush1.msra.mxu0 %v1742
  %1848 = vmatprep.subr.mxu0 %v1740
  %1849 = vmatpush1.msra.mxu0 %v1739
  %1850 = vmatprep.subr.mxu0 %v1737
  %1851 = vmatpush1.msra.mxu0 %v1736
  %1852 = vmatprep.subr.mxu0 %v1734
  %1853 = vmatpush1.msra.mxu0 %v1733
  %1854 = vmatprep.subr.mxu0 %v1731
  %1855 = vmatpush1.msra.mxu0 %v1730
  %1856 = vmatprep.subr.mxu0 %v1728
  %1857 = vmatpush1.msra.mxu0 %v1727
  %1858 = vmatprep.subr.mxu0 %v1725
  %1859 = vmatpush1.msra.mxu0 %v1724
  %1860 = vmatprep.subr.mxu0 %v1722
  %1861 = vmatpush1.msra.mxu0 %v1721
  %1862 = vmatprep.subr.mxu0 %v1719
  %1863 = vmatpush1.msra.mxu0 %v1718
  %1864 = vmatprep.subr.mxu0 %v1716
  %1865 = vmatpush1.msra.mxu0 %v1715
  %1866 = vmatprep.subr.mxu0 %v1713
  %1867 = vmatpush1.msra.mxu0 %v1712
  %1868 = vmatprep.subr.mxu0 %v1710
  %1869 = vmatpush1.msra.mxu0 %v1709
  %1870 = vmatprep.subr.mxu0 %v1707
  %1871 = vmatpush1.msra.mxu0 %v1706
  %1872 = vmatprep.subr.mxu0 %v1704
  %1873 = vmatpush1.msra.mxu0 %v1703
  %1874 = vmatprep.subr.mxu0 0.0
  %1875 = vmatpush2.msra.mxu0 0.0
  %1876 = vmatprep.subr.mxu0 0.0
  %1877 = vmatpush2.msra.mxu0 0.0
  %1878 = vmatprep.subr.mxu0 0.0
  %1879 = vmatpush2.msra.mxu0 0.0
  %1880 = vmatprep.subr.mxu0 0.0
  %1881 = vmatpush2.msra.mxu0 0.0
  %1882 = vmatprep.subr.mxu0 0.0
  %1883 = vmatpush2.msra.mxu0 0.0
  %1884 = vmatprep.subr.mxu0 0.0
  %1885 = vmatpush2.msra.mxu0 0.0
  %1886 = vmatprep.subr.mxu0 0.0
  %1887 = vmatpush2.msra.mxu0 0.0
  %1888 = vmatprep.subr.mxu0 0.0
  %1889 = vmatpush2.msra.mxu0 0.0
  %1890 = vmatprep.subr.mxu0 0.0
  %1891 = vmatpush2.msra.mxu0 0.0
  %1892 = vmatprep.subr.mxu0 0.0
  %1893 = vmatpush2.msra.mxu0 0.0
  %1894 = vmatprep.subr.mxu0 0.0
  %1895 = vmatpush2.msra.mxu0 0.0
  %1896 = vmatprep.subr.mxu0 0.0
  %1897 = vmatpush2.msra.mxu0 0.0
  %1898 = vmatprep.subr.mxu0 0.0
  %1899 = vmatpush2.msra.mxu0 0.0
  %1900 = vmatprep.subr.mxu0 0.0
  %1901 = vmatpush2.msra.mxu0 0.0
  %1902 = vmatprep.subr.mxu0 0.0
  %1903 = vmatpush2.msra.mxu0 0.0
  %1904 = vmatprep.subr.mxu0 0.0
  %1905 = vmatpush2.msra.mxu0 0.0
  %1906 = vmatprep.mubr.f32.mxu0 0.0
  %1907 = vmatmul.mubr.f32.gmra.mxu0 %v1603
  %v1908 = vpop.f32.mrf.mxu0
  %v1909 = vadd.f32 %v1820, %v1908
  %v1910 = vpop.f32.mrf.mxu0
  %v1911 = vadd.f32 %v1822, %v1910
  %1912 = vmatprep.mubr.f32.mxu0 0.0
  %1913 = vmatmul.mubr.f32.gmra.mxu0 %v1604
  %v1914 = vpop.f32.mrf.mxu0
  %v1915 = vadd.f32 %v1826, %v1914
  %v1916 = vpop.f32.mrf.mxu0
  %v1917 = vadd.f32 %v1828, %v1916
  %1918 = vmatprep.mubr.f32.mxu0 0.0
  %1919 = vmatmul.mubr.f32.gmra.mxu0 %v1605
  %v1920 = vpop.f32.mrf.mxu0
  %v1921 = vadd.f32 %v1832, %v1920
  %v1922 = vpop.f32.mrf.mxu0
  %v1923 = vadd.f32 %v1834, %v1922
  %1924 = vmatprep.mubr.f32.mxu0 0.0
  %1925 = vmatmul.mubr.f32.gmra.mxu0 %v1606
  %v1926 = vpop.f32.mrf.mxu0
  %v1927 = vadd.f32 %v1838, %v1926
  %v1928 = vpop.f32.mrf.mxu0
  %v1929 = vadd.f32 %v1840, %v1928
  %1930 = vdwg.mxu0
  %1931 = vmatprep.subr.mxu0 0.0
  %1932 = vmatpush1.msra.mxu0 %v1654
  %1933 = vmatprep.subr.mxu0 0.0
  %1934 = vmatpush1.msra.mxu0 %v1651
  %1935 = vmatprep.subr.mxu0 0.0
  %1936 = vmatpush1.msra.mxu0 %v1648
  %1937 = vmatprep.subr.mxu0 0.0
  %1938 = vmatpush1.msra.mxu0 %v1645
  %1939 = vmatprep.subr.mxu0 0.0
  %1940 = vmatpush1.msra.mxu0 %v1642
  %1941 = vmatprep.subr.mxu0 0.0
  %1942 = vmatpush1.msra.mxu0 %v1639
  %1943 = vmatprep.subr.mxu0 0.0
  %1944 = vmatpush1.msra.mxu0 %v1636
  %1945 = vmatprep.subr.mxu0 0.0
  %1946 = vmatpush1.msra.mxu0 %v1633
  %1947 = vmatprep.subr.mxu0 0.0
  %1948 = vmatpush1.msra.mxu0 %v1630
  %1949 = vmatprep.subr.mxu0 0.0
  %1950 = vmatpush1.msra.mxu0 %v1627
  %1951 = vmatprep.subr.mxu0 0.0
  %1952 = vmatpush1.msra.mxu0 %v1624
  %1953 = vmatprep.subr.mxu0 0.0
  %1954 = vmatpush1.msra.mxu0 %v1621
  %1955 = vmatprep.subr.mxu0 0.0
  %1956 = vmatpush1.msra.mxu0 %v1618
  %1957 = vmatprep.subr.mxu0 0.0
  %1958 = vmatpush1.msra.mxu0 %v1615
  %1959 = vmatprep.subr.mxu0 0.0
  %1960 = vmatpush1.msra.mxu0 %v1612
  %1961 = vmatprep.subr.mxu0 0.0
  %1962 = vmatpush1.msra.mxu0 %v1609
  %1963 = vmatprep.subr.mxu0 0.0
  %1964 = vmatpush2.msra.mxu0 %v1702
  %1965 = vmatprep.subr.mxu0 0.0
  %1966 = vmatpush2.msra.mxu0 %v1699
  %1967 = vmatprep.subr.mxu0 0.0
  %1968 = vmatpush2.msra.mxu0 %v1696
  %1969 = vmatprep.subr.mxu0 0.0
  %1970 = vmatpush2.msra.mxu0 %v1693
  %1971 = vmatprep.subr.mxu0 0.0
  %1972 = vmatpush2.msra.mxu0 %v1690
  %1973 = vmatprep.subr.mxu0 0.0
  %1974 = vmatpush2.msra.mxu0 %v1687
  %1975 = vmatprep.subr.mxu0 0.0
  %1976 = vmatpush2.msra.mxu0 %v1684
  %1977 = vmatprep.subr.mxu0 0.0
  %1978 = vmatpush2.msra.mxu0 %v1681
  %1979 = vmatprep.subr.mxu0 0.0
  %1980 = vmatpush2.msra.mxu0 %v1678
  %1981 = vmatprep.subr.mxu0 0.0
  %1982 = vmatpush2.msra.mxu0 %v1675
  %1983 = vmatprep.subr.mxu0 0.0
  %1984 = vmatpush2.msra.mxu0 %v1672
  %1985 = vmatprep.subr.mxu0 0.0
  %1986 = vmatpush2.msra.mxu0 %v1669
  %1987 = vmatprep.subr.mxu0 0.0
  %1988 = vmatpush2.msra.mxu0 %v1666
  %1989 = vmatprep.subr.mxu0 0.0
  %1990 = vmatpush2.msra.mxu0 %v1663
  %1991 = vmatprep.subr.mxu0 0.0
  %1992 = vmatpush2.msra.mxu0 %v1660
  %1993 = vmatprep.subr.mxu0 0.0
  %1994 = vmatpush2.msra.mxu0 %v1657
  %1995 = vmatprep.mubr.f32.mxu0 %v1599
  %1996 = vmatmul.mubr.f32.gmra.mxu0 %v1595
  %v1997 = vpop.f32.mrf.mxu0
  %v1998 = vadd.f32 0.0, %v1997
  %v1999 = vpop.f32.mrf.mxu0
  %2000 = vmatprep.mubr.f32.mxu0 %v1600
  %2001 = vmatmul.mubr.f32.gmra.mxu0 %v1596
  %v2002 = vpop.f32.mrf.mxu0
  %v2003 = vadd.f32 0.0, %v2002
  %v2004 = vpop.f32.mrf.mxu0
  %2005 = vmatprep.mubr.f32.mxu0 %v1601
  %2006 = vmatmul.mubr.f32.gmra.mxu0 %v1597
  %v2007 = vpop.f32.mrf.mxu0
  %v2008 = vadd.f32 0.0, %v2007
  %v2009 = vpop.f32.mrf.mxu0
  %2010 = vmatprep.mubr.f32.mxu0 %v1602
  %2011 = vmatmul.mubr.f32.gmra.mxu0 %v1598
  %v2012 = vpop.f32.mrf.mxu0
  %v2013 = vadd.f32 0.0, %v2012
  %v2014 = vpop.f32.mrf.mxu0
  %2015 = vdwg.mxu0
  %2016 = vmatprep.subr.mxu0 0.0
  %2017 = vmatpush1.msra.mxu0 %v1750
  %2018 = vmatprep.subr.mxu0 0.0
  %2019 = vmatpush1.msra.mxu0 %v1747
  %2020 = vmatprep.subr.mxu0 0.0
  %2021 = vmatpush1.msra.mxu0 %v1744
  %2022 = vmatprep.subr.mxu0 0.0
  %2023 = vmatpush1.msra.mxu0 %v1741
  %2024 = vmatprep.subr.mxu0 0.0
  %2025 = vmatpush1.msra.mxu0 %v1738
  %2026 = vmatprep.subr.mxu0 0.0
  %2027 = vmatpush1.msra.mxu0 %v1735
  %2028 = vmatprep.subr.mxu0 0.0
  %2029 = vmatpush1.msra.mxu0 %v1732
  %2030 = vmatprep.subr.mxu0 0.0
  %2031 = vmatpush1.msra.mxu0 %v1729
  %2032 = vmatprep.subr.mxu0 0.0
  %2033 = vmatpush1.msra.mxu0 %v1726
  %2034 = vmatprep.subr.mxu0 0.0
  %2035 = vmatpush1.msra.mxu0 %v1723
  %2036 = vmatprep.subr.mxu0 0.0
  %2037 = vmatpush1.msra.mxu0 %v1720
  %2038 = vmatprep.subr.mxu0 0.0
  %2039 = vmatpush1.msra.mxu0 %v1717
  %2040 = vmatprep.subr.mxu0 0.0
  %2041 = vmatpush1.msra.mxu0 %v1714
  %2042 = vmatprep.subr.mxu0 0.0
  %2043 = vmatpush1.msra.mxu0 %v1711
  %2044 = vmatprep.subr.mxu0 0.0
  %2045 = vmatpush1.msra.mxu0 %v1708
  %2046 = vmatprep.subr.mxu0 0.0
  %2047 = vmatpush1.msra.mxu0 %v1705
  %2048 = vmatprep.subr.mxu0 0.0
  %2049 = vmatpush2.msra.mxu0 0.0
  %2050 = vmatprep.subr.mxu0 0.0
  %2051 = vmatpush2.msra.mxu0 0.0
  %2052 = vmatprep.subr.mxu0 0.0
  %2053 = vmatpush2.msra.mxu0 0.0
  %2054 = vmatprep.subr.mxu0 0.0
  %2055 = vmatpush2.msra.mxu0 0.0
  %2056 = vmatprep.subr.mxu0 0.0
  %2057 = vmatpush2.msra.mxu0 0.0
  %2058 = vmatprep.subr.mxu0 0.0
  %2059 = vmatpush2.msra.mxu0 0.0
  %2060 = vmatprep.subr.mxu0 0.0
  %2061 = vmatpush2.msra.mxu0 0.0
  %2062 = vmatprep.subr.mxu0 0.0
  %2063 = vmatpush2.msra.mxu0 0.0
  %2064 = vmatprep.subr.mxu0 0.0
  %2065 = vmatpush2.msra.mxu0 0.0
  %2066 = vmatprep.subr.mxu0 0.0
  %2067 = vmatpush2.msra.mxu0 0.0
  %2068 = vmatprep.subr.mxu0 0.0
  %2069 = vmatpush2.msra.mxu0 0.0
  %2070 = vmatprep.subr.mxu0 0.0
  %2071 = vmatpush2.msra.mxu0 0.0
  %2072 = vmatprep.subr.mxu0 0.0
  %2073 = vmatpush2.msra.mxu0 0.0
  %2074 = vmatprep.subr.mxu0 0.0
  %2075 = vmatpush2.msra.mxu0 0.0
  %2076 = vmatprep.subr.mxu0 0.0
  %2077 = vmatpush2.msra.mxu0 0.0
  %2078 = vmatprep.subr.mxu0 0.0
  %2079 = vmatpush2.msra.mxu0 0.0
  %2080 = vmatprep.mubr.f32.mxu0 0.0
  %2081 = vmatmul.mubr.f32.gmra.mxu0 %v1603
  %v2082 = vpop.f32.mrf.mxu0
  %v2083 = vadd.f32 %v1998, %v2082
  %v2084 = vpop.f32.mrf.mxu0
  %2085 = vmatprep.mubr.f32.mxu0 0.0
  %2086 = vmatmul.mubr.f32.gmra.mxu0 %v1604
  %v2087 = vpop.f32.mrf.mxu0
  %v2088 = vadd.f32 %v2003, %v2087
  %v2089 = vpop.f32.mrf.mxu0
  %2090 = vmatprep.mubr.f32.mxu0 0.0
  %2091 = vmatmul.mubr.f32.gmra.mxu0 %v1605
  %v2092 = vpop.f32.mrf.mxu0
  %v2093 = vadd.f32 %v2008, %v2092
  %v2094 = vpop.f32.mrf.mxu0
  %2095 = vmatprep.mubr.f32.mxu0 0.0
  %2096 = vmatmul.mubr.f32.gmra.mxu0 %v1606
  %v2097 = vpop.f32.mrf.mxu0
  %v2098 = vadd.f32 %v2013, %v2097
  %v2099 = vpop.f32.mrf.mxu0
  %2100 = vdwg.mxu0
  %v2102 = vlaneseq
  %v2103 = vshrl.u32 %v2102, 7
  %v2104 = vsub.s32 0, %v2103
  %v2105 = vrot.slane %v1751, %v2104
  %v2106 = vlaneseq
  %v2107 = vshrl.u32 %v2106, 7
  %v2108 = vsub.s32 1, %v2107
  %v2109 = vrot.slane %v1751, %v2108
  %v2110 = vlaneseq
  %v2111 = vshrl.u32 %v2110, 7
  %v2112 = vsub.s32 2, %v2111
  %v2113 = vrot.slane %v1751, %v2112
  %v2117 = vadd.f32 %v1909, %v2105
  %v2118 = vadd.f32 %v1911, %v2109
  %v2119 = vadd.f32 %v2083, %v2113
  %v2120 = vadd.f32 %v1915, %v2105
  %v2121 = vadd.f32 %v1917, %v2109
  %v2122 = vadd.f32 %v2088, %v2113
  %v2123 = vadd.f32 %v1921, %v2105
  %v2124 = vadd.f32 %v1923, %v2109
  %v2125 = vadd.f32 %v2093, %v2113
  %v2126 = vadd.f32 %v1927, %v2105
  %v2127 = vadd.f32 %v1929, %v2109
  %v2128 = vadd.f32 %v2098, %v2113
  %v2129 = vtanh.pop %v2117
  %v2130 = vtanh.pop %v2118
  %v2131 = vtanh.pop %v2119
  %v2132 = vtanh.pop %v2120
  %v2133 = vtanh.pop %v2121
  %v2134 = vtanh.pop %v2122
  %v2135 = vtanh.pop %v2123
  %v2136 = vtanh.pop %v2124
  %v2137 = vtanh.pop %v2125
  %v2138 = vtanh.pop %v2126
  %v2139 = vtanh.pop %v2127
  %v2140 = vtanh.pop %v2128
  %v2142 = vlaneseq
  %v2143 = vshrl.u32 %v2142, 7
  %v2144 = vsub.s32 0, %v2143
  %v2145 = vrot.slane %v1752, %v2144
  %v2146 = vlaneseq
  %v2147 = vshrl.u32 %v2146, 7
  %v2148 = vsub.s32 1, %v2147
  %v2149 = vrot.slane %v1752, %v2148
  %v2150 = vlaneseq
  %v2151 = vshrl.u32 %v2150, 7
  %v2152 = vsub.s32 2, %v2151
  %v2153 = vrot.slane %v1752, %v2152
  %v2157 = vmul.f32 %v2129, %v2145
  %v2158 = vmul.f32 %v2130, %v2149
  %v2159 = vmul.f32 %v2131, %v2153
  %v2160 = vmul.f32 %v2132, %v2145
  %v2161 = vmul.f32 %v2133, %v2149
  %v2162 = vmul.f32 %v2134, %v2153
  %v2163 = vmul.f32 %v2135, %v2145
  %v2164 = vmul.f32 %v2136, %v2149
  %v2165 = vmul.f32 %v2137, %v2153
  %v2166 = vmul.f32 %v2138, %v2145
  %v2167 = vmul.f32 %v2139, %v2149
  %v2168 = vmul.f32 %v2140, %v2153
  %v2169 = vadd.f32 %v2157, %v2158
  %v2170 = vadd.f32 %v2169, %v2159
  %2171 = vadd.xlane.f32.xlu0 %v2170
  %v2172 = vpop.xlane.xlu0 %2171
  %v2173 = vadd.f32 %v2160, %v2161
  %v2174 = vadd.f32 %v2173, %v2162
  %2175 = vadd.xlane.f32.xlu0 %v2174
  %v2176 = vpop.xlane.xlu0 %2175
  %v2177 = vadd.f32 %v2163, %v2164
  %v2178 = vadd.f32 %v2177, %v2165
  %2179 = vadd.xlane.f32.xlu0 %v2178
  %v2180 = vpop.xlane.xlu0 %2179
  %v2181 = vadd.f32 %v2166, %v2167
  %v2182 = vadd.f32 %v2181, %v2168
  %2183 = vadd.xlane.f32.xlu0 %v2182
  %v2184 = vpop.xlane.xlu0 %2183
  %v2185 = vmax.f32 %v2172, %v2176
  %v2186 = vmax.f32 %v2180, %v2184
  %v2187 = vmax.f32 %v2185, %v2186
  %v2188 = vsub.f32 %v2172, %v2187
  %v2189 = vsub.f32 %v2176, %v2187
  %v2190 = vsub.f32 %v2180, %v2187
  %v2191 = vsub.f32 %v2184, %v2187
  %v2192 = vmul.f32 %v2188, 1.442695
  %v2193 = vpow.pop %v2192
  %v2194 = vmul.f32 %v2189, 1.442695
  %v2195 = vpow.pop %v2194
  %v2196 = vmul.f32 %v2190, 1.442695
  %v2197 = vpow.pop %v2196
  %v2198 = vmul.f32 %v2191, 1.442695
  %v2199 = vpow.pop %v2198
  %v2200 = vadd.f32 %v2193, %v2195
  %v2201 = vadd.f32 %v2200, %v2197
  %v2202 = vadd.f32 %v2201, %v2199
  %v2203 = vrcp.pop %v2202
  %v2204 = vmul.f32 %v2193, %v2203
  %v2205 = vmul.f32 %v2195, %v2203
  %v2206 = vmul.f32 %v2197, %v2203
  %v2207 = vmul.f32 %v2199, %v2203
  %v2208 = vmul.f32 %v2204, %v1595
  %v2209 = vmul.f32 %v2204, %v1599
  %v2210 = vmul.f32 %v2204, %v1603
  %v2211 = vmul.f32 %v2205, %v1596
  %v2212 = vmul.f32 %v2205, %v1600
  %v2213 = vmul.f32 %v2205, %v1604
  %v2214 = vmul.f32 %v2206, %v1597
  %v2215 = vmul.f32 %v2206, %v1601
  %v2216 = vmul.f32 %v2206, %v1605
  %v2217 = vmul.f32 %v2207, %v1598
  %v2218 = vmul.f32 %v2207, %v1602
  %v2219 = vmul.f32 %v2207, %v1606
  %v2220 = vadd.f32 %v2208, %v2211
  %v2221 = vadd.f32 %v2220, %v2214
  %v2222 = vadd.f32 %v2221, %v2217
  %v2223 = vadd.f32 %v2209, %v2212
  %v2224 = vadd.f32 %v2223, %v2215
  %v2225 = vadd.f32 %v2224, %v2218
  %v2226 = vadd.f32 %v2210, %v2213
  %v2227 = vadd.f32 %v2226, %v2216
  %v2228 = vadd.f32 %v2227, %v2219
  %2229 = vst [vmem:[%s12] sm:$0xff] %v2222
  %2230 = vst [vmem:[%s12 + $0x8] sm:$0xff] %v2225
  %2231 = vst [vmem:[%s12 + $0x10] sm:$0xff] %v2228
  // Predicated region
  $region50: #{hier_attn_net_forward.3} parent=0 // pred_check
    _
  $region51: #{hier_attn_net_forward.3} parent=0 // pred_check_branch
    %2233 = sbr.rel (0) target = $region53
  $region52: #{hier_attn_net_forward.3} parent=0 // pred_region
    _
  $region53: #{hier_attn_net_forward.3} parent=0 // pred_fallthru
    _
  // Predicated region
  $region54: #{hier_attn_net_forward.3} parent=0 // pred_check
    _
  $region55: #{hier_attn_net_forward.3} parent=0 // pred_check_branch
    %2235 = sbr.rel (0) target = $region57
  $region56: #{hier_attn_net_forward.3} parent=0 // pred_region
    _
  $region57: #{hier_attn_net_forward.3} parent=0 // pred_fallthru
    _

</llo_original>
